<compile_context>
chip_gen: v5e
topology: v5e:2x2
jax: 0.10.0
libtpu: 0.0.40
codegen_flags: <defaults>
</compile_context>

<pallas_src>
import functools

import jax
import jax.numpy as jnp
from jax.experimental import pallas as pl
from jax.experimental.pallas import tpu as pltpu

N_EMBED = 384                     # n_embed in the PyTorch module
BLOCK_SIZE = 256                  # max sequence length (tril buffer size)
N_HEAD = 6
HEAD_SIZE = N_EMBED // N_HEAD     # 64


def _mha_heads_kernel(x_ref, wqkv_ref, o_ref, *, n_head, head_size, q_tile):
    # x_ref:    (1, T, C)  f32  -- cast to bf16 in-kernel (no wrapper-side pass)
    # wqkv_ref: (C, 3*D)   bf16, D = n_head*head_size, layout [Wq*scale | Wk | Wv]
    # o_ref:    (1, T, D)  bf16 (lane-dense: D = 384 = 3 x 128 lanes)
    x = x_ref[0].astype(jnp.bfloat16)                  # (T, C) VPU cast
    w = wqkv_ref[...]                                  # (C, 3D)
    T = x.shape[0]
    D = n_head * head_size

    # One fused QKV projection for all heads (full-width MXU), f32 accumulation.
    # The torch C**-0.5 scale (C = n_embed) is already folded into the Wq columns.
    qkv = jnp.dot(x, w, preferred_element_type=jnp.float32)        # (T, 3D) f32
    q = qkv[:, :D].astype(jnp.bfloat16)                            # (T, D)
    k = qkv[:, D:2 * D].astype(jnp.bfloat16)                       # (T, D)
    v = qkv[:, 2 * D:].astype(jnp.bfloat16)                        # (T, D)

    # Hoist the 64-lane head column slices out of the q-tile loop (they cross the
    # 128-lane vreg tile and materialize copies; do them once, not per tile).
    q_heads = [q[:, h * head_size:(h + 1) * head_size] for h in range(n_head)]
    k_heads = [k[:, h * head_size:(h + 1) * head_size] for h in range(n_head)]
    v_heads = [v[:, h * head_size:(h + 1) * head_size] for h in range(n_head)]

    n_q_tiles = T // q_tile
    for qt in range(n_q_tiles):                        # static, unrolled q tiling
        q_lo = qt * q_tile
        kv_len = q_lo + q_tile                         # causal: later key blocks skipped

        # causal mask for this (q_tile, kv_len) tile, shared by all heads.
        # Every row keeps its own diagonal -> no fully-masked rows (no NaNs).
        row = jax.lax.broadcasted_iota(jnp.int32, (q_tile, kv_len), 0) + q_lo
        col = jax.lax.broadcasted_iota(jnp.int32, (q_tile, kv_len), 1)
        keep = row >= col

        for pair in range(n_head // 2):                # 2 heads = 128 aligned lanes
            pair_out = []
            for h in (2 * pair, 2 * pair + 1):
                qh = q_heads[h][q_lo:q_lo + q_tile]    # (q_tile, H)
                kh = k_heads[h][:kv_len]               # (kv_len, H)
                vh = v_heads[h][:kv_len]               # (kv_len, H)

                # scores = q @ k^T (contract head dim; no explicit transpose)
                s = jax.lax.dot_general(
                    qh, kh, (((1,), (1,)), ((), ())),
                    preferred_element_type=jnp.float32)            # (q_tile, kv_len)
                s = jnp.where(keep, s, -jnp.inf)

                # numerically-stable softmax with DEFERRED normalization:
                # un-normalized probs (in (0,1]) feed the PV matmul in bf16, and
                # the small (q_tile, H) f32 result is scaled afterwards.
                m = jnp.max(s, axis=-1, keepdims=True)
                p = jnp.exp(s - m)
                denom = jnp.sum(p, axis=-1, keepdims=True)
                pv = jnp.dot(p.astype(jnp.bfloat16), vh,
                             preferred_element_type=jnp.float32)   # (q_tile, H) f32
                pair_out.append(pv * pl.reciprocal(denom, approx=True))

            # 128-lane-aligned, unmasked store of this head pair for this q-tile
            c_lo = pair * 2 * head_size
            o_ref[0, q_lo:q_lo + q_tile, c_lo:c_lo + 2 * head_size] = (
                jnp.concatenate(pair_out, axis=-1).astype(o_ref.dtype))


def pack_qkv_weights(w_q, w_k, w_v):
    """Pack per-head nn.Linear weights into one fused (C, 3D) bf16 matrix.

    Call ONCE (e.g. at model build time), not per forward call: the transpose /
    concat / cast are un-fused XLA ops whose HBM traffic rivals the kernel's.
    The torch `C ** -0.5` scale (C = n_embed) is folded into the Wq columns.

    w_q, w_k, w_v: (n_head, head_size, C) float32 (nn.Linear weight layout,
                   out_features x in_features, no bias).
    """
    n_head, head_size, C = w_q.shape
    D = n_head * head_size

    def pack(w):  # (nH, H, C) -> (C, nH*H); column block h equals w[h].T
        return jnp.transpose(w, (2, 0, 1)).reshape(C, D)

    scale = jnp.float32(C) ** jnp.float32(-0.5)        # torch: C**-0.5, C = n_embed
    wq = pack(w_q) * scale
    return jnp.concatenate([wq, pack(w_k), pack(w_v)], axis=1).astype(jnp.bfloat16)


def mha_heads_forward(x, wqkv, *, n_head=N_HEAD):
    """Fused multi-head causal attention (concat of the PyTorch Head outputs).

    x:     (B, T, C) float32
    wqkv:  (C, 3*n_head*head_size) bf16, from pack_qkv_weights()
    returns (B, T, n_head*head_size) bfloat16
    """
    B, T, C = x.shape
    D = wqkv.shape[1] // 3
    head_size = D // n_head
    assert wqkv.shape[0] == C and C == N_EMBED and T <= BLOCK_SIZE
    assert C % 128 == 0 and T % 8 == 0
    assert n_head % 2 == 0 and (2 * head_size) % 128 == 0   # 128-lane pair stores

    q_tile = 128 if T % 128 == 0 else T
    n_qt = T // q_tile

    kernel = functools.partial(_mha_heads_kernel, n_head=n_head,
                               head_size=head_size, q_tile=q_tile)

    # Advisory cost hint (helps XLA overlap this tiny kernel inside a full model).
    kv_elems = sum((qt + 1) * q_tile * q_tile for qt in range(n_qt))  # per batch/head
    flops = (2 * B * T * C * 3 * D                       # fused QKV projection
             + 4 * B * n_head * kv_elems * head_size)    # QK^T + PV
    cost = pl.CostEstimate(
        flops=flops,
        transcendentals=B * n_head * kv_elems,           # exp()
        bytes_accessed=B * T * C * 4 + C * 3 * D * 2 + B * T * D * 2)

    return pl.pallas_call(
        kernel,
        out_shape=jax.ShapeDtypeStruct((B, T, D), jnp.bfloat16),
        grid_spec=pltpu.PrefetchScalarGridSpec(
            num_scalar_prefetch=0,
            grid=(B,),
            in_specs=[
                pl.BlockSpec((1, T, C), lambda b: (b, 0, 0)),     # f32 x, per batch
                pl.BlockSpec((C, 3 * D), lambda b: (0, 0)),       # fused bf16 QKV weight
            ],
            out_specs=pl.BlockSpec((1, T, D), lambda b: (b, 0, 0)),
        ),
        compiler_params=pltpu.CompilerParams(
            dimension_semantics=("parallel",)),
        cost_estimate=cost,
    )(x, wqkv)


def mha_heads_reference(x, w_q, w_k, w_v):
    """Pure-JAX f32 reference mirroring the PyTorch Head modules (eval mode)."""
    B, T, C = x.shape
    mask = jnp.tril(jnp.ones((T, T), dtype=bool))
    outs = []
    for h in range(w_q.shape[0]):
        q = x @ w_q[h].T
        k = x @ w_k[h].T
        v = x @ w_v[h].T
        wei = jnp.einsum("btd,bsd->bts", q, k) * (C ** -0.5)
        wei = jnp.where(mask, wei, -jnp.inf)
        wei = jax.nn.softmax(wei, axis=-1)
        outs.append(jnp.einsum("bts,bsd->btd", wei, v))
    return jnp.concatenate(outs, axis=-1)


if __name__ == "__main__":
    B, T = 2, 256   # T = block_size; exercises both q sub-tiles + causal skip

    key = jax.random.PRNGKey(0)
    kx, kq, kk, kv = jax.random.split(key, 4)

    x = jax.random.normal(kx, (B, T, N_EMBED), dtype=jnp.float32)
    # nn.Linear(n_embed, head_size, bias=False) weights: (head_size, n_embed) per head
    init = 1.0 / (N_EMBED ** 0.5)
    w_q = jax.random.uniform(kq, (N_HEAD, HEAD_SIZE, N_EMBED), jnp.float32, -init, init)
    w_k = jax.random.uniform(kk, (N_HEAD, HEAD_SIZE, N_EMBED), jnp.float32, -init, init)
    w_v = jax.random.uniform(kv, (N_HEAD, HEAD_SIZE, N_EMBED), jnp.float32, -init, init)

    wqkv = jax.block_until_ready(pack_qkv_weights(w_q, w_k, w_v))   # pack ONCE

    out = jax.block_until_ready(mha_heads_forward(x, wqkv))
    assert out.shape == (B, T, N_EMBED) and out.dtype == jnp.bfloat16

    ref = mha_heads_reference(x, w_q, w_k, w_v)
    out_f32 = out.astype(jnp.float32)
    err = float(jnp.max(jnp.abs(out_f32 - ref)))
    # bf16 operands + bf16 output + approx reciprocal => relaxed tolerance vs f32 ref
    assert jnp.allclose(out_f32, ref, atol=4e-2, rtol=4e-2), \
        f"mismatch, max abs err={err}"

    print("KERNEL_OK")
</pallas_src>

<mosaic_0001>
module attributes {stable_mosaic.version = 11 : i64} {
  func.func @_mha_heads_kernel(%arg0: i32, %arg1: memref<1x256x384xf32, #tpu.memory_space<vmem>>, %arg2: memref<384x1152xbf16, #tpu.memory_space<vmem>>, %arg3: memref<1x256x384xbf16, #tpu.memory_space<vmem>>) attributes {dimension_semantics = [#tpu.dimension_semantics<parallel>], iteration_bounds = array<i64: 2>, scalar_prefetch = 0 : i64, scratch_operands = 0 : i64, tpu.core_type = #tpu.core_type<tc>, window_params = [{transform_indices = @transform_0, window_bounds = array<i64: 1, 256, 384>}, {pipeline_mode = #tpu.pipeline_mode<synchronous>, transform_indices = @transform_1, window_bounds = array<i64: 384, 1152>}, {transform_indices = @transform_2, window_bounds = array<i64: 1, 256, 384>}]} {
    %c0 = arith.constant 0 : index
    %c0_0 = arith.constant 0 : index
    %c0_1 = arith.constant 0 : index
    %0 = vector.load %arg1[%c0, %c0_0, %c0_1] : memref<1x256x384xf32, #tpu.memory_space<vmem>>, vector<1x256x384xf32>
    %1 = vector.shape_cast %0 : vector<1x256x384xf32> to vector<256x384xf32>
    %2 = arith.truncf %1 : vector<256x384xf32> to vector<256x384xbf16>
    %c0_2 = arith.constant 0 : index
    %c0_3 = arith.constant 0 : index
    %3 = vector.load %arg2[%c0_2, %c0_3] : memref<384x1152xbf16, #tpu.memory_space<vmem>>, vector<384x1152xbf16>
    %cst = arith.constant dense<0.000000e+00> : vector<256x1152xf32>
    %4 = tpu.matmul %2, %3, %cst {dimension_numbers = #tpu.dot_dimension_numbers<[1], [0], [0], [1], [0, 0, 1, 1], [], []>} : vector<256x384xbf16>, vector<384x1152xbf16>, vector<256x1152xf32> -> vector<256x1152xf32>
    %5 = vector.extract_strided_slice %4 {offsets = [0, 0], sizes = [256, 384], strides = [1, 1]} : vector<256x1152xf32> to vector<256x384xf32>
    %6 = arith.truncf %5 : vector<256x384xf32> to vector<256x384xbf16>
    %7 = vector.extract_strided_slice %4 {offsets = [0, 384], sizes = [256, 384], strides = [1, 1]} : vector<256x1152xf32> to vector<256x384xf32>
    %8 = arith.truncf %7 : vector<256x384xf32> to vector<256x384xbf16>
    %9 = vector.extract_strided_slice %4 {offsets = [0, 768], sizes = [256, 384], strides = [1, 1]} : vector<256x1152xf32> to vector<256x384xf32>
    %10 = arith.truncf %9 : vector<256x384xf32> to vector<256x384xbf16>
    %11 = vector.extract_strided_slice %6 {offsets = [0, 0], sizes = [256, 64], strides = [1, 1]} : vector<256x384xbf16> to vector<256x64xbf16>
    %12 = vector.extract_strided_slice %6 {offsets = [0, 64], sizes = [256, 64], strides = [1, 1]} : vector<256x384xbf16> to vector<256x64xbf16>
    %13 = vector.extract_strided_slice %6 {offsets = [0, 128], sizes = [256, 64], strides = [1, 1]} : vector<256x384xbf16> to vector<256x64xbf16>
    %14 = vector.extract_strided_slice %6 {offsets = [0, 192], sizes = [256, 64], strides = [1, 1]} : vector<256x384xbf16> to vector<256x64xbf16>
    %15 = vector.extract_strided_slice %6 {offsets = [0, 256], sizes = [256, 64], strides = [1, 1]} : vector<256x384xbf16> to vector<256x64xbf16>
    %16 = vector.extract_strided_slice %6 {offsets = [0, 320], sizes = [256, 64], strides = [1, 1]} : vector<256x384xbf16> to vector<256x64xbf16>
    %17 = vector.extract_strided_slice %8 {offsets = [0, 0], sizes = [256, 64], strides = [1, 1]} : vector<256x384xbf16> to vector<256x64xbf16>
    %18 = vector.extract_strided_slice %8 {offsets = [0, 64], sizes = [256, 64], strides = [1, 1]} : vector<256x384xbf16> to vector<256x64xbf16>
    %19 = vector.extract_strided_slice %8 {offsets = [0, 128], sizes = [256, 64], strides = [1, 1]} : vector<256x384xbf16> to vector<256x64xbf16>
    %20 = vector.extract_strided_slice %8 {offsets = [0, 192], sizes = [256, 64], strides = [1, 1]} : vector<256x384xbf16> to vector<256x64xbf16>
    %21 = vector.extract_strided_slice %8 {offsets = [0, 256], sizes = [256, 64], strides = [1, 1]} : vector<256x384xbf16> to vector<256x64xbf16>
    %22 = vector.extract_strided_slice %8 {offsets = [0, 320], sizes = [256, 64], strides = [1, 1]} : vector<256x384xbf16> to vector<256x64xbf16>
    %23 = vector.extract_strided_slice %10 {offsets = [0, 0], sizes = [256, 64], strides = [1, 1]} : vector<256x384xbf16> to vector<256x64xbf16>
    %24 = vector.extract_strided_slice %10 {offsets = [0, 64], sizes = [256, 64], strides = [1, 1]} : vector<256x384xbf16> to vector<256x64xbf16>
    %25 = vector.extract_strided_slice %10 {offsets = [0, 128], sizes = [256, 64], strides = [1, 1]} : vector<256x384xbf16> to vector<256x64xbf16>
    %26 = vector.extract_strided_slice %10 {offsets = [0, 192], sizes = [256, 64], strides = [1, 1]} : vector<256x384xbf16> to vector<256x64xbf16>
    %27 = vector.extract_strided_slice %10 {offsets = [0, 256], sizes = [256, 64], strides = [1, 1]} : vector<256x384xbf16> to vector<256x64xbf16>
    %28 = vector.extract_strided_slice %10 {offsets = [0, 320], sizes = [256, 64], strides = [1, 1]} : vector<256x384xbf16> to vector<256x64xbf16>
    %29 = tpu.iota {dimensions = array<i32: 0>} : vector<128x128xi32>
    %c0_i32 = arith.constant 0 : i32
    %30 = vector.broadcast %c0_i32 : i32 to vector<128x128xi32>
    %31 = arith.addi %29, %30 : vector<128x128xi32>
    %32 = tpu.iota {dimensions = array<i32: 1>} : vector<128x128xi32>
    %33 = arith.cmpi sge, %31, %32 : vector<128x128xi32>
    %34 = vector.extract_strided_slice %11 {offsets = [0, 0], sizes = [128, 64], strides = [1, 1]} : vector<256x64xbf16> to vector<128x64xbf16>
    %35 = vector.extract_strided_slice %17 {offsets = [0, 0], sizes = [128, 64], strides = [1, 1]} : vector<256x64xbf16> to vector<128x64xbf16>
    %36 = vector.extract_strided_slice %23 {offsets = [0, 0], sizes = [128, 64], strides = [1, 1]} : vector<256x64xbf16> to vector<128x64xbf16>
    %cst_4 = arith.constant dense<0.000000e+00> : vector<128x128xf32>
    %37 = tpu.matmul %34, %35, %cst_4 {dimension_numbers = #tpu.dot_dimension_numbers<[1], [1], [0], [0], [0, 0, 1, 0], [], []>} : vector<128x64xbf16>, vector<128x64xbf16>, vector<128x128xf32> -> vector<128x128xf32>
    %cst_5 = arith.constant 0xFF800000 : f32
    %38 = vector.broadcast %cst_5 : f32 to vector<128x128xf32>
    %39 = arith.select %33, %37, %38 : vector<128x128xi1>, vector<128x128xf32>
    %cst_6 = arith.constant dense<0xFF800000> : vector<128xf32>
    %40 = vector.multi_reduction <maximumf>, %39, %cst_6 [1] : vector<128x128xf32> to vector<128xf32>
    %41 = vector.shape_cast %40 : vector<128xf32> to vector<128x1xf32>
    %42 = vector.broadcast %41 : vector<128x1xf32> to vector<128x128xf32>
    %43 = arith.subf %39, %42 : vector<128x128xf32>
    %44 = math.exp %43 : vector<128x128xf32>
    %cst_7 = arith.constant dense<0.000000e+00> : vector<128xf32>
    %45 = vector.multi_reduction <add>, %44, %cst_7 [1] : vector<128x128xf32> to vector<128xf32>
    %46 = vector.shape_cast %45 : vector<128xf32> to vector<128x1xf32>
    %47 = arith.truncf %44 : vector<128x128xf32> to vector<128x128xbf16>
    %cst_8 = arith.constant dense<0.000000e+00> : vector<128x64xf32>
    %48 = tpu.matmul %47, %36, %cst_8 {dimension_numbers = #tpu.dot_dimension_numbers<[1], [0], [0], [1], [0, 0, 1, 1], [], []>} : vector<128x128xbf16>, vector<128x64xbf16>, vector<128x64xf32> -> vector<128x64xf32>
    %49 = tpu.reciprocal %46 {approx = true} : vector<128x1xf32> -> vector<128x1xf32>
    %50 = vector.broadcast %49 : vector<128x1xf32> to vector<128x64xf32>
    %51 = arith.mulf %48, %50 : vector<128x64xf32>
    %52 = vector.extract_strided_slice %12 {offsets = [0, 0], sizes = [128, 64], strides = [1, 1]} : vector<256x64xbf16> to vector<128x64xbf16>
    %53 = vector.extract_strided_slice %18 {offsets = [0, 0], sizes = [128, 64], strides = [1, 1]} : vector<256x64xbf16> to vector<128x64xbf16>
    %54 = vector.extract_strided_slice %24 {offsets = [0, 0], sizes = [128, 64], strides = [1, 1]} : vector<256x64xbf16> to vector<128x64xbf16>
    %cst_9 = arith.constant dense<0.000000e+00> : vector<128x128xf32>
    %55 = tpu.matmul %52, %53, %cst_9 {dimension_numbers = #tpu.dot_dimension_numbers<[1], [1], [0], [0], [0, 0, 1, 0], [], []>} : vector<128x64xbf16>, vector<128x64xbf16>, vector<128x128xf32> -> vector<128x128xf32>
    %cst_10 = arith.constant 0xFF800000 : f32
    %56 = vector.broadcast %cst_10 : f32 to vector<128x128xf32>
    %57 = arith.select %33, %55, %56 : vector<128x128xi1>, vector<128x128xf32>
    %cst_11 = arith.constant dense<0xFF800000> : vector<128xf32>
    %58 = vector.multi_reduction <maximumf>, %57, %cst_11 [1] : vector<128x128xf32> to vector<128xf32>
    %59 = vector.shape_cast %58 : vector<128xf32> to vector<128x1xf32>
    %60 = vector.broadcast %59 : vector<128x1xf32> to vector<128x128xf32>
    %61 = arith.subf %57, %60 : vector<128x128xf32>
    %62 = math.exp %61 : vector<128x128xf32>
    %cst_12 = arith.constant dense<0.000000e+00> : vector<128xf32>
    %63 = vector.multi_reduction <add>, %62, %cst_12 [1] : vector<128x128xf32> to vector<128xf32>
    %64 = vector.shape_cast %63 : vector<128xf32> to vector<128x1xf32>
    %65 = arith.truncf %62 : vector<128x128xf32> to vector<128x128xbf16>
    %cst_13 = arith.constant dense<0.000000e+00> : vector<128x64xf32>
    %66 = tpu.matmul %65, %54, %cst_13 {dimension_numbers = #tpu.dot_dimension_numbers<[1], [0], [0], [1], [0, 0, 1, 1], [], []>} : vector<128x128xbf16>, vector<128x64xbf16>, vector<128x64xf32> -> vector<128x64xf32>
    %67 = tpu.reciprocal %64 {approx = true} : vector<128x1xf32> -> vector<128x1xf32>
    %68 = vector.broadcast %67 : vector<128x1xf32> to vector<128x64xf32>
    %69 = arith.mulf %66, %68 : vector<128x64xf32>
    %70 = tpu.concatenate %51, %69 in 1 : vector<128x64xf32>, vector<128x64xf32> -> vector<128x128xf32>
    %71 = arith.truncf %70 : vector<128x128xf32> to vector<128x128xbf16>
    %c0_14 = arith.constant 0 : index
    %c0_15 = arith.constant 0 : index
    %c0_16 = arith.constant 0 : index
    %72 = vector.load %arg3[%c0_14, %c0_15, %c0_16] : memref<1x256x384xbf16, #tpu.memory_space<vmem>>, vector<1x128x128xbf16>
    %73 = vector.shape_cast %72 : vector<1x128x128xbf16> to vector<128x128xbf16>
    %74 = vector.shape_cast %71 : vector<128x128xbf16> to vector<1x128x128xbf16>
    tpu.vector_store %arg3[%c0_14, %c0_15, %c0_16], %74 {strides = array<i32>} : memref<1x256x384xbf16, #tpu.memory_space<vmem>>, vector<1x128x128xbf16>,
    %75 = vector.extract_strided_slice %13 {offsets = [0, 0], sizes = [128, 64], strides = [1, 1]} : vector<256x64xbf16> to vector<128x64xbf16>
    %76 = vector.extract_strided_slice %19 {offsets = [0, 0], sizes = [128, 64], strides = [1, 1]} : vector<256x64xbf16> to vector<128x64xbf16>
    %77 = vector.extract_strided_slice %25 {offsets = [0, 0], sizes = [128, 64], strides = [1, 1]} : vector<256x64xbf16> to vector<128x64xbf16>
    %cst_17 = arith.constant dense<0.000000e+00> : vector<128x128xf32>
    %78 = tpu.matmul %75, %76, %cst_17 {dimension_numbers = #tpu.dot_dimension_numbers<[1], [1], [0], [0], [0, 0, 1, 0], [], []>} : vector<128x64xbf16>, vector<128x64xbf16>, vector<128x128xf32> -> vector<128x128xf32>
    %cst_18 = arith.constant 0xFF800000 : f32
    %79 = vector.broadcast %cst_18 : f32 to vector<128x128xf32>
    %80 = arith.select %33, %78, %79 : vector<128x128xi1>, vector<128x128xf32>
    %cst_19 = arith.constant dense<0xFF800000> : vector<128xf32>
    %81 = vector.multi_reduction <maximumf>, %80, %cst_19 [1] : vector<128x128xf32> to vector<128xf32>
    %82 = vector.shape_cast %81 : vector<128xf32> to vector<128x1xf32>
    %83 = vector.broadcast %82 : vector<128x1xf32> to vector<128x128xf32>
    %84 = arith.subf %80, %83 : vector<128x128xf32>
    %85 = math.exp %84 : vector<128x128xf32>
    %cst_20 = arith.constant dense<0.000000e+00> : vector<128xf32>
    %86 = vector.multi_reduction <add>, %85, %cst_20 [1] : vector<128x128xf32> to vector<128xf32>
    %87 = vector.shape_cast %86 : vector<128xf32> to vector<128x1xf32>
    %88 = arith.truncf %85 : vector<128x128xf32> to vector<128x128xbf16>
    %cst_21 = arith.constant dense<0.000000e+00> : vector<128x64xf32>
    %89 = tpu.matmul %88, %77, %cst_21 {dimension_numbers = #tpu.dot_dimension_numbers<[1], [0], [0], [1], [0, 0, 1, 1], [], []>} : vector<128x128xbf16>, vector<128x64xbf16>, vector<128x64xf32> -> vector<128x64xf32>
    %90 = tpu.reciprocal %87 {approx = true} : vector<128x1xf32> -> vector<128x1xf32>
    %91 = vector.broadcast %90 : vector<128x1xf32> to vector<128x64xf32>
    %92 = arith.mulf %89, %91 : vector<128x64xf32>
    %93 = vector.extract_strided_slice %14 {offsets = [0, 0], sizes = [128, 64], strides = [1, 1]} : vector<256x64xbf16> to vector<128x64xbf16>
    %94 = vector.extract_strided_slice %20 {offsets = [0, 0], sizes = [128, 64], strides = [1, 1]} : vector<256x64xbf16> to vector<128x64xbf16>
    %95 = vector.extract_strided_slice %26 {offsets = [0, 0], sizes = [128, 64], strides = [1, 1]} : vector<256x64xbf16> to vector<128x64xbf16>
    %cst_22 = arith.constant dense<0.000000e+00> : vector<128x128xf32>
    %96 = tpu.matmul %93, %94, %cst_22 {dimension_numbers = #tpu.dot_dimension_numbers<[1], [1], [0], [0], [0, 0, 1, 0], [], []>} : vector<128x64xbf16>, vector<128x64xbf16>, vector<128x128xf32> -> vector<128x128xf32>
    %cst_23 = arith.constant 0xFF800000 : f32
    %97 = vector.broadcast %cst_23 : f32 to vector<128x128xf32>
    %98 = arith.select %33, %96, %97 : vector<128x128xi1>, vector<128x128xf32>
    %cst_24 = arith.constant dense<0xFF800000> : vector<128xf32>
    %99 = vector.multi_reduction <maximumf>, %98, %cst_24 [1] : vector<128x128xf32> to vector<128xf32>
    %100 = vector.shape_cast %99 : vector<128xf32> to vector<128x1xf32>
    %101 = vector.broadcast %100 : vector<128x1xf32> to vector<128x128xf32>
    %102 = arith.subf %98, %101 : vector<128x128xf32>
    %103 = math.exp %102 : vector<128x128xf32>
    %cst_25 = arith.constant dense<0.000000e+00> : vector<128xf32>
    %104 = vector.multi_reduction <add>, %103, %cst_25 [1] : vector<128x128xf32> to vector<128xf32>
    %105 = vector.shape_cast %104 : vector<128xf32> to vector<128x1xf32>
    %106 = arith.truncf %103 : vector<128x128xf32> to vector<128x128xbf16>
    %cst_26 = arith.constant dense<0.000000e+00> : vector<128x64xf32>
    %107 = tpu.matmul %106, %95, %cst_26 {dimension_numbers = #tpu.dot_dimension_numbers<[1], [0], [0], [1], [0, 0, 1, 1], [], []>} : vector<128x128xbf16>, vector<128x64xbf16>, vector<128x64xf32> -> vector<128x64xf32>
    %108 = tpu.reciprocal %105 {approx = true} : vector<128x1xf32> -> vector<128x1xf32>
    %109 = vector.broadcast %108 : vector<128x1xf32> to vector<128x64xf32>
    %110 = arith.mulf %107, %109 : vector<128x64xf32>
    %111 = tpu.concatenate %92, %110 in 1 : vector<128x64xf32>, vector<128x64xf32> -> vector<128x128xf32>
    %112 = arith.truncf %111 : vector<128x128xf32> to vector<128x128xbf16>
    %c0_27 = arith.constant 0 : index
    %c0_28 = arith.constant 0 : index
    %c128 = arith.constant 128 : index
    %113 = vector.load %arg3[%c0_27, %c0_28, %c128] : memref<1x256x384xbf16, #tpu.memory_space<vmem>>, vector<1x128x128xbf16>
    %114 = vector.shape_cast %113 : vector<1x128x128xbf16> to vector<128x128xbf16>
    %115 = vector.shape_cast %112 : vector<128x128xbf16> to vector<1x128x128xbf16>
    tpu.vector_store %arg3[%c0_27, %c0_28, %c128], %115 {strides = array<i32>} : memref<1x256x384xbf16, #tpu.memory_space<vmem>>, vector<1x128x128xbf16>,
    %116 = vector.extract_strided_slice %15 {offsets = [0, 0], sizes = [128, 64], strides = [1, 1]} : vector<256x64xbf16> to vector<128x64xbf16>
    %117 = vector.extract_strided_slice %21 {offsets = [0, 0], sizes = [128, 64], strides = [1, 1]} : vector<256x64xbf16> to vector<128x64xbf16>
    %118 = vector.extract_strided_slice %27 {offsets = [0, 0], sizes = [128, 64], strides = [1, 1]} : vector<256x64xbf16> to vector<128x64xbf16>
    %cst_29 = arith.constant dense<0.000000e+00> : vector<128x128xf32>
    %119 = tpu.matmul %116, %117, %cst_29 {dimension_numbers = #tpu.dot_dimension_numbers<[1], [1], [0], [0], [0, 0, 1, 0], [], []>} : vector<128x64xbf16>, vector<128x64xbf16>, vector<128x128xf32> -> vector<128x128xf32>
    %cst_30 = arith.constant 0xFF800000 : f32
    %120 = vector.broadcast %cst_30 : f32 to vector<128x128xf32>
    %121 = arith.select %33, %119, %120 : vector<128x128xi1>, vector<128x128xf32>
    %cst_31 = arith.constant dense<0xFF800000> : vector<128xf32>
    %122 = vector.multi_reduction <maximumf>, %121, %cst_31 [1] : vector<128x128xf32> to vector<128xf32>
    %123 = vector.shape_cast %122 : vector<128xf32> to vector<128x1xf32>
    %124 = vector.broadcast %123 : vector<128x1xf32> to vector<128x128xf32>
    %125 = arith.subf %121, %124 : vector<128x128xf32>
    %126 = math.exp %125 : vector<128x128xf32>
    %cst_32 = arith.constant dense<0.000000e+00> : vector<128xf32>
    %127 = vector.multi_reduction <add>, %126, %cst_32 [1] : vector<128x128xf32> to vector<128xf32>
    %128 = vector.shape_cast %127 : vector<128xf32> to vector<128x1xf32>
    %129 = arith.truncf %126 : vector<128x128xf32> to vector<128x128xbf16>
    %cst_33 = arith.constant dense<0.000000e+00> : vector<128x64xf32>
    %130 = tpu.matmul %129, %118, %cst_33 {dimension_numbers = #tpu.dot_dimension_numbers<[1], [0], [0], [1], [0, 0, 1, 1], [], []>} : vector<128x128xbf16>, vector<128x64xbf16>, vector<128x64xf32> -> vector<128x64xf32>
    %131 = tpu.reciprocal %128 {approx = true} : vector<128x1xf32> -> vector<128x1xf32>
    %132 = vector.broadcast %131 : vector<128x1xf32> to vector<128x64xf32>
    %133 = arith.mulf %130, %132 : vector<128x64xf32>
    %134 = vector.extract_strided_slice %16 {offsets = [0, 0], sizes = [128, 64], strides = [1, 1]} : vector<256x64xbf16> to vector<128x64xbf16>
    %135 = vector.extract_strided_slice %22 {offsets = [0, 0], sizes = [128, 64], strides = [1, 1]} : vector<256x64xbf16> to vector<128x64xbf16>
    %136 = vector.extract_strided_slice %28 {offsets = [0, 0], sizes = [128, 64], strides = [1, 1]} : vector<256x64xbf16> to vector<128x64xbf16>
    %cst_34 = arith.constant dense<0.000000e+00> : vector<128x128xf32>
    %137 = tpu.matmul %134, %135, %cst_34 {dimension_numbers = #tpu.dot_dimension_numbers<[1], [1], [0], [0], [0, 0, 1, 0], [], []>} : vector<128x64xbf16>, vector<128x64xbf16>, vector<128x128xf32> -> vector<128x128xf32>
    %cst_35 = arith.constant 0xFF800000 : f32
    %138 = vector.broadcast %cst_35 : f32 to vector<128x128xf32>
    %139 = arith.select %33, %137, %138 : vector<128x128xi1>, vector<128x128xf32>
    %cst_36 = arith.constant dense<0xFF800000> : vector<128xf32>
    %140 = vector.multi_reduction <maximumf>, %139, %cst_36 [1] : vector<128x128xf32> to vector<128xf32>
    %141 = vector.shape_cast %140 : vector<128xf32> to vector<128x1xf32>
    %142 = vector.broadcast %141 : vector<128x1xf32> to vector<128x128xf32>
    %143 = arith.subf %139, %142 : vector<128x128xf32>
    %144 = math.exp %143 : vector<128x128xf32>
    %cst_37 = arith.constant dense<0.000000e+00> : vector<128xf32>
    %145 = vector.multi_reduction <add>, %144, %cst_37 [1] : vector<128x128xf32> to vector<128xf32>
    %146 = vector.shape_cast %145 : vector<128xf32> to vector<128x1xf32>
    %147 = arith.truncf %144 : vector<128x128xf32> to vector<128x128xbf16>
    %cst_38 = arith.constant dense<0.000000e+00> : vector<128x64xf32>
    %148 = tpu.matmul %147, %136, %cst_38 {dimension_numbers = #tpu.dot_dimension_numbers<[1], [0], [0], [1], [0, 0, 1, 1], [], []>} : vector<128x128xbf16>, vector<128x64xbf16>, vector<128x64xf32> -> vector<128x64xf32>
    %149 = tpu.reciprocal %146 {approx = true} : vector<128x1xf32> -> vector<128x1xf32>
    %150 = vector.broadcast %149 : vector<128x1xf32> to vector<128x64xf32>
    %151 = arith.mulf %148, %150 : vector<128x64xf32>
    %152 = tpu.concatenate %133, %151 in 1 : vector<128x64xf32>, vector<128x64xf32> -> vector<128x128xf32>
    %153 = arith.truncf %152 : vector<128x128xf32> to vector<128x128xbf16>
    %c0_39 = arith.constant 0 : index
    %c0_40 = arith.constant 0 : index
    %c256 = arith.constant 256 : index
    %154 = vector.load %arg3[%c0_39, %c0_40, %c256] : memref<1x256x384xbf16, #tpu.memory_space<vmem>>, vector<1x128x128xbf16>
    %155 = vector.shape_cast %154 : vector<1x128x128xbf16> to vector<128x128xbf16>
    %156 = vector.shape_cast %153 : vector<128x128xbf16> to vector<1x128x128xbf16>
    tpu.vector_store %arg3[%c0_39, %c0_40, %c256], %156 {strides = array<i32>} : memref<1x256x384xbf16, #tpu.memory_space<vmem>>, vector<1x128x128xbf16>,
    %157 = tpu.iota {dimensions = array<i32: 0>} : vector<128x256xi32>
    %c128_i32 = arith.constant 128 : i32
    %158 = vector.broadcast %c128_i32 : i32 to vector<128x256xi32>
    %159 = arith.addi %157, %158 : vector<128x256xi32>
    %160 = tpu.iota {dimensions = array<i32: 1>} : vector<128x256xi32>
    %161 = arith.cmpi sge, %159, %160 : vector<128x256xi32>
    %162 = vector.extract_strided_slice %11 {offsets = [128, 0], sizes = [128, 64], strides = [1, 1]} : vector<256x64xbf16> to vector<128x64xbf16>
    %cst_41 = arith.constant dense<0.000000e+00> : vector<128x256xf32>
    %163 = tpu.matmul %162, %17, %cst_41 {dimension_numbers = #tpu.dot_dimension_numbers<[1], [1], [0], [0], [0, 0, 1, 0], [], []>} : vector<128x64xbf16>, vector<256x64xbf16>, vector<128x256xf32> -> vector<128x256xf32>
    %cst_42 = arith.constant 0xFF800000 : f32
    %164 = vector.broadcast %cst_42 : f32 to vector<128x256xf32>
    %165 = arith.select %161, %163, %164 : vector<128x256xi1>, vector<128x256xf32>
    %cst_43 = arith.constant dense<0xFF800000> : vector<128xf32>
    %166 = vector.multi_reduction <maximumf>, %165, %cst_43 [1] : vector<128x256xf32> to vector<128xf32>
    %167 = vector.shape_cast %166 : vector<128xf32> to vector<128x1xf32>
    %168 = vector.broadcast %167 : vector<128x1xf32> to vector<128x256xf32>
    %169 = arith.subf %165, %168 : vector<128x256xf32>
    %170 = math.exp %169 : vector<128x256xf32>
    %cst_44 = arith.constant dense<0.000000e+00> : vector<128xf32>
    %171 = vector.multi_reduction <add>, %170, %cst_44 [1] : vector<128x256xf32> to vector<128xf32>
    %172 = vector.shape_cast %171 : vector<128xf32> to vector<128x1xf32>
    %173 = arith.truncf %170 : vector<128x256xf32> to vector<128x256xbf16>
    %cst_45 = arith.constant dense<0.000000e+00> : vector<128x64xf32>
    %174 = tpu.matmul %173, %23, %cst_45 {dimension_numbers = #tpu.dot_dimension_numbers<[1], [0], [0], [1], [0, 0, 1, 1], [], []>} : vector<128x256xbf16>, vector<256x64xbf16>, vector<128x64xf32> -> vector<128x64xf32>
    %175 = tpu.reciprocal %172 {approx = true} : vector<128x1xf32> -> vector<128x1xf32>
    %176 = vector.broadcast %175 : vector<128x1xf32> to vector<128x64xf32>
    %177 = arith.mulf %174, %176 : vector<128x64xf32>
    %178 = vector.extract_strided_slice %12 {offsets = [128, 0], sizes = [128, 64], strides = [1, 1]} : vector<256x64xbf16> to vector<128x64xbf16>
    %cst_46 = arith.constant dense<0.000000e+00> : vector<128x256xf32>
    %179 = tpu.matmul %178, %18, %cst_46 {dimension_numbers = #tpu.dot_dimension_numbers<[1], [1], [0], [0], [0, 0, 1, 0], [], []>} : vector<128x64xbf16>, vector<256x64xbf16>, vector<128x256xf32> -> vector<128x256xf32>
    %cst_47 = arith.constant 0xFF800000 : f32
    %180 = vector.broadcast %cst_47 : f32 to vector<128x256xf32>
    %181 = arith.select %161, %179, %180 : vector<128x256xi1>, vector<128x256xf32>
    %cst_48 = arith.constant dense<0xFF800000> : vector<128xf32>
    %182 = vector.multi_reduction <maximumf>, %181, %cst_48 [1] : vector<128x256xf32> to vector<128xf32>
    %183 = vector.shape_cast %182 : vector<128xf32> to vector<128x1xf32>
    %184 = vector.broadcast %183 : vector<128x1xf32> to vector<128x256xf32>
    %185 = arith.subf %181, %184 : vector<128x256xf32>
    %186 = math.exp %185 : vector<128x256xf32>
    %cst_49 = arith.constant dense<0.000000e+00> : vector<128xf32>
    %187 = vector.multi_reduction <add>, %186, %cst_49 [1] : vector<128x256xf32> to vector<128xf32>
    %188 = vector.shape_cast %187 : vector<128xf32> to vector<128x1xf32>
    %189 = arith.truncf %186 : vector<128x256xf32> to vector<128x256xbf16>
    %cst_50 = arith.constant dense<0.000000e+00> : vector<128x64xf32>
    %190 = tpu.matmul %189, %24, %cst_50 {dimension_numbers = #tpu.dot_dimension_numbers<[1], [0], [0], [1], [0, 0, 1, 1], [], []>} : vector<128x256xbf16>, vector<256x64xbf16>, vector<128x64xf32> -> vector<128x64xf32>
    %191 = tpu.reciprocal %188 {approx = true} : vector<128x1xf32> -> vector<128x1xf32>
    %192 = vector.broadcast %191 : vector<128x1xf32> to vector<128x64xf32>
    %193 = arith.mulf %190, %192 : vector<128x64xf32>
    %194 = tpu.concatenate %177, %193 in 1 : vector<128x64xf32>, vector<128x64xf32> -> vector<128x128xf32>
    %195 = arith.truncf %194 : vector<128x128xf32> to vector<128x128xbf16>
    %c0_51 = arith.constant 0 : index
    %c128_52 = arith.constant 128 : index
    %c0_53 = arith.constant 0 : index
    %196 = vector.load %arg3[%c0_51, %c128_52, %c0_53] : memref<1x256x384xbf16, #tpu.memory_space<vmem>>, vector<1x128x128xbf16>
    %197 = vector.shape_cast %196 : vector<1x128x128xbf16> to vector<128x128xbf16>
    %198 = vector.shape_cast %195 : vector<128x128xbf16> to vector<1x128x128xbf16>
    tpu.vector_store %arg3[%c0_51, %c128_52, %c0_53], %198 {strides = array<i32>} : memref<1x256x384xbf16, #tpu.memory_space<vmem>>, vector<1x128x128xbf16>,
    %199 = vector.extract_strided_slice %13 {offsets = [128, 0], sizes = [128, 64], strides = [1, 1]} : vector<256x64xbf16> to vector<128x64xbf16>
    %cst_54 = arith.constant dense<0.000000e+00> : vector<128x256xf32>
    %200 = tpu.matmul %199, %19, %cst_54 {dimension_numbers = #tpu.dot_dimension_numbers<[1], [1], [0], [0], [0, 0, 1, 0], [], []>} : vector<128x64xbf16>, vector<256x64xbf16>, vector<128x256xf32> -> vector<128x256xf32>
    %cst_55 = arith.constant 0xFF800000 : f32
    %201 = vector.broadcast %cst_55 : f32 to vector<128x256xf32>
    %202 = arith.select %161, %200, %201 : vector<128x256xi1>, vector<128x256xf32>
    %cst_56 = arith.constant dense<0xFF800000> : vector<128xf32>
    %203 = vector.multi_reduction <maximumf>, %202, %cst_56 [1] : vector<128x256xf32> to vector<128xf32>
    %204 = vector.shape_cast %203 : vector<128xf32> to vector<128x1xf32>
    %205 = vector.broadcast %204 : vector<128x1xf32> to vector<128x256xf32>
    %206 = arith.subf %202, %205 : vector<128x256xf32>
    %207 = math.exp %206 : vector<128x256xf32>
    %cst_57 = arith.constant dense<0.000000e+00> : vector<128xf32>
    %208 = vector.multi_reduction <add>, %207, %cst_57 [1] : vector<128x256xf32> to vector<128xf32>
    %209 = vector.shape_cast %208 : vector<128xf32> to vector<128x1xf32>
    %210 = arith.truncf %207 : vector<128x256xf32> to vector<128x256xbf16>
    %cst_58 = arith.constant dense<0.000000e+00> : vector<128x64xf32>
    %211 = tpu.matmul %210, %25, %cst_58 {dimension_numbers = #tpu.dot_dimension_numbers<[1], [0], [0], [1], [0, 0, 1, 1], [], []>} : vector<128x256xbf16>, vector<256x64xbf16>, vector<128x64xf32> -> vector<128x64xf32>
    %212 = tpu.reciprocal %209 {approx = true} : vector<128x1xf32> -> vector<128x1xf32>
    %213 = vector.broadcast %212 : vector<128x1xf32> to vector<128x64xf32>
    %214 = arith.mulf %211, %213 : vector<128x64xf32>
    %215 = vector.extract_strided_slice %14 {offsets = [128, 0], sizes = [128, 64], strides = [1, 1]} : vector<256x64xbf16> to vector<128x64xbf16>
    %cst_59 = arith.constant dense<0.000000e+00> : vector<128x256xf32>
    %216 = tpu.matmul %215, %20, %cst_59 {dimension_numbers = #tpu.dot_dimension_numbers<[1], [1], [0], [0], [0, 0, 1, 0], [], []>} : vector<128x64xbf16>, vector<256x64xbf16>, vector<128x256xf32> -> vector<128x256xf32>
    %cst_60 = arith.constant 0xFF800000 : f32
    %217 = vector.broadcast %cst_60 : f32 to vector<128x256xf32>
    %218 = arith.select %161, %216, %217 : vector<128x256xi1>, vector<128x256xf32>
    %cst_61 = arith.constant dense<0xFF800000> : vector<128xf32>
    %219 = vector.multi_reduction <maximumf>, %218, %cst_61 [1] : vector<128x256xf32> to vector<128xf32>
    %220 = vector.shape_cast %219 : vector<128xf32> to vector<128x1xf32>
    %221 = vector.broadcast %220 : vector<128x1xf32> to vector<128x256xf32>
    %222 = arith.subf %218, %221 : vector<128x256xf32>
    %223 = math.exp %222 : vector<128x256xf32>
    %cst_62 = arith.constant dense<0.000000e+00> : vector<128xf32>
    %224 = vector.multi_reduction <add>, %223, %cst_62 [1] : vector<128x256xf32> to vector<128xf32>
    %225 = vector.shape_cast %224 : vector<128xf32> to vector<128x1xf32>
    %226 = arith.truncf %223 : vector<128x256xf32> to vector<128x256xbf16>
    %cst_63 = arith.constant dense<0.000000e+00> : vector<128x64xf32>
    %227 = tpu.matmul %226, %26, %cst_63 {dimension_numbers = #tpu.dot_dimension_numbers<[1], [0], [0], [1], [0, 0, 1, 1], [], []>} : vector<128x256xbf16>, vector<256x64xbf16>, vector<128x64xf32> -> vector<128x64xf32>
    %228 = tpu.reciprocal %225 {approx = true} : vector<128x1xf32> -> vector<128x1xf32>
    %229 = vector.broadcast %228 : vector<128x1xf32> to vector<128x64xf32>
    %230 = arith.mulf %227, %229 : vector<128x64xf32>
    %231 = tpu.concatenate %214, %230 in 1 : vector<128x64xf32>, vector<128x64xf32> -> vector<128x128xf32>
    %232 = arith.truncf %231 : vector<128x128xf32> to vector<128x128xbf16>
    %c0_64 = arith.constant 0 : index
    %c128_65 = arith.constant 128 : index
    %c128_66 = arith.constant 128 : index
    %233 = vector.load %arg3[%c0_64, %c128_65, %c128_66] : memref<1x256x384xbf16, #tpu.memory_space<vmem>>, vector<1x128x128xbf16>
    %234 = vector.shape_cast %233 : vector<1x128x128xbf16> to vector<128x128xbf16>
    %235 = vector.shape_cast %232 : vector<128x128xbf16> to vector<1x128x128xbf16>
    tpu.vector_store %arg3[%c0_64, %c128_65, %c128_66], %235 {strides = array<i32>} : memref<1x256x384xbf16, #tpu.memory_space<vmem>>, vector<1x128x128xbf16>,
    %236 = vector.extract_strided_slice %15 {offsets = [128, 0], sizes = [128, 64], strides = [1, 1]} : vector<256x64xbf16> to vector<128x64xbf16>
    %cst_67 = arith.constant dense<0.000000e+00> : vector<128x256xf32>
    %237 = tpu.matmul %236, %21, %cst_67 {dimension_numbers = #tpu.dot_dimension_numbers<[1], [1], [0], [0], [0, 0, 1, 0], [], []>} : vector<128x64xbf16>, vector<256x64xbf16>, vector<128x256xf32> -> vector<128x256xf32>
    %cst_68 = arith.constant 0xFF800000 : f32
    %238 = vector.broadcast %cst_68 : f32 to vector<128x256xf32>
    %239 = arith.select %161, %237, %238 : vector<128x256xi1>, vector<128x256xf32>
    %cst_69 = arith.constant dense<0xFF800000> : vector<128xf32>
    %240 = vector.multi_reduction <maximumf>, %239, %cst_69 [1] : vector<128x256xf32> to vector<128xf32>
    %241 = vector.shape_cast %240 : vector<128xf32> to vector<128x1xf32>
    %242 = vector.broadcast %241 : vector<128x1xf32> to vector<128x256xf32>
    %243 = arith.subf %239, %242 : vector<128x256xf32>
    %244 = math.exp %243 : vector<128x256xf32>
    %cst_70 = arith.constant dense<0.000000e+00> : vector<128xf32>
    %245 = vector.multi_reduction <add>, %244, %cst_70 [1] : vector<128x256xf32> to vector<128xf32>
    %246 = vector.shape_cast %245 : vector<128xf32> to vector<128x1xf32>
    %247 = arith.truncf %244 : vector<128x256xf32> to vector<128x256xbf16>
    %cst_71 = arith.constant dense<0.000000e+00> : vector<128x64xf32>
    %248 = tpu.matmul %247, %27, %cst_71 {dimension_numbers = #tpu.dot_dimension_numbers<[1], [0], [0], [1], [0, 0, 1, 1], [], []>} : vector<128x256xbf16>, vector<256x64xbf16>, vector<128x64xf32> -> vector<128x64xf32>
    %249 = tpu.reciprocal %246 {approx = true} : vector<128x1xf32> -> vector<128x1xf32>
    %250 = vector.broadcast %249 : vector<128x1xf32> to vector<128x64xf32>
    %251 = arith.mulf %248, %250 : vector<128x64xf32>
    %252 = vector.extract_strided_slice %16 {offsets = [128, 0], sizes = [128, 64], strides = [1, 1]} : vector<256x64xbf16> to vector<128x64xbf16>
    %cst_72 = arith.constant dense<0.000000e+00> : vector<128x256xf32>
    %253 = tpu.matmul %252, %22, %cst_72 {dimension_numbers = #tpu.dot_dimension_numbers<[1], [1], [0], [0], [0, 0, 1, 0], [], []>} : vector<128x64xbf16>, vector<256x64xbf16>, vector<128x256xf32> -> vector<128x256xf32>
    %cst_73 = arith.constant 0xFF800000 : f32
    %254 = vector.broadcast %cst_73 : f32 to vector<128x256xf32>
    %255 = arith.select %161, %253, %254 : vector<128x256xi1>, vector<128x256xf32>
    %cst_74 = arith.constant dense<0xFF800000> : vector<128xf32>
    %256 = vector.multi_reduction <maximumf>, %255, %cst_74 [1] : vector<128x256xf32> to vector<128xf32>
    %257 = vector.shape_cast %256 : vector<128xf32> to vector<128x1xf32>
    %258 = vector.broadcast %257 : vector<128x1xf32> to vector<128x256xf32>
    %259 = arith.subf %255, %258 : vector<128x256xf32>
    %260 = math.exp %259 : vector<128x256xf32>
    %cst_75 = arith.constant dense<0.000000e+00> : vector<128xf32>
    %261 = vector.multi_reduction <add>, %260, %cst_75 [1] : vector<128x256xf32> to vector<128xf32>
    %262 = vector.shape_cast %261 : vector<128xf32> to vector<128x1xf32>
    %263 = arith.truncf %260 : vector<128x256xf32> to vector<128x256xbf16>
    %cst_76 = arith.constant dense<0.000000e+00> : vector<128x64xf32>
    %264 = tpu.matmul %263, %28, %cst_76 {dimension_numbers = #tpu.dot_dimension_numbers<[1], [0], [0], [1], [0, 0, 1, 1], [], []>} : vector<128x256xbf16>, vector<256x64xbf16>, vector<128x64xf32> -> vector<128x64xf32>
    %265 = tpu.reciprocal %262 {approx = true} : vector<128x1xf32> -> vector<128x1xf32>
    %266 = vector.broadcast %265 : vector<128x1xf32> to vector<128x64xf32>
    %267 = arith.mulf %264, %266 : vector<128x64xf32>
    %268 = tpu.concatenate %251, %267 in 1 : vector<128x64xf32>, vector<128x64xf32> -> vector<128x128xf32>
    %269 = arith.truncf %268 : vector<128x128xf32> to vector<128x128xbf16>
    %c0_77 = arith.constant 0 : index
    %c128_78 = arith.constant 128 : index
    %c256_79 = arith.constant 256 : index
    %270 = vector.load %arg3[%c0_77, %c128_78, %c256_79] : memref<1x256x384xbf16, #tpu.memory_space<vmem>>, vector<1x128x128xbf16>
    %271 = vector.shape_cast %270 : vector<1x128x128xbf16> to vector<128x128xbf16>
    %272 = vector.shape_cast %269 : vector<128x128xbf16> to vector<1x128x128xbf16>
    tpu.vector_store %arg3[%c0_77, %c128_78, %c256_79], %272 {strides = array<i32>} : memref<1x256x384xbf16, #tpu.memory_space<vmem>>, vector<1x128x128xbf16>,
    return
  }
  func.func @transform_0(%arg0: i32) -> (i32, i32, i32) {
    %c0_i32 = arith.constant 0 : i32
    %c0_i32_0 = arith.constant 0 : i32
    %c0_i32_1 = arith.constant 0 : i32
    return %arg0, %c0_i32, %c0_i32_0 : i32, i32, i32
  }
  func.func @transform_1(%arg0: i32) -> (i32, i32) {
    %c0_i32 = arith.constant 0 : i32
    %c0_i32_0 = arith.constant 0 : i32
    %c0_i32_1 = arith.constant 0 : i32
    return %c0_i32, %c0_i32_0 : i32, i32
  }
  func.func @transform_2(%arg0: i32) -> (i32, i32, i32) {
    %c0_i32 = arith.constant 0 : i32
    %c0_i32_0 = arith.constant 0 : i32
    %c0_i32_1 = arith.constant 0 : i32
    return %arg0, %c0_i32, %c0_i32_0 : i32, i32, i32
  }
}

</mosaic_0001>

<llo_original>
// kernel: tpu_custom_call.1
$region0: #{tpu_custom_call.1}
  #allocation0 [shape = 'u32[]', space=smem, size = 0x4, offset = 0x4, fixed_abs, tag = 'smem constant byte address 0x4 - core index']
  #allocation1 [shape = 'u32[72,128]{1,0:T(1,128)}', space=vmem, size = 0x9000, scoped, tag = 'internal scratch']
  %s0 = inlined_call_operand.hbm [shape: f32[2,256,384], index: 0, kind: input, shape index: {}]
  %s1 = inlined_call_operand.hbm [shape: bf16[384,1152], index: 1, kind: input, shape index: {}]
  %s2 = inlined_call_operand.hbm [shape: bf16[2,256,384], index: 2, kind: output, shape index: {}]
  %s3 = sld [smem:[#allocation0]]
  $region49: #{tpu_custom_call.1} parent=0
    _
  %s5 = ssub.s32 1, %s3
  %s6 = scalar_select 0, %s5, %s3
  $region1: #{tpu_custom_call.1} parent=0
    #allocation2 [shape = 'u8[786432]{0}', space=vmem, size = 0xc0000, scoped, tag = 'input window, operand 0']
    #allocation3 [shape = 's32[2]{0}', space=sflag, size = 0x8, scoped, tag = 'scoped memory for tpu_custom_call.1']
    #allocation4 [shape = 's32[2]{0}', space=sflag, size = 0x8, scoped, tag = 'scoped memory for tpu_custom_call.1']
    #allocation5 [shape = 'u8[884736]{0}', space=vmem, size = 0xd8000, scoped, tag = 'input window, operand 1, single buffered']
    #allocation6 [shape = 's32[1]{0}', space=sflag, size = 0x4, scoped, tag = 'scoped memory for tpu_custom_call.1']
    #allocation7 [shape = 'u8[393216]{0}', space=vmem, size = 0x60000, scoped, tag = 'output window, operand 0']
    %7 = vsyncpa [#allocation3], 0
    %s8 = scalar_lea.sflag [#allocation3], 1
    %9 = vsyncpa %s8, 0
    %10 = vsyncpa [#allocation6], 0
    %11 = vsyncpa [#allocation4], 0
    %s12 = scalar_lea.sflag [#allocation4], 1
    %13 = vsyncpa %s12, 0
    loop: start=0, step=1, limit=4
    $region2: #{tpu_custom_call.1} parent=1 // loop_pre_header
      _
    $region3: #{tpu_custom_call.1} parent=1 // loop_header
      %s15 = sphi 0, %s19
      %p16 = scmp.ge.s32.totalorder %s15, 4
      %s25 = sphi 0, %s27
      %s28 = sphi 0, %s25
      %s29 = sphi 0, %s28
      %s45 = sphi 0, %s29
      %s49 = sphi 0, %s49
      %s51 = sphi 0, %s49
      %s52 = sphi 0, %s51
      %s66 = sphi 0, %s52
      %s72 = sphi 0, %s74
      %s75 = sphi 0, %s72
      %s76 = sphi 0, %s75
      %s92 = sphi 0, %s76
    $region4: #{tpu_custom_call.1} parent=1 // loop_header_branch
      %18 = sbr.rel (%p16) target = $region8
    $region5: #{tpu_custom_call.1} parent=1 // loop_body
      %s20 = ssub.s32 %s15, 1
      %s21 = ssub.s32 %s15, 2
      %s22 = sadd.s32 %s15, 1
      %s23 = ssub.s32 %s15, %s22
      %p24 = scmp.eq.s32.totalorder %s23, 0
      %s26 = sadd.s32 %s25, 1
      %s27 = scalar_select %p24, %s25, %s26
      %p30 = pneg %p24
      %p31 = scmp.eq.s32.totalorder %s15, 1
      %p32 = por %p30, %p31
      %p33 = scmp.ne.s32.totalorder %s25, %s28
      %p34 = scmp.eq.s32.totalorder %s15, 0
      %p35 = por %p33, %p34
      %p36 = scmp.ne.s32.totalorder %s25, %s28
      %p37 = scmp.eq.s32.totalorder %s20, 1
      %p38 = por %p36, %p37
      %p39 = scmp.ne.s32.totalorder %s28, %s29
      %p40 = scmp.eq.s32.totalorder %s20, 0
      %p41 = por %p39, %p40
      %p42 = scmp.ne.s32.totalorder %s28, %s29
      %p43 = scmp.eq.s32.totalorder %s21, 1
      %p44 = por %p42, %p43
      %p46 = scmp.ne.s32.totalorder %s29, %s45
      %p47 = scmp.eq.s32.totalorder %s21, 0
      %p48 = por %p46, %p47
      %s50 = sadd.s32 %s49, 1
      %p53 = scmp.eq.s32.totalorder %s15, 1
      %p54 = scmp.ne.s32.totalorder %s49, %s51
      %p55 = scmp.eq.s32.totalorder %s15, 0
      %p56 = por %p54, %p55
      %p57 = scmp.ne.s32.totalorder %s49, %s51
      %p58 = scmp.eq.s32.totalorder %s20, 1
      %p59 = por %p57, %p58
      %p60 = scmp.ne.s32.totalorder %s51, %s52
      %p61 = scmp.eq.s32.totalorder %s20, 0
      %p62 = por %p60, %p61
      %p63 = scmp.ne.s32.totalorder %s51, %s52
      %p64 = scmp.eq.s32.totalorder %s21, 1
      %p65 = por %p63, %p64
      %p67 = scmp.ne.s32.totalorder %s52, %s66
      %p68 = scmp.eq.s32.totalorder %s21, 0
      %p69 = por %p67, %p68
      %s70 = ssub.s32 %s15, %s22
      %p71 = scmp.eq.s32.totalorder %s70, 0
      %s73 = sadd.s32 %s72, 1
      %s74 = scalar_select %p71, %s72, %s73
      %p77 = pneg %p71
      %p78 = scmp.eq.s32.totalorder %s15, 1
      %p79 = por %p77, %p78
      %p80 = scmp.ne.s32.totalorder %s72, %s75
      %p81 = scmp.eq.s32.totalorder %s15, 0
      %p82 = por %p80, %p81
      %p83 = scmp.ne.s32.totalorder %s72, %s75
      %p84 = scmp.eq.s32.totalorder %s20, 1
      %p85 = por %p83, %p84
      %p86 = scmp.ne.s32.totalorder %s75, %s76
      %p87 = scmp.eq.s32.totalorder %s20, 0
      %p88 = por %p86, %p87
      %p89 = scmp.ne.s32.totalorder %s75, %s76
      %p90 = scmp.eq.s32.totalorder %s21, 1
      %p91 = por %p89, %p90
      %p93 = scmp.ne.s32.totalorder %s76, %s92
      %p94 = scmp.eq.s32.totalorder %s21, 0
      %p95 = por %p93, %p94
      %p96 = scmp.le.s32.totalorder 1, %s15
      %p97 = scmp.lt.s32.totalorder %s15, 3
      %p98 = pnand %p96, %p97
      %p99 = pneg %p98
      // Predicated region
      $region9: #{tpu_custom_call.1} parent=5 // pred_check
        _
      $region10: #{tpu_custom_call.1} parent=5 // pred_check_branch
        %101 = sbr.rel (%p98) target = $region12
      $region11: #{tpu_custom_call.1} parent=5 // pred_region
        %s102 = ssub.s32 %s15, 1
        // Predicated region
        $region13: #{tpu_custom_call.1} parent=11 // pred_check
          %p103 = pneg %p62
        $region14: #{tpu_custom_call.1} parent=11 // pred_check_branch
          %105 = sbr.rel (%p103) target = $region16
        $region15: #{tpu_custom_call.1} parent=11 // pred_region
          %107 = vsyncadd [#allocation6], 0
          %s108 = sshll.u32 %s1, 4
          %s109 = int_to_ptr.hbm [resolvable:$true] %s108
          %s110 = sshll.u32 [#allocation5], 4
          %s111 = int_to_ptr.vmem [resolvable:$true] %s110
          %116 = dma.hbm_to_vmem [thread:$0]  %s109, 27648, %s111, [#allocation6], 576, 576, 36
        $region16: #{tpu_custom_call.1} parent=11 // pred_fallthru
          _
      $region12: #{tpu_custom_call.1} parent=5 // pred_fallthru
        _
      %p117 = scmp.lt.s32.totalorder %s15, 2
      // Predicated region
      $region17: #{tpu_custom_call.1} parent=5 // pred_check
        %p118 = pneg %p117
      $region18: #{tpu_custom_call.1} parent=5 // pred_check_branch
        %120 = sbr.rel (%p118) target = $region20
      $region19: #{tpu_custom_call.1} parent=5 // pred_region
        // Predicated region
        $region21: #{tpu_custom_call.1} parent=19 // pred_check
          %p121 = pneg %p35
        $region22: #{tpu_custom_call.1} parent=19 // pred_check_branch
          %123 = sbr.rel (%p121) target = $region24
        $region23: #{tpu_custom_call.1} parent=19 // pred_region
          %s124 = sand.u32 %s25, 1
          %s125 = scalar_lea.sflag [#allocation3], %s124
          %s126 = sand.u32 %s25, 1
          %s127 = smul.addr %s126, 768
          %s128 = scalar_lea.vmem [#allocation2], %s127
          %130 = vsyncadd %s125, 0
          %s131 = smul.addr %s15, 96
          %s132 = smul.addr %s131, 8
          %s133 = scalar_lea.hbm %s0, %s132
          %s134 = sshll.u32 %s133, 4
          %s135 = int_to_ptr.hbm [resolvable:$true] %s134
          %s136 = sshll.u32 %s128, 4
          %s137 = int_to_ptr.vmem [resolvable:$true] %s136
          %142 = dma.hbm_to_vmem [thread:$0]  %s135, 12288, %s137, %s125, 384, 384, 24
        $region24: #{tpu_custom_call.1} parent=19 // pred_fallthru
          _
      $region20: #{tpu_custom_call.1} parent=5 // pred_fallthru
        _
      %p143 = scmp.le.s32.totalorder 1, %s15
      %p144 = scmp.lt.s32.totalorder %s15, 3
      %p145 = pnand %p143, %p144
      %p146 = pneg %p145
      // Predicated region
      $region25: #{tpu_custom_call.1} parent=5 // pred_check
        _
      $region26: #{tpu_custom_call.1} parent=5 // pred_check_branch
        %148 = sbr.rel (%p145) target = $region28
      $region27: #{tpu_custom_call.1} parent=5 // pred_region
        %s149 = ssub.s32 %s15, 1
        %s150 = sand.u32 %s28, 1
        %s151 = scalar_lea.sflag [#allocation3], %s150
        %s152 = sand.u32 %s28, 1
        %s153 = smul.addr %s152, 768
        %s154 = scalar_lea.vmem [#allocation2], %s153
        // Predicated region
        $region29: #{tpu_custom_call.1} parent=27 // pred_check
          %p155 = pneg %p41
        $region30: #{tpu_custom_call.1} parent=27 // pred_check_branch
          %157 = sbr.rel (%p155) target = $region32
        $region31: #{tpu_custom_call.1} parent=27 // pred_region
          %159 = dma.done %s151, 12288
        $region32: #{tpu_custom_call.1} parent=27 // pred_fallthru
          _
        // Predicated region
        $region33: #{tpu_custom_call.1} parent=27 // pred_check
          %p160 = pneg %p62
        $region34: #{tpu_custom_call.1} parent=27 // pred_check_branch
          %162 = sbr.rel (%p160) target = $region36
        $region35: #{tpu_custom_call.1} parent=27 // pred_region
          %164 = dma.done [#allocation6], 27648
        $region36: #{tpu_custom_call.1} parent=27 // pred_fallthru
          _
        %s165 = sand.u32 %s28, 1
        %s166 = scalar_lea.sflag [#allocation3], %s165
        %s167 = sand.u32 %s28, 1
        %s168 = smul.addr %s167, 768
        %s169 = scalar_lea.vmem [#allocation2], %s168
        %p170 = pneg %p41
        %p171 = pneg %p38
        %p172 = pneg %p62
        %p173 = pneg %p59
        %p174 = pneg %p88
        %p175 = pneg %p85
        %s176 = sand.u32 %s75, 1
        %s177 = scalar_lea.sflag [#allocation4], %s176
        %s178 = sand.u32 %s75, 1
        %s179 = smul.addr %s178, 384
        %s180 = scalar_lea.vmem [#allocation7], %s179
        %v181 = vld [vmem:[%s154] sm:$0xff]
        %v182 = vld [vmem:[%s154 + $0x8] sm:$0xff]
        %v183 = vld [vmem:[%s154 + $0x10] sm:$0xff]
        %v184 = vld [vmem:[%s154 + $0x18] sm:$0xff]
        %v185 = vld [vmem:[%s154 + $0x20] sm:$0xff]
        %v186 = vld [vmem:[%s154 + $0x28] sm:$0xff]
        %v187 = vld [vmem:[%s154 + $0x30] sm:$0xff]
        %v188 = vld [vmem:[%s154 + $0x38] sm:$0xff]
        %v189 = vld [vmem:[%s154 + $0x40] sm:$0xff]
        %v190 = vld [vmem:[%s154 + $0x48] sm:$0xff]
        %v191 = vld [vmem:[%s154 + $0x50] sm:$0xff]
        %v192 = vld [vmem:[%s154 + $0x58] sm:$0xff]
        %v193 = vld [vmem:[%s154 + $0x60] sm:$0xff]
        %v194 = vld [vmem:[%s154 + $0x68] sm:$0xff]
        %v195 = vld [vmem:[%s154 + $0x70] sm:$0xff]
        %v196 = vld [vmem:[%s154 + $0x78] sm:$0xff]
        %v197 = vld [vmem:[%s154 + $0x80] sm:$0xff]
        %v198 = vld [vmem:[%s154 + $0x88] sm:$0xff]
        %v199 = vld [vmem:[%s154 + $0x90] sm:$0xff]
        %v200 = vld [vmem:[%s154 + $0x98] sm:$0xff]
        %v201 = vld [vmem:[%s154 + $0xa0] sm:$0xff]
        %v202 = vld [vmem:[%s154 + $0xa8] sm:$0xff]
        %v203 = vld [vmem:[%s154 + $0xb0] sm:$0xff]
        %v204 = vld [vmem:[%s154 + $0xb8] sm:$0xff]
        %v205 = vld [vmem:[%s154 + $0xc0] sm:$0xff]
        %v206 = vld [vmem:[%s154 + $0xc8] sm:$0xff]
        %v207 = vld [vmem:[%s154 + $0xd0] sm:$0xff]
        %v208 = vld [vmem:[%s154 + $0xd8] sm:$0xff]
        %v209 = vld [vmem:[%s154 + $0xe0] sm:$0xff]
        %v210 = vld [vmem:[%s154 + $0xe8] sm:$0xff]
        %v211 = vld [vmem:[%s154 + $0xf0] sm:$0xff]
        %v212 = vld [vmem:[%s154 + $0xf8] sm:$0xff]
        %v213 = vld [vmem:[%s154 + $0x100] sm:$0xff]
        %v214 = vld [vmem:[%s154 + $0x108] sm:$0xff]
        %v215 = vld [vmem:[%s154 + $0x110] sm:$0xff]
        %v216 = vld [vmem:[%s154 + $0x118] sm:$0xff]
        %v217 = vld [vmem:[%s154 + $0x120] sm:$0xff]
        %v218 = vld [vmem:[%s154 + $0x128] sm:$0xff]
        %v219 = vld [vmem:[%s154 + $0x130] sm:$0xff]
        %v220 = vld [vmem:[%s154 + $0x138] sm:$0xff]
        %v221 = vld [vmem:[%s154 + $0x140] sm:$0xff]
        %v222 = vld [vmem:[%s154 + $0x148] sm:$0xff]
        %v223 = vld [vmem:[%s154 + $0x150] sm:$0xff]
        %v224 = vld [vmem:[%s154 + $0x158] sm:$0xff]
        %v225 = vld [vmem:[%s154 + $0x160] sm:$0xff]
        %v226 = vld [vmem:[%s154 + $0x168] sm:$0xff]
        %v227 = vld [vmem:[%s154 + $0x170] sm:$0xff]
        %v228 = vld [vmem:[%s154 + $0x178] sm:$0xff]
        %v229 = vld [vmem:[%s154 + $0x180] sm:$0xff]
        %v230 = vld [vmem:[%s154 + $0x188] sm:$0xff]
        %v231 = vld [vmem:[%s154 + $0x190] sm:$0xff]
        %v232 = vld [vmem:[%s154 + $0x198] sm:$0xff]
        %v233 = vld [vmem:[%s154 + $0x1a0] sm:$0xff]
        %v234 = vld [vmem:[%s154 + $0x1a8] sm:$0xff]
        %v235 = vld [vmem:[%s154 + $0x1b0] sm:$0xff]
        %v236 = vld [vmem:[%s154 + $0x1b8] sm:$0xff]
        %v237 = vld [vmem:[%s154 + $0x1c0] sm:$0xff]
        %v238 = vld [vmem:[%s154 + $0x1c8] sm:$0xff]
        %v239 = vld [vmem:[%s154 + $0x1d0] sm:$0xff]
        %v240 = vld [vmem:[%s154 + $0x1d8] sm:$0xff]
        %v241 = vld [vmem:[%s154 + $0x1e0] sm:$0xff]
        %v242 = vld [vmem:[%s154 + $0x1e8] sm:$0xff]
        %v243 = vld [vmem:[%s154 + $0x1f0] sm:$0xff]
        %v244 = vld [vmem:[%s154 + $0x1f8] sm:$0xff]
        %v245 = vld [vmem:[%s154 + $0x200] sm:$0xff]
        %v246 = vld [vmem:[%s154 + $0x208] sm:$0xff]
        %v247 = vld [vmem:[%s154 + $0x210] sm:$0xff]
        %v248 = vld [vmem:[%s154 + $0x218] sm:$0xff]
        %v249 = vld [vmem:[%s154 + $0x220] sm:$0xff]
        %v250 = vld [vmem:[%s154 + $0x228] sm:$0xff]
        %v251 = vld [vmem:[%s154 + $0x230] sm:$0xff]
        %v252 = vld [vmem:[%s154 + $0x238] sm:$0xff]
        %v253 = vld [vmem:[%s154 + $0x240] sm:$0xff]
        %v254 = vld [vmem:[%s154 + $0x248] sm:$0xff]
        %v255 = vld [vmem:[%s154 + $0x250] sm:$0xff]
        %v256 = vld [vmem:[%s154 + $0x258] sm:$0xff]
        %v257 = vld [vmem:[%s154 + $0x260] sm:$0xff]
        %v258 = vld [vmem:[%s154 + $0x268] sm:$0xff]
        %v259 = vld [vmem:[%s154 + $0x270] sm:$0xff]
        %v260 = vld [vmem:[%s154 + $0x278] sm:$0xff]
        %v261 = vld [vmem:[%s154 + $0x280] sm:$0xff]
        %v262 = vld [vmem:[%s154 + $0x288] sm:$0xff]
        %v263 = vld [vmem:[%s154 + $0x290] sm:$0xff]
        %v264 = vld [vmem:[%s154 + $0x298] sm:$0xff]
        %v265 = vld [vmem:[%s154 + $0x2a0] sm:$0xff]
        %v266 = vld [vmem:[%s154 + $0x2a8] sm:$0xff]
        %v267 = vld [vmem:[%s154 + $0x2b0] sm:$0xff]
        %v268 = vld [vmem:[%s154 + $0x2b8] sm:$0xff]
        %v269 = vld [vmem:[%s154 + $0x2c0] sm:$0xff]
        %v270 = vld [vmem:[%s154 + $0x2c8] sm:$0xff]
        %v271 = vld [vmem:[%s154 + $0x2d0] sm:$0xff]
        %v272 = vld [vmem:[%s154 + $0x2d8] sm:$0xff]
        %v273 = vld [vmem:[%s154 + $0x2e0] sm:$0xff]
        %v274 = vld [vmem:[%s154 + $0x2e8] sm:$0xff]
        %v275 = vld [vmem:[%s154 + $0x2f0] sm:$0xff]
        %v276 = vld [vmem:[%s154 + $0x2f8] sm:$0xff]
        %v277 = vpack.c.bf16 %v184, %v181
        %v278 = vpack.c.bf16 %v185, %v182
        %v279 = vpack.c.bf16 %v186, %v183
        %v280 = vpack.c.bf16 %v190, %v187
        %v281 = vpack.c.bf16 %v191, %v188
        %v282 = vpack.c.bf16 %v192, %v189
        %v283 = vpack.c.bf16 %v196, %v193
        %v284 = vpack.c.bf16 %v197, %v194
        %v285 = vpack.c.bf16 %v198, %v195
        %v286 = vpack.c.bf16 %v202, %v199
        %v287 = vpack.c.bf16 %v203, %v200
        %v288 = vpack.c.bf16 %v204, %v201
        %v289 = vpack.c.bf16 %v208, %v205
        %v290 = vpack.c.bf16 %v209, %v206
        %v291 = vpack.c.bf16 %v210, %v207
        %v292 = vpack.c.bf16 %v214, %v211
        %v293 = vpack.c.bf16 %v215, %v212
        %v294 = vpack.c.bf16 %v216, %v213
        %v295 = vpack.c.bf16 %v220, %v217
        %v296 = vpack.c.bf16 %v221, %v218
        %v297 = vpack.c.bf16 %v222, %v219
        %v298 = vpack.c.bf16 %v226, %v223
        %v299 = vpack.c.bf16 %v227, %v224
        %v300 = vpack.c.bf16 %v228, %v225
        %v301 = vpack.c.bf16 %v232, %v229
        %v302 = vpack.c.bf16 %v233, %v230
        %v303 = vpack.c.bf16 %v234, %v231
        %v304 = vpack.c.bf16 %v238, %v235
        %v305 = vpack.c.bf16 %v239, %v236
        %v306 = vpack.c.bf16 %v240, %v237
        %v307 = vpack.c.bf16 %v244, %v241
        %v308 = vpack.c.bf16 %v245, %v242
        %v309 = vpack.c.bf16 %v246, %v243
        %v310 = vpack.c.bf16 %v250, %v247
        %v311 = vpack.c.bf16 %v251, %v248
        %v312 = vpack.c.bf16 %v252, %v249
        %v313 = vpack.c.bf16 %v256, %v253
        %v314 = vpack.c.bf16 %v257, %v254
        %v315 = vpack.c.bf16 %v258, %v255
        %v316 = vpack.c.bf16 %v262, %v259
        %v317 = vpack.c.bf16 %v263, %v260
        %v318 = vpack.c.bf16 %v264, %v261
        %v319 = vpack.c.bf16 %v268, %v265
        %v320 = vpack.c.bf16 %v269, %v266
        %v321 = vpack.c.bf16 %v270, %v267
        %v322 = vpack.c.bf16 %v274, %v271
        %v323 = vpack.c.bf16 %v275, %v272
        %v324 = vpack.c.bf16 %v276, %v273
        %v325 = vld [vmem:[#allocation5] sm:$0xff]
        %v326 = vld [vmem:[#allocation5 + $0x8] sm:$0xff]
        %v327 = vld [vmem:[#allocation5 + $0x10] sm:$0xff]
        %v328 = vld [vmem:[#allocation5 + $0x18] sm:$0xff]
        %v329 = vld [vmem:[#allocation5 + $0x20] sm:$0xf]
        %v330 = vld [vmem:[#allocation5 + $0x24] sm:$0xff]
        %v331 = vld [vmem:[#allocation5 + $0x2c] sm:$0xff]
        %v332 = vld [vmem:[#allocation5 + $0x34] sm:$0xff]
        %v333 = vld [vmem:[#allocation5 + $0x3c] sm:$0xff]
        %v334 = vld [vmem:[#allocation5 + $0x44] sm:$0xf]
        %v335 = vld [vmem:[#allocation5 + $0x48] sm:$0xff]
        %v336 = vld [vmem:[#allocation5 + $0x50] sm:$0xff]
        %v337 = vld [vmem:[#allocation5 + $0x58] sm:$0xff]
        %v338 = vld [vmem:[#allocation5 + $0x60] sm:$0xff]
        %v339 = vld [vmem:[#allocation5 + $0x68] sm:$0xf]
        %v340 = vld [vmem:[#allocation5 + $0x6c] sm:$0xff]
        %v341 = vld [vmem:[#allocation5 + $0x74] sm:$0xff]
        %v342 = vld [vmem:[#allocation5 + $0x7c] sm:$0xff]
        %v343 = vld [vmem:[#allocation5 + $0x84] sm:$0xff]
        %v344 = vld [vmem:[#allocation5 + $0x8c] sm:$0xf]
        %v345 = vld [vmem:[#allocation5 + $0x90] sm:$0xff]
        %v346 = vld [vmem:[#allocation5 + $0x98] sm:$0xff]
        %v347 = vld [vmem:[#allocation5 + $0xa0] sm:$0xff]
        %v348 = vld [vmem:[#allocation5 + $0xa8] sm:$0xff]
        %v349 = vld [vmem:[#allocation5 + $0xb0] sm:$0xf]
        %v350 = vld [vmem:[#allocation5 + $0xb4] sm:$0xff]
        %v351 = vld [vmem:[#allocation5 + $0xbc] sm:$0xff]
        %v352 = vld [vmem:[#allocation5 + $0xc4] sm:$0xff]
        %v353 = vld [vmem:[#allocation5 + $0xcc] sm:$0xff]
        %v354 = vld [vmem:[#allocation5 + $0xd4] sm:$0xf]
        %v355 = vld [vmem:[#allocation5 + $0xd8] sm:$0xff]
        %v356 = vld [vmem:[#allocation5 + $0xe0] sm:$0xff]
        %v357 = vld [vmem:[#allocation5 + $0xe8] sm:$0xff]
        %v358 = vld [vmem:[#allocation5 + $0xf0] sm:$0xff]
        %v359 = vld [vmem:[#allocation5 + $0xf8] sm:$0xf]
        %v360 = vld [vmem:[#allocation5 + $0xfc] sm:$0xff]
        %v361 = vld [vmem:[#allocation5 + $0x104] sm:$0xff]
        %v362 = vld [vmem:[#allocation5 + $0x10c] sm:$0xff]
        %v363 = vld [vmem:[#allocation5 + $0x114] sm:$0xff]
        %v364 = vld [vmem:[#allocation5 + $0x11c] sm:$0xf]
        %v365 = vld [vmem:[#allocation5 + $0x120] sm:$0xff]
        %v366 = vld [vmem:[#allocation5 + $0x128] sm:$0xff]
        %v367 = vld [vmem:[#allocation5 + $0x130] sm:$0xff]
        %v368 = vld [vmem:[#allocation5 + $0x138] sm:$0xff]
        %v369 = vld [vmem:[#allocation5 + $0x140] sm:$0xf]
        %v370 = vld [vmem:[#allocation5 + $0x144] sm:$0xff]
        %v371 = vld [vmem:[#allocation5 + $0x14c] sm:$0xff]
        %v372 = vld [vmem:[#allocation5 + $0x154] sm:$0xff]
        %v373 = vld [vmem:[#allocation5 + $0x15c] sm:$0xff]
        %v374 = vld [vmem:[#allocation5 + $0x164] sm:$0xf]
        %v375 = vld [vmem:[#allocation5 + $0x168] sm:$0xff]
        %v376 = vld [vmem:[#allocation5 + $0x170] sm:$0xff]
        %v377 = vld [vmem:[#allocation5 + $0x178] sm:$0xff]
        %v378 = vld [vmem:[#allocation5 + $0x180] sm:$0xff]
        %v379 = vld [vmem:[#allocation5 + $0x188] sm:$0xf]
        %v380 = vld [vmem:[#allocation5 + $0x18c] sm:$0xff]
        %v381 = vld [vmem:[#allocation5 + $0x194] sm:$0xff]
        %v382 = vld [vmem:[#allocation5 + $0x19c] sm:$0xff]
        %v383 = vld [vmem:[#allocation5 + $0x1a4] sm:$0xff]
        %v384 = vld [vmem:[#allocation5 + $0x1ac] sm:$0xf]
        %v385 = vld [vmem:[#allocation5 + $0x1b0] sm:$0xff]
        %v386 = vld [vmem:[#allocation5 + $0x1b8] sm:$0xff]
        %v387 = vld [vmem:[#allocation5 + $0x1c0] sm:$0xff]
        %v388 = vld [vmem:[#allocation5 + $0x1c8] sm:$0xff]
        %v389 = vld [vmem:[#allocation5 + $0x1d0] sm:$0xf]
        %v390 = vld [vmem:[#allocation5 + $0x1d4] sm:$0xff]
        %v391 = vld [vmem:[#allocation5 + $0x1dc] sm:$0xff]
        %v392 = vld [vmem:[#allocation5 + $0x1e4] sm:$0xff]
        %v393 = vld [vmem:[#allocation5 + $0x1ec] sm:$0xff]
        %v394 = vld [vmem:[#allocation5 + $0x1f4] sm:$0xf]
        %v395 = vld [vmem:[#allocation5 + $0x1f8] sm:$0xff]
        %v396 = vld [vmem:[#allocation5 + $0x200] sm:$0xff]
        %v397 = vld [vmem:[#allocation5 + $0x208] sm:$0xff]
        %v398 = vld [vmem:[#allocation5 + $0x210] sm:$0xff]
        %v399 = vld [vmem:[#allocation5 + $0x218] sm:$0xf]
        %v400 = vld [vmem:[#allocation5 + $0x21c] sm:$0xff]
        %v401 = vld [vmem:[#allocation5 + $0x224] sm:$0xff]
        %v402 = vld [vmem:[#allocation5 + $0x22c] sm:$0xff]
        %v403 = vld [vmem:[#allocation5 + $0x234] sm:$0xff]
        %v404 = vld [vmem:[#allocation5 + $0x23c] sm:$0xf]
        %v405 = vld [vmem:[#allocation5 + $0x240] sm:$0xff]
        %v406 = vld [vmem:[#allocation5 + $0x248] sm:$0xff]
        %v407 = vld [vmem:[#allocation5 + $0x250] sm:$0xff]
        %v408 = vld [vmem:[#allocation5 + $0x258] sm:$0xff]
        %v409 = vld [vmem:[#allocation5 + $0x260] sm:$0xf]
        %v410 = vld [vmem:[#allocation5 + $0x264] sm:$0xff]
        %v411 = vld [vmem:[#allocation5 + $0x26c] sm:$0xff]
        %v412 = vld [vmem:[#allocation5 + $0x274] sm:$0xff]
        %v413 = vld [vmem:[#allocation5 + $0x27c] sm:$0xff]
        %v414 = vld [vmem:[#allocation5 + $0x284] sm:$0xf]
        %v415 = vld [vmem:[#allocation5 + $0x288] sm:$0xff]
        %v416 = vld [vmem:[#allocation5 + $0x290] sm:$0xff]
        %v417 = vld [vmem:[#allocation5 + $0x298] sm:$0xff]
        %v418 = vld [vmem:[#allocation5 + $0x2a0] sm:$0xff]
        %v419 = vld [vmem:[#allocation5 + $0x2a8] sm:$0xf]
        %v420 = vld [vmem:[#allocation5 + $0x2ac] sm:$0xff]
        %v421 = vld [vmem:[#allocation5 + $0x2b4] sm:$0xff]
        %v422 = vld [vmem:[#allocation5 + $0x2bc] sm:$0xff]
        %v423 = vld [vmem:[#allocation5 + $0x2c4] sm:$0xff]
        %v424 = vld [vmem:[#allocation5 + $0x2cc] sm:$0xf]
        %v425 = vld [vmem:[#allocation5 + $0x2d0] sm:$0xff]
        %v426 = vld [vmem:[#allocation5 + $0x2d8] sm:$0xff]
        %v427 = vld [vmem:[#allocation5 + $0x2e0] sm:$0xff]
        %v428 = vld [vmem:[#allocation5 + $0x2e8] sm:$0xff]
        %v429 = vld [vmem:[#allocation5 + $0x2f0] sm:$0xf]
        %v430 = vld [vmem:[#allocation5 + $0x2f4] sm:$0xff]
        %v431 = vld [vmem:[#allocation5 + $0x2fc] sm:$0xff]
        %v432 = vld [vmem:[#allocation5 + $0x304] sm:$0xff]
        %v433 = vld [vmem:[#allocation5 + $0x30c] sm:$0xff]
        %v434 = vld [vmem:[#allocation5 + $0x314] sm:$0xf]
        %v435 = vld [vmem:[#allocation5 + $0x318] sm:$0xff]
        %v436 = vld [vmem:[#allocation5 + $0x320] sm:$0xff]
        %v437 = vld [vmem:[#allocation5 + $0x328] sm:$0xff]
        %v438 = vld [vmem:[#allocation5 + $0x330] sm:$0xff]
        %v439 = vld [vmem:[#allocation5 + $0x338] sm:$0xf]
        %v440 = vld [vmem:[#allocation5 + $0x33c] sm:$0xff]
        %v441 = vld [vmem:[#allocation5 + $0x344] sm:$0xff]
        %v442 = vld [vmem:[#allocation5 + $0x34c] sm:$0xff]
        %v443 = vld [vmem:[#allocation5 + $0x354] sm:$0xff]
        %v444 = vld [vmem:[#allocation5 + $0x35c] sm:$0xf]
        %v445 = vld [vmem:[#allocation5 + $0x360] sm:$0xff]
        %v446 = vld [vmem:[#allocation5 + $0x368] sm:$0xff]
        %v447 = vld [vmem:[#allocation5 + $0x370] sm:$0xff]
        %v448 = vld [vmem:[#allocation5 + $0x378] sm:$0xff]
        %v449 = vld [vmem:[#allocation5 + $0x380] sm:$0xf]
        %v450 = vld [vmem:[#allocation5 + $0x384] sm:$0xff]
        %v451 = vld [vmem:[#allocation5 + $0x38c] sm:$0xff]
        %v452 = vld [vmem:[#allocation5 + $0x394] sm:$0xff]
        %v453 = vld [vmem:[#allocation5 + $0x39c] sm:$0xff]
        %v454 = vld [vmem:[#allocation5 + $0x3a4] sm:$0xf]
        %v455 = vld [vmem:[#allocation5 + $0x3a8] sm:$0xff]
        %v456 = vld [vmem:[#allocation5 + $0x3b0] sm:$0xff]
        %v457 = vld [vmem:[#allocation5 + $0x3b8] sm:$0xff]
        %v458 = vld [vmem:[#allocation5 + $0x3c0] sm:$0xff]
        %v459 = vld [vmem:[#allocation5 + $0x3c8] sm:$0xf]
        %v460 = vld [vmem:[#allocation5 + $0x3cc] sm:$0xff]
        %v461 = vld [vmem:[#allocation5 + $0x3d4] sm:$0xff]
        %v462 = vld [vmem:[#allocation5 + $0x3dc] sm:$0xff]
        %v463 = vld [vmem:[#allocation5 + $0x3e4] sm:$0xff]
        %v464 = vld [vmem:[#allocation5 + $0x3ec] sm:$0xf]
        %v465 = vld [vmem:[#allocation5 + $0x3f0] sm:$0xff]
        %v466 = vld [vmem:[#allocation5 + $0x3f8] sm:$0xff]
        %v467 = vld [vmem:[#allocation5 + $0x400] sm:$0xff]
        %v468 = vld [vmem:[#allocation5 + $0x408] sm:$0xff]
        %v469 = vld [vmem:[#allocation5 + $0x410] sm:$0xf]
        %v470 = vld [vmem:[#allocation5 + $0x414] sm:$0xff]
        %v471 = vld [vmem:[#allocation5 + $0x41c] sm:$0xff]
        %v472 = vld [vmem:[#allocation5 + $0x424] sm:$0xff]
        %v473 = vld [vmem:[#allocation5 + $0x42c] sm:$0xff]
        %v474 = vld [vmem:[#allocation5 + $0x434] sm:$0xf]
        %v475 = vld [vmem:[#allocation5 + $0x438] sm:$0xff]
        %v476 = vld [vmem:[#allocation5 + $0x440] sm:$0xff]
        %v477 = vld [vmem:[#allocation5 + $0x448] sm:$0xff]
        %v478 = vld [vmem:[#allocation5 + $0x450] sm:$0xff]
        %v479 = vld [vmem:[#allocation5 + $0x458] sm:$0xf]
        %v480 = vld [vmem:[#allocation5 + $0x45c] sm:$0xff]
        %v481 = vld [vmem:[#allocation5 + $0x464] sm:$0xff]
        %v482 = vld [vmem:[#allocation5 + $0x46c] sm:$0xff]
        %v483 = vld [vmem:[#allocation5 + $0x474] sm:$0xff]
        %v484 = vld [vmem:[#allocation5 + $0x47c] sm:$0xf]
        %v485 = vld [vmem:[#allocation5 + $0x480] sm:$0xff]
        %v486 = vld [vmem:[#allocation5 + $0x488] sm:$0xff]
        %v487 = vld [vmem:[#allocation5 + $0x490] sm:$0xff]
        %v488 = vld [vmem:[#allocation5 + $0x498] sm:$0xff]
        %v489 = vld [vmem:[#allocation5 + $0x4a0] sm:$0xf]
        %v490 = vld [vmem:[#allocation5 + $0x4a4] sm:$0xff]
        %v491 = vld [vmem:[#allocation5 + $0x4ac] sm:$0xff]
        %v492 = vld [vmem:[#allocation5 + $0x4b4] sm:$0xff]
        %v493 = vld [vmem:[#allocation5 + $0x4bc] sm:$0xff]
        %v494 = vld [vmem:[#allocation5 + $0x4c4] sm:$0xf]
        %v495 = vld [vmem:[#allocation5 + $0x4c8] sm:$0xff]
        %v496 = vld [vmem:[#allocation5 + $0x4d0] sm:$0xff]
        %v497 = vld [vmem:[#allocation5 + $0x4d8] sm:$0xff]
        %v498 = vld [vmem:[#allocation5 + $0x4e0] sm:$0xff]
        %v499 = vld [vmem:[#allocation5 + $0x4e8] sm:$0xf]
        %v500 = vld [vmem:[#allocation5 + $0x4ec] sm:$0xff]
        %v501 = vld [vmem:[#allocation5 + $0x4f4] sm:$0xff]
        %v502 = vld [vmem:[#allocation5 + $0x4fc] sm:$0xff]
        %v503 = vld [vmem:[#allocation5 + $0x504] sm:$0xff]
        %v504 = vld [vmem:[#allocation5 + $0x50c] sm:$0xf]
        %v505 = vld [vmem:[#allocation5 + $0x510] sm:$0xff]
        %v506 = vld [vmem:[#allocation5 + $0x518] sm:$0xff]
        %v507 = vld [vmem:[#allocation5 + $0x520] sm:$0xff]
        %v508 = vld [vmem:[#allocation5 + $0x528] sm:$0xff]
        %v509 = vld [vmem:[#allocation5 + $0x530] sm:$0xf]
        %v510 = vld [vmem:[#allocation5 + $0x534] sm:$0xff]
        %v511 = vld [vmem:[#allocation5 + $0x53c] sm:$0xff]
        %v512 = vld [vmem:[#allocation5 + $0x544] sm:$0xff]
        %v513 = vld [vmem:[#allocation5 + $0x54c] sm:$0xff]
        %v514 = vld [vmem:[#allocation5 + $0x554] sm:$0xf]
        %v515 = vld [vmem:[#allocation5 + $0x558] sm:$0xff]
        %v516 = vld [vmem:[#allocation5 + $0x560] sm:$0xff]
        %v517 = vld [vmem:[#allocation5 + $0x568] sm:$0xff]
        %v518 = vld [vmem:[#allocation5 + $0x570] sm:$0xff]
        %v519 = vld [vmem:[#allocation5 + $0x578] sm:$0xf]
        %v520 = vld [vmem:[#allocation5 + $0x57c] sm:$0xff]
        %v521 = vld [vmem:[#allocation5 + $0x584] sm:$0xff]
        %v522 = vld [vmem:[#allocation5 + $0x58c] sm:$0xff]
        %v523 = vld [vmem:[#allocation5 + $0x594] sm:$0xff]
        %v524 = vld [vmem:[#allocation5 + $0x59c] sm:$0xf]
        %v525 = vld [vmem:[#allocation5 + $0x5a0] sm:$0xff]
        %v526 = vld [vmem:[#allocation5 + $0x5a8] sm:$0xff]
        %v527 = vld [vmem:[#allocation5 + $0x5b0] sm:$0xff]
        %v528 = vld [vmem:[#allocation5 + $0x5b8] sm:$0xff]
        %v529 = vld [vmem:[#allocation5 + $0x5c0] sm:$0xf]
        %v530 = vld [vmem:[#allocation5 + $0x5c4] sm:$0xff]
        %v531 = vld [vmem:[#allocation5 + $0x5cc] sm:$0xff]
        %v532 = vld [vmem:[#allocation5 + $0x5d4] sm:$0xff]
        %v533 = vld [vmem:[#allocation5 + $0x5dc] sm:$0xff]
        %v534 = vld [vmem:[#allocation5 + $0x5e4] sm:$0xf]
        %v535 = vld [vmem:[#allocation5 + $0x5e8] sm:$0xff]
        %v536 = vld [vmem:[#allocation5 + $0x5f0] sm:$0xff]
        %v537 = vld [vmem:[#allocation5 + $0x5f8] sm:$0xff]
        %v538 = vld [vmem:[#allocation5 + $0x600] sm:$0xff]
        %v539 = vld [vmem:[#allocation5 + $0x608] sm:$0xf]
        %v540 = vld [vmem:[#allocation5 + $0x60c] sm:$0xff]
        %v541 = vld [vmem:[#allocation5 + $0x614] sm:$0xff]
        %v542 = vld [vmem:[#allocation5 + $0x61c] sm:$0xff]
        %v543 = vld [vmem:[#allocation5 + $0x624] sm:$0xff]
        %v544 = vld [vmem:[#allocation5 + $0x62c] sm:$0xf]
        %v545 = vld [vmem:[#allocation5 + $0x630] sm:$0xff]
        %v546 = vld [vmem:[#allocation5 + $0x638] sm:$0xff]
        %v547 = vld [vmem:[#allocation5 + $0x640] sm:$0xff]
        %v548 = vld [vmem:[#allocation5 + $0x648] sm:$0xff]
        %v549 = vld [vmem:[#allocation5 + $0x650] sm:$0xf]
        %v550 = vld [vmem:[#allocation5 + $0x654] sm:$0xff]
        %v551 = vld [vmem:[#allocation5 + $0x65c] sm:$0xff]
        %v552 = vld [vmem:[#allocation5 + $0x664] sm:$0xff]
        %v553 = vld [vmem:[#allocation5 + $0x66c] sm:$0xff]
        %v554 = vld [vmem:[#allocation5 + $0x674] sm:$0xf]
        %v555 = vld [vmem:[#allocation5 + $0x678] sm:$0xff]
        %v556 = vld [vmem:[#allocation5 + $0x680] sm:$0xff]
        %v557 = vld [vmem:[#allocation5 + $0x688] sm:$0xff]
        %v558 = vld [vmem:[#allocation5 + $0x690] sm:$0xff]
        %v559 = vld [vmem:[#allocation5 + $0x698] sm:$0xf]
        %v560 = vld [vmem:[#allocation5 + $0x69c] sm:$0xff]
        %v561 = vld [vmem:[#allocation5 + $0x6a4] sm:$0xff]
        %v562 = vld [vmem:[#allocation5 + $0x6ac] sm:$0xff]
        %v563 = vld [vmem:[#allocation5 + $0x6b4] sm:$0xff]
        %v564 = vld [vmem:[#allocation5 + $0x6bc] sm:$0xf]
        %v805 = vunpack.c.l.b16 %v325
        %v806 = vunpack.c.h.b16 %v325
        %v807 = vunpack.c.l.b16 %v326
        %v808 = vunpack.c.h.b16 %v326
        %v809 = vunpack.c.l.b16 %v327
        %v810 = vunpack.c.h.b16 %v327
        %v811 = vunpack.c.l.b16 %v328
        %v812 = vunpack.c.h.b16 %v328
        %v813 = vunpack.c.l.b16 %v329
        %v814 = vunpack.c.l.b16 %v330
        %v815 = vunpack.c.h.b16 %v330
        %v816 = vunpack.c.l.b16 %v331
        %v817 = vunpack.c.h.b16 %v331
        %v818 = vunpack.c.l.b16 %v332
        %v819 = vunpack.c.h.b16 %v332
        %v820 = vunpack.c.l.b16 %v333
        %v821 = vunpack.c.h.b16 %v333
        %v822 = vunpack.c.l.b16 %v334
        %v823 = vunpack.c.l.b16 %v335
        %v824 = vunpack.c.h.b16 %v335
        %v825 = vunpack.c.l.b16 %v336
        %v826 = vunpack.c.h.b16 %v336
        %v827 = vunpack.c.l.b16 %v337
        %v828 = vunpack.c.h.b16 %v337
        %v829 = vunpack.c.l.b16 %v338
        %v830 = vunpack.c.h.b16 %v338
        %v831 = vunpack.c.l.b16 %v339
        %v832 = vunpack.c.l.b16 %v340
        %v833 = vunpack.c.h.b16 %v340
        %v834 = vunpack.c.l.b16 %v341
        %v835 = vunpack.c.h.b16 %v341
        %v836 = vunpack.c.l.b16 %v342
        %v837 = vunpack.c.h.b16 %v342
        %v838 = vunpack.c.l.b16 %v343
        %v839 = vunpack.c.h.b16 %v343
        %v840 = vunpack.c.l.b16 %v344
        %v841 = vunpack.c.l.b16 %v345
        %v842 = vunpack.c.h.b16 %v345
        %v843 = vunpack.c.l.b16 %v346
        %v844 = vunpack.c.h.b16 %v346
        %v845 = vunpack.c.l.b16 %v347
        %v846 = vunpack.c.h.b16 %v347
        %v847 = vunpack.c.l.b16 %v348
        %v848 = vunpack.c.h.b16 %v348
        %v849 = vunpack.c.l.b16 %v349
        %v850 = vunpack.c.l.b16 %v350
        %v851 = vunpack.c.h.b16 %v350
        %v852 = vunpack.c.l.b16 %v351
        %v853 = vunpack.c.h.b16 %v351
        %v854 = vunpack.c.l.b16 %v352
        %v855 = vunpack.c.h.b16 %v352
        %v856 = vunpack.c.l.b16 %v353
        %v857 = vunpack.c.h.b16 %v353
        %v858 = vunpack.c.l.b16 %v354
        %v859 = vunpack.c.l.b16 %v355
        %v860 = vunpack.c.h.b16 %v355
        %v861 = vunpack.c.l.b16 %v356
        %v862 = vunpack.c.h.b16 %v356
        %v863 = vunpack.c.l.b16 %v357
        %v864 = vunpack.c.h.b16 %v357
        %v865 = vunpack.c.l.b16 %v358
        %v866 = vunpack.c.h.b16 %v358
        %v867 = vunpack.c.l.b16 %v359
        %v868 = vunpack.c.l.b16 %v360
        %v869 = vunpack.c.h.b16 %v360
        %v870 = vunpack.c.l.b16 %v361
        %v871 = vunpack.c.h.b16 %v361
        %v872 = vunpack.c.l.b16 %v362
        %v873 = vunpack.c.h.b16 %v362
        %v874 = vunpack.c.l.b16 %v363
        %v875 = vunpack.c.h.b16 %v363
        %v876 = vunpack.c.l.b16 %v364
        %v877 = vunpack.c.l.b16 %v365
        %v878 = vunpack.c.h.b16 %v365
        %v879 = vunpack.c.l.b16 %v366
        %v880 = vunpack.c.h.b16 %v366
        %v881 = vunpack.c.l.b16 %v367
        %v882 = vunpack.c.h.b16 %v367
        %v883 = vunpack.c.l.b16 %v368
        %v884 = vunpack.c.h.b16 %v368
        %v885 = vunpack.c.l.b16 %v369
        %v886 = vunpack.c.l.b16 %v370
        %v887 = vunpack.c.h.b16 %v370
        %v888 = vunpack.c.l.b16 %v371
        %v889 = vunpack.c.h.b16 %v371
        %v890 = vunpack.c.l.b16 %v372
        %v891 = vunpack.c.h.b16 %v372
        %v892 = vunpack.c.l.b16 %v373
        %v893 = vunpack.c.h.b16 %v373
        %v894 = vunpack.c.l.b16 %v374
        %v895 = vunpack.c.l.b16 %v375
        %v896 = vunpack.c.h.b16 %v375
        %v897 = vunpack.c.l.b16 %v376
        %v898 = vunpack.c.h.b16 %v376
        %v899 = vunpack.c.l.b16 %v377
        %v900 = vunpack.c.h.b16 %v377
        %v901 = vunpack.c.l.b16 %v378
        %v902 = vunpack.c.h.b16 %v378
        %v903 = vunpack.c.l.b16 %v379
        %v904 = vunpack.c.l.b16 %v380
        %v905 = vunpack.c.h.b16 %v380
        %v906 = vunpack.c.l.b16 %v381
        %v907 = vunpack.c.h.b16 %v381
        %v908 = vunpack.c.l.b16 %v382
        %v909 = vunpack.c.h.b16 %v382
        %v910 = vunpack.c.l.b16 %v383
        %v911 = vunpack.c.h.b16 %v383
        %v912 = vunpack.c.l.b16 %v384
        %v913 = vunpack.c.l.b16 %v385
        %v914 = vunpack.c.h.b16 %v385
        %v915 = vunpack.c.l.b16 %v386
        %v916 = vunpack.c.h.b16 %v386
        %v917 = vunpack.c.l.b16 %v387
        %v918 = vunpack.c.h.b16 %v387
        %v919 = vunpack.c.l.b16 %v388
        %v920 = vunpack.c.h.b16 %v388
        %v921 = vunpack.c.l.b16 %v389
        %v922 = vunpack.c.l.b16 %v390
        %v923 = vunpack.c.h.b16 %v390
        %v924 = vunpack.c.l.b16 %v391
        %v925 = vunpack.c.h.b16 %v391
        %v926 = vunpack.c.l.b16 %v392
        %v927 = vunpack.c.h.b16 %v392
        %v928 = vunpack.c.l.b16 %v393
        %v929 = vunpack.c.h.b16 %v393
        %v930 = vunpack.c.l.b16 %v394
        %v931 = vunpack.c.l.b16 %v395
        %v932 = vunpack.c.h.b16 %v395
        %v933 = vunpack.c.l.b16 %v396
        %v934 = vunpack.c.h.b16 %v396
        %v935 = vunpack.c.l.b16 %v397
        %v936 = vunpack.c.h.b16 %v397
        %v937 = vunpack.c.l.b16 %v398
        %v938 = vunpack.c.h.b16 %v398
        %v939 = vunpack.c.l.b16 %v399
        %v940 = vunpack.c.l.b16 %v400
        %v941 = vunpack.c.h.b16 %v400
        %v942 = vunpack.c.l.b16 %v401
        %v943 = vunpack.c.h.b16 %v401
        %v944 = vunpack.c.l.b16 %v402
        %v945 = vunpack.c.h.b16 %v402
        %v946 = vunpack.c.l.b16 %v403
        %v947 = vunpack.c.h.b16 %v403
        %v948 = vunpack.c.l.b16 %v404
        %v949 = vunpack.c.l.b16 %v405
        %v950 = vunpack.c.h.b16 %v405
        %v951 = vunpack.c.l.b16 %v406
        %v952 = vunpack.c.h.b16 %v406
        %v953 = vunpack.c.l.b16 %v407
        %v954 = vunpack.c.h.b16 %v407
        %v955 = vunpack.c.l.b16 %v408
        %v956 = vunpack.c.h.b16 %v408
        %v957 = vunpack.c.l.b16 %v409
        %v958 = vunpack.c.l.b16 %v410
        %v959 = vunpack.c.h.b16 %v410
        %v960 = vunpack.c.l.b16 %v411
        %v961 = vunpack.c.h.b16 %v411
        %v962 = vunpack.c.l.b16 %v412
        %v963 = vunpack.c.h.b16 %v412
        %v964 = vunpack.c.l.b16 %v413
        %v965 = vunpack.c.h.b16 %v413
        %v966 = vunpack.c.l.b16 %v414
        %v967 = vunpack.c.l.b16 %v415
        %v968 = vunpack.c.h.b16 %v415
        %v969 = vunpack.c.l.b16 %v416
        %v970 = vunpack.c.h.b16 %v416
        %v971 = vunpack.c.l.b16 %v417
        %v972 = vunpack.c.h.b16 %v417
        %v973 = vunpack.c.l.b16 %v418
        %v974 = vunpack.c.h.b16 %v418
        %v975 = vunpack.c.l.b16 %v419
        %v976 = vunpack.c.l.b16 %v420
        %v977 = vunpack.c.h.b16 %v420
        %v978 = vunpack.c.l.b16 %v421
        %v979 = vunpack.c.h.b16 %v421
        %v980 = vunpack.c.l.b16 %v422
        %v981 = vunpack.c.h.b16 %v422
        %v982 = vunpack.c.l.b16 %v423
        %v983 = vunpack.c.h.b16 %v423
        %v984 = vunpack.c.l.b16 %v424
        %v985 = vunpack.c.l.b16 %v425
        %v986 = vunpack.c.h.b16 %v425
        %v987 = vunpack.c.l.b16 %v426
        %v988 = vunpack.c.h.b16 %v426
        %v989 = vunpack.c.l.b16 %v427
        %v990 = vunpack.c.h.b16 %v427
        %v991 = vunpack.c.l.b16 %v428
        %v992 = vunpack.c.h.b16 %v428
        %v993 = vunpack.c.l.b16 %v429
        %v994 = vunpack.c.l.b16 %v430
        %v995 = vunpack.c.h.b16 %v430
        %v996 = vunpack.c.l.b16 %v431
        %v997 = vunpack.c.h.b16 %v431
        %v998 = vunpack.c.l.b16 %v432
        %v999 = vunpack.c.h.b16 %v432
        %v1000 = vunpack.c.l.b16 %v433
        %v1001 = vunpack.c.h.b16 %v433
        %v1002 = vunpack.c.l.b16 %v434
        %v1003 = vunpack.c.l.b16 %v435
        %v1004 = vunpack.c.h.b16 %v435
        %v1005 = vunpack.c.l.b16 %v436
        %v1006 = vunpack.c.h.b16 %v436
        %v1007 = vunpack.c.l.b16 %v437
        %v1008 = vunpack.c.h.b16 %v437
        %v1009 = vunpack.c.l.b16 %v438
        %v1010 = vunpack.c.h.b16 %v438
        %v1011 = vunpack.c.l.b16 %v439
        %v1012 = vunpack.c.l.b16 %v440
        %v1013 = vunpack.c.h.b16 %v440
        %v1014 = vunpack.c.l.b16 %v441
        %v1015 = vunpack.c.h.b16 %v441
        %v1016 = vunpack.c.l.b16 %v442
        %v1017 = vunpack.c.h.b16 %v442
        %v1018 = vunpack.c.l.b16 %v443
        %v1019 = vunpack.c.h.b16 %v443
        %v1020 = vunpack.c.l.b16 %v444
        %v1021 = vunpack.c.l.b16 %v445
        %v1022 = vunpack.c.h.b16 %v445
        %v1023 = vunpack.c.l.b16 %v446
        %v1024 = vunpack.c.h.b16 %v446
        %v1025 = vunpack.c.l.b16 %v447
        %v1026 = vunpack.c.h.b16 %v447
        %v1027 = vunpack.c.l.b16 %v448
        %v1028 = vunpack.c.h.b16 %v448
        %v1029 = vunpack.c.l.b16 %v449
        %v1030 = vunpack.c.l.b16 %v450
        %v1031 = vunpack.c.h.b16 %v450
        %v1032 = vunpack.c.l.b16 %v451
        %v1033 = vunpack.c.h.b16 %v451
        %v1034 = vunpack.c.l.b16 %v452
        %v1035 = vunpack.c.h.b16 %v452
        %v1036 = vunpack.c.l.b16 %v453
        %v1037 = vunpack.c.h.b16 %v453
        %v1038 = vunpack.c.l.b16 %v454
        %v1039 = vunpack.c.l.b16 %v455
        %v1040 = vunpack.c.h.b16 %v455
        %v1041 = vunpack.c.l.b16 %v456
        %v1042 = vunpack.c.h.b16 %v456
        %v1043 = vunpack.c.l.b16 %v457
        %v1044 = vunpack.c.h.b16 %v457
        %v1045 = vunpack.c.l.b16 %v458
        %v1046 = vunpack.c.h.b16 %v458
        %v1047 = vunpack.c.l.b16 %v459
        %v1048 = vunpack.c.l.b16 %v460
        %v1049 = vunpack.c.h.b16 %v460
        %v1050 = vunpack.c.l.b16 %v461
        %v1051 = vunpack.c.h.b16 %v461
        %v1052 = vunpack.c.l.b16 %v462
        %v1053 = vunpack.c.h.b16 %v462
        %v1054 = vunpack.c.l.b16 %v463
        %v1055 = vunpack.c.h.b16 %v463
        %v1056 = vunpack.c.l.b16 %v464
        %v1057 = vunpack.c.l.b16 %v465
        %v1058 = vunpack.c.h.b16 %v465
        %v1059 = vunpack.c.l.b16 %v466
        %v1060 = vunpack.c.h.b16 %v466
        %v1061 = vunpack.c.l.b16 %v467
        %v1062 = vunpack.c.h.b16 %v467
        %v1063 = vunpack.c.l.b16 %v468
        %v1064 = vunpack.c.h.b16 %v468
        %v1065 = vunpack.c.l.b16 %v469
        %v1066 = vunpack.c.l.b16 %v470
        %v1067 = vunpack.c.h.b16 %v470
        %v1068 = vunpack.c.l.b16 %v471
        %v1069 = vunpack.c.h.b16 %v471
        %v1070 = vunpack.c.l.b16 %v472
        %v1071 = vunpack.c.h.b16 %v472
        %v1072 = vunpack.c.l.b16 %v473
        %v1073 = vunpack.c.h.b16 %v473
        %v1074 = vunpack.c.l.b16 %v474
        %v1075 = vunpack.c.l.b16 %v475
        %v1076 = vunpack.c.h.b16 %v475
        %v1077 = vunpack.c.l.b16 %v476
        %v1078 = vunpack.c.h.b16 %v476
        %v1079 = vunpack.c.l.b16 %v477
        %v1080 = vunpack.c.h.b16 %v477
        %v1081 = vunpack.c.l.b16 %v478
        %v1082 = vunpack.c.h.b16 %v478
        %v1083 = vunpack.c.l.b16 %v479
        %v1084 = vunpack.c.l.b16 %v480
        %v1085 = vunpack.c.h.b16 %v480
        %v1086 = vunpack.c.l.b16 %v481
        %v1087 = vunpack.c.h.b16 %v481
        %v1088 = vunpack.c.l.b16 %v482
        %v1089 = vunpack.c.h.b16 %v482
        %v1090 = vunpack.c.l.b16 %v483
        %v1091 = vunpack.c.h.b16 %v483
        %v1092 = vunpack.c.l.b16 %v484
        %v1093 = vunpack.c.l.b16 %v485
        %v1094 = vunpack.c.h.b16 %v485
        %v1095 = vunpack.c.l.b16 %v486
        %v1096 = vunpack.c.h.b16 %v486
        %v1097 = vunpack.c.l.b16 %v487
        %v1098 = vunpack.c.h.b16 %v487
        %v1099 = vunpack.c.l.b16 %v488
        %v1100 = vunpack.c.h.b16 %v488
        %v1101 = vunpack.c.l.b16 %v489
        %v1102 = vunpack.c.l.b16 %v490
        %v1103 = vunpack.c.h.b16 %v490
        %v1104 = vunpack.c.l.b16 %v491
        %v1105 = vunpack.c.h.b16 %v491
        %v1106 = vunpack.c.l.b16 %v492
        %v1107 = vunpack.c.h.b16 %v492
        %v1108 = vunpack.c.l.b16 %v493
        %v1109 = vunpack.c.h.b16 %v493
        %v1110 = vunpack.c.l.b16 %v494
        %v1111 = vunpack.c.l.b16 %v495
        %v1112 = vunpack.c.h.b16 %v495
        %v1113 = vunpack.c.l.b16 %v496
        %v1114 = vunpack.c.h.b16 %v496
        %v1115 = vunpack.c.l.b16 %v497
        %v1116 = vunpack.c.h.b16 %v497
        %v1117 = vunpack.c.l.b16 %v498
        %v1118 = vunpack.c.h.b16 %v498
        %v1119 = vunpack.c.l.b16 %v499
        %v1120 = vunpack.c.l.b16 %v500
        %v1121 = vunpack.c.h.b16 %v500
        %v1122 = vunpack.c.l.b16 %v501
        %v1123 = vunpack.c.h.b16 %v501
        %v1124 = vunpack.c.l.b16 %v502
        %v1125 = vunpack.c.h.b16 %v502
        %v1126 = vunpack.c.l.b16 %v503
        %v1127 = vunpack.c.h.b16 %v503
        %v1128 = vunpack.c.l.b16 %v504
        %v1129 = vunpack.c.l.b16 %v505
        %v1130 = vunpack.c.h.b16 %v505
        %v1131 = vunpack.c.l.b16 %v506
        %v1132 = vunpack.c.h.b16 %v506
        %v1133 = vunpack.c.l.b16 %v507
        %v1134 = vunpack.c.h.b16 %v507
        %v1135 = vunpack.c.l.b16 %v508
        %v1136 = vunpack.c.h.b16 %v508
        %v1137 = vunpack.c.l.b16 %v509
        %v1138 = vunpack.c.l.b16 %v510
        %v1139 = vunpack.c.h.b16 %v510
        %v1140 = vunpack.c.l.b16 %v511
        %v1141 = vunpack.c.h.b16 %v511
        %v1142 = vunpack.c.l.b16 %v512
        %v1143 = vunpack.c.h.b16 %v512
        %v1144 = vunpack.c.l.b16 %v513
        %v1145 = vunpack.c.h.b16 %v513
        %v1146 = vunpack.c.l.b16 %v514
        %v1147 = vunpack.c.l.b16 %v515
        %v1148 = vunpack.c.h.b16 %v515
        %v1149 = vunpack.c.l.b16 %v516
        %v1150 = vunpack.c.h.b16 %v516
        %v1151 = vunpack.c.l.b16 %v517
        %v1152 = vunpack.c.h.b16 %v517
        %v1153 = vunpack.c.l.b16 %v518
        %v1154 = vunpack.c.h.b16 %v518
        %v1155 = vunpack.c.l.b16 %v519
        %v1156 = vunpack.c.l.b16 %v520
        %v1157 = vunpack.c.h.b16 %v520
        %v1158 = vunpack.c.l.b16 %v521
        %v1159 = vunpack.c.h.b16 %v521
        %v1160 = vunpack.c.l.b16 %v522
        %v1161 = vunpack.c.h.b16 %v522
        %v1162 = vunpack.c.l.b16 %v523
        %v1163 = vunpack.c.h.b16 %v523
        %v1164 = vunpack.c.l.b16 %v524
        %v1165 = vunpack.c.l.b16 %v525
        %v1166 = vunpack.c.h.b16 %v525
        %v1167 = vunpack.c.l.b16 %v526
        %v1168 = vunpack.c.h.b16 %v526
        %v1169 = vunpack.c.l.b16 %v527
        %v1170 = vunpack.c.h.b16 %v527
        %v1171 = vunpack.c.l.b16 %v528
        %v1172 = vunpack.c.h.b16 %v528
        %v1173 = vunpack.c.l.b16 %v529
        %v1174 = vunpack.c.l.b16 %v530
        %v1175 = vunpack.c.h.b16 %v530
        %v1176 = vunpack.c.l.b16 %v531
        %v1177 = vunpack.c.h.b16 %v531
        %v1178 = vunpack.c.l.b16 %v532
        %v1179 = vunpack.c.h.b16 %v532
        %v1180 = vunpack.c.l.b16 %v533
        %v1181 = vunpack.c.h.b16 %v533
        %v1182 = vunpack.c.l.b16 %v534
        %v1183 = vunpack.c.l.b16 %v535
        %v1184 = vunpack.c.h.b16 %v535
        %v1185 = vunpack.c.l.b16 %v536
        %v1186 = vunpack.c.h.b16 %v536
        %v1187 = vunpack.c.l.b16 %v537
        %v1188 = vunpack.c.h.b16 %v537
        %v1189 = vunpack.c.l.b16 %v538
        %v1190 = vunpack.c.h.b16 %v538
        %v1191 = vunpack.c.l.b16 %v539
        %v1192 = vunpack.c.l.b16 %v540
        %v1193 = vunpack.c.h.b16 %v540
        %v1194 = vunpack.c.l.b16 %v541
        %v1195 = vunpack.c.h.b16 %v541
        %v1196 = vunpack.c.l.b16 %v542
        %v1197 = vunpack.c.h.b16 %v542
        %v1198 = vunpack.c.l.b16 %v543
        %v1199 = vunpack.c.h.b16 %v543
        %v1200 = vunpack.c.l.b16 %v544
        %v1201 = vunpack.c.l.b16 %v545
        %v1202 = vunpack.c.h.b16 %v545
        %v1203 = vunpack.c.l.b16 %v546
        %v1204 = vunpack.c.h.b16 %v546
        %v1205 = vunpack.c.l.b16 %v547
        %v1206 = vunpack.c.h.b16 %v547
        %v1207 = vunpack.c.l.b16 %v548
        %v1208 = vunpack.c.h.b16 %v548
        %v1209 = vunpack.c.l.b16 %v549
        %v1210 = vunpack.c.l.b16 %v550
        %v1211 = vunpack.c.h.b16 %v550
        %v1212 = vunpack.c.l.b16 %v551
        %v1213 = vunpack.c.h.b16 %v551
        %v1214 = vunpack.c.l.b16 %v552
        %v1215 = vunpack.c.h.b16 %v552
        %v1216 = vunpack.c.l.b16 %v553
        %v1217 = vunpack.c.h.b16 %v553
        %v1218 = vunpack.c.l.b16 %v554
        %v1219 = vunpack.c.l.b16 %v555
        %v1220 = vunpack.c.h.b16 %v555
        %v1221 = vunpack.c.l.b16 %v556
        %v1222 = vunpack.c.h.b16 %v556
        %v1223 = vunpack.c.l.b16 %v557
        %v1224 = vunpack.c.h.b16 %v557
        %v1225 = vunpack.c.l.b16 %v558
        %v1226 = vunpack.c.h.b16 %v558
        %v1227 = vunpack.c.l.b16 %v559
        %v1228 = vunpack.c.l.b16 %v560
        %v1229 = vunpack.c.h.b16 %v560
        %v1230 = vunpack.c.l.b16 %v561
        %v1231 = vunpack.c.h.b16 %v561
        %v1232 = vunpack.c.l.b16 %v562
        %v1233 = vunpack.c.h.b16 %v562
        %v1234 = vunpack.c.l.b16 %v563
        %v1235 = vunpack.c.h.b16 %v563
        %v1236 = vunpack.c.l.b16 %v564
        %v1237 = vpack.c.b16 %v814, %v805
        %v1238 = vpack.c.b16 %v815, %v806
        %v1239 = vpack.c.b16 %v816, %v807
        %v1240 = vpack.c.b16 %v817, %v808
        %v1241 = vpack.c.b16 %v818, %v809
        %v1242 = vpack.c.b16 %v819, %v810
        %v1243 = vpack.c.b16 %v820, %v811
        %v1244 = vpack.c.b16 %v821, %v812
        %v1245 = vpack.c.b16 %v822, %v813
        %v1246 = vpack.c.b16 %v832, %v823
        %v1247 = vpack.c.b16 %v833, %v824
        %v1248 = vpack.c.b16 %v834, %v825
        %v1249 = vpack.c.b16 %v835, %v826
        %v1250 = vpack.c.b16 %v836, %v827
        %v1251 = vpack.c.b16 %v837, %v828
        %v1252 = vpack.c.b16 %v838, %v829
        %v1253 = vpack.c.b16 %v839, %v830
        %v1254 = vpack.c.b16 %v840, %v831
        %v1255 = vpack.c.b16 %v850, %v841
        %v1256 = vpack.c.b16 %v851, %v842
        %v1257 = vpack.c.b16 %v852, %v843
        %v1258 = vpack.c.b16 %v853, %v844
        %v1259 = vpack.c.b16 %v854, %v845
        %v1260 = vpack.c.b16 %v855, %v846
        %v1261 = vpack.c.b16 %v856, %v847
        %v1262 = vpack.c.b16 %v857, %v848
        %v1263 = vpack.c.b16 %v858, %v849
        %v1264 = vpack.c.b16 %v868, %v859
        %v1265 = vpack.c.b16 %v869, %v860
        %v1266 = vpack.c.b16 %v870, %v861
        %v1267 = vpack.c.b16 %v871, %v862
        %v1268 = vpack.c.b16 %v872, %v863
        %v1269 = vpack.c.b16 %v873, %v864
        %v1270 = vpack.c.b16 %v874, %v865
        %v1271 = vpack.c.b16 %v875, %v866
        %v1272 = vpack.c.b16 %v876, %v867
        %v1273 = vpack.c.b16 %v886, %v877
        %v1274 = vpack.c.b16 %v887, %v878
        %v1275 = vpack.c.b16 %v888, %v879
        %v1276 = vpack.c.b16 %v889, %v880
        %v1277 = vpack.c.b16 %v890, %v881
        %v1278 = vpack.c.b16 %v891, %v882
        %v1279 = vpack.c.b16 %v892, %v883
        %v1280 = vpack.c.b16 %v893, %v884
        %v1281 = vpack.c.b16 %v894, %v885
        %v1282 = vpack.c.b16 %v904, %v895
        %v1283 = vpack.c.b16 %v905, %v896
        %v1284 = vpack.c.b16 %v906, %v897
        %v1285 = vpack.c.b16 %v907, %v898
        %v1286 = vpack.c.b16 %v908, %v899
        %v1287 = vpack.c.b16 %v909, %v900
        %v1288 = vpack.c.b16 %v910, %v901
        %v1289 = vpack.c.b16 %v911, %v902
        %v1290 = vpack.c.b16 %v912, %v903
        %v1291 = vpack.c.b16 %v922, %v913
        %v1292 = vpack.c.b16 %v923, %v914
        %v1293 = vpack.c.b16 %v924, %v915
        %v1294 = vpack.c.b16 %v925, %v916
        %v1295 = vpack.c.b16 %v926, %v917
        %v1296 = vpack.c.b16 %v927, %v918
        %v1297 = vpack.c.b16 %v928, %v919
        %v1298 = vpack.c.b16 %v929, %v920
        %v1299 = vpack.c.b16 %v930, %v921
        %v1300 = vpack.c.b16 %v940, %v931
        %v1301 = vpack.c.b16 %v941, %v932
        %v1302 = vpack.c.b16 %v942, %v933
        %v1303 = vpack.c.b16 %v943, %v934
        %v1304 = vpack.c.b16 %v944, %v935
        %v1305 = vpack.c.b16 %v945, %v936
        %v1306 = vpack.c.b16 %v946, %v937
        %v1307 = vpack.c.b16 %v947, %v938
        %v1308 = vpack.c.b16 %v948, %v939
        %v1309 = vpack.c.b16 %v958, %v949
        %v1310 = vpack.c.b16 %v959, %v950
        %v1311 = vpack.c.b16 %v960, %v951
        %v1312 = vpack.c.b16 %v961, %v952
        %v1313 = vpack.c.b16 %v962, %v953
        %v1314 = vpack.c.b16 %v963, %v954
        %v1315 = vpack.c.b16 %v964, %v955
        %v1316 = vpack.c.b16 %v965, %v956
        %v1317 = vpack.c.b16 %v966, %v957
        %v1318 = vpack.c.b16 %v976, %v967
        %v1319 = vpack.c.b16 %v977, %v968
        %v1320 = vpack.c.b16 %v978, %v969
        %v1321 = vpack.c.b16 %v979, %v970
        %v1322 = vpack.c.b16 %v980, %v971
        %v1323 = vpack.c.b16 %v981, %v972
        %v1324 = vpack.c.b16 %v982, %v973
        %v1325 = vpack.c.b16 %v983, %v974
        %v1326 = vpack.c.b16 %v984, %v975
        %v1327 = vpack.c.b16 %v994, %v985
        %v1328 = vpack.c.b16 %v995, %v986
        %v1329 = vpack.c.b16 %v996, %v987
        %v1330 = vpack.c.b16 %v997, %v988
        %v1331 = vpack.c.b16 %v998, %v989
        %v1332 = vpack.c.b16 %v999, %v990
        %v1333 = vpack.c.b16 %v1000, %v991
        %v1334 = vpack.c.b16 %v1001, %v992
        %v1335 = vpack.c.b16 %v1002, %v993
        %v1336 = vpack.c.b16 %v1012, %v1003
        %v1337 = vpack.c.b16 %v1013, %v1004
        %v1338 = vpack.c.b16 %v1014, %v1005
        %v1339 = vpack.c.b16 %v1015, %v1006
        %v1340 = vpack.c.b16 %v1016, %v1007
        %v1341 = vpack.c.b16 %v1017, %v1008
        %v1342 = vpack.c.b16 %v1018, %v1009
        %v1343 = vpack.c.b16 %v1019, %v1010
        %v1344 = vpack.c.b16 %v1020, %v1011
        %v1345 = vpack.c.b16 %v1030, %v1021
        %v1346 = vpack.c.b16 %v1031, %v1022
        %v1347 = vpack.c.b16 %v1032, %v1023
        %v1348 = vpack.c.b16 %v1033, %v1024
        %v1349 = vpack.c.b16 %v1034, %v1025
        %v1350 = vpack.c.b16 %v1035, %v1026
        %v1351 = vpack.c.b16 %v1036, %v1027
        %v1352 = vpack.c.b16 %v1037, %v1028
        %v1353 = vpack.c.b16 %v1038, %v1029
        %v1354 = vpack.c.b16 %v1048, %v1039
        %v1355 = vpack.c.b16 %v1049, %v1040
        %v1356 = vpack.c.b16 %v1050, %v1041
        %v1357 = vpack.c.b16 %v1051, %v1042
        %v1358 = vpack.c.b16 %v1052, %v1043
        %v1359 = vpack.c.b16 %v1053, %v1044
        %v1360 = vpack.c.b16 %v1054, %v1045
        %v1361 = vpack.c.b16 %v1055, %v1046
        %v1362 = vpack.c.b16 %v1056, %v1047
        %v1363 = vpack.c.b16 %v1066, %v1057
        %v1364 = vpack.c.b16 %v1067, %v1058
        %v1365 = vpack.c.b16 %v1068, %v1059
        %v1366 = vpack.c.b16 %v1069, %v1060
        %v1367 = vpack.c.b16 %v1070, %v1061
        %v1368 = vpack.c.b16 %v1071, %v1062
        %v1369 = vpack.c.b16 %v1072, %v1063
        %v1370 = vpack.c.b16 %v1073, %v1064
        %v1371 = vpack.c.b16 %v1074, %v1065
        %v1372 = vpack.c.b16 %v1084, %v1075
        %v1373 = vpack.c.b16 %v1085, %v1076
        %v1374 = vpack.c.b16 %v1086, %v1077
        %v1375 = vpack.c.b16 %v1087, %v1078
        %v1376 = vpack.c.b16 %v1088, %v1079
        %v1377 = vpack.c.b16 %v1089, %v1080
        %v1378 = vpack.c.b16 %v1090, %v1081
        %v1379 = vpack.c.b16 %v1091, %v1082
        %v1380 = vpack.c.b16 %v1092, %v1083
        %v1381 = vpack.c.b16 %v1102, %v1093
        %v1382 = vpack.c.b16 %v1103, %v1094
        %v1383 = vpack.c.b16 %v1104, %v1095
        %v1384 = vpack.c.b16 %v1105, %v1096
        %v1385 = vpack.c.b16 %v1106, %v1097
        %v1386 = vpack.c.b16 %v1107, %v1098
        %v1387 = vpack.c.b16 %v1108, %v1099
        %v1388 = vpack.c.b16 %v1109, %v1100
        %v1389 = vpack.c.b16 %v1110, %v1101
        %v1390 = vpack.c.b16 %v1120, %v1111
        %v1391 = vpack.c.b16 %v1121, %v1112
        %v1392 = vpack.c.b16 %v1122, %v1113
        %v1393 = vpack.c.b16 %v1123, %v1114
        %v1394 = vpack.c.b16 %v1124, %v1115
        %v1395 = vpack.c.b16 %v1125, %v1116
        %v1396 = vpack.c.b16 %v1126, %v1117
        %v1397 = vpack.c.b16 %v1127, %v1118
        %v1398 = vpack.c.b16 %v1128, %v1119
        %v1399 = vpack.c.b16 %v1138, %v1129
        %v1400 = vpack.c.b16 %v1139, %v1130
        %v1401 = vpack.c.b16 %v1140, %v1131
        %v1402 = vpack.c.b16 %v1141, %v1132
        %v1403 = vpack.c.b16 %v1142, %v1133
        %v1404 = vpack.c.b16 %v1143, %v1134
        %v1405 = vpack.c.b16 %v1144, %v1135
        %v1406 = vpack.c.b16 %v1145, %v1136
        %v1407 = vpack.c.b16 %v1146, %v1137
        %v1408 = vpack.c.b16 %v1156, %v1147
        %v1409 = vpack.c.b16 %v1157, %v1148
        %v1410 = vpack.c.b16 %v1158, %v1149
        %v1411 = vpack.c.b16 %v1159, %v1150
        %v1412 = vpack.c.b16 %v1160, %v1151
        %v1413 = vpack.c.b16 %v1161, %v1152
        %v1414 = vpack.c.b16 %v1162, %v1153
        %v1415 = vpack.c.b16 %v1163, %v1154
        %v1416 = vpack.c.b16 %v1164, %v1155
        %v1417 = vpack.c.b16 %v1174, %v1165
        %v1418 = vpack.c.b16 %v1175, %v1166
        %v1419 = vpack.c.b16 %v1176, %v1167
        %v1420 = vpack.c.b16 %v1177, %v1168
        %v1421 = vpack.c.b16 %v1178, %v1169
        %v1422 = vpack.c.b16 %v1179, %v1170
        %v1423 = vpack.c.b16 %v1180, %v1171
        %v1424 = vpack.c.b16 %v1181, %v1172
        %v1425 = vpack.c.b16 %v1182, %v1173
        %v1426 = vpack.c.b16 %v1192, %v1183
        %v1427 = vpack.c.b16 %v1193, %v1184
        %v1428 = vpack.c.b16 %v1194, %v1185
        %v1429 = vpack.c.b16 %v1195, %v1186
        %v1430 = vpack.c.b16 %v1196, %v1187
        %v1431 = vpack.c.b16 %v1197, %v1188
        %v1432 = vpack.c.b16 %v1198, %v1189
        %v1433 = vpack.c.b16 %v1199, %v1190
        %v1434 = vpack.c.b16 %v1200, %v1191
        %v1435 = vpack.c.b16 %v1210, %v1201
        %v1436 = vpack.c.b16 %v1211, %v1202
        %v1437 = vpack.c.b16 %v1212, %v1203
        %v1438 = vpack.c.b16 %v1213, %v1204
        %v1439 = vpack.c.b16 %v1214, %v1205
        %v1440 = vpack.c.b16 %v1215, %v1206
        %v1441 = vpack.c.b16 %v1216, %v1207
        %v1442 = vpack.c.b16 %v1217, %v1208
        %v1443 = vpack.c.b16 %v1218, %v1209
        %v1444 = vpack.c.b16 %v1228, %v1219
        %v1445 = vpack.c.b16 %v1229, %v1220
        %v1446 = vpack.c.b16 %v1230, %v1221
        %v1447 = vpack.c.b16 %v1231, %v1222
        %v1448 = vpack.c.b16 %v1232, %v1223
        %v1449 = vpack.c.b16 %v1233, %v1224
        %v1450 = vpack.c.b16 %v1234, %v1225
        %v1451 = vpack.c.b16 %v1235, %v1226
        %v1452 = vpack.c.b16 %v1236, %v1227
        %1669 = vmatpush.bf16.msra.mxu0 %v1300
        %1670 = vmatpush.bf16.msra.mxu0 %v1291
        %1671 = vmatpush.bf16.msra.mxu0 %v1282
        %1672 = vmatpush.bf16.msra.mxu0 %v1273
        %1673 = vmatpush.bf16.msra.mxu0 %v1264
        %1674 = vmatpush.bf16.msra.mxu0 %v1255
        %1675 = vmatpush.bf16.msra.mxu0 %v1246
        %1676 = vmatpush.bf16.msra.mxu0 %v1237
        %1677 = vmatmul.bf16.gmra.mxu0 %v277
        %v1678 = vpop.f32.mrf.mxu0
        %v1679 = vadd.f32 0.0, %v1678
        %v1680 = vpop.f32.mrf.mxu0
        %v1681 = vadd.f32 0.0, %v1680
        %1682 = vmatmul.bf16.gmra.mxu0 %v280
        %v1683 = vpop.f32.mrf.mxu0
        %v1684 = vadd.f32 0.0, %v1683
        %v1685 = vpop.f32.mrf.mxu0
        %v1686 = vadd.f32 0.0, %v1685
        %1687 = vmatmul.bf16.gmra.mxu0 %v283
        %v1688 = vpop.f32.mrf.mxu0
        %v1689 = vadd.f32 0.0, %v1688
        %v1690 = vpop.f32.mrf.mxu0
        %v1691 = vadd.f32 0.0, %v1690
        %1692 = vmatmul.bf16.gmra.mxu0 %v286
        %v1693 = vpop.f32.mrf.mxu0
        %v1694 = vadd.f32 0.0, %v1693
        %v1695 = vpop.f32.mrf.mxu0
        %v1696 = vadd.f32 0.0, %v1695
        %1697 = vmatmul.bf16.gmra.mxu0 %v289
        %v1698 = vpop.f32.mrf.mxu0
        %v1699 = vadd.f32 0.0, %v1698
        %v1700 = vpop.f32.mrf.mxu0
        %v1701 = vadd.f32 0.0, %v1700
        %1702 = vmatmul.bf16.gmra.mxu0 %v292
        %v1703 = vpop.f32.mrf.mxu0
        %v1704 = vadd.f32 0.0, %v1703
        %v1705 = vpop.f32.mrf.mxu0
        %v1706 = vadd.f32 0.0, %v1705
        %1707 = vmatmul.bf16.gmra.mxu0 %v295
        %v1708 = vpop.f32.mrf.mxu0
        %v1709 = vadd.f32 0.0, %v1708
        %v1710 = vpop.f32.mrf.mxu0
        %v1711 = vadd.f32 0.0, %v1710
        %1712 = vmatmul.bf16.gmra.mxu0 %v298
        %v1713 = vpop.f32.mrf.mxu0
        %v1714 = vadd.f32 0.0, %v1713
        %v1715 = vpop.f32.mrf.mxu0
        %v1716 = vadd.f32 0.0, %v1715
        %1717 = vmatmul.bf16.gmra.mxu0 %v301
        %v1718 = vpop.f32.mrf.mxu0
        %v1719 = vadd.f32 0.0, %v1718
        %v1720 = vpop.f32.mrf.mxu0
        %v1721 = vadd.f32 0.0, %v1720
        %1722 = vmatmul.bf16.gmra.mxu0 %v304
        %v1723 = vpop.f32.mrf.mxu0
        %v1724 = vadd.f32 0.0, %v1723
        %v1725 = vpop.f32.mrf.mxu0
        %v1726 = vadd.f32 0.0, %v1725
        %1727 = vmatmul.bf16.gmra.mxu0 %v307
        %v1728 = vpop.f32.mrf.mxu0
        %v1729 = vadd.f32 0.0, %v1728
        %v1730 = vpop.f32.mrf.mxu0
        %v1731 = vadd.f32 0.0, %v1730
        %1732 = vmatmul.bf16.gmra.mxu0 %v310
        %v1733 = vpop.f32.mrf.mxu0
        %v1734 = vadd.f32 0.0, %v1733
        %v1735 = vpop.f32.mrf.mxu0
        %v1736 = vadd.f32 0.0, %v1735
        %1737 = vmatmul.bf16.gmra.mxu0 %v313
        %v1738 = vpop.f32.mrf.mxu0
        %v1739 = vadd.f32 0.0, %v1738
        %v1740 = vpop.f32.mrf.mxu0
        %v1741 = vadd.f32 0.0, %v1740
        %1742 = vmatmul.bf16.gmra.mxu0 %v316
        %v1743 = vpop.f32.mrf.mxu0
        %v1744 = vadd.f32 0.0, %v1743
        %v1745 = vpop.f32.mrf.mxu0
        %v1746 = vadd.f32 0.0, %v1745
        %1747 = vmatmul.bf16.gmra.mxu0 %v319
        %v1748 = vpop.f32.mrf.mxu0
        %v1749 = vadd.f32 0.0, %v1748
        %v1750 = vpop.f32.mrf.mxu0
        %v1751 = vadd.f32 0.0, %v1750
        %1752 = vmatmul.bf16.gmra.mxu0 %v322
        %v1753 = vpop.f32.mrf.mxu0
        %v1754 = vadd.f32 0.0, %v1753
        %v1755 = vpop.f32.mrf.mxu0
        %v1756 = vadd.f32 0.0, %v1755
        %1757 = vdwg.mxu0
        %1758 = vmatpush.bf16.msra.mxu0 %v1372
        %1759 = vmatpush.bf16.msra.mxu0 %v1363
        %1760 = vmatpush.bf16.msra.mxu0 %v1354
        %1761 = vmatpush.bf16.msra.mxu0 %v1345
        %1762 = vmatpush.bf16.msra.mxu0 %v1336
        %1763 = vmatpush.bf16.msra.mxu0 %v1327
        %1764 = vmatpush.bf16.msra.mxu0 %v1318
        %1765 = vmatpush.bf16.msra.mxu0 %v1309
        %1766 = vmatmul.bf16.gmra.mxu0 %v278
        %v1767 = vpop.f32.mrf.mxu0
        %v1768 = vadd.f32 %v1679, %v1767
        %v1769 = vpop.f32.mrf.mxu0
        %v1770 = vadd.f32 %v1681, %v1769
        %1771 = vmatmul.bf16.gmra.mxu0 %v281
        %v1772 = vpop.f32.mrf.mxu0
        %v1773 = vadd.f32 %v1684, %v1772
        %v1774 = vpop.f32.mrf.mxu0
        %v1775 = vadd.f32 %v1686, %v1774
        %1776 = vmatmul.bf16.gmra.mxu0 %v284
        %v1777 = vpop.f32.mrf.mxu0
        %v1778 = vadd.f32 %v1689, %v1777
        %v1779 = vpop.f32.mrf.mxu0
        %v1780 = vadd.f32 %v1691, %v1779
        %1781 = vmatmul.bf16.gmra.mxu0 %v287
        %v1782 = vpop.f32.mrf.mxu0
        %v1783 = vadd.f32 %v1694, %v1782
        %v1784 = vpop.f32.mrf.mxu0
        %v1785 = vadd.f32 %v1696, %v1784
        %1786 = vmatmul.bf16.gmra.mxu0 %v290
        %v1787 = vpop.f32.mrf.mxu0
        %v1788 = vadd.f32 %v1699, %v1787
        %v1789 = vpop.f32.mrf.mxu0
        %v1790 = vadd.f32 %v1701, %v1789
        %1791 = vmatmul.bf16.gmra.mxu0 %v293
        %v1792 = vpop.f32.mrf.mxu0
        %v1793 = vadd.f32 %v1704, %v1792
        %v1794 = vpop.f32.mrf.mxu0
        %v1795 = vadd.f32 %v1706, %v1794
        %1796 = vmatmul.bf16.gmra.mxu0 %v296
        %v1797 = vpop.f32.mrf.mxu0
        %v1798 = vadd.f32 %v1709, %v1797
        %v1799 = vpop.f32.mrf.mxu0
        %v1800 = vadd.f32 %v1711, %v1799
        %1801 = vmatmul.bf16.gmra.mxu0 %v299
        %v1802 = vpop.f32.mrf.mxu0
        %v1803 = vadd.f32 %v1714, %v1802
        %v1804 = vpop.f32.mrf.mxu0
        %v1805 = vadd.f32 %v1716, %v1804
        %1806 = vmatmul.bf16.gmra.mxu0 %v302
        %v1807 = vpop.f32.mrf.mxu0
        %v1808 = vadd.f32 %v1719, %v1807
        %v1809 = vpop.f32.mrf.mxu0
        %v1810 = vadd.f32 %v1721, %v1809
        %1811 = vmatmul.bf16.gmra.mxu0 %v305
        %v1812 = vpop.f32.mrf.mxu0
        %v1813 = vadd.f32 %v1724, %v1812
        %v1814 = vpop.f32.mrf.mxu0
        %v1815 = vadd.f32 %v1726, %v1814
        %1816 = vmatmul.bf16.gmra.mxu0 %v308
        %v1817 = vpop.f32.mrf.mxu0
        %v1818 = vadd.f32 %v1729, %v1817
        %v1819 = vpop.f32.mrf.mxu0
        %v1820 = vadd.f32 %v1731, %v1819
        %1821 = vmatmul.bf16.gmra.mxu0 %v311
        %v1822 = vpop.f32.mrf.mxu0
        %v1823 = vadd.f32 %v1734, %v1822
        %v1824 = vpop.f32.mrf.mxu0
        %v1825 = vadd.f32 %v1736, %v1824
        %1826 = vmatmul.bf16.gmra.mxu0 %v314
        %v1827 = vpop.f32.mrf.mxu0
        %v1828 = vadd.f32 %v1739, %v1827
        %v1829 = vpop.f32.mrf.mxu0
        %v1830 = vadd.f32 %v1741, %v1829
        %1831 = vmatmul.bf16.gmra.mxu0 %v317
        %v1832 = vpop.f32.mrf.mxu0
        %v1833 = vadd.f32 %v1744, %v1832
        %v1834 = vpop.f32.mrf.mxu0
        %v1835 = vadd.f32 %v1746, %v1834
        %1836 = vmatmul.bf16.gmra.mxu0 %v320
        %v1837 = vpop.f32.mrf.mxu0
        %v1838 = vadd.f32 %v1749, %v1837
        %v1839 = vpop.f32.mrf.mxu0
        %v1840 = vadd.f32 %v1751, %v1839
        %1841 = vmatmul.bf16.gmra.mxu0 %v323
        %v1842 = vpop.f32.mrf.mxu0
        %v1843 = vadd.f32 %v1754, %v1842
        %v1844 = vpop.f32.mrf.mxu0
        %v1845 = vadd.f32 %v1756, %v1844
        %1846 = vdwg.mxu0
        %1847 = vmatpush.bf16.msra.mxu0 %v1444
        %1848 = vmatpush.bf16.msra.mxu0 %v1435
        %1849 = vmatpush.bf16.msra.mxu0 %v1426
        %1850 = vmatpush.bf16.msra.mxu0 %v1417
        %1851 = vmatpush.bf16.msra.mxu0 %v1408
        %1852 = vmatpush.bf16.msra.mxu0 %v1399
        %1853 = vmatpush.bf16.msra.mxu0 %v1390
        %1854 = vmatpush.bf16.msra.mxu0 %v1381
        %1855 = vmatmul.bf16.gmra.mxu0 %v279
        %v1856 = vpop.f32.mrf.mxu0
        %v1857 = vadd.f32 %v1768, %v1856
        %v1858 = vpop.f32.mrf.mxu0
        %v1859 = vadd.f32 %v1770, %v1858
        %1860 = vmatmul.bf16.gmra.mxu0 %v282
        %v1861 = vpop.f32.mrf.mxu0
        %v1862 = vadd.f32 %v1773, %v1861
        %v1863 = vpop.f32.mrf.mxu0
        %v1864 = vadd.f32 %v1775, %v1863
        %1865 = vmatmul.bf16.gmra.mxu0 %v285
        %v1866 = vpop.f32.mrf.mxu0
        %v1867 = vadd.f32 %v1778, %v1866
        %v1868 = vpop.f32.mrf.mxu0
        %v1869 = vadd.f32 %v1780, %v1868
        %1870 = vmatmul.bf16.gmra.mxu0 %v288
        %v1871 = vpop.f32.mrf.mxu0
        %v1872 = vadd.f32 %v1783, %v1871
        %v1873 = vpop.f32.mrf.mxu0
        %v1874 = vadd.f32 %v1785, %v1873
        %1875 = vmatmul.bf16.gmra.mxu0 %v291
        %v1876 = vpop.f32.mrf.mxu0
        %v1877 = vadd.f32 %v1788, %v1876
        %v1878 = vpop.f32.mrf.mxu0
        %v1879 = vadd.f32 %v1790, %v1878
        %1880 = vmatmul.bf16.gmra.mxu0 %v294
        %v1881 = vpop.f32.mrf.mxu0
        %v1882 = vadd.f32 %v1793, %v1881
        %v1883 = vpop.f32.mrf.mxu0
        %v1884 = vadd.f32 %v1795, %v1883
        %1885 = vmatmul.bf16.gmra.mxu0 %v297
        %v1886 = vpop.f32.mrf.mxu0
        %v1887 = vadd.f32 %v1798, %v1886
        %v1888 = vpop.f32.mrf.mxu0
        %v1889 = vadd.f32 %v1800, %v1888
        %1890 = vmatmul.bf16.gmra.mxu0 %v300
        %v1891 = vpop.f32.mrf.mxu0
        %v1892 = vadd.f32 %v1803, %v1891
        %v1893 = vpop.f32.mrf.mxu0
        %v1894 = vadd.f32 %v1805, %v1893
        %1895 = vmatmul.bf16.gmra.mxu0 %v303
        %v1896 = vpop.f32.mrf.mxu0
        %v1897 = vadd.f32 %v1808, %v1896
        %v1898 = vpop.f32.mrf.mxu0
        %v1899 = vadd.f32 %v1810, %v1898
        %1900 = vmatmul.bf16.gmra.mxu0 %v306
        %v1901 = vpop.f32.mrf.mxu0
        %v1902 = vadd.f32 %v1813, %v1901
        %v1903 = vpop.f32.mrf.mxu0
        %v1904 = vadd.f32 %v1815, %v1903
        %1905 = vmatmul.bf16.gmra.mxu0 %v309
        %v1906 = vpop.f32.mrf.mxu0
        %v1907 = vadd.f32 %v1818, %v1906
        %v1908 = vpop.f32.mrf.mxu0
        %v1909 = vadd.f32 %v1820, %v1908
        %1910 = vmatmul.bf16.gmra.mxu0 %v312
        %v1911 = vpop.f32.mrf.mxu0
        %v1912 = vadd.f32 %v1823, %v1911
        %v1913 = vpop.f32.mrf.mxu0
        %v1914 = vadd.f32 %v1825, %v1913
        %1915 = vmatmul.bf16.gmra.mxu0 %v315
        %v1916 = vpop.f32.mrf.mxu0
        %v1917 = vadd.f32 %v1828, %v1916
        %v1918 = vpop.f32.mrf.mxu0
        %v1919 = vadd.f32 %v1830, %v1918
        %1920 = vmatmul.bf16.gmra.mxu0 %v318
        %v1921 = vpop.f32.mrf.mxu0
        %v1922 = vadd.f32 %v1833, %v1921
        %v1923 = vpop.f32.mrf.mxu0
        %v1924 = vadd.f32 %v1835, %v1923
        %1925 = vmatmul.bf16.gmra.mxu0 %v321
        %v1926 = vpop.f32.mrf.mxu0
        %v1927 = vadd.f32 %v1838, %v1926
        %v1928 = vpop.f32.mrf.mxu0
        %v1929 = vadd.f32 %v1840, %v1928
        %1930 = vmatmul.bf16.gmra.mxu0 %v324
        %v1931 = vpop.f32.mrf.mxu0
        %v1932 = vadd.f32 %v1843, %v1931
        %v1933 = vpop.f32.mrf.mxu0
        %v1934 = vadd.f32 %v1845, %v1933
        %1935 = vdwg.mxu0
        %1936 = vmatpush.bf16.msra.mxu0 %v1301
        %1937 = vmatpush.bf16.msra.mxu0 %v1292
        %1938 = vmatpush.bf16.msra.mxu0 %v1283
        %1939 = vmatpush.bf16.msra.mxu0 %v1274
        %1940 = vmatpush.bf16.msra.mxu0 %v1265
        %1941 = vmatpush.bf16.msra.mxu0 %v1256
        %1942 = vmatpush.bf16.msra.mxu0 %v1247
        %1943 = vmatpush.bf16.msra.mxu0 %v1238
        %1944 = vmatmul.bf16.gmra.mxu0 %v277
        %v1945 = vpop.f32.mrf.mxu0
        %v1946 = vadd.f32 0.0, %v1945
        %v1947 = vpop.f32.mrf.mxu0
        %v1948 = vadd.f32 0.0, %v1947
        %1949 = vmatmul.bf16.gmra.mxu0 %v280
        %v1950 = vpop.f32.mrf.mxu0
        %v1951 = vadd.f32 0.0, %v1950
        %v1952 = vpop.f32.mrf.mxu0
        %v1953 = vadd.f32 0.0, %v1952
        %1954 = vmatmul.bf16.gmra.mxu0 %v283
        %v1955 = vpop.f32.mrf.mxu0
        %v1956 = vadd.f32 0.0, %v1955
        %v1957 = vpop.f32.mrf.mxu0
        %v1958 = vadd.f32 0.0, %v1957
        %1959 = vmatmul.bf16.gmra.mxu0 %v286
        %v1960 = vpop.f32.mrf.mxu0
        %v1961 = vadd.f32 0.0, %v1960
        %v1962 = vpop.f32.mrf.mxu0
        %v1963 = vadd.f32 0.0, %v1962
        %1964 = vmatmul.bf16.gmra.mxu0 %v289
        %v1965 = vpop.f32.mrf.mxu0
        %v1966 = vadd.f32 0.0, %v1965
        %v1967 = vpop.f32.mrf.mxu0
        %v1968 = vadd.f32 0.0, %v1967
        %1969 = vmatmul.bf16.gmra.mxu0 %v292
        %v1970 = vpop.f32.mrf.mxu0
        %v1971 = vadd.f32 0.0, %v1970
        %v1972 = vpop.f32.mrf.mxu0
        %v1973 = vadd.f32 0.0, %v1972
        %1974 = vmatmul.bf16.gmra.mxu0 %v295
        %v1975 = vpop.f32.mrf.mxu0
        %v1976 = vadd.f32 0.0, %v1975
        %v1977 = vpop.f32.mrf.mxu0
        %v1978 = vadd.f32 0.0, %v1977
        %1979 = vmatmul.bf16.gmra.mxu0 %v298
        %v1980 = vpop.f32.mrf.mxu0
        %v1981 = vadd.f32 0.0, %v1980
        %v1982 = vpop.f32.mrf.mxu0
        %v1983 = vadd.f32 0.0, %v1982
        %1984 = vmatmul.bf16.gmra.mxu0 %v301
        %v1985 = vpop.f32.mrf.mxu0
        %v1986 = vadd.f32 0.0, %v1985
        %v1987 = vpop.f32.mrf.mxu0
        %v1988 = vadd.f32 0.0, %v1987
        %1989 = vmatmul.bf16.gmra.mxu0 %v304
        %v1990 = vpop.f32.mrf.mxu0
        %v1991 = vadd.f32 0.0, %v1990
        %v1992 = vpop.f32.mrf.mxu0
        %v1993 = vadd.f32 0.0, %v1992
        %1994 = vmatmul.bf16.gmra.mxu0 %v307
        %v1995 = vpop.f32.mrf.mxu0
        %v1996 = vadd.f32 0.0, %v1995
        %v1997 = vpop.f32.mrf.mxu0
        %v1998 = vadd.f32 0.0, %v1997
        %1999 = vmatmul.bf16.gmra.mxu0 %v310
        %v2000 = vpop.f32.mrf.mxu0
        %v2001 = vadd.f32 0.0, %v2000
        %v2002 = vpop.f32.mrf.mxu0
        %v2003 = vadd.f32 0.0, %v2002
        %2004 = vmatmul.bf16.gmra.mxu0 %v313
        %v2005 = vpop.f32.mrf.mxu0
        %v2006 = vadd.f32 0.0, %v2005
        %v2007 = vpop.f32.mrf.mxu0
        %v2008 = vadd.f32 0.0, %v2007
        %2009 = vmatmul.bf16.gmra.mxu0 %v316
        %v2010 = vpop.f32.mrf.mxu0
        %v2011 = vadd.f32 0.0, %v2010
        %v2012 = vpop.f32.mrf.mxu0
        %v2013 = vadd.f32 0.0, %v2012
        %2014 = vmatmul.bf16.gmra.mxu0 %v319
        %v2015 = vpop.f32.mrf.mxu0
        %v2016 = vadd.f32 0.0, %v2015
        %v2017 = vpop.f32.mrf.mxu0
        %v2018 = vadd.f32 0.0, %v2017
        %2019 = vmatmul.bf16.gmra.mxu0 %v322
        %v2020 = vpop.f32.mrf.mxu0
        %v2021 = vadd.f32 0.0, %v2020
        %v2022 = vpop.f32.mrf.mxu0
        %v2023 = vadd.f32 0.0, %v2022
        %2024 = vdwg.mxu0
        %2025 = vmatpush.bf16.msra.mxu0 %v1373
        %2026 = vmatpush.bf16.msra.mxu0 %v1364
        %2027 = vmatpush.bf16.msra.mxu0 %v1355
        %2028 = vmatpush.bf16.msra.mxu0 %v1346
        %2029 = vmatpush.bf16.msra.mxu0 %v1337
        %2030 = vmatpush.bf16.msra.mxu0 %v1328
        %2031 = vmatpush.bf16.msra.mxu0 %v1319
        %2032 = vmatpush.bf16.msra.mxu0 %v1310
        %2033 = vmatmul.bf16.gmra.mxu0 %v278
        %v2034 = vpop.f32.mrf.mxu0
        %v2035 = vadd.f32 %v1946, %v2034
        %v2036 = vpop.f32.mrf.mxu0
        %v2037 = vadd.f32 %v1948, %v2036
        %2038 = vmatmul.bf16.gmra.mxu0 %v281
        %v2039 = vpop.f32.mrf.mxu0
        %v2040 = vadd.f32 %v1951, %v2039
        %v2041 = vpop.f32.mrf.mxu0
        %v2042 = vadd.f32 %v1953, %v2041
        %2043 = vmatmul.bf16.gmra.mxu0 %v284
        %v2044 = vpop.f32.mrf.mxu0
        %v2045 = vadd.f32 %v1956, %v2044
        %v2046 = vpop.f32.mrf.mxu0
        %v2047 = vadd.f32 %v1958, %v2046
        %2048 = vmatmul.bf16.gmra.mxu0 %v287
        %v2049 = vpop.f32.mrf.mxu0
        %v2050 = vadd.f32 %v1961, %v2049
        %v2051 = vpop.f32.mrf.mxu0
        %v2052 = vadd.f32 %v1963, %v2051
        %2053 = vmatmul.bf16.gmra.mxu0 %v290
        %v2054 = vpop.f32.mrf.mxu0
        %v2055 = vadd.f32 %v1966, %v2054
        %v2056 = vpop.f32.mrf.mxu0
        %v2057 = vadd.f32 %v1968, %v2056
        %2058 = vmatmul.bf16.gmra.mxu0 %v293
        %v2059 = vpop.f32.mrf.mxu0
        %v2060 = vadd.f32 %v1971, %v2059
        %v2061 = vpop.f32.mrf.mxu0
        %v2062 = vadd.f32 %v1973, %v2061
        %2063 = vmatmul.bf16.gmra.mxu0 %v296
        %v2064 = vpop.f32.mrf.mxu0
        %v2065 = vadd.f32 %v1976, %v2064
        %v2066 = vpop.f32.mrf.mxu0
        %v2067 = vadd.f32 %v1978, %v2066
        %2068 = vmatmul.bf16.gmra.mxu0 %v299
        %v2069 = vpop.f32.mrf.mxu0
        %v2070 = vadd.f32 %v1981, %v2069
        %v2071 = vpop.f32.mrf.mxu0
        %v2072 = vadd.f32 %v1983, %v2071
        %2073 = vmatmul.bf16.gmra.mxu0 %v302
        %v2074 = vpop.f32.mrf.mxu0
        %v2075 = vadd.f32 %v1986, %v2074
        %v2076 = vpop.f32.mrf.mxu0
        %v2077 = vadd.f32 %v1988, %v2076
        %2078 = vmatmul.bf16.gmra.mxu0 %v305
        %v2079 = vpop.f32.mrf.mxu0
        %v2080 = vadd.f32 %v1991, %v2079
        %v2081 = vpop.f32.mrf.mxu0
        %v2082 = vadd.f32 %v1993, %v2081
        %2083 = vmatmul.bf16.gmra.mxu0 %v308
        %v2084 = vpop.f32.mrf.mxu0
        %v2085 = vadd.f32 %v1996, %v2084
        %v2086 = vpop.f32.mrf.mxu0
        %v2087 = vadd.f32 %v1998, %v2086
        %2088 = vmatmul.bf16.gmra.mxu0 %v311
        %v2089 = vpop.f32.mrf.mxu0
        %v2090 = vadd.f32 %v2001, %v2089
        %v2091 = vpop.f32.mrf.mxu0
        %v2092 = vadd.f32 %v2003, %v2091
        %2093 = vmatmul.bf16.gmra.mxu0 %v314
        %v2094 = vpop.f32.mrf.mxu0
        %v2095 = vadd.f32 %v2006, %v2094
        %v2096 = vpop.f32.mrf.mxu0
        %v2097 = vadd.f32 %v2008, %v2096
        %2098 = vmatmul.bf16.gmra.mxu0 %v317
        %v2099 = vpop.f32.mrf.mxu0
        %v2100 = vadd.f32 %v2011, %v2099
        %v2101 = vpop.f32.mrf.mxu0
        %v2102 = vadd.f32 %v2013, %v2101
        %2103 = vmatmul.bf16.gmra.mxu0 %v320
        %v2104 = vpop.f32.mrf.mxu0
        %v2105 = vadd.f32 %v2016, %v2104
        %v2106 = vpop.f32.mrf.mxu0
        %v2107 = vadd.f32 %v2018, %v2106
        %2108 = vmatmul.bf16.gmra.mxu0 %v323
        %v2109 = vpop.f32.mrf.mxu0
        %v2110 = vadd.f32 %v2021, %v2109
        %v2111 = vpop.f32.mrf.mxu0
        %v2112 = vadd.f32 %v2023, %v2111
        %2113 = vdwg.mxu0
        %2114 = vmatpush.bf16.msra.mxu0 %v1445
        %2115 = vmatpush.bf16.msra.mxu0 %v1436
        %2116 = vmatpush.bf16.msra.mxu0 %v1427
        %2117 = vmatpush.bf16.msra.mxu0 %v1418
        %2118 = vmatpush.bf16.msra.mxu0 %v1409
        %2119 = vmatpush.bf16.msra.mxu0 %v1400
        %2120 = vmatpush.bf16.msra.mxu0 %v1391
        %2121 = vmatpush.bf16.msra.mxu0 %v1382
        %2122 = vmatmul.bf16.gmra.mxu0 %v279
        %v2123 = vpop.f32.mrf.mxu0
        %v2124 = vadd.f32 %v2035, %v2123
        %v2125 = vpop.f32.mrf.mxu0
        %v2126 = vadd.f32 %v2037, %v2125
        %2127 = vmatmul.bf16.gmra.mxu0 %v282
        %v2128 = vpop.f32.mrf.mxu0
        %v2129 = vadd.f32 %v2040, %v2128
        %v2130 = vpop.f32.mrf.mxu0
        %v2131 = vadd.f32 %v2042, %v2130
        %2132 = vmatmul.bf16.gmra.mxu0 %v285
        %v2133 = vpop.f32.mrf.mxu0
        %v2134 = vadd.f32 %v2045, %v2133
        %v2135 = vpop.f32.mrf.mxu0
        %v2136 = vadd.f32 %v2047, %v2135
        %2137 = vmatmul.bf16.gmra.mxu0 %v288
        %v2138 = vpop.f32.mrf.mxu0
        %v2139 = vadd.f32 %v2050, %v2138
        %v2140 = vpop.f32.mrf.mxu0
        %v2141 = vadd.f32 %v2052, %v2140
        %2142 = vmatmul.bf16.gmra.mxu0 %v291
        %v2143 = vpop.f32.mrf.mxu0
        %v2144 = vadd.f32 %v2055, %v2143
        %v2145 = vpop.f32.mrf.mxu0
        %v2146 = vadd.f32 %v2057, %v2145
        %2147 = vmatmul.bf16.gmra.mxu0 %v294
        %v2148 = vpop.f32.mrf.mxu0
        %v2149 = vadd.f32 %v2060, %v2148
        %v2150 = vpop.f32.mrf.mxu0
        %v2151 = vadd.f32 %v2062, %v2150
        %2152 = vmatmul.bf16.gmra.mxu0 %v297
        %v2153 = vpop.f32.mrf.mxu0
        %v2154 = vadd.f32 %v2065, %v2153
        %v2155 = vpop.f32.mrf.mxu0
        %v2156 = vadd.f32 %v2067, %v2155
        %2157 = vmatmul.bf16.gmra.mxu0 %v300
        %v2158 = vpop.f32.mrf.mxu0
        %v2159 = vadd.f32 %v2070, %v2158
        %v2160 = vpop.f32.mrf.mxu0
        %v2161 = vadd.f32 %v2072, %v2160
        %2162 = vmatmul.bf16.gmra.mxu0 %v303
        %v2163 = vpop.f32.mrf.mxu0
        %v2164 = vadd.f32 %v2075, %v2163
        %v2165 = vpop.f32.mrf.mxu0
        %v2166 = vadd.f32 %v2077, %v2165
        %2167 = vmatmul.bf16.gmra.mxu0 %v306
        %v2168 = vpop.f32.mrf.mxu0
        %v2169 = vadd.f32 %v2080, %v2168
        %v2170 = vpop.f32.mrf.mxu0
        %v2171 = vadd.f32 %v2082, %v2170
        %2172 = vmatmul.bf16.gmra.mxu0 %v309
        %v2173 = vpop.f32.mrf.mxu0
        %v2174 = vadd.f32 %v2085, %v2173
        %v2175 = vpop.f32.mrf.mxu0
        %v2176 = vadd.f32 %v2087, %v2175
        %2177 = vmatmul.bf16.gmra.mxu0 %v312
        %v2178 = vpop.f32.mrf.mxu0
        %v2179 = vadd.f32 %v2090, %v2178
        %v2180 = vpop.f32.mrf.mxu0
        %v2181 = vadd.f32 %v2092, %v2180
        %2182 = vmatmul.bf16.gmra.mxu0 %v315
        %v2183 = vpop.f32.mrf.mxu0
        %v2184 = vadd.f32 %v2095, %v2183
        %v2185 = vpop.f32.mrf.mxu0
        %v2186 = vadd.f32 %v2097, %v2185
        %2187 = vmatmul.bf16.gmra.mxu0 %v318
        %v2188 = vpop.f32.mrf.mxu0
        %v2189 = vadd.f32 %v2100, %v2188
        %v2190 = vpop.f32.mrf.mxu0
        %v2191 = vadd.f32 %v2102, %v2190
        %2192 = vmatmul.bf16.gmra.mxu0 %v321
        %v2193 = vpop.f32.mrf.mxu0
        %v2194 = vadd.f32 %v2105, %v2193
        %v2195 = vpop.f32.mrf.mxu0
        %v2196 = vadd.f32 %v2107, %v2195
        %2197 = vmatmul.bf16.gmra.mxu0 %v324
        %v2198 = vpop.f32.mrf.mxu0
        %v2199 = vadd.f32 %v2110, %v2198
        %v2200 = vpop.f32.mrf.mxu0
        %v2201 = vadd.f32 %v2112, %v2200
        %2202 = vdwg.mxu0
        %2203 = vmatpush.bf16.msra.mxu0 %v1302
        %2204 = vmatpush.bf16.msra.mxu0 %v1293
        %2205 = vmatpush.bf16.msra.mxu0 %v1284
        %2206 = vmatpush.bf16.msra.mxu0 %v1275
        %2207 = vmatpush.bf16.msra.mxu0 %v1266
        %2208 = vmatpush.bf16.msra.mxu0 %v1257
        %2209 = vmatpush.bf16.msra.mxu0 %v1248
        %2210 = vmatpush.bf16.msra.mxu0 %v1239
        %2211 = vmatmul.bf16.gmra.mxu0 %v277
        %v2212 = vpop.f32.mrf.mxu0
        %v2213 = vadd.f32 0.0, %v2212
        %v2214 = vpop.f32.mrf.mxu0
        %v2215 = vadd.f32 0.0, %v2214
        %2216 = vmatmul.bf16.gmra.mxu0 %v280
        %v2217 = vpop.f32.mrf.mxu0
        %v2218 = vadd.f32 0.0, %v2217
        %v2219 = vpop.f32.mrf.mxu0
        %v2220 = vadd.f32 0.0, %v2219
        %2221 = vmatmul.bf16.gmra.mxu0 %v283
        %v2222 = vpop.f32.mrf.mxu0
        %v2223 = vadd.f32 0.0, %v2222
        %v2224 = vpop.f32.mrf.mxu0
        %v2225 = vadd.f32 0.0, %v2224
        %2226 = vmatmul.bf16.gmra.mxu0 %v286
        %v2227 = vpop.f32.mrf.mxu0
        %v2228 = vadd.f32 0.0, %v2227
        %v2229 = vpop.f32.mrf.mxu0
        %v2230 = vadd.f32 0.0, %v2229
        %2231 = vmatmul.bf16.gmra.mxu0 %v289
        %v2232 = vpop.f32.mrf.mxu0
        %v2233 = vadd.f32 0.0, %v2232
        %v2234 = vpop.f32.mrf.mxu0
        %v2235 = vadd.f32 0.0, %v2234
        %2236 = vmatmul.bf16.gmra.mxu0 %v292
        %v2237 = vpop.f32.mrf.mxu0
        %v2238 = vadd.f32 0.0, %v2237
        %v2239 = vpop.f32.mrf.mxu0
        %v2240 = vadd.f32 0.0, %v2239
        %2241 = vmatmul.bf16.gmra.mxu0 %v295
        %v2242 = vpop.f32.mrf.mxu0
        %v2243 = vadd.f32 0.0, %v2242
        %v2244 = vpop.f32.mrf.mxu0
        %v2245 = vadd.f32 0.0, %v2244
        %2246 = vmatmul.bf16.gmra.mxu0 %v298
        %v2247 = vpop.f32.mrf.mxu0
        %v2248 = vadd.f32 0.0, %v2247
        %v2249 = vpop.f32.mrf.mxu0
        %v2250 = vadd.f32 0.0, %v2249
        %2251 = vmatmul.bf16.gmra.mxu0 %v301
        %v2252 = vpop.f32.mrf.mxu0
        %v2253 = vadd.f32 0.0, %v2252
        %v2254 = vpop.f32.mrf.mxu0
        %v2255 = vadd.f32 0.0, %v2254
        %2256 = vmatmul.bf16.gmra.mxu0 %v304
        %v2257 = vpop.f32.mrf.mxu0
        %v2258 = vadd.f32 0.0, %v2257
        %v2259 = vpop.f32.mrf.mxu0
        %v2260 = vadd.f32 0.0, %v2259
        %2261 = vmatmul.bf16.gmra.mxu0 %v307
        %v2262 = vpop.f32.mrf.mxu0
        %v2263 = vadd.f32 0.0, %v2262
        %v2264 = vpop.f32.mrf.mxu0
        %v2265 = vadd.f32 0.0, %v2264
        %2266 = vmatmul.bf16.gmra.mxu0 %v310
        %v2267 = vpop.f32.mrf.mxu0
        %v2268 = vadd.f32 0.0, %v2267
        %v2269 = vpop.f32.mrf.mxu0
        %v2270 = vadd.f32 0.0, %v2269
        %2271 = vmatmul.bf16.gmra.mxu0 %v313
        %v2272 = vpop.f32.mrf.mxu0
        %v2273 = vadd.f32 0.0, %v2272
        %v2274 = vpop.f32.mrf.mxu0
        %v2275 = vadd.f32 0.0, %v2274
        %2276 = vmatmul.bf16.gmra.mxu0 %v316
        %v2277 = vpop.f32.mrf.mxu0
        %v2278 = vadd.f32 0.0, %v2277
        %v2279 = vpop.f32.mrf.mxu0
        %v2280 = vadd.f32 0.0, %v2279
        %2281 = vmatmul.bf16.gmra.mxu0 %v319
        %v2282 = vpop.f32.mrf.mxu0
        %v2283 = vadd.f32 0.0, %v2282
        %v2284 = vpop.f32.mrf.mxu0
        %v2285 = vadd.f32 0.0, %v2284
        %2286 = vmatmul.bf16.gmra.mxu0 %v322
        %v2287 = vpop.f32.mrf.mxu0
        %v2288 = vadd.f32 0.0, %v2287
        %v2289 = vpop.f32.mrf.mxu0
        %v2290 = vadd.f32 0.0, %v2289
        %2291 = vdwg.mxu0
        %2292 = vmatpush.bf16.msra.mxu0 %v1374
        %2293 = vmatpush.bf16.msra.mxu0 %v1365
        %2294 = vmatpush.bf16.msra.mxu0 %v1356
        %2295 = vmatpush.bf16.msra.mxu0 %v1347
        %2296 = vmatpush.bf16.msra.mxu0 %v1338
        %2297 = vmatpush.bf16.msra.mxu0 %v1329
        %2298 = vmatpush.bf16.msra.mxu0 %v1320
        %2299 = vmatpush.bf16.msra.mxu0 %v1311
        %2300 = vmatmul.bf16.gmra.mxu0 %v278
        %v2301 = vpop.f32.mrf.mxu0
        %v2302 = vadd.f32 %v2213, %v2301
        %v2303 = vpop.f32.mrf.mxu0
        %v2304 = vadd.f32 %v2215, %v2303
        %2305 = vmatmul.bf16.gmra.mxu0 %v281
        %v2306 = vpop.f32.mrf.mxu0
        %v2307 = vadd.f32 %v2218, %v2306
        %v2308 = vpop.f32.mrf.mxu0
        %v2309 = vadd.f32 %v2220, %v2308
        %2310 = vmatmul.bf16.gmra.mxu0 %v284
        %v2311 = vpop.f32.mrf.mxu0
        %v2312 = vadd.f32 %v2223, %v2311
        %v2313 = vpop.f32.mrf.mxu0
        %v2314 = vadd.f32 %v2225, %v2313
        %2315 = vmatmul.bf16.gmra.mxu0 %v287
        %v2316 = vpop.f32.mrf.mxu0
        %v2317 = vadd.f32 %v2228, %v2316
        %v2318 = vpop.f32.mrf.mxu0
        %v2319 = vadd.f32 %v2230, %v2318
        %2320 = vmatmul.bf16.gmra.mxu0 %v290
        %v2321 = vpop.f32.mrf.mxu0
        %v2322 = vadd.f32 %v2233, %v2321
        %v2323 = vpop.f32.mrf.mxu0
        %v2324 = vadd.f32 %v2235, %v2323
        %2325 = vmatmul.bf16.gmra.mxu0 %v293
        %v2326 = vpop.f32.mrf.mxu0
        %v2327 = vadd.f32 %v2238, %v2326
        %v2328 = vpop.f32.mrf.mxu0
        %v2329 = vadd.f32 %v2240, %v2328
        %2330 = vmatmul.bf16.gmra.mxu0 %v296
        %v2331 = vpop.f32.mrf.mxu0
        %v2332 = vadd.f32 %v2243, %v2331
        %v2333 = vpop.f32.mrf.mxu0
        %v2334 = vadd.f32 %v2245, %v2333
        %2335 = vmatmul.bf16.gmra.mxu0 %v299
        %v2336 = vpop.f32.mrf.mxu0
        %v2337 = vadd.f32 %v2248, %v2336
        %v2338 = vpop.f32.mrf.mxu0
        %v2339 = vadd.f32 %v2250, %v2338
        %2340 = vmatmul.bf16.gmra.mxu0 %v302
        %v2341 = vpop.f32.mrf.mxu0
        %v2342 = vadd.f32 %v2253, %v2341
        %v2343 = vpop.f32.mrf.mxu0
        %v2344 = vadd.f32 %v2255, %v2343
        %2345 = vmatmul.bf16.gmra.mxu0 %v305
        %v2346 = vpop.f32.mrf.mxu0
        %v2347 = vadd.f32 %v2258, %v2346
        %v2348 = vpop.f32.mrf.mxu0
        %v2349 = vadd.f32 %v2260, %v2348
        %2350 = vmatmul.bf16.gmra.mxu0 %v308
        %v2351 = vpop.f32.mrf.mxu0
        %v2352 = vadd.f32 %v2263, %v2351
        %v2353 = vpop.f32.mrf.mxu0
        %v2354 = vadd.f32 %v2265, %v2353
        %2355 = vmatmul.bf16.gmra.mxu0 %v311
        %v2356 = vpop.f32.mrf.mxu0
        %v2357 = vadd.f32 %v2268, %v2356
        %v2358 = vpop.f32.mrf.mxu0
        %v2359 = vadd.f32 %v2270, %v2358
        %2360 = vmatmul.bf16.gmra.mxu0 %v314
        %v2361 = vpop.f32.mrf.mxu0
        %v2362 = vadd.f32 %v2273, %v2361
        %v2363 = vpop.f32.mrf.mxu0
        %v2364 = vadd.f32 %v2275, %v2363
        %2365 = vmatmul.bf16.gmra.mxu0 %v317
        %v2366 = vpop.f32.mrf.mxu0
        %v2367 = vadd.f32 %v2278, %v2366
        %v2368 = vpop.f32.mrf.mxu0
        %v2369 = vadd.f32 %v2280, %v2368
        %2370 = vmatmul.bf16.gmra.mxu0 %v320
        %v2371 = vpop.f32.mrf.mxu0
        %v2372 = vadd.f32 %v2283, %v2371
        %v2373 = vpop.f32.mrf.mxu0
        %v2374 = vadd.f32 %v2285, %v2373
        %2375 = vmatmul.bf16.gmra.mxu0 %v323
        %v2376 = vpop.f32.mrf.mxu0
        %v2377 = vadd.f32 %v2288, %v2376
        %v2378 = vpop.f32.mrf.mxu0
        %v2379 = vadd.f32 %v2290, %v2378
        %2380 = vdwg.mxu0
        %2381 = vmatpush.bf16.msra.mxu0 %v1446
        %2382 = vmatpush.bf16.msra.mxu0 %v1437
        %2383 = vmatpush.bf16.msra.mxu0 %v1428
        %2384 = vmatpush.bf16.msra.mxu0 %v1419
        %2385 = vmatpush.bf16.msra.mxu0 %v1410
        %2386 = vmatpush.bf16.msra.mxu0 %v1401
        %2387 = vmatpush.bf16.msra.mxu0 %v1392
        %2388 = vmatpush.bf16.msra.mxu0 %v1383
        %2389 = vmatmul.bf16.gmra.mxu0 %v279
        %v2390 = vpop.f32.mrf.mxu0
        %v2391 = vadd.f32 %v2302, %v2390
        %v2392 = vpop.f32.mrf.mxu0
        %v2393 = vadd.f32 %v2304, %v2392
        %2394 = vmatmul.bf16.gmra.mxu0 %v282
        %v2395 = vpop.f32.mrf.mxu0
        %v2396 = vadd.f32 %v2307, %v2395
        %v2397 = vpop.f32.mrf.mxu0
        %v2398 = vadd.f32 %v2309, %v2397
        %2399 = vmatmul.bf16.gmra.mxu0 %v285
        %v2400 = vpop.f32.mrf.mxu0
        %v2401 = vadd.f32 %v2312, %v2400
        %v2402 = vpop.f32.mrf.mxu0
        %v2403 = vadd.f32 %v2314, %v2402
        %2404 = vmatmul.bf16.gmra.mxu0 %v288
        %v2405 = vpop.f32.mrf.mxu0
        %v2406 = vadd.f32 %v2317, %v2405
        %v2407 = vpop.f32.mrf.mxu0
        %v2408 = vadd.f32 %v2319, %v2407
        %2409 = vmatmul.bf16.gmra.mxu0 %v291
        %v2410 = vpop.f32.mrf.mxu0
        %v2411 = vadd.f32 %v2322, %v2410
        %v2412 = vpop.f32.mrf.mxu0
        %v2413 = vadd.f32 %v2324, %v2412
        %2414 = vmatmul.bf16.gmra.mxu0 %v294
        %v2415 = vpop.f32.mrf.mxu0
        %v2416 = vadd.f32 %v2327, %v2415
        %v2417 = vpop.f32.mrf.mxu0
        %v2418 = vadd.f32 %v2329, %v2417
        %2419 = vmatmul.bf16.gmra.mxu0 %v297
        %v2420 = vpop.f32.mrf.mxu0
        %v2421 = vadd.f32 %v2332, %v2420
        %v2422 = vpop.f32.mrf.mxu0
        %v2423 = vadd.f32 %v2334, %v2422
        %2424 = vmatmul.bf16.gmra.mxu0 %v300
        %v2425 = vpop.f32.mrf.mxu0
        %v2426 = vadd.f32 %v2337, %v2425
        %v2427 = vpop.f32.mrf.mxu0
        %v2428 = vadd.f32 %v2339, %v2427
        %2429 = vmatmul.bf16.gmra.mxu0 %v303
        %v2430 = vpop.f32.mrf.mxu0
        %v2431 = vadd.f32 %v2342, %v2430
        %v2432 = vpop.f32.mrf.mxu0
        %v2433 = vadd.f32 %v2344, %v2432
        %2434 = vmatmul.bf16.gmra.mxu0 %v306
        %v2435 = vpop.f32.mrf.mxu0
        %v2436 = vadd.f32 %v2347, %v2435
        %v2437 = vpop.f32.mrf.mxu0
        %v2438 = vadd.f32 %v2349, %v2437
        %2439 = vmatmul.bf16.gmra.mxu0 %v309
        %v2440 = vpop.f32.mrf.mxu0
        %v2441 = vadd.f32 %v2352, %v2440
        %v2442 = vpop.f32.mrf.mxu0
        %v2443 = vadd.f32 %v2354, %v2442
        %2444 = vmatmul.bf16.gmra.mxu0 %v312
        %v2445 = vpop.f32.mrf.mxu0
        %v2446 = vadd.f32 %v2357, %v2445
        %v2447 = vpop.f32.mrf.mxu0
        %v2448 = vadd.f32 %v2359, %v2447
        %2449 = vmatmul.bf16.gmra.mxu0 %v315
        %v2450 = vpop.f32.mrf.mxu0
        %v2451 = vadd.f32 %v2362, %v2450
        %v2452 = vpop.f32.mrf.mxu0
        %v2453 = vadd.f32 %v2364, %v2452
        %2454 = vmatmul.bf16.gmra.mxu0 %v318
        %v2455 = vpop.f32.mrf.mxu0
        %v2456 = vadd.f32 %v2367, %v2455
        %v2457 = vpop.f32.mrf.mxu0
        %v2458 = vadd.f32 %v2369, %v2457
        %2459 = vmatmul.bf16.gmra.mxu0 %v321
        %v2460 = vpop.f32.mrf.mxu0
        %v2461 = vadd.f32 %v2372, %v2460
        %v2462 = vpop.f32.mrf.mxu0
        %v2463 = vadd.f32 %v2374, %v2462
        %2464 = vmatmul.bf16.gmra.mxu0 %v324
        %v2465 = vpop.f32.mrf.mxu0
        %v2466 = vadd.f32 %v2377, %v2465
        %v2467 = vpop.f32.mrf.mxu0
        %v2468 = vadd.f32 %v2379, %v2467
        %2469 = vdwg.mxu0
        %2470 = vmatpush.bf16.msra.mxu0 %v1303
        %2471 = vmatpush.bf16.msra.mxu0 %v1294
        %2472 = vmatpush.bf16.msra.mxu0 %v1285
        %2473 = vmatpush.bf16.msra.mxu0 %v1276
        %2474 = vmatpush.bf16.msra.mxu0 %v1267
        %2475 = vmatpush.bf16.msra.mxu0 %v1258
        %2476 = vmatpush.bf16.msra.mxu0 %v1249
        %2477 = vmatpush.bf16.msra.mxu0 %v1240
        %2478 = vmatmul.bf16.gmra.mxu0 %v277
        %v2479 = vpop.f32.mrf.mxu0
        %v2480 = vadd.f32 0.0, %v2479
        %v2481 = vpop.f32.mrf.mxu0
        %v2482 = vadd.f32 0.0, %v2481
        %2483 = vmatmul.bf16.gmra.mxu0 %v280
        %v2484 = vpop.f32.mrf.mxu0
        %v2485 = vadd.f32 0.0, %v2484
        %v2486 = vpop.f32.mrf.mxu0
        %v2487 = vadd.f32 0.0, %v2486
        %2488 = vmatmul.bf16.gmra.mxu0 %v283
        %v2489 = vpop.f32.mrf.mxu0
        %v2490 = vadd.f32 0.0, %v2489
        %v2491 = vpop.f32.mrf.mxu0
        %v2492 = vadd.f32 0.0, %v2491
        %2493 = vmatmul.bf16.gmra.mxu0 %v286
        %v2494 = vpop.f32.mrf.mxu0
        %v2495 = vadd.f32 0.0, %v2494
        %v2496 = vpop.f32.mrf.mxu0
        %v2497 = vadd.f32 0.0, %v2496
        %2498 = vmatmul.bf16.gmra.mxu0 %v289
        %v2499 = vpop.f32.mrf.mxu0
        %v2500 = vadd.f32 0.0, %v2499
        %v2501 = vpop.f32.mrf.mxu0
        %v2502 = vadd.f32 0.0, %v2501
        %2503 = vmatmul.bf16.gmra.mxu0 %v292
        %v2504 = vpop.f32.mrf.mxu0
        %v2505 = vadd.f32 0.0, %v2504
        %v2506 = vpop.f32.mrf.mxu0
        %v2507 = vadd.f32 0.0, %v2506
        %2508 = vmatmul.bf16.gmra.mxu0 %v295
        %v2509 = vpop.f32.mrf.mxu0
        %v2510 = vadd.f32 0.0, %v2509
        %v2511 = vpop.f32.mrf.mxu0
        %v2512 = vadd.f32 0.0, %v2511
        %2513 = vmatmul.bf16.gmra.mxu0 %v298
        %v2514 = vpop.f32.mrf.mxu0
        %v2515 = vadd.f32 0.0, %v2514
        %v2516 = vpop.f32.mrf.mxu0
        %v2517 = vadd.f32 0.0, %v2516
        %2518 = vmatmul.bf16.gmra.mxu0 %v301
        %v2519 = vpop.f32.mrf.mxu0
        %v2520 = vadd.f32 0.0, %v2519
        %v2521 = vpop.f32.mrf.mxu0
        %v2522 = vadd.f32 0.0, %v2521
        %2523 = vmatmul.bf16.gmra.mxu0 %v304
        %v2524 = vpop.f32.mrf.mxu0
        %v2525 = vadd.f32 0.0, %v2524
        %v2526 = vpop.f32.mrf.mxu0
        %v2527 = vadd.f32 0.0, %v2526
        %2528 = vmatmul.bf16.gmra.mxu0 %v307
        %v2529 = vpop.f32.mrf.mxu0
        %v2530 = vadd.f32 0.0, %v2529
        %v2531 = vpop.f32.mrf.mxu0
        %v2532 = vadd.f32 0.0, %v2531
        %2533 = vmatmul.bf16.gmra.mxu0 %v310
        %v2534 = vpop.f32.mrf.mxu0
        %v2535 = vadd.f32 0.0, %v2534
        %v2536 = vpop.f32.mrf.mxu0
        %v2537 = vadd.f32 0.0, %v2536
        %2538 = vmatmul.bf16.gmra.mxu0 %v313
        %v2539 = vpop.f32.mrf.mxu0
        %v2540 = vadd.f32 0.0, %v2539
        %v2541 = vpop.f32.mrf.mxu0
        %v2542 = vadd.f32 0.0, %v2541
        %2543 = vmatmul.bf16.gmra.mxu0 %v316
        %v2544 = vpop.f32.mrf.mxu0
        %v2545 = vadd.f32 0.0, %v2544
        %v2546 = vpop.f32.mrf.mxu0
        %v2547 = vadd.f32 0.0, %v2546
        %2548 = vmatmul.bf16.gmra.mxu0 %v319
        %v2549 = vpop.f32.mrf.mxu0
        %v2550 = vadd.f32 0.0, %v2549
        %v2551 = vpop.f32.mrf.mxu0
        %v2552 = vadd.f32 0.0, %v2551
        %2553 = vmatmul.bf16.gmra.mxu0 %v322
        %v2554 = vpop.f32.mrf.mxu0
        %v2555 = vadd.f32 0.0, %v2554
        %v2556 = vpop.f32.mrf.mxu0
        %v2557 = vadd.f32 0.0, %v2556
        %2558 = vdwg.mxu0
        %2559 = vmatpush.bf16.msra.mxu0 %v1375
        %2560 = vmatpush.bf16.msra.mxu0 %v1366
        %2561 = vmatpush.bf16.msra.mxu0 %v1357
        %2562 = vmatpush.bf16.msra.mxu0 %v1348
        %2563 = vmatpush.bf16.msra.mxu0 %v1339
        %2564 = vmatpush.bf16.msra.mxu0 %v1330
        %2565 = vmatpush.bf16.msra.mxu0 %v1321
        %2566 = vmatpush.bf16.msra.mxu0 %v1312
        %2567 = vmatmul.bf16.gmra.mxu0 %v278
        %v2568 = vpop.f32.mrf.mxu0
        %v2569 = vadd.f32 %v2480, %v2568
        %v2570 = vpop.f32.mrf.mxu0
        %v2571 = vadd.f32 %v2482, %v2570
        %2572 = vmatmul.bf16.gmra.mxu0 %v281
        %v2573 = vpop.f32.mrf.mxu0
        %v2574 = vadd.f32 %v2485, %v2573
        %v2575 = vpop.f32.mrf.mxu0
        %v2576 = vadd.f32 %v2487, %v2575
        %2577 = vmatmul.bf16.gmra.mxu0 %v284
        %v2578 = vpop.f32.mrf.mxu0
        %v2579 = vadd.f32 %v2490, %v2578
        %v2580 = vpop.f32.mrf.mxu0
        %v2581 = vadd.f32 %v2492, %v2580
        %2582 = vmatmul.bf16.gmra.mxu0 %v287
        %v2583 = vpop.f32.mrf.mxu0
        %v2584 = vadd.f32 %v2495, %v2583
        %v2585 = vpop.f32.mrf.mxu0
        %v2586 = vadd.f32 %v2497, %v2585
        %2587 = vmatmul.bf16.gmra.mxu0 %v290
        %v2588 = vpop.f32.mrf.mxu0
        %v2589 = vadd.f32 %v2500, %v2588
        %v2590 = vpop.f32.mrf.mxu0
        %v2591 = vadd.f32 %v2502, %v2590
        %2592 = vmatmul.bf16.gmra.mxu0 %v293
        %v2593 = vpop.f32.mrf.mxu0
        %v2594 = vadd.f32 %v2505, %v2593
        %v2595 = vpop.f32.mrf.mxu0
        %v2596 = vadd.f32 %v2507, %v2595
        %2597 = vmatmul.bf16.gmra.mxu0 %v296
        %v2598 = vpop.f32.mrf.mxu0
        %v2599 = vadd.f32 %v2510, %v2598
        %v2600 = vpop.f32.mrf.mxu0
        %v2601 = vadd.f32 %v2512, %v2600
        %2602 = vmatmul.bf16.gmra.mxu0 %v299
        %v2603 = vpop.f32.mrf.mxu0
        %v2604 = vadd.f32 %v2515, %v2603
        %v2605 = vpop.f32.mrf.mxu0
        %v2606 = vadd.f32 %v2517, %v2605
        %2607 = vmatmul.bf16.gmra.mxu0 %v302
        %v2608 = vpop.f32.mrf.mxu0
        %v2609 = vadd.f32 %v2520, %v2608
        %v2610 = vpop.f32.mrf.mxu0
        %v2611 = vadd.f32 %v2522, %v2610
        %2612 = vmatmul.bf16.gmra.mxu0 %v305
        %v2613 = vpop.f32.mrf.mxu0
        %v2614 = vadd.f32 %v2525, %v2613
        %v2615 = vpop.f32.mrf.mxu0
        %v2616 = vadd.f32 %v2527, %v2615
        %2617 = vmatmul.bf16.gmra.mxu0 %v308
        %v2618 = vpop.f32.mrf.mxu0
        %v2619 = vadd.f32 %v2530, %v2618
        %v2620 = vpop.f32.mrf.mxu0
        %v2621 = vadd.f32 %v2532, %v2620
        %2622 = vmatmul.bf16.gmra.mxu0 %v311
        %v2623 = vpop.f32.mrf.mxu0
        %v2624 = vadd.f32 %v2535, %v2623
        %v2625 = vpop.f32.mrf.mxu0
        %v2626 = vadd.f32 %v2537, %v2625
        %2627 = vmatmul.bf16.gmra.mxu0 %v314
        %v2628 = vpop.f32.mrf.mxu0
        %v2629 = vadd.f32 %v2540, %v2628
        %v2630 = vpop.f32.mrf.mxu0
        %v2631 = vadd.f32 %v2542, %v2630
        %2632 = vmatmul.bf16.gmra.mxu0 %v317
        %v2633 = vpop.f32.mrf.mxu0
        %v2634 = vadd.f32 %v2545, %v2633
        %v2635 = vpop.f32.mrf.mxu0
        %v2636 = vadd.f32 %v2547, %v2635
        %2637 = vmatmul.bf16.gmra.mxu0 %v320
        %v2638 = vpop.f32.mrf.mxu0
        %v2639 = vadd.f32 %v2550, %v2638
        %v2640 = vpop.f32.mrf.mxu0
        %v2641 = vadd.f32 %v2552, %v2640
        %2642 = vmatmul.bf16.gmra.mxu0 %v323
        %v2643 = vpop.f32.mrf.mxu0
        %v2644 = vadd.f32 %v2555, %v2643
        %v2645 = vpop.f32.mrf.mxu0
        %v2646 = vadd.f32 %v2557, %v2645
        %2647 = vdwg.mxu0
        %2648 = vmatpush.bf16.msra.mxu0 %v1447
        %2649 = vmatpush.bf16.msra.mxu0 %v1438
        %2650 = vmatpush.bf16.msra.mxu0 %v1429
        %2651 = vmatpush.bf16.msra.mxu0 %v1420
        %2652 = vmatpush.bf16.msra.mxu0 %v1411
        %2653 = vmatpush.bf16.msra.mxu0 %v1402
        %2654 = vmatpush.bf16.msra.mxu0 %v1393
        %2655 = vmatpush.bf16.msra.mxu0 %v1384
        %2656 = vmatmul.bf16.gmra.mxu0 %v279
        %v2657 = vpop.f32.mrf.mxu0
        %v2658 = vadd.f32 %v2569, %v2657
        %v2659 = vpop.f32.mrf.mxu0
        %v2660 = vadd.f32 %v2571, %v2659
        %2661 = vmatmul.bf16.gmra.mxu0 %v282
        %v2662 = vpop.f32.mrf.mxu0
        %v2663 = vadd.f32 %v2574, %v2662
        %v2664 = vpop.f32.mrf.mxu0
        %v2665 = vadd.f32 %v2576, %v2664
        %2666 = vmatmul.bf16.gmra.mxu0 %v285
        %v2667 = vpop.f32.mrf.mxu0
        %v2668 = vadd.f32 %v2579, %v2667
        %v2669 = vpop.f32.mrf.mxu0
        %v2670 = vadd.f32 %v2581, %v2669
        %2671 = vmatmul.bf16.gmra.mxu0 %v288
        %v2672 = vpop.f32.mrf.mxu0
        %v2673 = vadd.f32 %v2584, %v2672
        %v2674 = vpop.f32.mrf.mxu0
        %v2675 = vadd.f32 %v2586, %v2674
        %2676 = vmatmul.bf16.gmra.mxu0 %v291
        %v2677 = vpop.f32.mrf.mxu0
        %v2678 = vadd.f32 %v2589, %v2677
        %v2679 = vpop.f32.mrf.mxu0
        %v2680 = vadd.f32 %v2591, %v2679
        %2681 = vmatmul.bf16.gmra.mxu0 %v294
        %v2682 = vpop.f32.mrf.mxu0
        %v2683 = vadd.f32 %v2594, %v2682
        %v2684 = vpop.f32.mrf.mxu0
        %v2685 = vadd.f32 %v2596, %v2684
        %2686 = vmatmul.bf16.gmra.mxu0 %v297
        %v2687 = vpop.f32.mrf.mxu0
        %v2688 = vadd.f32 %v2599, %v2687
        %v2689 = vpop.f32.mrf.mxu0
        %v2690 = vadd.f32 %v2601, %v2689
        %2691 = vmatmul.bf16.gmra.mxu0 %v300
        %v2692 = vpop.f32.mrf.mxu0
        %v2693 = vadd.f32 %v2604, %v2692
        %v2694 = vpop.f32.mrf.mxu0
        %v2695 = vadd.f32 %v2606, %v2694
        %2696 = vmatmul.bf16.gmra.mxu0 %v303
        %v2697 = vpop.f32.mrf.mxu0
        %v2698 = vadd.f32 %v2609, %v2697
        %v2699 = vpop.f32.mrf.mxu0
        %v2700 = vadd.f32 %v2611, %v2699
        %2701 = vmatmul.bf16.gmra.mxu0 %v306
        %v2702 = vpop.f32.mrf.mxu0
        %v2703 = vadd.f32 %v2614, %v2702
        %v2704 = vpop.f32.mrf.mxu0
        %v2705 = vadd.f32 %v2616, %v2704
        %2706 = vmatmul.bf16.gmra.mxu0 %v309
        %v2707 = vpop.f32.mrf.mxu0
        %v2708 = vadd.f32 %v2619, %v2707
        %v2709 = vpop.f32.mrf.mxu0
        %v2710 = vadd.f32 %v2621, %v2709
        %2711 = vmatmul.bf16.gmra.mxu0 %v312
        %v2712 = vpop.f32.mrf.mxu0
        %v2713 = vadd.f32 %v2624, %v2712
        %v2714 = vpop.f32.mrf.mxu0
        %v2715 = vadd.f32 %v2626, %v2714
        %2716 = vmatmul.bf16.gmra.mxu0 %v315
        %v2717 = vpop.f32.mrf.mxu0
        %v2718 = vadd.f32 %v2629, %v2717
        %v2719 = vpop.f32.mrf.mxu0
        %v2720 = vadd.f32 %v2631, %v2719
        %2721 = vmatmul.bf16.gmra.mxu0 %v318
        %v2722 = vpop.f32.mrf.mxu0
        %v2723 = vadd.f32 %v2634, %v2722
        %v2724 = vpop.f32.mrf.mxu0
        %v2725 = vadd.f32 %v2636, %v2724
        %2726 = vmatmul.bf16.gmra.mxu0 %v321
        %v2727 = vpop.f32.mrf.mxu0
        %v2728 = vadd.f32 %v2639, %v2727
        %v2729 = vpop.f32.mrf.mxu0
        %v2730 = vadd.f32 %v2641, %v2729
        %2731 = vmatmul.bf16.gmra.mxu0 %v324
        %v2732 = vpop.f32.mrf.mxu0
        %v2733 = vadd.f32 %v2644, %v2732
        %v2734 = vpop.f32.mrf.mxu0
        %v2735 = vadd.f32 %v2646, %v2734
        %2736 = vdwg.mxu0
        %2737 = vmatpush.bf16.msra.mxu0 %v1304
        %2738 = vmatpush.bf16.msra.mxu0 %v1295
        %2739 = vmatpush.bf16.msra.mxu0 %v1286
        %2740 = vmatpush.bf16.msra.mxu0 %v1277
        %2741 = vmatpush.bf16.msra.mxu0 %v1268
        %2742 = vmatpush.bf16.msra.mxu0 %v1259
        %2743 = vmatpush.bf16.msra.mxu0 %v1250
        %2744 = vmatpush.bf16.msra.mxu0 %v1241
        %2745 = vmatmul.bf16.gmra.mxu0 %v277
        %v2746 = vpop.f32.mrf.mxu0
        %v2747 = vadd.f32 0.0, %v2746
        %v2748 = vpop.f32.mrf.mxu0
        %v2749 = vadd.f32 0.0, %v2748
        %2750 = vmatmul.bf16.gmra.mxu0 %v280
        %v2751 = vpop.f32.mrf.mxu0
        %v2752 = vadd.f32 0.0, %v2751
        %v2753 = vpop.f32.mrf.mxu0
        %v2754 = vadd.f32 0.0, %v2753
        %2755 = vmatmul.bf16.gmra.mxu0 %v283
        %v2756 = vpop.f32.mrf.mxu0
        %v2757 = vadd.f32 0.0, %v2756
        %v2758 = vpop.f32.mrf.mxu0
        %v2759 = vadd.f32 0.0, %v2758
        %2760 = vmatmul.bf16.gmra.mxu0 %v286
        %v2761 = vpop.f32.mrf.mxu0
        %v2762 = vadd.f32 0.0, %v2761
        %v2763 = vpop.f32.mrf.mxu0
        %v2764 = vadd.f32 0.0, %v2763
        %2765 = vmatmul.bf16.gmra.mxu0 %v289
        %v2766 = vpop.f32.mrf.mxu0
        %v2767 = vadd.f32 0.0, %v2766
        %v2768 = vpop.f32.mrf.mxu0
        %v2769 = vadd.f32 0.0, %v2768
        %2770 = vmatmul.bf16.gmra.mxu0 %v292
        %v2771 = vpop.f32.mrf.mxu0
        %v2772 = vadd.f32 0.0, %v2771
        %v2773 = vpop.f32.mrf.mxu0
        %v2774 = vadd.f32 0.0, %v2773
        %2775 = vmatmul.bf16.gmra.mxu0 %v295
        %v2776 = vpop.f32.mrf.mxu0
        %v2777 = vadd.f32 0.0, %v2776
        %v2778 = vpop.f32.mrf.mxu0
        %v2779 = vadd.f32 0.0, %v2778
        %2780 = vmatmul.bf16.gmra.mxu0 %v298
        %v2781 = vpop.f32.mrf.mxu0
        %v2782 = vadd.f32 0.0, %v2781
        %v2783 = vpop.f32.mrf.mxu0
        %v2784 = vadd.f32 0.0, %v2783
        %2785 = vmatmul.bf16.gmra.mxu0 %v301
        %v2786 = vpop.f32.mrf.mxu0
        %v2787 = vadd.f32 0.0, %v2786
        %v2788 = vpop.f32.mrf.mxu0
        %v2789 = vadd.f32 0.0, %v2788
        %2790 = vmatmul.bf16.gmra.mxu0 %v304
        %v2791 = vpop.f32.mrf.mxu0
        %v2792 = vadd.f32 0.0, %v2791
        %v2793 = vpop.f32.mrf.mxu0
        %v2794 = vadd.f32 0.0, %v2793
        %2795 = vmatmul.bf16.gmra.mxu0 %v307
        %v2796 = vpop.f32.mrf.mxu0
        %v2797 = vadd.f32 0.0, %v2796
        %v2798 = vpop.f32.mrf.mxu0
        %v2799 = vadd.f32 0.0, %v2798
        %2800 = vmatmul.bf16.gmra.mxu0 %v310
        %v2801 = vpop.f32.mrf.mxu0
        %v2802 = vadd.f32 0.0, %v2801
        %v2803 = vpop.f32.mrf.mxu0
        %v2804 = vadd.f32 0.0, %v2803
        %2805 = vmatmul.bf16.gmra.mxu0 %v313
        %v2806 = vpop.f32.mrf.mxu0
        %v2807 = vadd.f32 0.0, %v2806
        %v2808 = vpop.f32.mrf.mxu0
        %v2809 = vadd.f32 0.0, %v2808
        %2810 = vmatmul.bf16.gmra.mxu0 %v316
        %v2811 = vpop.f32.mrf.mxu0
        %v2812 = vadd.f32 0.0, %v2811
        %v2813 = vpop.f32.mrf.mxu0
        %v2814 = vadd.f32 0.0, %v2813
        %2815 = vmatmul.bf16.gmra.mxu0 %v319
        %v2816 = vpop.f32.mrf.mxu0
        %v2817 = vadd.f32 0.0, %v2816
        %v2818 = vpop.f32.mrf.mxu0
        %v2819 = vadd.f32 0.0, %v2818
        %2820 = vmatmul.bf16.gmra.mxu0 %v322
        %v2821 = vpop.f32.mrf.mxu0
        %v2822 = vadd.f32 0.0, %v2821
        %v2823 = vpop.f32.mrf.mxu0
        %v2824 = vadd.f32 0.0, %v2823
        %2825 = vdwg.mxu0
        %2826 = vmatpush.bf16.msra.mxu0 %v1376
        %2827 = vmatpush.bf16.msra.mxu0 %v1367
        %2828 = vmatpush.bf16.msra.mxu0 %v1358
        %2829 = vmatpush.bf16.msra.mxu0 %v1349
        %2830 = vmatpush.bf16.msra.mxu0 %v1340
        %2831 = vmatpush.bf16.msra.mxu0 %v1331
        %2832 = vmatpush.bf16.msra.mxu0 %v1322
        %2833 = vmatpush.bf16.msra.mxu0 %v1313
        %2834 = vmatmul.bf16.gmra.mxu0 %v278
        %v2835 = vpop.f32.mrf.mxu0
        %v2836 = vadd.f32 %v2747, %v2835
        %v2837 = vpop.f32.mrf.mxu0
        %v2838 = vadd.f32 %v2749, %v2837
        %2839 = vmatmul.bf16.gmra.mxu0 %v281
        %v2840 = vpop.f32.mrf.mxu0
        %v2841 = vadd.f32 %v2752, %v2840
        %v2842 = vpop.f32.mrf.mxu0
        %v2843 = vadd.f32 %v2754, %v2842
        %2844 = vmatmul.bf16.gmra.mxu0 %v284
        %v2845 = vpop.f32.mrf.mxu0
        %v2846 = vadd.f32 %v2757, %v2845
        %v2847 = vpop.f32.mrf.mxu0
        %v2848 = vadd.f32 %v2759, %v2847
        %2849 = vmatmul.bf16.gmra.mxu0 %v287
        %v2850 = vpop.f32.mrf.mxu0
        %v2851 = vadd.f32 %v2762, %v2850
        %v2852 = vpop.f32.mrf.mxu0
        %v2853 = vadd.f32 %v2764, %v2852
        %2854 = vmatmul.bf16.gmra.mxu0 %v290
        %v2855 = vpop.f32.mrf.mxu0
        %v2856 = vadd.f32 %v2767, %v2855
        %v2857 = vpop.f32.mrf.mxu0
        %v2858 = vadd.f32 %v2769, %v2857
        %2859 = vmatmul.bf16.gmra.mxu0 %v293
        %v2860 = vpop.f32.mrf.mxu0
        %v2861 = vadd.f32 %v2772, %v2860
        %v2862 = vpop.f32.mrf.mxu0
        %v2863 = vadd.f32 %v2774, %v2862
        %2864 = vmatmul.bf16.gmra.mxu0 %v296
        %v2865 = vpop.f32.mrf.mxu0
        %v2866 = vadd.f32 %v2777, %v2865
        %v2867 = vpop.f32.mrf.mxu0
        %v2868 = vadd.f32 %v2779, %v2867
        %2869 = vmatmul.bf16.gmra.mxu0 %v299
        %v2870 = vpop.f32.mrf.mxu0
        %v2871 = vadd.f32 %v2782, %v2870
        %v2872 = vpop.f32.mrf.mxu0
        %v2873 = vadd.f32 %v2784, %v2872
        %2874 = vmatmul.bf16.gmra.mxu0 %v302
        %v2875 = vpop.f32.mrf.mxu0
        %v2876 = vadd.f32 %v2787, %v2875
        %v2877 = vpop.f32.mrf.mxu0
        %v2878 = vadd.f32 %v2789, %v2877
        %2879 = vmatmul.bf16.gmra.mxu0 %v305
        %v2880 = vpop.f32.mrf.mxu0
        %v2881 = vadd.f32 %v2792, %v2880
        %v2882 = vpop.f32.mrf.mxu0
        %v2883 = vadd.f32 %v2794, %v2882
        %2884 = vmatmul.bf16.gmra.mxu0 %v308
        %v2885 = vpop.f32.mrf.mxu0
        %v2886 = vadd.f32 %v2797, %v2885
        %v2887 = vpop.f32.mrf.mxu0
        %v2888 = vadd.f32 %v2799, %v2887
        %2889 = vmatmul.bf16.gmra.mxu0 %v311
        %v2890 = vpop.f32.mrf.mxu0
        %v2891 = vadd.f32 %v2802, %v2890
        %v2892 = vpop.f32.mrf.mxu0
        %v2893 = vadd.f32 %v2804, %v2892
        %2894 = vmatmul.bf16.gmra.mxu0 %v314
        %v2895 = vpop.f32.mrf.mxu0
        %v2896 = vadd.f32 %v2807, %v2895
        %v2897 = vpop.f32.mrf.mxu0
        %v2898 = vadd.f32 %v2809, %v2897
        %2899 = vmatmul.bf16.gmra.mxu0 %v317
        %v2900 = vpop.f32.mrf.mxu0
        %v2901 = vadd.f32 %v2812, %v2900
        %v2902 = vpop.f32.mrf.mxu0
        %v2903 = vadd.f32 %v2814, %v2902
        %2904 = vmatmul.bf16.gmra.mxu0 %v320
        %v2905 = vpop.f32.mrf.mxu0
        %v2906 = vadd.f32 %v2817, %v2905
        %v2907 = vpop.f32.mrf.mxu0
        %v2908 = vadd.f32 %v2819, %v2907
        %2909 = vmatmul.bf16.gmra.mxu0 %v323
        %v2910 = vpop.f32.mrf.mxu0
        %v2911 = vadd.f32 %v2822, %v2910
        %v2912 = vpop.f32.mrf.mxu0
        %v2913 = vadd.f32 %v2824, %v2912
        %2914 = vdwg.mxu0
        %2915 = vmatpush.bf16.msra.mxu0 %v1448
        %2916 = vmatpush.bf16.msra.mxu0 %v1439
        %2917 = vmatpush.bf16.msra.mxu0 %v1430
        %2918 = vmatpush.bf16.msra.mxu0 %v1421
        %2919 = vmatpush.bf16.msra.mxu0 %v1412
        %2920 = vmatpush.bf16.msra.mxu0 %v1403
        %2921 = vmatpush.bf16.msra.mxu0 %v1394
        %2922 = vmatpush.bf16.msra.mxu0 %v1385
        %2923 = vmatmul.bf16.gmra.mxu0 %v279
        %v2924 = vpop.f32.mrf.mxu0
        %v2925 = vadd.f32 %v2836, %v2924
        %v2926 = vpop.f32.mrf.mxu0
        %v2927 = vadd.f32 %v2838, %v2926
        %2928 = vmatmul.bf16.gmra.mxu0 %v282
        %v2929 = vpop.f32.mrf.mxu0
        %v2930 = vadd.f32 %v2841, %v2929
        %v2931 = vpop.f32.mrf.mxu0
        %v2932 = vadd.f32 %v2843, %v2931
        %2933 = vmatmul.bf16.gmra.mxu0 %v285
        %v2934 = vpop.f32.mrf.mxu0
        %v2935 = vadd.f32 %v2846, %v2934
        %v2936 = vpop.f32.mrf.mxu0
        %v2937 = vadd.f32 %v2848, %v2936
        %2938 = vmatmul.bf16.gmra.mxu0 %v288
        %v2939 = vpop.f32.mrf.mxu0
        %v2940 = vadd.f32 %v2851, %v2939
        %v2941 = vpop.f32.mrf.mxu0
        %v2942 = vadd.f32 %v2853, %v2941
        %2943 = vmatmul.bf16.gmra.mxu0 %v291
        %v2944 = vpop.f32.mrf.mxu0
        %v2945 = vadd.f32 %v2856, %v2944
        %v2946 = vpop.f32.mrf.mxu0
        %v2947 = vadd.f32 %v2858, %v2946
        %2948 = vmatmul.bf16.gmra.mxu0 %v294
        %v2949 = vpop.f32.mrf.mxu0
        %v2950 = vadd.f32 %v2861, %v2949
        %v2951 = vpop.f32.mrf.mxu0
        %v2952 = vadd.f32 %v2863, %v2951
        %2953 = vmatmul.bf16.gmra.mxu0 %v297
        %v2954 = vpop.f32.mrf.mxu0
        %v2955 = vadd.f32 %v2866, %v2954
        %v2956 = vpop.f32.mrf.mxu0
        %v2957 = vadd.f32 %v2868, %v2956
        %2958 = vmatmul.bf16.gmra.mxu0 %v300
        %v2959 = vpop.f32.mrf.mxu0
        %v2960 = vadd.f32 %v2871, %v2959
        %v2961 = vpop.f32.mrf.mxu0
        %v2962 = vadd.f32 %v2873, %v2961
        %2963 = vmatmul.bf16.gmra.mxu0 %v303
        %v2964 = vpop.f32.mrf.mxu0
        %v2965 = vadd.f32 %v2876, %v2964
        %v2966 = vpop.f32.mrf.mxu0
        %v2967 = vadd.f32 %v2878, %v2966
        %2968 = vmatmul.bf16.gmra.mxu0 %v306
        %v2969 = vpop.f32.mrf.mxu0
        %v2970 = vadd.f32 %v2881, %v2969
        %v2971 = vpop.f32.mrf.mxu0
        %v2972 = vadd.f32 %v2883, %v2971
        %2973 = vmatmul.bf16.gmra.mxu0 %v309
        %v2974 = vpop.f32.mrf.mxu0
        %v2975 = vadd.f32 %v2886, %v2974
        %v2976 = vpop.f32.mrf.mxu0
        %v2977 = vadd.f32 %v2888, %v2976
        %2978 = vmatmul.bf16.gmra.mxu0 %v312
        %v2979 = vpop.f32.mrf.mxu0
        %v2980 = vadd.f32 %v2891, %v2979
        %v2981 = vpop.f32.mrf.mxu0
        %v2982 = vadd.f32 %v2893, %v2981
        %2983 = vmatmul.bf16.gmra.mxu0 %v315
        %v2984 = vpop.f32.mrf.mxu0
        %v2985 = vadd.f32 %v2896, %v2984
        %v2986 = vpop.f32.mrf.mxu0
        %v2987 = vadd.f32 %v2898, %v2986
        %2988 = vmatmul.bf16.gmra.mxu0 %v318
        %v2989 = vpop.f32.mrf.mxu0
        %v2990 = vadd.f32 %v2901, %v2989
        %v2991 = vpop.f32.mrf.mxu0
        %v2992 = vadd.f32 %v2903, %v2991
        %2993 = vmatmul.bf16.gmra.mxu0 %v321
        %v2994 = vpop.f32.mrf.mxu0
        %v2995 = vadd.f32 %v2906, %v2994
        %v2996 = vpop.f32.mrf.mxu0
        %v2997 = vadd.f32 %v2908, %v2996
        %2998 = vmatmul.bf16.gmra.mxu0 %v324
        %v2999 = vpop.f32.mrf.mxu0
        %v3000 = vadd.f32 %v2911, %v2999
        %v3001 = vpop.f32.mrf.mxu0
        %v3002 = vadd.f32 %v2913, %v3001
        %3003 = vdwg.mxu0
        %3004 = vmatpush.bf16.msra.mxu0 %v1305
        %3005 = vmatpush.bf16.msra.mxu0 %v1296
        %3006 = vmatpush.bf16.msra.mxu0 %v1287
        %3007 = vmatpush.bf16.msra.mxu0 %v1278
        %3008 = vmatpush.bf16.msra.mxu0 %v1269
        %3009 = vmatpush.bf16.msra.mxu0 %v1260
        %3010 = vmatpush.bf16.msra.mxu0 %v1251
        %3011 = vmatpush.bf16.msra.mxu0 %v1242
        %3012 = vmatmul.bf16.gmra.mxu0 %v277
        %v3013 = vpop.f32.mrf.mxu0
        %v3014 = vadd.f32 0.0, %v3013
        %v3015 = vpop.f32.mrf.mxu0
        %v3016 = vadd.f32 0.0, %v3015
        %3017 = vmatmul.bf16.gmra.mxu0 %v280
        %v3018 = vpop.f32.mrf.mxu0
        %v3019 = vadd.f32 0.0, %v3018
        %v3020 = vpop.f32.mrf.mxu0
        %v3021 = vadd.f32 0.0, %v3020
        %3022 = vmatmul.bf16.gmra.mxu0 %v283
        %v3023 = vpop.f32.mrf.mxu0
        %v3024 = vadd.f32 0.0, %v3023
        %v3025 = vpop.f32.mrf.mxu0
        %v3026 = vadd.f32 0.0, %v3025
        %3027 = vmatmul.bf16.gmra.mxu0 %v286
        %v3028 = vpop.f32.mrf.mxu0
        %v3029 = vadd.f32 0.0, %v3028
        %v3030 = vpop.f32.mrf.mxu0
        %v3031 = vadd.f32 0.0, %v3030
        %3032 = vmatmul.bf16.gmra.mxu0 %v289
        %v3033 = vpop.f32.mrf.mxu0
        %v3034 = vadd.f32 0.0, %v3033
        %v3035 = vpop.f32.mrf.mxu0
        %v3036 = vadd.f32 0.0, %v3035
        %3037 = vmatmul.bf16.gmra.mxu0 %v292
        %v3038 = vpop.f32.mrf.mxu0
        %v3039 = vadd.f32 0.0, %v3038
        %v3040 = vpop.f32.mrf.mxu0
        %v3041 = vadd.f32 0.0, %v3040
        %3042 = vmatmul.bf16.gmra.mxu0 %v295
        %v3043 = vpop.f32.mrf.mxu0
        %v3044 = vadd.f32 0.0, %v3043
        %v3045 = vpop.f32.mrf.mxu0
        %v3046 = vadd.f32 0.0, %v3045
        %3047 = vmatmul.bf16.gmra.mxu0 %v298
        %v3048 = vpop.f32.mrf.mxu0
        %v3049 = vadd.f32 0.0, %v3048
        %v3050 = vpop.f32.mrf.mxu0
        %v3051 = vadd.f32 0.0, %v3050
        %3052 = vmatmul.bf16.gmra.mxu0 %v301
        %v3053 = vpop.f32.mrf.mxu0
        %v3054 = vadd.f32 0.0, %v3053
        %v3055 = vpop.f32.mrf.mxu0
        %v3056 = vadd.f32 0.0, %v3055
        %3057 = vmatmul.bf16.gmra.mxu0 %v304
        %v3058 = vpop.f32.mrf.mxu0
        %v3059 = vadd.f32 0.0, %v3058
        %v3060 = vpop.f32.mrf.mxu0
        %v3061 = vadd.f32 0.0, %v3060
        %3062 = vmatmul.bf16.gmra.mxu0 %v307
        %v3063 = vpop.f32.mrf.mxu0
        %v3064 = vadd.f32 0.0, %v3063
        %v3065 = vpop.f32.mrf.mxu0
        %v3066 = vadd.f32 0.0, %v3065
        %3067 = vmatmul.bf16.gmra.mxu0 %v310
        %v3068 = vpop.f32.mrf.mxu0
        %v3069 = vadd.f32 0.0, %v3068
        %v3070 = vpop.f32.mrf.mxu0
        %v3071 = vadd.f32 0.0, %v3070
        %3072 = vmatmul.bf16.gmra.mxu0 %v313
        %v3073 = vpop.f32.mrf.mxu0
        %v3074 = vadd.f32 0.0, %v3073
        %v3075 = vpop.f32.mrf.mxu0
        %v3076 = vadd.f32 0.0, %v3075
        %3077 = vmatmul.bf16.gmra.mxu0 %v316
        %v3078 = vpop.f32.mrf.mxu0
        %v3079 = vadd.f32 0.0, %v3078
        %v3080 = vpop.f32.mrf.mxu0
        %v3081 = vadd.f32 0.0, %v3080
        %3082 = vmatmul.bf16.gmra.mxu0 %v319
        %v3083 = vpop.f32.mrf.mxu0
        %v3084 = vadd.f32 0.0, %v3083
        %v3085 = vpop.f32.mrf.mxu0
        %v3086 = vadd.f32 0.0, %v3085
        %3087 = vmatmul.bf16.gmra.mxu0 %v322
        %v3088 = vpop.f32.mrf.mxu0
        %v3089 = vadd.f32 0.0, %v3088
        %v3090 = vpop.f32.mrf.mxu0
        %v3091 = vadd.f32 0.0, %v3090
        %3092 = vdwg.mxu0
        %3093 = vmatpush.bf16.msra.mxu0 %v1377
        %3094 = vmatpush.bf16.msra.mxu0 %v1368
        %3095 = vmatpush.bf16.msra.mxu0 %v1359
        %3096 = vmatpush.bf16.msra.mxu0 %v1350
        %3097 = vmatpush.bf16.msra.mxu0 %v1341
        %3098 = vmatpush.bf16.msra.mxu0 %v1332
        %3099 = vmatpush.bf16.msra.mxu0 %v1323
        %3100 = vmatpush.bf16.msra.mxu0 %v1314
        %3101 = vmatmul.bf16.gmra.mxu0 %v278
        %v3102 = vpop.f32.mrf.mxu0
        %v3103 = vadd.f32 %v3014, %v3102
        %v3104 = vpop.f32.mrf.mxu0
        %v3105 = vadd.f32 %v3016, %v3104
        %3106 = vmatmul.bf16.gmra.mxu0 %v281
        %v3107 = vpop.f32.mrf.mxu0
        %v3108 = vadd.f32 %v3019, %v3107
        %v3109 = vpop.f32.mrf.mxu0
        %v3110 = vadd.f32 %v3021, %v3109
        %3111 = vmatmul.bf16.gmra.mxu0 %v284
        %v3112 = vpop.f32.mrf.mxu0
        %v3113 = vadd.f32 %v3024, %v3112
        %v3114 = vpop.f32.mrf.mxu0
        %v3115 = vadd.f32 %v3026, %v3114
        %3116 = vmatmul.bf16.gmra.mxu0 %v287
        %v3117 = vpop.f32.mrf.mxu0
        %v3118 = vadd.f32 %v3029, %v3117
        %v3119 = vpop.f32.mrf.mxu0
        %v3120 = vadd.f32 %v3031, %v3119
        %3121 = vmatmul.bf16.gmra.mxu0 %v290
        %v3122 = vpop.f32.mrf.mxu0
        %v3123 = vadd.f32 %v3034, %v3122
        %v3124 = vpop.f32.mrf.mxu0
        %v3125 = vadd.f32 %v3036, %v3124
        %3126 = vmatmul.bf16.gmra.mxu0 %v293
        %v3127 = vpop.f32.mrf.mxu0
        %v3128 = vadd.f32 %v3039, %v3127
        %v3129 = vpop.f32.mrf.mxu0
        %v3130 = vadd.f32 %v3041, %v3129
        %3131 = vmatmul.bf16.gmra.mxu0 %v296
        %v3132 = vpop.f32.mrf.mxu0
        %v3133 = vadd.f32 %v3044, %v3132
        %v3134 = vpop.f32.mrf.mxu0
        %v3135 = vadd.f32 %v3046, %v3134
        %3136 = vmatmul.bf16.gmra.mxu0 %v299
        %v3137 = vpop.f32.mrf.mxu0
        %v3138 = vadd.f32 %v3049, %v3137
        %v3139 = vpop.f32.mrf.mxu0
        %v3140 = vadd.f32 %v3051, %v3139
        %3141 = vmatmul.bf16.gmra.mxu0 %v302
        %v3142 = vpop.f32.mrf.mxu0
        %v3143 = vadd.f32 %v3054, %v3142
        %v3144 = vpop.f32.mrf.mxu0
        %v3145 = vadd.f32 %v3056, %v3144
        %3146 = vmatmul.bf16.gmra.mxu0 %v305
        %v3147 = vpop.f32.mrf.mxu0
        %v3148 = vadd.f32 %v3059, %v3147
        %v3149 = vpop.f32.mrf.mxu0
        %v3150 = vadd.f32 %v3061, %v3149
        %3151 = vmatmul.bf16.gmra.mxu0 %v308
        %v3152 = vpop.f32.mrf.mxu0
        %v3153 = vadd.f32 %v3064, %v3152
        %v3154 = vpop.f32.mrf.mxu0
        %v3155 = vadd.f32 %v3066, %v3154
        %3156 = vmatmul.bf16.gmra.mxu0 %v311
        %v3157 = vpop.f32.mrf.mxu0
        %v3158 = vadd.f32 %v3069, %v3157
        %v3159 = vpop.f32.mrf.mxu0
        %v3160 = vadd.f32 %v3071, %v3159
        %3161 = vmatmul.bf16.gmra.mxu0 %v314
        %v3162 = vpop.f32.mrf.mxu0
        %v3163 = vadd.f32 %v3074, %v3162
        %v3164 = vpop.f32.mrf.mxu0
        %v3165 = vadd.f32 %v3076, %v3164
        %3166 = vmatmul.bf16.gmra.mxu0 %v317
        %v3167 = vpop.f32.mrf.mxu0
        %v3168 = vadd.f32 %v3079, %v3167
        %v3169 = vpop.f32.mrf.mxu0
        %v3170 = vadd.f32 %v3081, %v3169
        %3171 = vmatmul.bf16.gmra.mxu0 %v320
        %v3172 = vpop.f32.mrf.mxu0
        %v3173 = vadd.f32 %v3084, %v3172
        %v3174 = vpop.f32.mrf.mxu0
        %v3175 = vadd.f32 %v3086, %v3174
        %3176 = vmatmul.bf16.gmra.mxu0 %v323
        %v3177 = vpop.f32.mrf.mxu0
        %v3178 = vadd.f32 %v3089, %v3177
        %v3179 = vpop.f32.mrf.mxu0
        %v3180 = vadd.f32 %v3091, %v3179
        %3181 = vdwg.mxu0
        %3182 = vmatpush.bf16.msra.mxu0 %v1449
        %3183 = vmatpush.bf16.msra.mxu0 %v1440
        %3184 = vmatpush.bf16.msra.mxu0 %v1431
        %3185 = vmatpush.bf16.msra.mxu0 %v1422
        %3186 = vmatpush.bf16.msra.mxu0 %v1413
        %3187 = vmatpush.bf16.msra.mxu0 %v1404
        %3188 = vmatpush.bf16.msra.mxu0 %v1395
        %3189 = vmatpush.bf16.msra.mxu0 %v1386
        %3190 = vmatmul.bf16.gmra.mxu0 %v279
        %v3191 = vpop.f32.mrf.mxu0
        %v3192 = vadd.f32 %v3103, %v3191
        %v3193 = vpop.f32.mrf.mxu0
        %v3194 = vadd.f32 %v3105, %v3193
        %3195 = vmatmul.bf16.gmra.mxu0 %v282
        %v3196 = vpop.f32.mrf.mxu0
        %v3197 = vadd.f32 %v3108, %v3196
        %v3198 = vpop.f32.mrf.mxu0
        %v3199 = vadd.f32 %v3110, %v3198
        %3200 = vmatmul.bf16.gmra.mxu0 %v285
        %v3201 = vpop.f32.mrf.mxu0
        %v3202 = vadd.f32 %v3113, %v3201
        %v3203 = vpop.f32.mrf.mxu0
        %v3204 = vadd.f32 %v3115, %v3203
        %3205 = vmatmul.bf16.gmra.mxu0 %v288
        %v3206 = vpop.f32.mrf.mxu0
        %v3207 = vadd.f32 %v3118, %v3206
        %v3208 = vpop.f32.mrf.mxu0
        %v3209 = vadd.f32 %v3120, %v3208
        %3210 = vmatmul.bf16.gmra.mxu0 %v291
        %v3211 = vpop.f32.mrf.mxu0
        %v3212 = vadd.f32 %v3123, %v3211
        %v3213 = vpop.f32.mrf.mxu0
        %v3214 = vadd.f32 %v3125, %v3213
        %3215 = vmatmul.bf16.gmra.mxu0 %v294
        %v3216 = vpop.f32.mrf.mxu0
        %v3217 = vadd.f32 %v3128, %v3216
        %v3218 = vpop.f32.mrf.mxu0
        %v3219 = vadd.f32 %v3130, %v3218
        %3220 = vmatmul.bf16.gmra.mxu0 %v297
        %v3221 = vpop.f32.mrf.mxu0
        %v3222 = vadd.f32 %v3133, %v3221
        %v3223 = vpop.f32.mrf.mxu0
        %v3224 = vadd.f32 %v3135, %v3223
        %3225 = vmatmul.bf16.gmra.mxu0 %v300
        %v3226 = vpop.f32.mrf.mxu0
        %v3227 = vadd.f32 %v3138, %v3226
        %v3228 = vpop.f32.mrf.mxu0
        %v3229 = vadd.f32 %v3140, %v3228
        %3230 = vmatmul.bf16.gmra.mxu0 %v303
        %v3231 = vpop.f32.mrf.mxu0
        %v3232 = vadd.f32 %v3143, %v3231
        %v3233 = vpop.f32.mrf.mxu0
        %v3234 = vadd.f32 %v3145, %v3233
        %3235 = vmatmul.bf16.gmra.mxu0 %v306
        %v3236 = vpop.f32.mrf.mxu0
        %v3237 = vadd.f32 %v3148, %v3236
        %v3238 = vpop.f32.mrf.mxu0
        %v3239 = vadd.f32 %v3150, %v3238
        %3240 = vmatmul.bf16.gmra.mxu0 %v309
        %v3241 = vpop.f32.mrf.mxu0
        %v3242 = vadd.f32 %v3153, %v3241
        %v3243 = vpop.f32.mrf.mxu0
        %v3244 = vadd.f32 %v3155, %v3243
        %3245 = vmatmul.bf16.gmra.mxu0 %v312
        %v3246 = vpop.f32.mrf.mxu0
        %v3247 = vadd.f32 %v3158, %v3246
        %v3248 = vpop.f32.mrf.mxu0
        %v3249 = vadd.f32 %v3160, %v3248
        %3250 = vmatmul.bf16.gmra.mxu0 %v315
        %v3251 = vpop.f32.mrf.mxu0
        %v3252 = vadd.f32 %v3163, %v3251
        %v3253 = vpop.f32.mrf.mxu0
        %v3254 = vadd.f32 %v3165, %v3253
        %3255 = vmatmul.bf16.gmra.mxu0 %v318
        %v3256 = vpop.f32.mrf.mxu0
        %v3257 = vadd.f32 %v3168, %v3256
        %v3258 = vpop.f32.mrf.mxu0
        %v3259 = vadd.f32 %v3170, %v3258
        %3260 = vmatmul.bf16.gmra.mxu0 %v321
        %v3261 = vpop.f32.mrf.mxu0
        %v3262 = vadd.f32 %v3173, %v3261
        %v3263 = vpop.f32.mrf.mxu0
        %v3264 = vadd.f32 %v3175, %v3263
        %3265 = vmatmul.bf16.gmra.mxu0 %v324
        %v3266 = vpop.f32.mrf.mxu0
        %v3267 = vadd.f32 %v3178, %v3266
        %v3268 = vpop.f32.mrf.mxu0
        %v3269 = vadd.f32 %v3180, %v3268
        %3270 = vdwg.mxu0
        %3271 = vmatpush.bf16.msra.mxu0 %v1306
        %3272 = vmatpush.bf16.msra.mxu0 %v1297
        %3273 = vmatpush.bf16.msra.mxu0 %v1288
        %3274 = vmatpush.bf16.msra.mxu0 %v1279
        %3275 = vmatpush.bf16.msra.mxu0 %v1270
        %3276 = vmatpush.bf16.msra.mxu0 %v1261
        %3277 = vmatpush.bf16.msra.mxu0 %v1252
        %3278 = vmatpush.bf16.msra.mxu0 %v1243
        %3279 = vmatmul.bf16.gmra.mxu0 %v277
        %v3280 = vpop.f32.mrf.mxu0
        %v3281 = vadd.f32 0.0, %v3280
        %v3282 = vpop.f32.mrf.mxu0
        %v3283 = vadd.f32 0.0, %v3282
        %3284 = vmatmul.bf16.gmra.mxu0 %v280
        %v3285 = vpop.f32.mrf.mxu0
        %v3286 = vadd.f32 0.0, %v3285
        %v3287 = vpop.f32.mrf.mxu0
        %v3288 = vadd.f32 0.0, %v3287
        %3289 = vmatmul.bf16.gmra.mxu0 %v283
        %v3290 = vpop.f32.mrf.mxu0
        %v3291 = vadd.f32 0.0, %v3290
        %v3292 = vpop.f32.mrf.mxu0
        %v3293 = vadd.f32 0.0, %v3292
        %3294 = vmatmul.bf16.gmra.mxu0 %v286
        %v3295 = vpop.f32.mrf.mxu0
        %v3296 = vadd.f32 0.0, %v3295
        %v3297 = vpop.f32.mrf.mxu0
        %v3298 = vadd.f32 0.0, %v3297
        %3299 = vmatmul.bf16.gmra.mxu0 %v289
        %v3300 = vpop.f32.mrf.mxu0
        %v3301 = vadd.f32 0.0, %v3300
        %v3302 = vpop.f32.mrf.mxu0
        %v3303 = vadd.f32 0.0, %v3302
        %3304 = vmatmul.bf16.gmra.mxu0 %v292
        %v3305 = vpop.f32.mrf.mxu0
        %v3306 = vadd.f32 0.0, %v3305
        %v3307 = vpop.f32.mrf.mxu0
        %v3308 = vadd.f32 0.0, %v3307
        %3309 = vmatmul.bf16.gmra.mxu0 %v295
        %v3310 = vpop.f32.mrf.mxu0
        %v3311 = vadd.f32 0.0, %v3310
        %v3312 = vpop.f32.mrf.mxu0
        %v3313 = vadd.f32 0.0, %v3312
        %3314 = vmatmul.bf16.gmra.mxu0 %v298
        %v3315 = vpop.f32.mrf.mxu0
        %v3316 = vadd.f32 0.0, %v3315
        %v3317 = vpop.f32.mrf.mxu0
        %v3318 = vadd.f32 0.0, %v3317
        %3319 = vmatmul.bf16.gmra.mxu0 %v301
        %v3320 = vpop.f32.mrf.mxu0
        %v3321 = vadd.f32 0.0, %v3320
        %v3322 = vpop.f32.mrf.mxu0
        %v3323 = vadd.f32 0.0, %v3322
        %3324 = vmatmul.bf16.gmra.mxu0 %v304
        %v3325 = vpop.f32.mrf.mxu0
        %v3326 = vadd.f32 0.0, %v3325
        %v3327 = vpop.f32.mrf.mxu0
        %v3328 = vadd.f32 0.0, %v3327
        %3329 = vmatmul.bf16.gmra.mxu0 %v307
        %v3330 = vpop.f32.mrf.mxu0
        %v3331 = vadd.f32 0.0, %v3330
        %v3332 = vpop.f32.mrf.mxu0
        %v3333 = vadd.f32 0.0, %v3332
        %3334 = vmatmul.bf16.gmra.mxu0 %v310
        %v3335 = vpop.f32.mrf.mxu0
        %v3336 = vadd.f32 0.0, %v3335
        %v3337 = vpop.f32.mrf.mxu0
        %v3338 = vadd.f32 0.0, %v3337
        %3339 = vmatmul.bf16.gmra.mxu0 %v313
        %v3340 = vpop.f32.mrf.mxu0
        %v3341 = vadd.f32 0.0, %v3340
        %v3342 = vpop.f32.mrf.mxu0
        %v3343 = vadd.f32 0.0, %v3342
        %3344 = vmatmul.bf16.gmra.mxu0 %v316
        %v3345 = vpop.f32.mrf.mxu0
        %v3346 = vadd.f32 0.0, %v3345
        %v3347 = vpop.f32.mrf.mxu0
        %v3348 = vadd.f32 0.0, %v3347
        %3349 = vmatmul.bf16.gmra.mxu0 %v319
        %v3350 = vpop.f32.mrf.mxu0
        %v3351 = vadd.f32 0.0, %v3350
        %v3352 = vpop.f32.mrf.mxu0
        %v3353 = vadd.f32 0.0, %v3352
        %3354 = vmatmul.bf16.gmra.mxu0 %v322
        %v3355 = vpop.f32.mrf.mxu0
        %v3356 = vadd.f32 0.0, %v3355
        %v3357 = vpop.f32.mrf.mxu0
        %v3358 = vadd.f32 0.0, %v3357
        %3359 = vdwg.mxu0
        %3360 = vmatpush.bf16.msra.mxu0 %v1378
        %3361 = vmatpush.bf16.msra.mxu0 %v1369
        %3362 = vmatpush.bf16.msra.mxu0 %v1360
        %3363 = vmatpush.bf16.msra.mxu0 %v1351
        %3364 = vmatpush.bf16.msra.mxu0 %v1342
        %3365 = vmatpush.bf16.msra.mxu0 %v1333
        %3366 = vmatpush.bf16.msra.mxu0 %v1324
        %3367 = vmatpush.bf16.msra.mxu0 %v1315
        %3368 = vmatmul.bf16.gmra.mxu0 %v278
        %v3369 = vpop.f32.mrf.mxu0
        %v3370 = vadd.f32 %v3281, %v3369
        %v3371 = vpop.f32.mrf.mxu0
        %v3372 = vadd.f32 %v3283, %v3371
        %3373 = vmatmul.bf16.gmra.mxu0 %v281
        %v3374 = vpop.f32.mrf.mxu0
        %v3375 = vadd.f32 %v3286, %v3374
        %v3376 = vpop.f32.mrf.mxu0
        %v3377 = vadd.f32 %v3288, %v3376
        %3378 = vmatmul.bf16.gmra.mxu0 %v284
        %v3379 = vpop.f32.mrf.mxu0
        %v3380 = vadd.f32 %v3291, %v3379
        %v3381 = vpop.f32.mrf.mxu0
        %v3382 = vadd.f32 %v3293, %v3381
        %3383 = vmatmul.bf16.gmra.mxu0 %v287
        %v3384 = vpop.f32.mrf.mxu0
        %v3385 = vadd.f32 %v3296, %v3384
        %v3386 = vpop.f32.mrf.mxu0
        %v3387 = vadd.f32 %v3298, %v3386
        %3388 = vmatmul.bf16.gmra.mxu0 %v290
        %v3389 = vpop.f32.mrf.mxu0
        %v3390 = vadd.f32 %v3301, %v3389
        %v3391 = vpop.f32.mrf.mxu0
        %v3392 = vadd.f32 %v3303, %v3391
        %3393 = vmatmul.bf16.gmra.mxu0 %v293
        %v3394 = vpop.f32.mrf.mxu0
        %v3395 = vadd.f32 %v3306, %v3394
        %v3396 = vpop.f32.mrf.mxu0
        %v3397 = vadd.f32 %v3308, %v3396
        %3398 = vmatmul.bf16.gmra.mxu0 %v296
        %v3399 = vpop.f32.mrf.mxu0
        %v3400 = vadd.f32 %v3311, %v3399
        %v3401 = vpop.f32.mrf.mxu0
        %v3402 = vadd.f32 %v3313, %v3401
        %3403 = vmatmul.bf16.gmra.mxu0 %v299
        %v3404 = vpop.f32.mrf.mxu0
        %v3405 = vadd.f32 %v3316, %v3404
        %v3406 = vpop.f32.mrf.mxu0
        %v3407 = vadd.f32 %v3318, %v3406
        %3408 = vmatmul.bf16.gmra.mxu0 %v302
        %v3409 = vpop.f32.mrf.mxu0
        %v3410 = vadd.f32 %v3321, %v3409
        %v3411 = vpop.f32.mrf.mxu0
        %v3412 = vadd.f32 %v3323, %v3411
        %3413 = vmatmul.bf16.gmra.mxu0 %v305
        %v3414 = vpop.f32.mrf.mxu0
        %v3415 = vadd.f32 %v3326, %v3414
        %v3416 = vpop.f32.mrf.mxu0
        %v3417 = vadd.f32 %v3328, %v3416
        %3418 = vmatmul.bf16.gmra.mxu0 %v308
        %v3419 = vpop.f32.mrf.mxu0
        %v3420 = vadd.f32 %v3331, %v3419
        %v3421 = vpop.f32.mrf.mxu0
        %v3422 = vadd.f32 %v3333, %v3421
        %3423 = vmatmul.bf16.gmra.mxu0 %v311
        %v3424 = vpop.f32.mrf.mxu0
        %v3425 = vadd.f32 %v3336, %v3424
        %v3426 = vpop.f32.mrf.mxu0
        %v3427 = vadd.f32 %v3338, %v3426
        %3428 = vmatmul.bf16.gmra.mxu0 %v314
        %v3429 = vpop.f32.mrf.mxu0
        %v3430 = vadd.f32 %v3341, %v3429
        %v3431 = vpop.f32.mrf.mxu0
        %v3432 = vadd.f32 %v3343, %v3431
        %3433 = vmatmul.bf16.gmra.mxu0 %v317
        %v3434 = vpop.f32.mrf.mxu0
        %v3435 = vadd.f32 %v3346, %v3434
        %v3436 = vpop.f32.mrf.mxu0
        %v3437 = vadd.f32 %v3348, %v3436
        %3438 = vmatmul.bf16.gmra.mxu0 %v320
        %v3439 = vpop.f32.mrf.mxu0
        %v3440 = vadd.f32 %v3351, %v3439
        %v3441 = vpop.f32.mrf.mxu0
        %v3442 = vadd.f32 %v3353, %v3441
        %3443 = vmatmul.bf16.gmra.mxu0 %v323
        %v3444 = vpop.f32.mrf.mxu0
        %v3445 = vadd.f32 %v3356, %v3444
        %v3446 = vpop.f32.mrf.mxu0
        %v3447 = vadd.f32 %v3358, %v3446
        %3448 = vdwg.mxu0
        %3449 = vmatpush.bf16.msra.mxu0 %v1450
        %3450 = vmatpush.bf16.msra.mxu0 %v1441
        %3451 = vmatpush.bf16.msra.mxu0 %v1432
        %3452 = vmatpush.bf16.msra.mxu0 %v1423
        %3453 = vmatpush.bf16.msra.mxu0 %v1414
        %3454 = vmatpush.bf16.msra.mxu0 %v1405
        %3455 = vmatpush.bf16.msra.mxu0 %v1396
        %3456 = vmatpush.bf16.msra.mxu0 %v1387
        %3457 = vmatmul.bf16.gmra.mxu0 %v279
        %v3458 = vpop.f32.mrf.mxu0
        %v3459 = vadd.f32 %v3370, %v3458
        %v3460 = vpop.f32.mrf.mxu0
        %v3461 = vadd.f32 %v3372, %v3460
        %3462 = vmatmul.bf16.gmra.mxu0 %v282
        %v3463 = vpop.f32.mrf.mxu0
        %v3464 = vadd.f32 %v3375, %v3463
        %v3465 = vpop.f32.mrf.mxu0
        %v3466 = vadd.f32 %v3377, %v3465
        %3467 = vmatmul.bf16.gmra.mxu0 %v285
        %v3468 = vpop.f32.mrf.mxu0
        %v3469 = vadd.f32 %v3380, %v3468
        %v3470 = vpop.f32.mrf.mxu0
        %v3471 = vadd.f32 %v3382, %v3470
        %3472 = vmatmul.bf16.gmra.mxu0 %v288
        %v3473 = vpop.f32.mrf.mxu0
        %v3474 = vadd.f32 %v3385, %v3473
        %v3475 = vpop.f32.mrf.mxu0
        %v3476 = vadd.f32 %v3387, %v3475
        %3477 = vmatmul.bf16.gmra.mxu0 %v291
        %v3478 = vpop.f32.mrf.mxu0
        %v3479 = vadd.f32 %v3390, %v3478
        %v3480 = vpop.f32.mrf.mxu0
        %v3481 = vadd.f32 %v3392, %v3480
        %3482 = vmatmul.bf16.gmra.mxu0 %v294
        %v3483 = vpop.f32.mrf.mxu0
        %v3484 = vadd.f32 %v3395, %v3483
        %v3485 = vpop.f32.mrf.mxu0
        %v3486 = vadd.f32 %v3397, %v3485
        %3487 = vmatmul.bf16.gmra.mxu0 %v297
        %v3488 = vpop.f32.mrf.mxu0
        %v3489 = vadd.f32 %v3400, %v3488
        %v3490 = vpop.f32.mrf.mxu0
        %v3491 = vadd.f32 %v3402, %v3490
        %3492 = vmatmul.bf16.gmra.mxu0 %v300
        %v3493 = vpop.f32.mrf.mxu0
        %v3494 = vadd.f32 %v3405, %v3493
        %v3495 = vpop.f32.mrf.mxu0
        %v3496 = vadd.f32 %v3407, %v3495
        %3497 = vmatmul.bf16.gmra.mxu0 %v303
        %v3498 = vpop.f32.mrf.mxu0
        %v3499 = vadd.f32 %v3410, %v3498
        %v3500 = vpop.f32.mrf.mxu0
        %v3501 = vadd.f32 %v3412, %v3500
        %3502 = vmatmul.bf16.gmra.mxu0 %v306
        %v3503 = vpop.f32.mrf.mxu0
        %v3504 = vadd.f32 %v3415, %v3503
        %v3505 = vpop.f32.mrf.mxu0
        %v3506 = vadd.f32 %v3417, %v3505
        %3507 = vmatmul.bf16.gmra.mxu0 %v309
        %v3508 = vpop.f32.mrf.mxu0
        %v3509 = vadd.f32 %v3420, %v3508
        %v3510 = vpop.f32.mrf.mxu0
        %v3511 = vadd.f32 %v3422, %v3510
        %3512 = vmatmul.bf16.gmra.mxu0 %v312
        %v3513 = vpop.f32.mrf.mxu0
        %v3514 = vadd.f32 %v3425, %v3513
        %v3515 = vpop.f32.mrf.mxu0
        %v3516 = vadd.f32 %v3427, %v3515
        %3517 = vmatmul.bf16.gmra.mxu0 %v315
        %v3518 = vpop.f32.mrf.mxu0
        %v3519 = vadd.f32 %v3430, %v3518
        %v3520 = vpop.f32.mrf.mxu0
        %v3521 = vadd.f32 %v3432, %v3520
        %3522 = vmatmul.bf16.gmra.mxu0 %v318
        %v3523 = vpop.f32.mrf.mxu0
        %v3524 = vadd.f32 %v3435, %v3523
        %v3525 = vpop.f32.mrf.mxu0
        %v3526 = vadd.f32 %v3437, %v3525
        %3527 = vmatmul.bf16.gmra.mxu0 %v321
        %v3528 = vpop.f32.mrf.mxu0
        %v3529 = vadd.f32 %v3440, %v3528
        %v3530 = vpop.f32.mrf.mxu0
        %v3531 = vadd.f32 %v3442, %v3530
        %3532 = vmatmul.bf16.gmra.mxu0 %v324
        %v3533 = vpop.f32.mrf.mxu0
        %v3534 = vadd.f32 %v3445, %v3533
        %v3535 = vpop.f32.mrf.mxu0
        %v3536 = vadd.f32 %v3447, %v3535
        %3537 = vdwg.mxu0
        %3538 = vmatpush.bf16.msra.mxu0 %v1307
        %3539 = vmatpush.bf16.msra.mxu0 %v1298
        %3540 = vmatpush.bf16.msra.mxu0 %v1289
        %3541 = vmatpush.bf16.msra.mxu0 %v1280
        %3542 = vmatpush.bf16.msra.mxu0 %v1271
        %3543 = vmatpush.bf16.msra.mxu0 %v1262
        %3544 = vmatpush.bf16.msra.mxu0 %v1253
        %3545 = vmatpush.bf16.msra.mxu0 %v1244
        %3546 = vmatmul.bf16.gmra.mxu0 %v277
        %v3547 = vpop.f32.mrf.mxu0
        %v3548 = vadd.f32 0.0, %v3547
        %v3549 = vpop.f32.mrf.mxu0
        %v3550 = vadd.f32 0.0, %v3549
        %3551 = vmatmul.bf16.gmra.mxu0 %v280
        %v3552 = vpop.f32.mrf.mxu0
        %v3553 = vadd.f32 0.0, %v3552
        %v3554 = vpop.f32.mrf.mxu0
        %v3555 = vadd.f32 0.0, %v3554
        %3556 = vmatmul.bf16.gmra.mxu0 %v283
        %v3557 = vpop.f32.mrf.mxu0
        %v3558 = vadd.f32 0.0, %v3557
        %v3559 = vpop.f32.mrf.mxu0
        %v3560 = vadd.f32 0.0, %v3559
        %3561 = vmatmul.bf16.gmra.mxu0 %v286
        %v3562 = vpop.f32.mrf.mxu0
        %v3563 = vadd.f32 0.0, %v3562
        %v3564 = vpop.f32.mrf.mxu0
        %v3565 = vadd.f32 0.0, %v3564
        %3566 = vmatmul.bf16.gmra.mxu0 %v289
        %v3567 = vpop.f32.mrf.mxu0
        %v3568 = vadd.f32 0.0, %v3567
        %v3569 = vpop.f32.mrf.mxu0
        %v3570 = vadd.f32 0.0, %v3569
        %3571 = vmatmul.bf16.gmra.mxu0 %v292
        %v3572 = vpop.f32.mrf.mxu0
        %v3573 = vadd.f32 0.0, %v3572
        %v3574 = vpop.f32.mrf.mxu0
        %v3575 = vadd.f32 0.0, %v3574
        %3576 = vmatmul.bf16.gmra.mxu0 %v295
        %v3577 = vpop.f32.mrf.mxu0
        %v3578 = vadd.f32 0.0, %v3577
        %v3579 = vpop.f32.mrf.mxu0
        %v3580 = vadd.f32 0.0, %v3579
        %3581 = vmatmul.bf16.gmra.mxu0 %v298
        %v3582 = vpop.f32.mrf.mxu0
        %v3583 = vadd.f32 0.0, %v3582
        %v3584 = vpop.f32.mrf.mxu0
        %v3585 = vadd.f32 0.0, %v3584
        %3586 = vmatmul.bf16.gmra.mxu0 %v301
        %v3587 = vpop.f32.mrf.mxu0
        %v3588 = vadd.f32 0.0, %v3587
        %v3589 = vpop.f32.mrf.mxu0
        %v3590 = vadd.f32 0.0, %v3589
        %3591 = vmatmul.bf16.gmra.mxu0 %v304
        %v3592 = vpop.f32.mrf.mxu0
        %v3593 = vadd.f32 0.0, %v3592
        %v3594 = vpop.f32.mrf.mxu0
        %v3595 = vadd.f32 0.0, %v3594
        %3596 = vmatmul.bf16.gmra.mxu0 %v307
        %v3597 = vpop.f32.mrf.mxu0
        %v3598 = vadd.f32 0.0, %v3597
        %v3599 = vpop.f32.mrf.mxu0
        %v3600 = vadd.f32 0.0, %v3599
        %3601 = vmatmul.bf16.gmra.mxu0 %v310
        %v3602 = vpop.f32.mrf.mxu0
        %v3603 = vadd.f32 0.0, %v3602
        %v3604 = vpop.f32.mrf.mxu0
        %v3605 = vadd.f32 0.0, %v3604
        %3606 = vmatmul.bf16.gmra.mxu0 %v313
        %v3607 = vpop.f32.mrf.mxu0
        %v3608 = vadd.f32 0.0, %v3607
        %v3609 = vpop.f32.mrf.mxu0
        %v3610 = vadd.f32 0.0, %v3609
        %3611 = vmatmul.bf16.gmra.mxu0 %v316
        %v3612 = vpop.f32.mrf.mxu0
        %v3613 = vadd.f32 0.0, %v3612
        %v3614 = vpop.f32.mrf.mxu0
        %v3615 = vadd.f32 0.0, %v3614
        %3616 = vmatmul.bf16.gmra.mxu0 %v319
        %v3617 = vpop.f32.mrf.mxu0
        %v3618 = vadd.f32 0.0, %v3617
        %v3619 = vpop.f32.mrf.mxu0
        %v3620 = vadd.f32 0.0, %v3619
        %3621 = vmatmul.bf16.gmra.mxu0 %v322
        %v3622 = vpop.f32.mrf.mxu0
        %v3623 = vadd.f32 0.0, %v3622
        %v3624 = vpop.f32.mrf.mxu0
        %v3625 = vadd.f32 0.0, %v3624
        %3626 = vdwg.mxu0
        %3627 = vmatpush.bf16.msra.mxu0 %v1379
        %3628 = vmatpush.bf16.msra.mxu0 %v1370
        %3629 = vmatpush.bf16.msra.mxu0 %v1361
        %3630 = vmatpush.bf16.msra.mxu0 %v1352
        %3631 = vmatpush.bf16.msra.mxu0 %v1343
        %3632 = vmatpush.bf16.msra.mxu0 %v1334
        %3633 = vmatpush.bf16.msra.mxu0 %v1325
        %3634 = vmatpush.bf16.msra.mxu0 %v1316
        %3635 = vmatmul.bf16.gmra.mxu0 %v278
        %v3636 = vpop.f32.mrf.mxu0
        %v3637 = vadd.f32 %v3548, %v3636
        %v3638 = vpop.f32.mrf.mxu0
        %v3639 = vadd.f32 %v3550, %v3638
        %3640 = vmatmul.bf16.gmra.mxu0 %v281
        %v3641 = vpop.f32.mrf.mxu0
        %v3642 = vadd.f32 %v3553, %v3641
        %v3643 = vpop.f32.mrf.mxu0
        %v3644 = vadd.f32 %v3555, %v3643
        %3645 = vmatmul.bf16.gmra.mxu0 %v284
        %v3646 = vpop.f32.mrf.mxu0
        %v3647 = vadd.f32 %v3558, %v3646
        %v3648 = vpop.f32.mrf.mxu0
        %v3649 = vadd.f32 %v3560, %v3648
        %3650 = vmatmul.bf16.gmra.mxu0 %v287
        %v3651 = vpop.f32.mrf.mxu0
        %v3652 = vadd.f32 %v3563, %v3651
        %v3653 = vpop.f32.mrf.mxu0
        %v3654 = vadd.f32 %v3565, %v3653
        %3655 = vmatmul.bf16.gmra.mxu0 %v290
        %v3656 = vpop.f32.mrf.mxu0
        %v3657 = vadd.f32 %v3568, %v3656
        %v3658 = vpop.f32.mrf.mxu0
        %v3659 = vadd.f32 %v3570, %v3658
        %3660 = vmatmul.bf16.gmra.mxu0 %v293
        %v3661 = vpop.f32.mrf.mxu0
        %v3662 = vadd.f32 %v3573, %v3661
        %v3663 = vpop.f32.mrf.mxu0
        %v3664 = vadd.f32 %v3575, %v3663
        %3665 = vmatmul.bf16.gmra.mxu0 %v296
        %v3666 = vpop.f32.mrf.mxu0
        %v3667 = vadd.f32 %v3578, %v3666
        %v3668 = vpop.f32.mrf.mxu0
        %v3669 = vadd.f32 %v3580, %v3668
        %3670 = vmatmul.bf16.gmra.mxu0 %v299
        %v3671 = vpop.f32.mrf.mxu0
        %v3672 = vadd.f32 %v3583, %v3671
        %v3673 = vpop.f32.mrf.mxu0
        %v3674 = vadd.f32 %v3585, %v3673
        %3675 = vmatmul.bf16.gmra.mxu0 %v302
        %v3676 = vpop.f32.mrf.mxu0
        %v3677 = vadd.f32 %v3588, %v3676
        %v3678 = vpop.f32.mrf.mxu0
        %v3679 = vadd.f32 %v3590, %v3678
        %3680 = vmatmul.bf16.gmra.mxu0 %v305
        %v3681 = vpop.f32.mrf.mxu0
        %v3682 = vadd.f32 %v3593, %v3681
        %v3683 = vpop.f32.mrf.mxu0
        %v3684 = vadd.f32 %v3595, %v3683
        %3685 = vmatmul.bf16.gmra.mxu0 %v308
        %v3686 = vpop.f32.mrf.mxu0
        %v3687 = vadd.f32 %v3598, %v3686
        %v3688 = vpop.f32.mrf.mxu0
        %v3689 = vadd.f32 %v3600, %v3688
        %3690 = vmatmul.bf16.gmra.mxu0 %v311
        %v3691 = vpop.f32.mrf.mxu0
        %v3692 = vadd.f32 %v3603, %v3691
        %v3693 = vpop.f32.mrf.mxu0
        %v3694 = vadd.f32 %v3605, %v3693
        %3695 = vmatmul.bf16.gmra.mxu0 %v314
        %v3696 = vpop.f32.mrf.mxu0
        %v3697 = vadd.f32 %v3608, %v3696
        %v3698 = vpop.f32.mrf.mxu0
        %v3699 = vadd.f32 %v3610, %v3698
        %3700 = vmatmul.bf16.gmra.mxu0 %v317
        %v3701 = vpop.f32.mrf.mxu0
        %v3702 = vadd.f32 %v3613, %v3701
        %v3703 = vpop.f32.mrf.mxu0
        %v3704 = vadd.f32 %v3615, %v3703
        %3705 = vmatmul.bf16.gmra.mxu0 %v320
        %v3706 = vpop.f32.mrf.mxu0
        %v3707 = vadd.f32 %v3618, %v3706
        %v3708 = vpop.f32.mrf.mxu0
        %v3709 = vadd.f32 %v3620, %v3708
        %3710 = vmatmul.bf16.gmra.mxu0 %v323
        %v3711 = vpop.f32.mrf.mxu0
        %v3712 = vadd.f32 %v3623, %v3711
        %v3713 = vpop.f32.mrf.mxu0
        %v3714 = vadd.f32 %v3625, %v3713
        %3715 = vdwg.mxu0
        %3716 = vmatpush.bf16.msra.mxu0 %v1451
        %3717 = vmatpush.bf16.msra.mxu0 %v1442
        %3718 = vmatpush.bf16.msra.mxu0 %v1433
        %3719 = vmatpush.bf16.msra.mxu0 %v1424
        %3720 = vmatpush.bf16.msra.mxu0 %v1415
        %3721 = vmatpush.bf16.msra.mxu0 %v1406
        %3722 = vmatpush.bf16.msra.mxu0 %v1397
        %3723 = vmatpush.bf16.msra.mxu0 %v1388
        %3724 = vmatmul.bf16.gmra.mxu0 %v279
        %v3725 = vpop.f32.mrf.mxu0
        %v3726 = vadd.f32 %v3637, %v3725
        %v3727 = vpop.f32.mrf.mxu0
        %v3728 = vadd.f32 %v3639, %v3727
        %3729 = vmatmul.bf16.gmra.mxu0 %v282
        %v3730 = vpop.f32.mrf.mxu0
        %v3731 = vadd.f32 %v3642, %v3730
        %v3732 = vpop.f32.mrf.mxu0
        %v3733 = vadd.f32 %v3644, %v3732
        %3734 = vmatmul.bf16.gmra.mxu0 %v285
        %v3735 = vpop.f32.mrf.mxu0
        %v3736 = vadd.f32 %v3647, %v3735
        %v3737 = vpop.f32.mrf.mxu0
        %v3738 = vadd.f32 %v3649, %v3737
        %3739 = vmatmul.bf16.gmra.mxu0 %v288
        %v3740 = vpop.f32.mrf.mxu0
        %v3741 = vadd.f32 %v3652, %v3740
        %v3742 = vpop.f32.mrf.mxu0
        %v3743 = vadd.f32 %v3654, %v3742
        %3744 = vmatmul.bf16.gmra.mxu0 %v291
        %v3745 = vpop.f32.mrf.mxu0
        %v3746 = vadd.f32 %v3657, %v3745
        %v3747 = vpop.f32.mrf.mxu0
        %v3748 = vadd.f32 %v3659, %v3747
        %3749 = vmatmul.bf16.gmra.mxu0 %v294
        %v3750 = vpop.f32.mrf.mxu0
        %v3751 = vadd.f32 %v3662, %v3750
        %v3752 = vpop.f32.mrf.mxu0
        %v3753 = vadd.f32 %v3664, %v3752
        %3754 = vmatmul.bf16.gmra.mxu0 %v297
        %v3755 = vpop.f32.mrf.mxu0
        %v3756 = vadd.f32 %v3667, %v3755
        %v3757 = vpop.f32.mrf.mxu0
        %v3758 = vadd.f32 %v3669, %v3757
        %3759 = vmatmul.bf16.gmra.mxu0 %v300
        %v3760 = vpop.f32.mrf.mxu0
        %v3761 = vadd.f32 %v3672, %v3760
        %v3762 = vpop.f32.mrf.mxu0
        %v3763 = vadd.f32 %v3674, %v3762
        %3764 = vmatmul.bf16.gmra.mxu0 %v303
        %v3765 = vpop.f32.mrf.mxu0
        %v3766 = vadd.f32 %v3677, %v3765
        %v3767 = vpop.f32.mrf.mxu0
        %v3768 = vadd.f32 %v3679, %v3767
        %3769 = vmatmul.bf16.gmra.mxu0 %v306
        %v3770 = vpop.f32.mrf.mxu0
        %v3771 = vadd.f32 %v3682, %v3770
        %v3772 = vpop.f32.mrf.mxu0
        %v3773 = vadd.f32 %v3684, %v3772
        %3774 = vmatmul.bf16.gmra.mxu0 %v309
        %v3775 = vpop.f32.mrf.mxu0
        %v3776 = vadd.f32 %v3687, %v3775
        %v3777 = vpop.f32.mrf.mxu0
        %v3778 = vadd.f32 %v3689, %v3777
        %3779 = vmatmul.bf16.gmra.mxu0 %v312
        %v3780 = vpop.f32.mrf.mxu0
        %v3781 = vadd.f32 %v3692, %v3780
        %v3782 = vpop.f32.mrf.mxu0
        %v3783 = vadd.f32 %v3694, %v3782
        %3784 = vmatmul.bf16.gmra.mxu0 %v315
        %v3785 = vpop.f32.mrf.mxu0
        %v3786 = vadd.f32 %v3697, %v3785
        %v3787 = vpop.f32.mrf.mxu0
        %v3788 = vadd.f32 %v3699, %v3787
        %3789 = vmatmul.bf16.gmra.mxu0 %v318
        %v3790 = vpop.f32.mrf.mxu0
        %v3791 = vadd.f32 %v3702, %v3790
        %v3792 = vpop.f32.mrf.mxu0
        %v3793 = vadd.f32 %v3704, %v3792
        %3794 = vmatmul.bf16.gmra.mxu0 %v321
        %v3795 = vpop.f32.mrf.mxu0
        %v3796 = vadd.f32 %v3707, %v3795
        %v3797 = vpop.f32.mrf.mxu0
        %v3798 = vadd.f32 %v3709, %v3797
        %3799 = vmatmul.bf16.gmra.mxu0 %v324
        %v3800 = vpop.f32.mrf.mxu0
        %v3801 = vadd.f32 %v3712, %v3800
        %v3802 = vpop.f32.mrf.mxu0
        %v3803 = vadd.f32 %v3714, %v3802
        %3804 = vdwg.mxu0
        %3805 = vmatpush.bf16.msra.mxu0 %v1308
        %3806 = vmatpush.bf16.msra.mxu0 %v1299
        %3807 = vmatpush.bf16.msra.mxu0 %v1290
        %3808 = vmatpush.bf16.msra.mxu0 %v1281
        %3809 = vmatpush.bf16.msra.mxu0 %v1272
        %3810 = vmatpush.bf16.msra.mxu0 %v1263
        %3811 = vmatpush.bf16.msra.mxu0 %v1254
        %3812 = vmatpush.bf16.msra.mxu0 %v1245
        %3813 = vmatmul.bf16.gmra.mxu0 %v277
        %v3814 = vpop.f32.mrf.mxu0
        %v3815 = vadd.f32 0.0, %v3814
        %v3816 = vpop.f32.mrf.mxu0
        %v3817 = vadd.f32 0.0, %v3816
        %3818 = vmatmul.bf16.gmra.mxu0 %v280
        %v3819 = vpop.f32.mrf.mxu0
        %v3820 = vadd.f32 0.0, %v3819
        %v3821 = vpop.f32.mrf.mxu0
        %v3822 = vadd.f32 0.0, %v3821
        %3823 = vmatmul.bf16.gmra.mxu0 %v283
        %v3824 = vpop.f32.mrf.mxu0
        %v3825 = vadd.f32 0.0, %v3824
        %v3826 = vpop.f32.mrf.mxu0
        %v3827 = vadd.f32 0.0, %v3826
        %3828 = vmatmul.bf16.gmra.mxu0 %v286
        %v3829 = vpop.f32.mrf.mxu0
        %v3830 = vadd.f32 0.0, %v3829
        %v3831 = vpop.f32.mrf.mxu0
        %v3832 = vadd.f32 0.0, %v3831
        %3833 = vmatmul.bf16.gmra.mxu0 %v289
        %v3834 = vpop.f32.mrf.mxu0
        %v3835 = vadd.f32 0.0, %v3834
        %v3836 = vpop.f32.mrf.mxu0
        %v3837 = vadd.f32 0.0, %v3836
        %3838 = vmatmul.bf16.gmra.mxu0 %v292
        %v3839 = vpop.f32.mrf.mxu0
        %v3840 = vadd.f32 0.0, %v3839
        %v3841 = vpop.f32.mrf.mxu0
        %v3842 = vadd.f32 0.0, %v3841
        %3843 = vmatmul.bf16.gmra.mxu0 %v295
        %v3844 = vpop.f32.mrf.mxu0
        %v3845 = vadd.f32 0.0, %v3844
        %v3846 = vpop.f32.mrf.mxu0
        %v3847 = vadd.f32 0.0, %v3846
        %3848 = vmatmul.bf16.gmra.mxu0 %v298
        %v3849 = vpop.f32.mrf.mxu0
        %v3850 = vadd.f32 0.0, %v3849
        %v3851 = vpop.f32.mrf.mxu0
        %v3852 = vadd.f32 0.0, %v3851
        %3853 = vmatmul.bf16.gmra.mxu0 %v301
        %v3854 = vpop.f32.mrf.mxu0
        %v3855 = vadd.f32 0.0, %v3854
        %v3856 = vpop.f32.mrf.mxu0
        %v3857 = vadd.f32 0.0, %v3856
        %3858 = vmatmul.bf16.gmra.mxu0 %v304
        %v3859 = vpop.f32.mrf.mxu0
        %v3860 = vadd.f32 0.0, %v3859
        %v3861 = vpop.f32.mrf.mxu0
        %v3862 = vadd.f32 0.0, %v3861
        %3863 = vmatmul.bf16.gmra.mxu0 %v307
        %v3864 = vpop.f32.mrf.mxu0
        %v3865 = vadd.f32 0.0, %v3864
        %v3866 = vpop.f32.mrf.mxu0
        %v3867 = vadd.f32 0.0, %v3866
        %3868 = vmatmul.bf16.gmra.mxu0 %v310
        %v3869 = vpop.f32.mrf.mxu0
        %v3870 = vadd.f32 0.0, %v3869
        %v3871 = vpop.f32.mrf.mxu0
        %v3872 = vadd.f32 0.0, %v3871
        %3873 = vmatmul.bf16.gmra.mxu0 %v313
        %v3874 = vpop.f32.mrf.mxu0
        %v3875 = vadd.f32 0.0, %v3874
        %v3876 = vpop.f32.mrf.mxu0
        %v3877 = vadd.f32 0.0, %v3876
        %3878 = vmatmul.bf16.gmra.mxu0 %v316
        %v3879 = vpop.f32.mrf.mxu0
        %v3880 = vadd.f32 0.0, %v3879
        %v3881 = vpop.f32.mrf.mxu0
        %v3882 = vadd.f32 0.0, %v3881
        %3883 = vmatmul.bf16.gmra.mxu0 %v319
        %v3884 = vpop.f32.mrf.mxu0
        %v3885 = vadd.f32 0.0, %v3884
        %v3886 = vpop.f32.mrf.mxu0
        %v3887 = vadd.f32 0.0, %v3886
        %3888 = vmatmul.bf16.gmra.mxu0 %v322
        %v3889 = vpop.f32.mrf.mxu0
        %v3890 = vadd.f32 0.0, %v3889
        %v3891 = vpop.f32.mrf.mxu0
        %v3892 = vadd.f32 0.0, %v3891
        %3893 = vdwg.mxu0
        %3894 = vmatpush.bf16.msra.mxu0 %v1380
        %3895 = vmatpush.bf16.msra.mxu0 %v1371
        %3896 = vmatpush.bf16.msra.mxu0 %v1362
        %3897 = vmatpush.bf16.msra.mxu0 %v1353
        %3898 = vmatpush.bf16.msra.mxu0 %v1344
        %3899 = vmatpush.bf16.msra.mxu0 %v1335
        %3900 = vmatpush.bf16.msra.mxu0 %v1326
        %3901 = vmatpush.bf16.msra.mxu0 %v1317
        %3902 = vmatmul.bf16.gmra.mxu0 %v278
        %v3903 = vpop.f32.mrf.mxu0
        %v3904 = vadd.f32 %v3815, %v3903
        %v3905 = vpop.f32.mrf.mxu0
        %v3906 = vadd.f32 %v3817, %v3905
        %3907 = vmatmul.bf16.gmra.mxu0 %v281
        %v3908 = vpop.f32.mrf.mxu0
        %v3909 = vadd.f32 %v3820, %v3908
        %v3910 = vpop.f32.mrf.mxu0
        %v3911 = vadd.f32 %v3822, %v3910
        %3912 = vmatmul.bf16.gmra.mxu0 %v284
        %v3913 = vpop.f32.mrf.mxu0
        %v3914 = vadd.f32 %v3825, %v3913
        %v3915 = vpop.f32.mrf.mxu0
        %v3916 = vadd.f32 %v3827, %v3915
        %3917 = vmatmul.bf16.gmra.mxu0 %v287
        %v3918 = vpop.f32.mrf.mxu0
        %v3919 = vadd.f32 %v3830, %v3918
        %v3920 = vpop.f32.mrf.mxu0
        %v3921 = vadd.f32 %v3832, %v3920
        %3922 = vmatmul.bf16.gmra.mxu0 %v290
        %v3923 = vpop.f32.mrf.mxu0
        %v3924 = vadd.f32 %v3835, %v3923
        %v3925 = vpop.f32.mrf.mxu0
        %v3926 = vadd.f32 %v3837, %v3925
        %3927 = vmatmul.bf16.gmra.mxu0 %v293
        %v3928 = vpop.f32.mrf.mxu0
        %v3929 = vadd.f32 %v3840, %v3928
        %v3930 = vpop.f32.mrf.mxu0
        %v3931 = vadd.f32 %v3842, %v3930
        %3932 = vmatmul.bf16.gmra.mxu0 %v296
        %v3933 = vpop.f32.mrf.mxu0
        %v3934 = vadd.f32 %v3845, %v3933
        %v3935 = vpop.f32.mrf.mxu0
        %v3936 = vadd.f32 %v3847, %v3935
        %3937 = vmatmul.bf16.gmra.mxu0 %v299
        %v3938 = vpop.f32.mrf.mxu0
        %v3939 = vadd.f32 %v3850, %v3938
        %v3940 = vpop.f32.mrf.mxu0
        %v3941 = vadd.f32 %v3852, %v3940
        %3942 = vmatmul.bf16.gmra.mxu0 %v302
        %v3943 = vpop.f32.mrf.mxu0
        %v3944 = vadd.f32 %v3855, %v3943
        %v3945 = vpop.f32.mrf.mxu0
        %v3946 = vadd.f32 %v3857, %v3945
        %3947 = vmatmul.bf16.gmra.mxu0 %v305
        %v3948 = vpop.f32.mrf.mxu0
        %v3949 = vadd.f32 %v3860, %v3948
        %v3950 = vpop.f32.mrf.mxu0
        %v3951 = vadd.f32 %v3862, %v3950
        %3952 = vmatmul.bf16.gmra.mxu0 %v308
        %v3953 = vpop.f32.mrf.mxu0
        %v3954 = vadd.f32 %v3865, %v3953
        %v3955 = vpop.f32.mrf.mxu0
        %v3956 = vadd.f32 %v3867, %v3955
        %3957 = vmatmul.bf16.gmra.mxu0 %v311
        %v3958 = vpop.f32.mrf.mxu0
        %v3959 = vadd.f32 %v3870, %v3958
        %v3960 = vpop.f32.mrf.mxu0
        %v3961 = vadd.f32 %v3872, %v3960
        %3962 = vmatmul.bf16.gmra.mxu0 %v314
        %v3963 = vpop.f32.mrf.mxu0
        %v3964 = vadd.f32 %v3875, %v3963
        %v3965 = vpop.f32.mrf.mxu0
        %v3966 = vadd.f32 %v3877, %v3965
        %3967 = vmatmul.bf16.gmra.mxu0 %v317
        %v3968 = vpop.f32.mrf.mxu0
        %v3969 = vadd.f32 %v3880, %v3968
        %v3970 = vpop.f32.mrf.mxu0
        %v3971 = vadd.f32 %v3882, %v3970
        %3972 = vmatmul.bf16.gmra.mxu0 %v320
        %v3973 = vpop.f32.mrf.mxu0
        %v3974 = vadd.f32 %v3885, %v3973
        %v3975 = vpop.f32.mrf.mxu0
        %v3976 = vadd.f32 %v3887, %v3975
        %3977 = vmatmul.bf16.gmra.mxu0 %v323
        %v3978 = vpop.f32.mrf.mxu0
        %v3979 = vadd.f32 %v3890, %v3978
        %v3980 = vpop.f32.mrf.mxu0
        %v3981 = vadd.f32 %v3892, %v3980
        %3982 = vdwg.mxu0
        %3983 = vmatpush.bf16.msra.mxu0 %v1452
        %3984 = vmatpush.bf16.msra.mxu0 %v1443
        %3985 = vmatpush.bf16.msra.mxu0 %v1434
        %3986 = vmatpush.bf16.msra.mxu0 %v1425
        %3987 = vmatpush.bf16.msra.mxu0 %v1416
        %3988 = vmatpush.bf16.msra.mxu0 %v1407
        %3989 = vmatpush.bf16.msra.mxu0 %v1398
        %3990 = vmatpush.bf16.msra.mxu0 %v1389
        %3991 = vmatmul.bf16.gmra.mxu0 %v279
        %v3992 = vpop.f32.mrf.mxu0
        %v3993 = vadd.f32 %v3904, %v3992
        %v3994 = vpop.f32.mrf.mxu0
        %v3995 = vadd.f32 %v3906, %v3994
        %3996 = vmatmul.bf16.gmra.mxu0 %v282
        %v3997 = vpop.f32.mrf.mxu0
        %v3998 = vadd.f32 %v3909, %v3997
        %v3999 = vpop.f32.mrf.mxu0
        %v4000 = vadd.f32 %v3911, %v3999
        %4001 = vmatmul.bf16.gmra.mxu0 %v285
        %v4002 = vpop.f32.mrf.mxu0
        %v4003 = vadd.f32 %v3914, %v4002
        %v4004 = vpop.f32.mrf.mxu0
        %v4005 = vadd.f32 %v3916, %v4004
        %4006 = vmatmul.bf16.gmra.mxu0 %v288
        %v4007 = vpop.f32.mrf.mxu0
        %v4008 = vadd.f32 %v3919, %v4007
        %v4009 = vpop.f32.mrf.mxu0
        %v4010 = vadd.f32 %v3921, %v4009
        %4011 = vmatmul.bf16.gmra.mxu0 %v291
        %v4012 = vpop.f32.mrf.mxu0
        %v4013 = vadd.f32 %v3924, %v4012
        %v4014 = vpop.f32.mrf.mxu0
        %v4015 = vadd.f32 %v3926, %v4014
        %4016 = vmatmul.bf16.gmra.mxu0 %v294
        %v4017 = vpop.f32.mrf.mxu0
        %v4018 = vadd.f32 %v3929, %v4017
        %v4019 = vpop.f32.mrf.mxu0
        %v4020 = vadd.f32 %v3931, %v4019
        %4021 = vmatmul.bf16.gmra.mxu0 %v297
        %v4022 = vpop.f32.mrf.mxu0
        %v4023 = vadd.f32 %v3934, %v4022
        %v4024 = vpop.f32.mrf.mxu0
        %v4025 = vadd.f32 %v3936, %v4024
        %4026 = vmatmul.bf16.gmra.mxu0 %v300
        %v4027 = vpop.f32.mrf.mxu0
        %v4028 = vadd.f32 %v3939, %v4027
        %v4029 = vpop.f32.mrf.mxu0
        %v4030 = vadd.f32 %v3941, %v4029
        %4031 = vmatmul.bf16.gmra.mxu0 %v303
        %v4032 = vpop.f32.mrf.mxu0
        %v4033 = vadd.f32 %v3944, %v4032
        %v4034 = vpop.f32.mrf.mxu0
        %v4035 = vadd.f32 %v3946, %v4034
        %4036 = vmatmul.bf16.gmra.mxu0 %v306
        %v4037 = vpop.f32.mrf.mxu0
        %v4038 = vadd.f32 %v3949, %v4037
        %v4039 = vpop.f32.mrf.mxu0
        %v4040 = vadd.f32 %v3951, %v4039
        %4041 = vmatmul.bf16.gmra.mxu0 %v309
        %v4042 = vpop.f32.mrf.mxu0
        %v4043 = vadd.f32 %v3954, %v4042
        %v4044 = vpop.f32.mrf.mxu0
        %v4045 = vadd.f32 %v3956, %v4044
        %4046 = vmatmul.bf16.gmra.mxu0 %v312
        %v4047 = vpop.f32.mrf.mxu0
        %v4048 = vadd.f32 %v3959, %v4047
        %v4049 = vpop.f32.mrf.mxu0
        %v4050 = vadd.f32 %v3961, %v4049
        %4051 = vmatmul.bf16.gmra.mxu0 %v315
        %v4052 = vpop.f32.mrf.mxu0
        %v4053 = vadd.f32 %v3964, %v4052
        %v4054 = vpop.f32.mrf.mxu0
        %v4055 = vadd.f32 %v3966, %v4054
        %4056 = vmatmul.bf16.gmra.mxu0 %v318
        %v4057 = vpop.f32.mrf.mxu0
        %v4058 = vadd.f32 %v3969, %v4057
        %v4059 = vpop.f32.mrf.mxu0
        %v4060 = vadd.f32 %v3971, %v4059
        %4061 = vmatmul.bf16.gmra.mxu0 %v321
        %v4062 = vpop.f32.mrf.mxu0
        %v4063 = vadd.f32 %v3974, %v4062
        %v4064 = vpop.f32.mrf.mxu0
        %v4065 = vadd.f32 %v3976, %v4064
        %4066 = vmatmul.bf16.gmra.mxu0 %v324
        %v4067 = vpop.f32.mrf.mxu0
        %v4068 = vadd.f32 %v3979, %v4067
        %v4069 = vpop.f32.mrf.mxu0
        %v4070 = vadd.f32 %v3981, %v4069
        %4071 = vdwg.mxu0
        %v4072 = vpack.c.bf16 %v2124, %v1857
        %v4073 = vpack.c.bf16 %v2391, %v2391
        %v4074 = vpack.c.bf16 %v2126, %v1859
        %v4075 = vpack.c.bf16 %v2393, %v2393
        %v4076 = vpack.c.bf16 %v2129, %v1862
        %v4077 = vpack.c.bf16 %v2396, %v2396
        %v4078 = vpack.c.bf16 %v2131, %v1864
        %v4079 = vpack.c.bf16 %v2398, %v2398
        %v4080 = vpack.c.bf16 %v2134, %v1867
        %v4081 = vpack.c.bf16 %v2401, %v2401
        %v4082 = vpack.c.bf16 %v2136, %v1869
        %v4083 = vpack.c.bf16 %v2403, %v2403
        %v4084 = vpack.c.bf16 %v2139, %v1872
        %v4085 = vpack.c.bf16 %v2406, %v2406
        %v4086 = vpack.c.bf16 %v2141, %v1874
        %v4087 = vpack.c.bf16 %v2408, %v2408
        %v4088 = vpack.c.bf16 %v2144, %v1877
        %v4089 = vpack.c.bf16 %v2411, %v2411
        %v4090 = vpack.c.bf16 %v2146, %v1879
        %v4091 = vpack.c.bf16 %v2413, %v2413
        %v4092 = vpack.c.bf16 %v2149, %v1882
        %v4093 = vpack.c.bf16 %v2416, %v2416
        %v4094 = vpack.c.bf16 %v2151, %v1884
        %v4095 = vpack.c.bf16 %v2418, %v2418
        %v4096 = vpack.c.bf16 %v2154, %v1887
        %v4097 = vpack.c.bf16 %v2421, %v2421
        %v4098 = vpack.c.bf16 %v2156, %v1889
        %v4099 = vpack.c.bf16 %v2423, %v2423
        %v4100 = vpack.c.bf16 %v2159, %v1892
        %v4101 = vpack.c.bf16 %v2426, %v2426
        %v4102 = vpack.c.bf16 %v2161, %v1894
        %v4103 = vpack.c.bf16 %v2428, %v2428
        %v4104 = vpack.c.bf16 %v2164, %v1897
        %v4105 = vpack.c.bf16 %v2431, %v2431
        %v4106 = vpack.c.bf16 %v2166, %v1899
        %v4107 = vpack.c.bf16 %v2433, %v2433
        %v4108 = vpack.c.bf16 %v2169, %v1902
        %v4109 = vpack.c.bf16 %v2436, %v2436
        %v4110 = vpack.c.bf16 %v2171, %v1904
        %v4111 = vpack.c.bf16 %v2438, %v2438
        %v4112 = vpack.c.bf16 %v2174, %v1907
        %v4113 = vpack.c.bf16 %v2441, %v2441
        %v4114 = vpack.c.bf16 %v2176, %v1909
        %v4115 = vpack.c.bf16 %v2443, %v2443
        %v4116 = vpack.c.bf16 %v2179, %v1912
        %v4117 = vpack.c.bf16 %v2446, %v2446
        %v4118 = vpack.c.bf16 %v2181, %v1914
        %v4119 = vpack.c.bf16 %v2448, %v2448
        %v4120 = vpack.c.bf16 %v2184, %v1917
        %v4121 = vpack.c.bf16 %v2451, %v2451
        %v4122 = vpack.c.bf16 %v2186, %v1919
        %v4123 = vpack.c.bf16 %v2453, %v2453
        %v4124 = vpack.c.bf16 %v2189, %v1922
        %v4125 = vpack.c.bf16 %v2456, %v2456
        %v4126 = vpack.c.bf16 %v2191, %v1924
        %v4127 = vpack.c.bf16 %v2458, %v2458
        %v4128 = vpack.c.bf16 %v2194, %v1927
        %v4129 = vpack.c.bf16 %v2461, %v2461
        %v4130 = vpack.c.bf16 %v2196, %v1929
        %v4131 = vpack.c.bf16 %v2463, %v2463
        %v4132 = vpack.c.bf16 %v2199, %v1932
        %v4133 = vpack.c.bf16 %v2466, %v2466
        %v4134 = vpack.c.bf16 %v2201, %v1934
        %v4135 = vpack.c.bf16 %v2468, %v2468
        %v4136 = vpack.c.bf16 %v2925, %v2658
        %v4137 = vpack.c.bf16 %v3192, %v3192
        %v4138 = vpack.c.bf16 %v2927, %v2660
        %v4139 = vpack.c.bf16 %v3194, %v3194
        %v4140 = vpack.c.bf16 %v2930, %v2663
        %v4141 = vpack.c.bf16 %v3197, %v3197
        %v4142 = vpack.c.bf16 %v2932, %v2665
        %v4143 = vpack.c.bf16 %v3199, %v3199
        %v4144 = vpack.c.bf16 %v2935, %v2668
        %v4145 = vpack.c.bf16 %v3202, %v3202
        %v4146 = vpack.c.bf16 %v2937, %v2670
        %v4147 = vpack.c.bf16 %v3204, %v3204
        %v4148 = vpack.c.bf16 %v2940, %v2673
        %v4149 = vpack.c.bf16 %v3207, %v3207
        %v4150 = vpack.c.bf16 %v2942, %v2675
        %v4151 = vpack.c.bf16 %v3209, %v3209
        %v4152 = vpack.c.bf16 %v2945, %v2678
        %v4153 = vpack.c.bf16 %v3212, %v3212
        %v4154 = vpack.c.bf16 %v2947, %v2680
        %v4155 = vpack.c.bf16 %v3214, %v3214
        %v4156 = vpack.c.bf16 %v2950, %v2683
        %v4157 = vpack.c.bf16 %v3217, %v3217
        %v4158 = vpack.c.bf16 %v2952, %v2685
        %v4159 = vpack.c.bf16 %v3219, %v3219
        %v4160 = vpack.c.bf16 %v2955, %v2688
        %v4161 = vpack.c.bf16 %v3222, %v3222
        %v4162 = vpack.c.bf16 %v2957, %v2690
        %v4163 = vpack.c.bf16 %v3224, %v3224
        %v4164 = vpack.c.bf16 %v2960, %v2693
        %v4165 = vpack.c.bf16 %v3227, %v3227
        %v4166 = vpack.c.bf16 %v2962, %v2695
        %v4167 = vpack.c.bf16 %v3229, %v3229
        %v4168 = vpack.c.bf16 %v2965, %v2698
        %v4169 = vpack.c.bf16 %v3232, %v3232
        %v4170 = vpack.c.bf16 %v2967, %v2700
        %v4171 = vpack.c.bf16 %v3234, %v3234
        %v4172 = vpack.c.bf16 %v2970, %v2703
        %v4173 = vpack.c.bf16 %v3237, %v3237
        %v4174 = vpack.c.bf16 %v2972, %v2705
        %v4175 = vpack.c.bf16 %v3239, %v3239
        %v4176 = vpack.c.bf16 %v2975, %v2708
        %v4177 = vpack.c.bf16 %v3242, %v3242
        %v4178 = vpack.c.bf16 %v2977, %v2710
        %v4179 = vpack.c.bf16 %v3244, %v3244
        %v4180 = vpack.c.bf16 %v2980, %v2713
        %v4181 = vpack.c.bf16 %v3247, %v3247
        %v4182 = vpack.c.bf16 %v2982, %v2715
        %v4183 = vpack.c.bf16 %v3249, %v3249
        %v4184 = vpack.c.bf16 %v2985, %v2718
        %v4185 = vpack.c.bf16 %v3252, %v3252
        %v4186 = vpack.c.bf16 %v2987, %v2720
        %v4187 = vpack.c.bf16 %v3254, %v3254
        %v4188 = vpack.c.bf16 %v2990, %v2723
        %v4189 = vpack.c.bf16 %v3257, %v3257
        %v4190 = vpack.c.bf16 %v2992, %v2725
        %v4191 = vpack.c.bf16 %v3259, %v3259
        %v4192 = vpack.c.bf16 %v2995, %v2728
        %v4193 = vpack.c.bf16 %v3262, %v3262
        %v4194 = vpack.c.bf16 %v2997, %v2730
        %v4195 = vpack.c.bf16 %v3264, %v3264
        %v4196 = vpack.c.bf16 %v3000, %v2733
        %v4197 = vpack.c.bf16 %v3267, %v3267
        %v4198 = vpack.c.bf16 %v3002, %v2735
        %v4199 = vpack.c.bf16 %v3269, %v3269
        %v4200 = vpack.c.bf16 %v3726, %v3459
        %v4201 = vpack.c.bf16 %v3993, %v3993
        %v4202 = vpack.c.bf16 %v3728, %v3461
        %v4203 = vpack.c.bf16 %v3995, %v3995
        %v4204 = vpack.c.bf16 %v3731, %v3464
        %v4205 = vpack.c.bf16 %v3998, %v3998
        %v4206 = vpack.c.bf16 %v3733, %v3466
        %v4207 = vpack.c.bf16 %v4000, %v4000
        %v4208 = vpack.c.bf16 %v3736, %v3469
        %v4209 = vpack.c.bf16 %v4003, %v4003
        %v4210 = vpack.c.bf16 %v3738, %v3471
        %v4211 = vpack.c.bf16 %v4005, %v4005
        %v4212 = vpack.c.bf16 %v3741, %v3474
        %v4213 = vpack.c.bf16 %v4008, %v4008
        %v4214 = vpack.c.bf16 %v3743, %v3476
        %v4215 = vpack.c.bf16 %v4010, %v4010
        %v4216 = vpack.c.bf16 %v3746, %v3479
        %v4217 = vpack.c.bf16 %v4013, %v4013
        %v4218 = vpack.c.bf16 %v3748, %v3481
        %v4219 = vpack.c.bf16 %v4015, %v4015
        %v4220 = vpack.c.bf16 %v3751, %v3484
        %v4221 = vpack.c.bf16 %v4018, %v4018
        %v4222 = vpack.c.bf16 %v3753, %v3486
        %v4223 = vpack.c.bf16 %v4020, %v4020
        %v4224 = vpack.c.bf16 %v3756, %v3489
        %v4225 = vpack.c.bf16 %v4023, %v4023
        %v4226 = vpack.c.bf16 %v3758, %v3491
        %v4227 = vpack.c.bf16 %v4025, %v4025
        %v4228 = vpack.c.bf16 %v3761, %v3494
        %v4229 = vpack.c.bf16 %v4028, %v4028
        %v4230 = vpack.c.bf16 %v3763, %v3496
        %v4231 = vpack.c.bf16 %v4030, %v4030
        %v4232 = vpack.c.bf16 %v3766, %v3499
        %v4233 = vpack.c.bf16 %v4033, %v4033
        %v4234 = vpack.c.bf16 %v3768, %v3501
        %v4235 = vpack.c.bf16 %v4035, %v4035
        %v4236 = vpack.c.bf16 %v3771, %v3504
        %v4237 = vpack.c.bf16 %v4038, %v4038
        %v4238 = vpack.c.bf16 %v3773, %v3506
        %v4239 = vpack.c.bf16 %v4040, %v4040
        %v4240 = vpack.c.bf16 %v3776, %v3509
        %v4241 = vpack.c.bf16 %v4043, %v4043
        %v4242 = vpack.c.bf16 %v3778, %v3511
        %v4243 = vpack.c.bf16 %v4045, %v4045
        %v4244 = vpack.c.bf16 %v3781, %v3514
        %v4245 = vpack.c.bf16 %v4048, %v4048
        %v4246 = vpack.c.bf16 %v3783, %v3516
        %v4247 = vpack.c.bf16 %v4050, %v4050
        %v4248 = vpack.c.bf16 %v3786, %v3519
        %v4249 = vpack.c.bf16 %v4053, %v4053
        %v4250 = vpack.c.bf16 %v3788, %v3521
        %v4251 = vpack.c.bf16 %v4055, %v4055
        %v4252 = vpack.c.bf16 %v3791, %v3524
        %v4253 = vpack.c.bf16 %v4058, %v4058
        %v4254 = vpack.c.bf16 %v3793, %v3526
        %v4255 = vpack.c.bf16 %v4060, %v4060
        %v4256 = vpack.c.bf16 %v3796, %v3529
        %v4257 = vpack.c.bf16 %v4063, %v4063
        %v4258 = vpack.c.bf16 %v3798, %v3531
        %v4259 = vpack.c.bf16 %v4065, %v4065
        %v4260 = vpack.c.bf16 %v3801, %v3534
        %v4261 = vpack.c.bf16 %v4068, %v4068
        %v4262 = vpack.c.bf16 %v3803, %v3536
        %v4263 = vpack.c.bf16 %v4070, %v4070
        %v4264 = vlaneseq
        %v4265 = vshrl.u32 %v4264, 7
        %v4266 = vadd.s32 %v4265, 8
        %v4267 = vadd.s32 %v4265, 16
        %v4268 = vadd.s32 %v4265, 24
        %v4269 = vadd.s32 %v4265, 32
        %v4270 = vadd.s32 %v4265, 40
        %v4271 = vadd.s32 %v4265, 48
        %v4272 = vadd.s32 %v4265, 56
        %v4273 = vadd.s32 %v4265, 64
        %v4274 = vadd.s32 %v4265, 72
        %v4275 = vadd.s32 %v4265, 80
        %v4276 = vadd.s32 %v4265, 88
        %v4277 = vadd.s32 %v4265, 96
        %v4278 = vadd.s32 %v4265, 104
        %v4279 = vadd.s32 %v4265, 112
        %v4280 = vadd.s32 %v4265, 120
        %v4281 = vlaneseq
        %v4282 = vand.u32 %v4281, 127
        %vm4283 = vcmp.ge.s32.totalorder %v4265, %v4282
        %vm4284 = vcmp.ge.s32.totalorder %v4266, %v4282
        %vm4285 = vcmp.ge.s32.totalorder %v4267, %v4282
        %vm4286 = vcmp.ge.s32.totalorder %v4268, %v4282
        %vm4287 = vcmp.ge.s32.totalorder %v4269, %v4282
        %vm4288 = vcmp.ge.s32.totalorder %v4270, %v4282
        %vm4289 = vcmp.ge.s32.totalorder %v4271, %v4282
        %vm4290 = vcmp.ge.s32.totalorder %v4272, %v4282
        %vm4291 = vcmp.ge.s32.totalorder %v4273, %v4282
        %vm4292 = vcmp.ge.s32.totalorder %v4274, %v4282
        %vm4293 = vcmp.ge.s32.totalorder %v4275, %v4282
        %vm4294 = vcmp.ge.s32.totalorder %v4276, %v4282
        %vm4295 = vcmp.ge.s32.totalorder %v4277, %v4282
        %vm4296 = vcmp.ge.s32.totalorder %v4278, %v4282
        %vm4297 = vcmp.ge.s32.totalorder %v4279, %v4282
        %vm4298 = vcmp.ge.s32.totalorder %v4280, %v4282
        %v4315 = vunpack.c.l.b16 %v4072
        %v4316 = vunpack.c.l.b16 %v4074
        %v4317 = vunpack.c.l.b16 %v4076
        %v4318 = vunpack.c.l.b16 %v4078
        %v4319 = vunpack.c.l.b16 %v4080
        %v4320 = vunpack.c.l.b16 %v4082
        %v4321 = vunpack.c.l.b16 %v4084
        %v4322 = vunpack.c.l.b16 %v4086
        %v4323 = vunpack.c.l.b16 %v4088
        %v4324 = vunpack.c.l.b16 %v4090
        %v4325 = vunpack.c.l.b16 %v4092
        %v4326 = vunpack.c.l.b16 %v4094
        %v4327 = vunpack.c.l.b16 %v4096
        %v4328 = vunpack.c.l.b16 %v4098
        %v4329 = vunpack.c.l.b16 %v4100
        %v4330 = vunpack.c.l.b16 %v4102
        %v4331 = vpack.c.b16 %v4316, %v4315
        %v4332 = vpack.c.b16 %v4318, %v4317
        %v4333 = vpack.c.b16 %v4320, %v4319
        %v4334 = vpack.c.b16 %v4322, %v4321
        %v4335 = vpack.c.b16 %v4324, %v4323
        %v4336 = vpack.c.b16 %v4326, %v4325
        %v4337 = vpack.c.b16 %v4328, %v4327
        %v4338 = vpack.c.b16 %v4330, %v4329
        %v4355 = vunpack.c.l.b16 %v4136
        %v4356 = vunpack.c.l.b16 %v4138
        %v4357 = vunpack.c.l.b16 %v4140
        %v4358 = vunpack.c.l.b16 %v4142
        %v4359 = vunpack.c.l.b16 %v4144
        %v4360 = vunpack.c.l.b16 %v4146
        %v4361 = vunpack.c.l.b16 %v4148
        %v4362 = vunpack.c.l.b16 %v4150
        %v4363 = vunpack.c.l.b16 %v4152
        %v4364 = vunpack.c.l.b16 %v4154
        %v4365 = vunpack.c.l.b16 %v4156
        %v4366 = vunpack.c.l.b16 %v4158
        %v4367 = vunpack.c.l.b16 %v4160
        %v4368 = vunpack.c.l.b16 %v4162
        %v4369 = vunpack.c.l.b16 %v4164
        %v4370 = vunpack.c.l.b16 %v4166
        %v4371 = vpack.c.b16 %v4356, %v4355
        %v4372 = vpack.c.b16 %v4358, %v4357
        %v4373 = vpack.c.b16 %v4360, %v4359
        %v4374 = vpack.c.b16 %v4362, %v4361
        %v4375 = vpack.c.b16 %v4364, %v4363
        %v4376 = vpack.c.b16 %v4366, %v4365
        %v4377 = vpack.c.b16 %v4368, %v4367
        %v4378 = vpack.c.b16 %v4370, %v4369
        %vm4379 = vcmask 523264
        %v4381 = vsel %vm4379, %v4331, 0
        %v4384 = vsel %vm4379, %v4332, 0
        %v4387 = vsel %vm4379, %v4333, 0
        %v4390 = vsel %vm4379, %v4334, 0
        %v4393 = vsel %vm4379, %v4335, 0
        %v4396 = vsel %vm4379, %v4336, 0
        %v4399 = vsel %vm4379, %v4337, 0
        %v4402 = vsel %vm4379, %v4338, 0
        %v4405 = vsel %vm4379, %v4371, 0
        %v4408 = vsel %vm4379, %v4372, 0
        %v4411 = vsel %vm4379, %v4373, 0
        %v4414 = vsel %vm4379, %v4374, 0
        %v4417 = vsel %vm4379, %v4375, 0
        %v4420 = vsel %vm4379, %v4376, 0
        %v4423 = vsel %vm4379, %v4377, 0
        %v4426 = vsel %vm4379, %v4378, 0
        %4428 = vmatpush.bf16.xpose.msra.mxu0 %v4426
        %4429 = vmatpush.bf16.xpose.msra.mxu0 %v4423
        %4430 = vmatpush.bf16.xpose.msra.mxu0 %v4420
        %4431 = vmatpush.bf16.xpose.msra.mxu0 %v4417
        %4432 = vmatpush.bf16.xpose.msra.mxu0 %v4414
        %4433 = vmatpush.bf16.xpose.msra.mxu0 %v4411
        %4434 = vmatpush.bf16.xpose.msra.mxu0 %v4408
        %4435 = vmatpush.bf16.xpose.msra.mxu0 %v4405
        %4436 = vmatmul.bf16.gmra.mxu0 %v4381
        %v4437 = vpop.f32.mrf.mxu0
        %v4438 = vadd.f32 0.0, %v4437
        %v4439 = vpop.f32.mrf.mxu0
        %v4440 = vadd.f32 0.0, %v4439
        %4441 = vmatmul.bf16.gmra.mxu0 %v4384
        %v4442 = vpop.f32.mrf.mxu0
        %v4443 = vadd.f32 0.0, %v4442
        %v4444 = vpop.f32.mrf.mxu0
        %v4445 = vadd.f32 0.0, %v4444
        %4446 = vmatmul.bf16.gmra.mxu0 %v4387
        %v4447 = vpop.f32.mrf.mxu0
        %v4448 = vadd.f32 0.0, %v4447
        %v4449 = vpop.f32.mrf.mxu0
        %v4450 = vadd.f32 0.0, %v4449
        %4451 = vmatmul.bf16.gmra.mxu0 %v4390
        %v4452 = vpop.f32.mrf.mxu0
        %v4453 = vadd.f32 0.0, %v4452
        %v4454 = vpop.f32.mrf.mxu0
        %v4455 = vadd.f32 0.0, %v4454
        %4456 = vmatmul.bf16.gmra.mxu0 %v4393
        %v4457 = vpop.f32.mrf.mxu0
        %v4458 = vadd.f32 0.0, %v4457
        %v4459 = vpop.f32.mrf.mxu0
        %v4460 = vadd.f32 0.0, %v4459
        %4461 = vmatmul.bf16.gmra.mxu0 %v4396
        %v4462 = vpop.f32.mrf.mxu0
        %v4463 = vadd.f32 0.0, %v4462
        %v4464 = vpop.f32.mrf.mxu0
        %v4465 = vadd.f32 0.0, %v4464
        %4466 = vmatmul.bf16.gmra.mxu0 %v4399
        %v4467 = vpop.f32.mrf.mxu0
        %v4468 = vadd.f32 0.0, %v4467
        %v4469 = vpop.f32.mrf.mxu0
        %v4470 = vadd.f32 0.0, %v4469
        %4471 = vmatmul.bf16.gmra.mxu0 %v4402
        %v4472 = vpop.f32.mrf.mxu0
        %v4473 = vadd.f32 0.0, %v4472
        %v4474 = vpop.f32.mrf.mxu0
        %v4475 = vadd.f32 0.0, %v4474
        %4476 = vdwg.mxu0
        %v4477 = vsel %vm4283, %v4438, -inf
        %v4478 = vsel %vm4284, %v4440, -inf
        %v4479 = vsel %vm4285, %v4443, -inf
        %v4480 = vsel %vm4286, %v4445, -inf
        %v4481 = vsel %vm4287, %v4448, -inf
        %v4482 = vsel %vm4288, %v4450, -inf
        %v4483 = vsel %vm4289, %v4453, -inf
        %v4484 = vsel %vm4290, %v4455, -inf
        %v4485 = vsel %vm4291, %v4458, -inf
        %v4486 = vsel %vm4292, %v4460, -inf
        %v4487 = vsel %vm4293, %v4463, -inf
        %v4488 = vsel %vm4294, %v4465, -inf
        %v4489 = vsel %vm4295, %v4468, -inf
        %v4490 = vsel %vm4296, %v4470, -inf
        %v4491 = vsel %vm4297, %v4473, -inf
        %v4492 = vsel %vm4298, %v4475, -inf
        %4493 = vmax.xlane.f32.xlu0 %v4477
        %v4494 = vpop.xlane.xlu0 %4493
        %4495 = vmax.xlane.f32.xlu0 %v4478
        %v4496 = vpop.xlane.xlu0 %4495
        %4497 = vmax.xlane.f32.xlu0 %v4479
        %v4498 = vpop.xlane.xlu0 %4497
        %4499 = vmax.xlane.f32.xlu0 %v4480
        %v4500 = vpop.xlane.xlu0 %4499
        %4501 = vmax.xlane.f32.xlu0 %v4481
        %v4502 = vpop.xlane.xlu0 %4501
        %4503 = vmax.xlane.f32.xlu0 %v4482
        %v4504 = vpop.xlane.xlu0 %4503
        %4505 = vmax.xlane.f32.xlu0 %v4483
        %v4506 = vpop.xlane.xlu0 %4505
        %4507 = vmax.xlane.f32.xlu0 %v4484
        %v4508 = vpop.xlane.xlu0 %4507
        %4509 = vmax.xlane.f32.xlu0 %v4485
        %v4510 = vpop.xlane.xlu0 %4509
        %4511 = vmax.xlane.f32.xlu0 %v4486
        %v4512 = vpop.xlane.xlu0 %4511
        %4513 = vmax.xlane.f32.xlu0 %v4487
        %v4514 = vpop.xlane.xlu0 %4513
        %4515 = vmax.xlane.f32.xlu0 %v4488
        %v4516 = vpop.xlane.xlu0 %4515
        %4517 = vmax.xlane.f32.xlu0 %v4489
        %v4518 = vpop.xlane.xlu0 %4517
        %4519 = vmax.xlane.f32.xlu0 %v4490
        %v4520 = vpop.xlane.xlu0 %4519
        %4521 = vmax.xlane.f32.xlu0 %v4491
        %v4522 = vpop.xlane.xlu0 %4521
        %4523 = vmax.xlane.f32.xlu0 %v4492
        %v4524 = vpop.xlane.xlu0 %4523
        %v4525 = vsub.f32 %v4477, %v4494
        %v4526 = vsub.f32 %v4478, %v4496
        %v4527 = vsub.f32 %v4479, %v4498
        %v4528 = vsub.f32 %v4480, %v4500
        %v4529 = vsub.f32 %v4481, %v4502
        %v4530 = vsub.f32 %v4482, %v4504
        %v4531 = vsub.f32 %v4483, %v4506
        %v4532 = vsub.f32 %v4484, %v4508
        %v4533 = vsub.f32 %v4485, %v4510
        %v4534 = vsub.f32 %v4486, %v4512
        %v4535 = vsub.f32 %v4487, %v4514
        %v4536 = vsub.f32 %v4488, %v4516
        %v4537 = vsub.f32 %v4489, %v4518
        %v4538 = vsub.f32 %v4490, %v4520
        %v4539 = vsub.f32 %v4491, %v4522
        %v4540 = vsub.f32 %v4492, %v4524
        %v4541 = vmul.f32 %v4525, 1.442695
        %v4542 = vpow.pop %v4541
        %v4543 = vmul.f32 %v4526, 1.442695
        %v4544 = vpow.pop %v4543
        %v4545 = vmul.f32 %v4527, 1.442695
        %v4546 = vpow.pop %v4545
        %v4547 = vmul.f32 %v4528, 1.442695
        %v4548 = vpow.pop %v4547
        %v4549 = vmul.f32 %v4529, 1.442695
        %v4550 = vpow.pop %v4549
        %v4551 = vmul.f32 %v4530, 1.442695
        %v4552 = vpow.pop %v4551
        %v4553 = vmul.f32 %v4531, 1.442695
        %v4554 = vpow.pop %v4553
        %v4555 = vmul.f32 %v4532, 1.442695
        %v4556 = vpow.pop %v4555
        %v4557 = vmul.f32 %v4533, 1.442695
        %v4558 = vpow.pop %v4557
        %v4559 = vmul.f32 %v4534, 1.442695
        %v4560 = vpow.pop %v4559
        %v4561 = vmul.f32 %v4535, 1.442695
        %v4562 = vpow.pop %v4561
        %v4563 = vmul.f32 %v4536, 1.442695
        %v4564 = vpow.pop %v4563
        %v4565 = vmul.f32 %v4537, 1.442695
        %v4566 = vpow.pop %v4565
        %v4567 = vmul.f32 %v4538, 1.442695
        %v4568 = vpow.pop %v4567
        %v4569 = vmul.f32 %v4539, 1.442695
        %v4570 = vpow.pop %v4569
        %v4571 = vmul.f32 %v4540, 1.442695
        %v4572 = vpow.pop %v4571
        %4573 = vadd.xlane.f32.xlu0 %v4542
        %v4574 = vpop.xlane.xlu0 %4573
        %4575 = vadd.xlane.f32.xlu0 %v4544
        %v4576 = vpop.xlane.xlu0 %4575
        %4577 = vadd.xlane.f32.xlu0 %v4546
        %v4578 = vpop.xlane.xlu0 %4577
        %4579 = vadd.xlane.f32.xlu0 %v4548
        %v4580 = vpop.xlane.xlu0 %4579
        %4581 = vadd.xlane.f32.xlu0 %v4550
        %v4582 = vpop.xlane.xlu0 %4581
        %4583 = vadd.xlane.f32.xlu0 %v4552
        %v4584 = vpop.xlane.xlu0 %4583
        %4585 = vadd.xlane.f32.xlu0 %v4554
        %v4586 = vpop.xlane.xlu0 %4585
        %4587 = vadd.xlane.f32.xlu0 %v4556
        %v4588 = vpop.xlane.xlu0 %4587
        %4589 = vadd.xlane.f32.xlu0 %v4558
        %v4590 = vpop.xlane.xlu0 %4589
        %4591 = vadd.xlane.f32.xlu0 %v4560
        %v4592 = vpop.xlane.xlu0 %4591
        %4593 = vadd.xlane.f32.xlu0 %v4562
        %v4594 = vpop.xlane.xlu0 %4593
        %4595 = vadd.xlane.f32.xlu0 %v4564
        %v4596 = vpop.xlane.xlu0 %4595
        %4597 = vadd.xlane.f32.xlu0 %v4566
        %v4598 = vpop.xlane.xlu0 %4597
        %4599 = vadd.xlane.f32.xlu0 %v4568
        %v4600 = vpop.xlane.xlu0 %4599
        %4601 = vadd.xlane.f32.xlu0 %v4570
        %v4602 = vpop.xlane.xlu0 %4601
        %4603 = vadd.xlane.f32.xlu0 %v4572
        %v4604 = vpop.xlane.xlu0 %4603
        %v4605 = vpack.c.bf16 %v4544, %v4542
        %v4606 = vpack.c.bf16 %v4548, %v4546
        %v4607 = vpack.c.bf16 %v4552, %v4550
        %v4608 = vpack.c.bf16 %v4556, %v4554
        %v4609 = vpack.c.bf16 %v4560, %v4558
        %v4610 = vpack.c.bf16 %v4564, %v4562
        %v4611 = vpack.c.bf16 %v4568, %v4566
        %v4612 = vpack.c.bf16 %v4572, %v4570
        %v4629 = vunpack.c.l.b16 %v4200
        %v4630 = vunpack.c.l.b16 %v4202
        %v4631 = vunpack.c.l.b16 %v4204
        %v4632 = vunpack.c.l.b16 %v4206
        %v4633 = vunpack.c.l.b16 %v4208
        %v4634 = vunpack.c.l.b16 %v4210
        %v4635 = vunpack.c.l.b16 %v4212
        %v4636 = vunpack.c.l.b16 %v4214
        %v4637 = vunpack.c.l.b16 %v4216
        %v4638 = vunpack.c.l.b16 %v4218
        %v4639 = vunpack.c.l.b16 %v4220
        %v4640 = vunpack.c.l.b16 %v4222
        %v4641 = vunpack.c.l.b16 %v4224
        %v4642 = vunpack.c.l.b16 %v4226
        %v4643 = vunpack.c.l.b16 %v4228
        %v4644 = vunpack.c.l.b16 %v4230
        %v4645 = vpack.c.b16 %v4630, %v4629
        %v4646 = vpack.c.b16 %v4632, %v4631
        %v4647 = vpack.c.b16 %v4634, %v4633
        %v4648 = vpack.c.b16 %v4636, %v4635
        %v4649 = vpack.c.b16 %v4638, %v4637
        %v4650 = vpack.c.b16 %v4640, %v4639
        %v4651 = vpack.c.b16 %v4642, %v4641
        %v4652 = vpack.c.b16 %v4644, %v4643
        %4661 = vmatpush.bf16.msra.mxu0 %v4652
        %4662 = vmatpush.bf16.msra.mxu0 %v4651
        %4663 = vmatpush.bf16.msra.mxu0 %v4650
        %4664 = vmatpush.bf16.msra.mxu0 %v4649
        %4665 = vmatpush.bf16.msra.mxu0 %v4648
        %4666 = vmatpush.bf16.msra.mxu0 %v4647
        %4667 = vmatpush.bf16.msra.mxu0 %v4646
        %4668 = vmatpush.bf16.msra.mxu0 %v4645
        %4669 = vmatmul.bf16.gmra.mxu0 %v4605
        %v4670 = vpop.f32.mrf.mxu0
        %v4671 = vadd.f32 0.0, %v4670
        %v4672 = vpop.f32.mrf.mxu0
        %v4673 = vadd.f32 0.0, %v4672
        %4674 = vmatmul.bf16.gmra.mxu0 %v4606
        %v4675 = vpop.f32.mrf.mxu0
        %v4676 = vadd.f32 0.0, %v4675
        %v4677 = vpop.f32.mrf.mxu0
        %v4678 = vadd.f32 0.0, %v4677
        %4679 = vmatmul.bf16.gmra.mxu0 %v4607
        %v4680 = vpop.f32.mrf.mxu0
        %v4681 = vadd.f32 0.0, %v4680
        %v4682 = vpop.f32.mrf.mxu0
        %v4683 = vadd.f32 0.0, %v4682
        %4684 = vmatmul.bf16.gmra.mxu0 %v4608
        %v4685 = vpop.f32.mrf.mxu0
        %v4686 = vadd.f32 0.0, %v4685
        %v4687 = vpop.f32.mrf.mxu0
        %v4688 = vadd.f32 0.0, %v4687
        %4689 = vmatmul.bf16.gmra.mxu0 %v4609
        %v4690 = vpop.f32.mrf.mxu0
        %v4691 = vadd.f32 0.0, %v4690
        %v4692 = vpop.f32.mrf.mxu0
        %v4693 = vadd.f32 0.0, %v4692
        %4694 = vmatmul.bf16.gmra.mxu0 %v4610
        %v4695 = vpop.f32.mrf.mxu0
        %v4696 = vadd.f32 0.0, %v4695
        %v4697 = vpop.f32.mrf.mxu0
        %v4698 = vadd.f32 0.0, %v4697
        %4699 = vmatmul.bf16.gmra.mxu0 %v4611
        %v4700 = vpop.f32.mrf.mxu0
        %v4701 = vadd.f32 0.0, %v4700
        %v4702 = vpop.f32.mrf.mxu0
        %v4703 = vadd.f32 0.0, %v4702
        %4704 = vmatmul.bf16.gmra.mxu0 %v4612
        %v4705 = vpop.f32.mrf.mxu0
        %v4706 = vadd.f32 0.0, %v4705
        %v4707 = vpop.f32.mrf.mxu0
        %v4708 = vadd.f32 0.0, %v4707
        %4709 = vdwg.mxu0
        %v4710 = vrcp.pop %v4574
        %v4711 = vrcp.pop %v4576
        %v4712 = vrcp.pop %v4578
        %v4713 = vrcp.pop %v4580
        %v4714 = vrcp.pop %v4582
        %v4715 = vrcp.pop %v4584
        %v4716 = vrcp.pop %v4586
        %v4717 = vrcp.pop %v4588
        %v4718 = vrcp.pop %v4590
        %v4719 = vrcp.pop %v4592
        %v4720 = vrcp.pop %v4594
        %v4721 = vrcp.pop %v4596
        %v4722 = vrcp.pop %v4598
        %v4723 = vrcp.pop %v4600
        %v4724 = vrcp.pop %v4602
        %v4725 = vrcp.pop %v4604
        %v4726 = vmul.f32 %v4671, %v4710
        %v4727 = vmul.f32 %v4673, %v4711
        %v4728 = vmul.f32 %v4676, %v4712
        %v4729 = vmul.f32 %v4678, %v4713
        %v4730 = vmul.f32 %v4681, %v4714
        %v4731 = vmul.f32 %v4683, %v4715
        %v4732 = vmul.f32 %v4686, %v4716
        %v4733 = vmul.f32 %v4688, %v4717
        %v4734 = vmul.f32 %v4691, %v4718
        %v4735 = vmul.f32 %v4693, %v4719
        %v4736 = vmul.f32 %v4696, %v4720
        %v4737 = vmul.f32 %v4698, %v4721
        %v4738 = vmul.f32 %v4701, %v4722
        %v4739 = vmul.f32 %v4703, %v4723
        %v4740 = vmul.f32 %v4706, %v4724
        %v4741 = vmul.f32 %v4708, %v4725
        %4742 = vrot.lane.b32.xlu0 %v4331, 64
        %v4743 = vpop.permute.xlu0 %4742
        %4744 = vrot.lane.b32.xlu0 %v4332, 64
        %v4745 = vpop.permute.xlu0 %4744
        %4746 = vrot.lane.b32.xlu0 %v4333, 64
        %v4747 = vpop.permute.xlu0 %4746
        %4748 = vrot.lane.b32.xlu0 %v4334, 64
        %v4749 = vpop.permute.xlu0 %4748
        %4750 = vrot.lane.b32.xlu0 %v4335, 64
        %v4751 = vpop.permute.xlu0 %4750
        %4752 = vrot.lane.b32.xlu0 %v4336, 64
        %v4753 = vpop.permute.xlu0 %4752
        %4754 = vrot.lane.b32.xlu0 %v4337, 64
        %v4755 = vpop.permute.xlu0 %4754
        %4756 = vrot.lane.b32.xlu0 %v4338, 64
        %v4757 = vpop.permute.xlu0 %4756
        %4758 = vrot.lane.b32.xlu0 %v4371, 64
        %v4759 = vpop.permute.xlu0 %4758
        %4760 = vrot.lane.b32.xlu0 %v4372, 64
        %v4761 = vpop.permute.xlu0 %4760
        %4762 = vrot.lane.b32.xlu0 %v4373, 64
        %v4763 = vpop.permute.xlu0 %4762
        %4764 = vrot.lane.b32.xlu0 %v4374, 64
        %v4765 = vpop.permute.xlu0 %4764
        %4766 = vrot.lane.b32.xlu0 %v4375, 64
        %v4767 = vpop.permute.xlu0 %4766
        %4768 = vrot.lane.b32.xlu0 %v4376, 64
        %v4769 = vpop.permute.xlu0 %4768
        %4770 = vrot.lane.b32.xlu0 %v4377, 64
        %v4771 = vpop.permute.xlu0 %4770
        %4772 = vrot.lane.b32.xlu0 %v4378, 64
        %v4773 = vpop.permute.xlu0 %4772
        %v4775 = vsel %vm4379, %v4743, 0
        %v4778 = vsel %vm4379, %v4745, 0
        %v4781 = vsel %vm4379, %v4747, 0
        %v4784 = vsel %vm4379, %v4749, 0
        %v4787 = vsel %vm4379, %v4751, 0
        %v4790 = vsel %vm4379, %v4753, 0
        %v4793 = vsel %vm4379, %v4755, 0
        %v4796 = vsel %vm4379, %v4757, 0
        %v4799 = vsel %vm4379, %v4759, 0
        %v4802 = vsel %vm4379, %v4761, 0
        %v4805 = vsel %vm4379, %v4763, 0
        %v4808 = vsel %vm4379, %v4765, 0
        %v4811 = vsel %vm4379, %v4767, 0
        %v4814 = vsel %vm4379, %v4769, 0
        %v4817 = vsel %vm4379, %v4771, 0
        %v4820 = vsel %vm4379, %v4773, 0
        %4822 = vmatpush.bf16.xpose.msra.mxu0 %v4820
        %4823 = vmatpush.bf16.xpose.msra.mxu0 %v4817
        %4824 = vmatpush.bf16.xpose.msra.mxu0 %v4814
        %4825 = vmatpush.bf16.xpose.msra.mxu0 %v4811
        %4826 = vmatpush.bf16.xpose.msra.mxu0 %v4808
        %4827 = vmatpush.bf16.xpose.msra.mxu0 %v4805
        %4828 = vmatpush.bf16.xpose.msra.mxu0 %v4802
        %4829 = vmatpush.bf16.xpose.msra.mxu0 %v4799
        %4830 = vmatmul.bf16.gmra.mxu0 %v4775
        %v4831 = vpop.f32.mrf.mxu0
        %v4832 = vadd.f32 0.0, %v4831
        %v4833 = vpop.f32.mrf.mxu0
        %v4834 = vadd.f32 0.0, %v4833
        %4835 = vmatmul.bf16.gmra.mxu0 %v4778
        %v4836 = vpop.f32.mrf.mxu0
        %v4837 = vadd.f32 0.0, %v4836
        %v4838 = vpop.f32.mrf.mxu0
        %v4839 = vadd.f32 0.0, %v4838
        %4840 = vmatmul.bf16.gmra.mxu0 %v4781
        %v4841 = vpop.f32.mrf.mxu0
        %v4842 = vadd.f32 0.0, %v4841
        %v4843 = vpop.f32.mrf.mxu0
        %v4844 = vadd.f32 0.0, %v4843
        %4845 = vmatmul.bf16.gmra.mxu0 %v4784
        %v4846 = vpop.f32.mrf.mxu0
        %v4847 = vadd.f32 0.0, %v4846
        %v4848 = vpop.f32.mrf.mxu0
        %v4849 = vadd.f32 0.0, %v4848
        %4850 = vmatmul.bf16.gmra.mxu0 %v4787
        %v4851 = vpop.f32.mrf.mxu0
        %v4852 = vadd.f32 0.0, %v4851
        %v4853 = vpop.f32.mrf.mxu0
        %v4854 = vadd.f32 0.0, %v4853
        %4855 = vmatmul.bf16.gmra.mxu0 %v4790
        %v4856 = vpop.f32.mrf.mxu0
        %v4857 = vadd.f32 0.0, %v4856
        %v4858 = vpop.f32.mrf.mxu0
        %v4859 = vadd.f32 0.0, %v4858
        %4860 = vmatmul.bf16.gmra.mxu0 %v4793
        %v4861 = vpop.f32.mrf.mxu0
        %v4862 = vadd.f32 0.0, %v4861
        %v4863 = vpop.f32.mrf.mxu0
        %v4864 = vadd.f32 0.0, %v4863
        %4865 = vmatmul.bf16.gmra.mxu0 %v4796
        %v4866 = vpop.f32.mrf.mxu0
        %v4867 = vadd.f32 0.0, %v4866
        %v4868 = vpop.f32.mrf.mxu0
        %v4869 = vadd.f32 0.0, %v4868
        %4870 = vdwg.mxu0
        %v4871 = vsel %vm4283, %v4832, -inf
        %v4872 = vsel %vm4284, %v4834, -inf
        %v4873 = vsel %vm4285, %v4837, -inf
        %v4874 = vsel %vm4286, %v4839, -inf
        %v4875 = vsel %vm4287, %v4842, -inf
        %v4876 = vsel %vm4288, %v4844, -inf
        %v4877 = vsel %vm4289, %v4847, -inf
        %v4878 = vsel %vm4290, %v4849, -inf
        %v4879 = vsel %vm4291, %v4852, -inf
        %v4880 = vsel %vm4292, %v4854, -inf
        %v4881 = vsel %vm4293, %v4857, -inf
        %v4882 = vsel %vm4294, %v4859, -inf
        %v4883 = vsel %vm4295, %v4862, -inf
        %v4884 = vsel %vm4296, %v4864, -inf
        %v4885 = vsel %vm4297, %v4867, -inf
        %v4886 = vsel %vm4298, %v4869, -inf
        %4887 = vmax.xlane.f32.xlu0 %v4871
        %v4888 = vpop.xlane.xlu0 %4887
        %4889 = vmax.xlane.f32.xlu0 %v4872
        %v4890 = vpop.xlane.xlu0 %4889
        %4891 = vmax.xlane.f32.xlu0 %v4873
        %v4892 = vpop.xlane.xlu0 %4891
        %4893 = vmax.xlane.f32.xlu0 %v4874
        %v4894 = vpop.xlane.xlu0 %4893
        %4895 = vmax.xlane.f32.xlu0 %v4875
        %v4896 = vpop.xlane.xlu0 %4895
        %4897 = vmax.xlane.f32.xlu0 %v4876
        %v4898 = vpop.xlane.xlu0 %4897
        %4899 = vmax.xlane.f32.xlu0 %v4877
        %v4900 = vpop.xlane.xlu0 %4899
        %4901 = vmax.xlane.f32.xlu0 %v4878
        %v4902 = vpop.xlane.xlu0 %4901
        %4903 = vmax.xlane.f32.xlu0 %v4879
        %v4904 = vpop.xlane.xlu0 %4903
        %4905 = vmax.xlane.f32.xlu0 %v4880
        %v4906 = vpop.xlane.xlu0 %4905
        %4907 = vmax.xlane.f32.xlu0 %v4881
        %v4908 = vpop.xlane.xlu0 %4907
        %4909 = vmax.xlane.f32.xlu0 %v4882
        %v4910 = vpop.xlane.xlu0 %4909
        %4911 = vmax.xlane.f32.xlu0 %v4883
        %v4912 = vpop.xlane.xlu0 %4911
        %4913 = vmax.xlane.f32.xlu0 %v4884
        %v4914 = vpop.xlane.xlu0 %4913
        %4915 = vmax.xlane.f32.xlu0 %v4885
        %v4916 = vpop.xlane.xlu0 %4915
        %4917 = vmax.xlane.f32.xlu0 %v4886
        %v4918 = vpop.xlane.xlu0 %4917
        %v4919 = vsub.f32 %v4871, %v4888
        %v4920 = vsub.f32 %v4872, %v4890
        %v4921 = vsub.f32 %v4873, %v4892
        %v4922 = vsub.f32 %v4874, %v4894
        %v4923 = vsub.f32 %v4875, %v4896
        %v4924 = vsub.f32 %v4876, %v4898
        %v4925 = vsub.f32 %v4877, %v4900
        %v4926 = vsub.f32 %v4878, %v4902
        %v4927 = vsub.f32 %v4879, %v4904
        %v4928 = vsub.f32 %v4880, %v4906
        %v4929 = vsub.f32 %v4881, %v4908
        %v4930 = vsub.f32 %v4882, %v4910
        %v4931 = vsub.f32 %v4883, %v4912
        %v4932 = vsub.f32 %v4884, %v4914
        %v4933 = vsub.f32 %v4885, %v4916
        %v4934 = vsub.f32 %v4886, %v4918
        %v4935 = vmul.f32 %v4919, 1.442695
        %v4936 = vpow.pop %v4935
        %v4937 = vmul.f32 %v4920, 1.442695
        %v4938 = vpow.pop %v4937
        %v4939 = vmul.f32 %v4921, 1.442695
        %v4940 = vpow.pop %v4939
        %v4941 = vmul.f32 %v4922, 1.442695
        %v4942 = vpow.pop %v4941
        %v4943 = vmul.f32 %v4923, 1.442695
        %v4944 = vpow.pop %v4943
        %v4945 = vmul.f32 %v4924, 1.442695
        %v4946 = vpow.pop %v4945
        %v4947 = vmul.f32 %v4925, 1.442695
        %v4948 = vpow.pop %v4947
        %v4949 = vmul.f32 %v4926, 1.442695
        %v4950 = vpow.pop %v4949
        %v4951 = vmul.f32 %v4927, 1.442695
        %v4952 = vpow.pop %v4951
        %v4953 = vmul.f32 %v4928, 1.442695
        %v4954 = vpow.pop %v4953
        %v4955 = vmul.f32 %v4929, 1.442695
        %v4956 = vpow.pop %v4955
        %v4957 = vmul.f32 %v4930, 1.442695
        %v4958 = vpow.pop %v4957
        %v4959 = vmul.f32 %v4931, 1.442695
        %v4960 = vpow.pop %v4959
        %v4961 = vmul.f32 %v4932, 1.442695
        %v4962 = vpow.pop %v4961
        %v4963 = vmul.f32 %v4933, 1.442695
        %v4964 = vpow.pop %v4963
        %v4965 = vmul.f32 %v4934, 1.442695
        %v4966 = vpow.pop %v4965
        %4967 = vadd.xlane.f32.xlu0 %v4936
        %v4968 = vpop.xlane.xlu0 %4967
        %4969 = vadd.xlane.f32.xlu0 %v4938
        %v4970 = vpop.xlane.xlu0 %4969
        %4971 = vadd.xlane.f32.xlu0 %v4940
        %v4972 = vpop.xlane.xlu0 %4971
        %4973 = vadd.xlane.f32.xlu0 %v4942
        %v4974 = vpop.xlane.xlu0 %4973
        %4975 = vadd.xlane.f32.xlu0 %v4944
        %v4976 = vpop.xlane.xlu0 %4975
        %4977 = vadd.xlane.f32.xlu0 %v4946
        %v4978 = vpop.xlane.xlu0 %4977
        %4979 = vadd.xlane.f32.xlu0 %v4948
        %v4980 = vpop.xlane.xlu0 %4979
        %4981 = vadd.xlane.f32.xlu0 %v4950
        %v4982 = vpop.xlane.xlu0 %4981
        %4983 = vadd.xlane.f32.xlu0 %v4952
        %v4984 = vpop.xlane.xlu0 %4983
        %4985 = vadd.xlane.f32.xlu0 %v4954
        %v4986 = vpop.xlane.xlu0 %4985
        %4987 = vadd.xlane.f32.xlu0 %v4956
        %v4988 = vpop.xlane.xlu0 %4987
        %4989 = vadd.xlane.f32.xlu0 %v4958
        %v4990 = vpop.xlane.xlu0 %4989
        %4991 = vadd.xlane.f32.xlu0 %v4960
        %v4992 = vpop.xlane.xlu0 %4991
        %4993 = vadd.xlane.f32.xlu0 %v4962
        %v4994 = vpop.xlane.xlu0 %4993
        %4995 = vadd.xlane.f32.xlu0 %v4964
        %v4996 = vpop.xlane.xlu0 %4995
        %4997 = vadd.xlane.f32.xlu0 %v4966
        %v4998 = vpop.xlane.xlu0 %4997
        %v4999 = vpack.c.bf16 %v4938, %v4936
        %v5000 = vpack.c.bf16 %v4942, %v4940
        %v5001 = vpack.c.bf16 %v4946, %v4944
        %v5002 = vpack.c.bf16 %v4950, %v4948
        %v5003 = vpack.c.bf16 %v4954, %v4952
        %v5004 = vpack.c.bf16 %v4958, %v4956
        %v5005 = vpack.c.bf16 %v4962, %v4960
        %v5006 = vpack.c.bf16 %v4966, %v4964
        %5007 = vrot.lane.b32.xlu0 %v4645, 64
        %v5008 = vpop.permute.xlu0 %5007
        %5009 = vrot.lane.b32.xlu0 %v4646, 64
        %v5010 = vpop.permute.xlu0 %5009
        %5011 = vrot.lane.b32.xlu0 %v4647, 64
        %v5012 = vpop.permute.xlu0 %5011
        %5013 = vrot.lane.b32.xlu0 %v4648, 64
        %v5014 = vpop.permute.xlu0 %5013
        %5015 = vrot.lane.b32.xlu0 %v4649, 64
        %v5016 = vpop.permute.xlu0 %5015
        %5017 = vrot.lane.b32.xlu0 %v4650, 64
        %v5018 = vpop.permute.xlu0 %5017
        %5019 = vrot.lane.b32.xlu0 %v4651, 64
        %v5020 = vpop.permute.xlu0 %5019
        %5021 = vrot.lane.b32.xlu0 %v4652, 64
        %v5022 = vpop.permute.xlu0 %5021
        %5031 = vmatpush.bf16.msra.mxu0 %v5022
        %5032 = vmatpush.bf16.msra.mxu0 %v5020
        %5033 = vmatpush.bf16.msra.mxu0 %v5018
        %5034 = vmatpush.bf16.msra.mxu0 %v5016
        %5035 = vmatpush.bf16.msra.mxu0 %v5014
        %5036 = vmatpush.bf16.msra.mxu0 %v5012
        %5037 = vmatpush.bf16.msra.mxu0 %v5010
        %5038 = vmatpush.bf16.msra.mxu0 %v5008
        %5039 = vmatmul.bf16.gmra.mxu0 %v4999
        %v5040 = vpop.f32.mrf.mxu0
        %v5041 = vadd.f32 0.0, %v5040
        %v5042 = vpop.f32.mrf.mxu0
        %v5043 = vadd.f32 0.0, %v5042
        %5044 = vmatmul.bf16.gmra.mxu0 %v5000
        %v5045 = vpop.f32.mrf.mxu0
        %v5046 = vadd.f32 0.0, %v5045
        %v5047 = vpop.f32.mrf.mxu0
        %v5048 = vadd.f32 0.0, %v5047
        %5049 = vmatmul.bf16.gmra.mxu0 %v5001
        %v5050 = vpop.f32.mrf.mxu0
        %v5051 = vadd.f32 0.0, %v5050
        %v5052 = vpop.f32.mrf.mxu0
        %v5053 = vadd.f32 0.0, %v5052
        %5054 = vmatmul.bf16.gmra.mxu0 %v5002
        %v5055 = vpop.f32.mrf.mxu0
        %v5056 = vadd.f32 0.0, %v5055
        %v5057 = vpop.f32.mrf.mxu0
        %v5058 = vadd.f32 0.0, %v5057
        %5059 = vmatmul.bf16.gmra.mxu0 %v5003
        %v5060 = vpop.f32.mrf.mxu0
        %v5061 = vadd.f32 0.0, %v5060
        %v5062 = vpop.f32.mrf.mxu0
        %v5063 = vadd.f32 0.0, %v5062
        %5064 = vmatmul.bf16.gmra.mxu0 %v5004
        %v5065 = vpop.f32.mrf.mxu0
        %v5066 = vadd.f32 0.0, %v5065
        %v5067 = vpop.f32.mrf.mxu0
        %v5068 = vadd.f32 0.0, %v5067
        %5069 = vmatmul.bf16.gmra.mxu0 %v5005
        %v5070 = vpop.f32.mrf.mxu0
        %v5071 = vadd.f32 0.0, %v5070
        %v5072 = vpop.f32.mrf.mxu0
        %v5073 = vadd.f32 0.0, %v5072
        %5074 = vmatmul.bf16.gmra.mxu0 %v5006
        %v5075 = vpop.f32.mrf.mxu0
        %v5076 = vadd.f32 0.0, %v5075
        %v5077 = vpop.f32.mrf.mxu0
        %v5078 = vadd.f32 0.0, %v5077
        %5079 = vdwg.mxu0
        %v5080 = vrcp.pop %v4968
        %v5081 = vrcp.pop %v4970
        %v5082 = vrcp.pop %v4972
        %v5083 = vrcp.pop %v4974
        %v5084 = vrcp.pop %v4976
        %v5085 = vrcp.pop %v4978
        %v5086 = vrcp.pop %v4980
        %v5087 = vrcp.pop %v4982
        %v5088 = vrcp.pop %v4984
        %v5089 = vrcp.pop %v4986
        %v5090 = vrcp.pop %v4988
        %v5091 = vrcp.pop %v4990
        %v5092 = vrcp.pop %v4992
        %v5093 = vrcp.pop %v4994
        %v5094 = vrcp.pop %v4996
        %v5095 = vrcp.pop %v4998
        %v5096 = vmul.f32 %v5041, %v5080
        %v5097 = vmul.f32 %v5043, %v5081
        %v5098 = vmul.f32 %v5046, %v5082
        %v5099 = vmul.f32 %v5048, %v5083
        %v5100 = vmul.f32 %v5051, %v5084
        %v5101 = vmul.f32 %v5053, %v5085
        %v5102 = vmul.f32 %v5056, %v5086
        %v5103 = vmul.f32 %v5058, %v5087
        %v5104 = vmul.f32 %v5061, %v5088
        %v5105 = vmul.f32 %v5063, %v5089
        %v5106 = vmul.f32 %v5066, %v5090
        %v5107 = vmul.f32 %v5068, %v5091
        %v5108 = vmul.f32 %v5071, %v5092
        %v5109 = vmul.f32 %v5073, %v5093
        %v5110 = vmul.f32 %v5076, %v5094
        %v5111 = vmul.f32 %v5078, %v5095
        %5128 = vrot.lane.b32.xlu0 %v5096, 64
        %v5129 = vpop.permute.xlu0 %5128
        %5130 = vrot.lane.b32.xlu0 %v5097, 64
        %v5131 = vpop.permute.xlu0 %5130
        %5132 = vrot.lane.b32.xlu0 %v5098, 64
        %v5133 = vpop.permute.xlu0 %5132
        %5134 = vrot.lane.b32.xlu0 %v5099, 64
        %v5135 = vpop.permute.xlu0 %5134
        %5136 = vrot.lane.b32.xlu0 %v5100, 64
        %v5137 = vpop.permute.xlu0 %5136
        %5138 = vrot.lane.b32.xlu0 %v5101, 64
        %v5139 = vpop.permute.xlu0 %5138
        %5140 = vrot.lane.b32.xlu0 %v5102, 64
        %v5141 = vpop.permute.xlu0 %5140
        %5142 = vrot.lane.b32.xlu0 %v5103, 64
        %v5143 = vpop.permute.xlu0 %5142
        %5144 = vrot.lane.b32.xlu0 %v5104, 64
        %v5145 = vpop.permute.xlu0 %5144
        %5146 = vrot.lane.b32.xlu0 %v5105, 64
        %v5147 = vpop.permute.xlu0 %5146
        %5148 = vrot.lane.b32.xlu0 %v5106, 64
        %v5149 = vpop.permute.xlu0 %5148
        %5150 = vrot.lane.b32.xlu0 %v5107, 64
        %v5151 = vpop.permute.xlu0 %5150
        %5152 = vrot.lane.b32.xlu0 %v5108, 64
        %v5153 = vpop.permute.xlu0 %5152
        %5154 = vrot.lane.b32.xlu0 %v5109, 64
        %v5155 = vpop.permute.xlu0 %5154
        %5156 = vrot.lane.b32.xlu0 %v5110, 64
        %v5157 = vpop.permute.xlu0 %5156
        %5158 = vrot.lane.b32.xlu0 %v5111, 64
        %v5159 = vpop.permute.xlu0 %5158
        %v5176 = vsel %vm4379, %v4726, %v5129
        %v5177 = vsel %vm4379, %v4727, %v5131
        %v5178 = vsel %vm4379, %v4728, %v5133
        %v5179 = vsel %vm4379, %v4729, %v5135
        %v5180 = vsel %vm4379, %v4730, %v5137
        %v5181 = vsel %vm4379, %v4731, %v5139
        %v5182 = vsel %vm4379, %v4732, %v5141
        %v5183 = vsel %vm4379, %v4733, %v5143
        %v5184 = vsel %vm4379, %v4734, %v5145
        %v5185 = vsel %vm4379, %v4735, %v5147
        %v5186 = vsel %vm4379, %v4736, %v5149
        %v5187 = vsel %vm4379, %v4737, %v5151
        %v5188 = vsel %vm4379, %v4738, %v5153
        %v5189 = vsel %vm4379, %v4739, %v5155
        %v5190 = vsel %vm4379, %v4740, %v5157
        %v5191 = vsel %vm4379, %v4741, %v5159
        %v5192 = vpack.c.bf16 %v5176, %v5176
        %v5193 = vpack.c.bf16 %v5177, %v5177
        %v5194 = vpack.c.bf16 %v5178, %v5178
        %v5195 = vpack.c.bf16 %v5179, %v5179
        %v5196 = vpack.c.bf16 %v5180, %v5180
        %v5197 = vpack.c.bf16 %v5181, %v5181
        %v5198 = vpack.c.bf16 %v5182, %v5182
        %v5199 = vpack.c.bf16 %v5183, %v5183
        %v5200 = vpack.c.bf16 %v5184, %v5184
        %v5201 = vpack.c.bf16 %v5185, %v5185
        %v5202 = vpack.c.bf16 %v5186, %v5186
        %v5203 = vpack.c.bf16 %v5187, %v5187
        %v5204 = vpack.c.bf16 %v5188, %v5188
        %v5205 = vpack.c.bf16 %v5189, %v5189
        %v5206 = vpack.c.bf16 %v5190, %v5190
        %v5207 = vpack.c.bf16 %v5191, %v5191
        %5208 = vst [vmem:[%s180] sm:$0xf] %v5192
        %5209 = vst [vmem:[%s180 + $0xc] sm:$0xf] %v5193
        %5210 = vst [vmem:[%s180 + $0x18] sm:$0xf] %v5194
        %5211 = vst [vmem:[%s180 + $0x24] sm:$0xf] %v5195
        %5212 = vst [vmem:[%s180 + $0x30] sm:$0xf] %v5196
        %5213 = vst [vmem:[%s180 + $0x3c] sm:$0xf] %v5197
        %5214 = vst [vmem:[%s180 + $0x48] sm:$0xf] %v5198
        %5215 = vst [vmem:[%s180 + $0x54] sm:$0xf] %v5199
        %5216 = vst [vmem:[%s180 + $0x60] sm:$0xf] %v5200
        %5217 = vst [vmem:[%s180 + $0x6c] sm:$0xf] %v5201
        %5218 = vst [vmem:[%s180 + $0x78] sm:$0xf] %v5202
        %5219 = vst [vmem:[%s180 + $0x84] sm:$0xf] %v5203
        %5220 = vst [vmem:[%s180 + $0x90] sm:$0xf] %v5204
        %5221 = vst [vmem:[%s180 + $0x9c] sm:$0xf] %v5205
        %5222 = vst [vmem:[%s180 + $0xa8] sm:$0xf] %v5206
        %5223 = vst [vmem:[%s180 + $0xb4] sm:$0xf] %v5207
        %v5224 = vunpack.c.h.b16 %v4072
        %v5225 = vunpack.c.h.b16 %v4074
        %v5226 = vunpack.c.h.b16 %v4076
        %v5227 = vunpack.c.h.b16 %v4078
        %v5228 = vunpack.c.h.b16 %v4080
        %v5229 = vunpack.c.h.b16 %v4082
        %v5230 = vunpack.c.h.b16 %v4084
        %v5231 = vunpack.c.h.b16 %v4086
        %v5232 = vunpack.c.h.b16 %v4088
        %v5233 = vunpack.c.h.b16 %v4090
        %v5234 = vunpack.c.h.b16 %v4092
        %v5235 = vunpack.c.h.b16 %v4094
        %v5236 = vunpack.c.h.b16 %v4096
        %v5237 = vunpack.c.h.b16 %v4098
        %v5238 = vunpack.c.h.b16 %v4100
        %v5239 = vunpack.c.h.b16 %v4102
        %v5240 = vpack.c.b16 %v5225, %v5224
        %v5241 = vpack.c.b16 %v5227, %v5226
        %v5242 = vpack.c.b16 %v5229, %v5228
        %v5243 = vpack.c.b16 %v5231, %v5230
        %v5244 = vpack.c.b16 %v5233, %v5232
        %v5245 = vpack.c.b16 %v5235, %v5234
        %v5246 = vpack.c.b16 %v5237, %v5236
        %v5247 = vpack.c.b16 %v5239, %v5238
        %v5248 = vunpack.c.h.b16 %v4136
        %v5249 = vunpack.c.h.b16 %v4138
        %v5250 = vunpack.c.h.b16 %v4140
        %v5251 = vunpack.c.h.b16 %v4142
        %v5252 = vunpack.c.h.b16 %v4144
        %v5253 = vunpack.c.h.b16 %v4146
        %v5254 = vunpack.c.h.b16 %v4148
        %v5255 = vunpack.c.h.b16 %v4150
        %v5256 = vunpack.c.h.b16 %v4152
        %v5257 = vunpack.c.h.b16 %v4154
        %v5258 = vunpack.c.h.b16 %v4156
        %v5259 = vunpack.c.h.b16 %v4158
        %v5260 = vunpack.c.h.b16 %v4160
        %v5261 = vunpack.c.h.b16 %v4162
        %v5262 = vunpack.c.h.b16 %v4164
        %v5263 = vunpack.c.h.b16 %v4166
        %v5264 = vpack.c.b16 %v5249, %v5248
        %v5265 = vpack.c.b16 %v5251, %v5250
        %v5266 = vpack.c.b16 %v5253, %v5252
        %v5267 = vpack.c.b16 %v5255, %v5254
        %v5268 = vpack.c.b16 %v5257, %v5256
        %v5269 = vpack.c.b16 %v5259, %v5258
        %v5270 = vpack.c.b16 %v5261, %v5260
        %v5271 = vpack.c.b16 %v5263, %v5262
        %v5273 = vsel %vm4379, %v5240, 0
        %v5276 = vsel %vm4379, %v5241, 0
        %v5279 = vsel %vm4379, %v5242, 0
        %v5282 = vsel %vm4379, %v5243, 0
        %v5285 = vsel %vm4379, %v5244, 0
        %v5288 = vsel %vm4379, %v5245, 0
        %v5291 = vsel %vm4379, %v5246, 0
        %v5294 = vsel %vm4379, %v5247, 0
        %v5297 = vsel %vm4379, %v5264, 0
        %v5300 = vsel %vm4379, %v5265, 0
        %v5303 = vsel %vm4379, %v5266, 0
        %v5306 = vsel %vm4379, %v5267, 0
        %v5309 = vsel %vm4379, %v5268, 0
        %v5312 = vsel %vm4379, %v5269, 0
        %v5315 = vsel %vm4379, %v5270, 0
        %v5318 = vsel %vm4379, %v5271, 0
        %5320 = vmatpush.bf16.xpose.msra.mxu0 %v5318
        %5321 = vmatpush.bf16.xpose.msra.mxu0 %v5315
        %5322 = vmatpush.bf16.xpose.msra.mxu0 %v5312
        %5323 = vmatpush.bf16.xpose.msra.mxu0 %v5309
        %5324 = vmatpush.bf16.xpose.msra.mxu0 %v5306
        %5325 = vmatpush.bf16.xpose.msra.mxu0 %v5303
        %5326 = vmatpush.bf16.xpose.msra.mxu0 %v5300
        %5327 = vmatpush.bf16.xpose.msra.mxu0 %v5297
        %5328 = vmatmul.bf16.gmra.mxu0 %v5273
        %v5329 = vpop.f32.mrf.mxu0
        %v5330 = vadd.f32 0.0, %v5329
        %v5331 = vpop.f32.mrf.mxu0
        %v5332 = vadd.f32 0.0, %v5331
        %5333 = vmatmul.bf16.gmra.mxu0 %v5276
        %v5334 = vpop.f32.mrf.mxu0
        %v5335 = vadd.f32 0.0, %v5334
        %v5336 = vpop.f32.mrf.mxu0
        %v5337 = vadd.f32 0.0, %v5336
        %5338 = vmatmul.bf16.gmra.mxu0 %v5279
        %v5339 = vpop.f32.mrf.mxu0
        %v5340 = vadd.f32 0.0, %v5339
        %v5341 = vpop.f32.mrf.mxu0
        %v5342 = vadd.f32 0.0, %v5341
        %5343 = vmatmul.bf16.gmra.mxu0 %v5282
        %v5344 = vpop.f32.mrf.mxu0
        %v5345 = vadd.f32 0.0, %v5344
        %v5346 = vpop.f32.mrf.mxu0
        %v5347 = vadd.f32 0.0, %v5346
        %5348 = vmatmul.bf16.gmra.mxu0 %v5285
        %v5349 = vpop.f32.mrf.mxu0
        %v5350 = vadd.f32 0.0, %v5349
        %v5351 = vpop.f32.mrf.mxu0
        %v5352 = vadd.f32 0.0, %v5351
        %5353 = vmatmul.bf16.gmra.mxu0 %v5288
        %v5354 = vpop.f32.mrf.mxu0
        %v5355 = vadd.f32 0.0, %v5354
        %v5356 = vpop.f32.mrf.mxu0
        %v5357 = vadd.f32 0.0, %v5356
        %5358 = vmatmul.bf16.gmra.mxu0 %v5291
        %v5359 = vpop.f32.mrf.mxu0
        %v5360 = vadd.f32 0.0, %v5359
        %v5361 = vpop.f32.mrf.mxu0
        %v5362 = vadd.f32 0.0, %v5361
        %5363 = vmatmul.bf16.gmra.mxu0 %v5294
        %v5364 = vpop.f32.mrf.mxu0
        %v5365 = vadd.f32 0.0, %v5364
        %v5366 = vpop.f32.mrf.mxu0
        %v5367 = vadd.f32 0.0, %v5366
        %5368 = vdwg.mxu0
        %v5369 = vsel %vm4283, %v5330, -inf
        %v5370 = vsel %vm4284, %v5332, -inf
        %v5371 = vsel %vm4285, %v5335, -inf
        %v5372 = vsel %vm4286, %v5337, -inf
        %v5373 = vsel %vm4287, %v5340, -inf
        %v5374 = vsel %vm4288, %v5342, -inf
        %v5375 = vsel %vm4289, %v5345, -inf
        %v5376 = vsel %vm4290, %v5347, -inf
        %v5377 = vsel %vm4291, %v5350, -inf
        %v5378 = vsel %vm4292, %v5352, -inf
        %v5379 = vsel %vm4293, %v5355, -inf
        %v5380 = vsel %vm4294, %v5357, -inf
        %v5381 = vsel %vm4295, %v5360, -inf
        %v5382 = vsel %vm4296, %v5362, -inf
        %v5383 = vsel %vm4297, %v5365, -inf
        %v5384 = vsel %vm4298, %v5367, -inf
        %5385 = vmax.xlane.f32.xlu0 %v5369
        %v5386 = vpop.xlane.xlu0 %5385
        %5387 = vmax.xlane.f32.xlu0 %v5370
        %v5388 = vpop.xlane.xlu0 %5387
        %5389 = vmax.xlane.f32.xlu0 %v5371
        %v5390 = vpop.xlane.xlu0 %5389
        %5391 = vmax.xlane.f32.xlu0 %v5372
        %v5392 = vpop.xlane.xlu0 %5391
        %5393 = vmax.xlane.f32.xlu0 %v5373
        %v5394 = vpop.xlane.xlu0 %5393
        %5395 = vmax.xlane.f32.xlu0 %v5374
        %v5396 = vpop.xlane.xlu0 %5395
        %5397 = vmax.xlane.f32.xlu0 %v5375
        %v5398 = vpop.xlane.xlu0 %5397
        %5399 = vmax.xlane.f32.xlu0 %v5376
        %v5400 = vpop.xlane.xlu0 %5399
        %5401 = vmax.xlane.f32.xlu0 %v5377
        %v5402 = vpop.xlane.xlu0 %5401
        %5403 = vmax.xlane.f32.xlu0 %v5378
        %v5404 = vpop.xlane.xlu0 %5403
        %5405 = vmax.xlane.f32.xlu0 %v5379
        %v5406 = vpop.xlane.xlu0 %5405
        %5407 = vmax.xlane.f32.xlu0 %v5380
        %v5408 = vpop.xlane.xlu0 %5407
        %5409 = vmax.xlane.f32.xlu0 %v5381
        %v5410 = vpop.xlane.xlu0 %5409
        %5411 = vmax.xlane.f32.xlu0 %v5382
        %v5412 = vpop.xlane.xlu0 %5411
        %5413 = vmax.xlane.f32.xlu0 %v5383
        %v5414 = vpop.xlane.xlu0 %5413
        %5415 = vmax.xlane.f32.xlu0 %v5384
        %v5416 = vpop.xlane.xlu0 %5415
        %v5417 = vsub.f32 %v5369, %v5386
        %v5418 = vsub.f32 %v5370, %v5388
        %v5419 = vsub.f32 %v5371, %v5390
        %v5420 = vsub.f32 %v5372, %v5392
        %v5421 = vsub.f32 %v5373, %v5394
        %v5422 = vsub.f32 %v5374, %v5396
        %v5423 = vsub.f32 %v5375, %v5398
        %v5424 = vsub.f32 %v5376, %v5400
        %v5425 = vsub.f32 %v5377, %v5402
        %v5426 = vsub.f32 %v5378, %v5404
        %v5427 = vsub.f32 %v5379, %v5406
        %v5428 = vsub.f32 %v5380, %v5408
        %v5429 = vsub.f32 %v5381, %v5410
        %v5430 = vsub.f32 %v5382, %v5412
        %v5431 = vsub.f32 %v5383, %v5414
        %v5432 = vsub.f32 %v5384, %v5416
        %v5433 = vmul.f32 %v5417, 1.442695
        %v5434 = vpow.pop %v5433
        %v5435 = vmul.f32 %v5418, 1.442695
        %v5436 = vpow.pop %v5435
        %v5437 = vmul.f32 %v5419, 1.442695
        %v5438 = vpow.pop %v5437
        %v5439 = vmul.f32 %v5420, 1.442695
        %v5440 = vpow.pop %v5439
        %v5441 = vmul.f32 %v5421, 1.442695
        %v5442 = vpow.pop %v5441
        %v5443 = vmul.f32 %v5422, 1.442695
        %v5444 = vpow.pop %v5443
        %v5445 = vmul.f32 %v5423, 1.442695
        %v5446 = vpow.pop %v5445
        %v5447 = vmul.f32 %v5424, 1.442695
        %v5448 = vpow.pop %v5447
        %v5449 = vmul.f32 %v5425, 1.442695
        %v5450 = vpow.pop %v5449
        %v5451 = vmul.f32 %v5426, 1.442695
        %v5452 = vpow.pop %v5451
        %v5453 = vmul.f32 %v5427, 1.442695
        %v5454 = vpow.pop %v5453
        %v5455 = vmul.f32 %v5428, 1.442695
        %v5456 = vpow.pop %v5455
        %v5457 = vmul.f32 %v5429, 1.442695
        %v5458 = vpow.pop %v5457
        %v5459 = vmul.f32 %v5430, 1.442695
        %v5460 = vpow.pop %v5459
        %v5461 = vmul.f32 %v5431, 1.442695
        %v5462 = vpow.pop %v5461
        %v5463 = vmul.f32 %v5432, 1.442695
        %v5464 = vpow.pop %v5463
        %5465 = vadd.xlane.f32.xlu0 %v5434
        %v5466 = vpop.xlane.xlu0 %5465
        %5467 = vadd.xlane.f32.xlu0 %v5436
        %v5468 = vpop.xlane.xlu0 %5467
        %5469 = vadd.xlane.f32.xlu0 %v5438
        %v5470 = vpop.xlane.xlu0 %5469
        %5471 = vadd.xlane.f32.xlu0 %v5440
        %v5472 = vpop.xlane.xlu0 %5471
        %5473 = vadd.xlane.f32.xlu0 %v5442
        %v5474 = vpop.xlane.xlu0 %5473
        %5475 = vadd.xlane.f32.xlu0 %v5444
        %v5476 = vpop.xlane.xlu0 %5475
        %5477 = vadd.xlane.f32.xlu0 %v5446
        %v5478 = vpop.xlane.xlu0 %5477
        %5479 = vadd.xlane.f32.xlu0 %v5448
        %v5480 = vpop.xlane.xlu0 %5479
        %5481 = vadd.xlane.f32.xlu0 %v5450
        %v5482 = vpop.xlane.xlu0 %5481
        %5483 = vadd.xlane.f32.xlu0 %v5452
        %v5484 = vpop.xlane.xlu0 %5483
        %5485 = vadd.xlane.f32.xlu0 %v5454
        %v5486 = vpop.xlane.xlu0 %5485
        %5487 = vadd.xlane.f32.xlu0 %v5456
        %v5488 = vpop.xlane.xlu0 %5487
        %5489 = vadd.xlane.f32.xlu0 %v5458
        %v5490 = vpop.xlane.xlu0 %5489
        %5491 = vadd.xlane.f32.xlu0 %v5460
        %v5492 = vpop.xlane.xlu0 %5491
        %5493 = vadd.xlane.f32.xlu0 %v5462
        %v5494 = vpop.xlane.xlu0 %5493
        %5495 = vadd.xlane.f32.xlu0 %v5464
        %v5496 = vpop.xlane.xlu0 %5495
        %v5497 = vpack.c.bf16 %v5436, %v5434
        %v5498 = vpack.c.bf16 %v5440, %v5438
        %v5499 = vpack.c.bf16 %v5444, %v5442
        %v5500 = vpack.c.bf16 %v5448, %v5446
        %v5501 = vpack.c.bf16 %v5452, %v5450
        %v5502 = vpack.c.bf16 %v5456, %v5454
        %v5503 = vpack.c.bf16 %v5460, %v5458
        %v5504 = vpack.c.bf16 %v5464, %v5462
        %v5505 = vunpack.c.h.b16 %v4200
        %v5506 = vunpack.c.h.b16 %v4202
        %v5507 = vunpack.c.h.b16 %v4204
        %v5508 = vunpack.c.h.b16 %v4206
        %v5509 = vunpack.c.h.b16 %v4208
        %v5510 = vunpack.c.h.b16 %v4210
        %v5511 = vunpack.c.h.b16 %v4212
        %v5512 = vunpack.c.h.b16 %v4214
        %v5513 = vunpack.c.h.b16 %v4216
        %v5514 = vunpack.c.h.b16 %v4218
        %v5515 = vunpack.c.h.b16 %v4220
        %v5516 = vunpack.c.h.b16 %v4222
        %v5517 = vunpack.c.h.b16 %v4224
        %v5518 = vunpack.c.h.b16 %v4226
        %v5519 = vunpack.c.h.b16 %v4228
        %v5520 = vunpack.c.h.b16 %v4230
        %v5521 = vpack.c.b16 %v5506, %v5505
        %v5522 = vpack.c.b16 %v5508, %v5507
        %v5523 = vpack.c.b16 %v5510, %v5509
        %v5524 = vpack.c.b16 %v5512, %v5511
        %v5525 = vpack.c.b16 %v5514, %v5513
        %v5526 = vpack.c.b16 %v5516, %v5515
        %v5527 = vpack.c.b16 %v5518, %v5517
        %v5528 = vpack.c.b16 %v5520, %v5519
        %5537 = vmatpush.bf16.msra.mxu0 %v5528
        %5538 = vmatpush.bf16.msra.mxu0 %v5527
        %5539 = vmatpush.bf16.msra.mxu0 %v5526
        %5540 = vmatpush.bf16.msra.mxu0 %v5525
        %5541 = vmatpush.bf16.msra.mxu0 %v5524
        %5542 = vmatpush.bf16.msra.mxu0 %v5523
        %5543 = vmatpush.bf16.msra.mxu0 %v5522
        %5544 = vmatpush.bf16.msra.mxu0 %v5521
        %5545 = vmatmul.bf16.gmra.mxu0 %v5497
        %v5546 = vpop.f32.mrf.mxu0
        %v5547 = vadd.f32 0.0, %v5546
        %v5548 = vpop.f32.mrf.mxu0
        %v5549 = vadd.f32 0.0, %v5548
        %5550 = vmatmul.bf16.gmra.mxu0 %v5498
        %v5551 = vpop.f32.mrf.mxu0
        %v5552 = vadd.f32 0.0, %v5551
        %v5553 = vpop.f32.mrf.mxu0
        %v5554 = vadd.f32 0.0, %v5553
        %5555 = vmatmul.bf16.gmra.mxu0 %v5499
        %v5556 = vpop.f32.mrf.mxu0
        %v5557 = vadd.f32 0.0, %v5556
        %v5558 = vpop.f32.mrf.mxu0
        %v5559 = vadd.f32 0.0, %v5558
        %5560 = vmatmul.bf16.gmra.mxu0 %v5500
        %v5561 = vpop.f32.mrf.mxu0
        %v5562 = vadd.f32 0.0, %v5561
        %v5563 = vpop.f32.mrf.mxu0
        %v5564 = vadd.f32 0.0, %v5563
        %5565 = vmatmul.bf16.gmra.mxu0 %v5501
        %v5566 = vpop.f32.mrf.mxu0
        %v5567 = vadd.f32 0.0, %v5566
        %v5568 = vpop.f32.mrf.mxu0
        %v5569 = vadd.f32 0.0, %v5568
        %5570 = vmatmul.bf16.gmra.mxu0 %v5502
        %v5571 = vpop.f32.mrf.mxu0
        %v5572 = vadd.f32 0.0, %v5571
        %v5573 = vpop.f32.mrf.mxu0
        %v5574 = vadd.f32 0.0, %v5573
        %5575 = vmatmul.bf16.gmra.mxu0 %v5503
        %v5576 = vpop.f32.mrf.mxu0
        %v5577 = vadd.f32 0.0, %v5576
        %v5578 = vpop.f32.mrf.mxu0
        %v5579 = vadd.f32 0.0, %v5578
        %5580 = vmatmul.bf16.gmra.mxu0 %v5504
        %v5581 = vpop.f32.mrf.mxu0
        %v5582 = vadd.f32 0.0, %v5581
        %v5583 = vpop.f32.mrf.mxu0
        %v5584 = vadd.f32 0.0, %v5583
        %5585 = vdwg.mxu0
        %v5586 = vrcp.pop %v5466
        %v5587 = vrcp.pop %v5468
        %v5588 = vrcp.pop %v5470
        %v5589 = vrcp.pop %v5472
        %v5590 = vrcp.pop %v5474
        %v5591 = vrcp.pop %v5476
        %v5592 = vrcp.pop %v5478
        %v5593 = vrcp.pop %v5480
        %v5594 = vrcp.pop %v5482
        %v5595 = vrcp.pop %v5484
        %v5596 = vrcp.pop %v5486
        %v5597 = vrcp.pop %v5488
        %v5598 = vrcp.pop %v5490
        %v5599 = vrcp.pop %v5492
        %v5600 = vrcp.pop %v5494
        %v5601 = vrcp.pop %v5496
        %v5602 = vmul.f32 %v5547, %v5586
        %v5603 = vmul.f32 %v5549, %v5587
        %v5604 = vmul.f32 %v5552, %v5588
        %v5605 = vmul.f32 %v5554, %v5589
        %v5606 = vmul.f32 %v5557, %v5590
        %v5607 = vmul.f32 %v5559, %v5591
        %v5608 = vmul.f32 %v5562, %v5592
        %v5609 = vmul.f32 %v5564, %v5593
        %v5610 = vmul.f32 %v5567, %v5594
        %v5611 = vmul.f32 %v5569, %v5595
        %v5612 = vmul.f32 %v5572, %v5596
        %v5613 = vmul.f32 %v5574, %v5597
        %v5614 = vmul.f32 %v5577, %v5598
        %v5615 = vmul.f32 %v5579, %v5599
        %v5616 = vmul.f32 %v5582, %v5600
        %v5617 = vmul.f32 %v5584, %v5601
        %5618 = vrot.lane.b32.xlu0 %v5240, 64
        %v5619 = vpop.permute.xlu0 %5618
        %5620 = vrot.lane.b32.xlu0 %v5241, 64
        %v5621 = vpop.permute.xlu0 %5620
        %5622 = vrot.lane.b32.xlu0 %v5242, 64
        %v5623 = vpop.permute.xlu0 %5622
        %5624 = vrot.lane.b32.xlu0 %v5243, 64
        %v5625 = vpop.permute.xlu0 %5624
        %5626 = vrot.lane.b32.xlu0 %v5244, 64
        %v5627 = vpop.permute.xlu0 %5626
        %5628 = vrot.lane.b32.xlu0 %v5245, 64
        %v5629 = vpop.permute.xlu0 %5628
        %5630 = vrot.lane.b32.xlu0 %v5246, 64
        %v5631 = vpop.permute.xlu0 %5630
        %5632 = vrot.lane.b32.xlu0 %v5247, 64
        %v5633 = vpop.permute.xlu0 %5632
        %5634 = vrot.lane.b32.xlu0 %v5264, 64
        %v5635 = vpop.permute.xlu0 %5634
        %5636 = vrot.lane.b32.xlu0 %v5265, 64
        %v5637 = vpop.permute.xlu0 %5636
        %5638 = vrot.lane.b32.xlu0 %v5266, 64
        %v5639 = vpop.permute.xlu0 %5638
        %5640 = vrot.lane.b32.xlu0 %v5267, 64
        %v5641 = vpop.permute.xlu0 %5640
        %5642 = vrot.lane.b32.xlu0 %v5268, 64
        %v5643 = vpop.permute.xlu0 %5642
        %5644 = vrot.lane.b32.xlu0 %v5269, 64
        %v5645 = vpop.permute.xlu0 %5644
        %5646 = vrot.lane.b32.xlu0 %v5270, 64
        %v5647 = vpop.permute.xlu0 %5646
        %5648 = vrot.lane.b32.xlu0 %v5271, 64
        %v5649 = vpop.permute.xlu0 %5648
        %v5651 = vsel %vm4379, %v5619, 0
        %v5654 = vsel %vm4379, %v5621, 0
        %v5657 = vsel %vm4379, %v5623, 0
        %v5660 = vsel %vm4379, %v5625, 0
        %v5663 = vsel %vm4379, %v5627, 0
        %v5666 = vsel %vm4379, %v5629, 0
        %v5669 = vsel %vm4379, %v5631, 0
        %v5672 = vsel %vm4379, %v5633, 0
        %v5675 = vsel %vm4379, %v5635, 0
        %v5678 = vsel %vm4379, %v5637, 0
        %v5681 = vsel %vm4379, %v5639, 0
        %v5684 = vsel %vm4379, %v5641, 0
        %v5687 = vsel %vm4379, %v5643, 0
        %v5690 = vsel %vm4379, %v5645, 0
        %v5693 = vsel %vm4379, %v5647, 0
        %v5696 = vsel %vm4379, %v5649, 0
        %5698 = vmatpush.bf16.xpose.msra.mxu0 %v5696
        %5699 = vmatpush.bf16.xpose.msra.mxu0 %v5693
        %5700 = vmatpush.bf16.xpose.msra.mxu0 %v5690
        %5701 = vmatpush.bf16.xpose.msra.mxu0 %v5687
        %5702 = vmatpush.bf16.xpose.msra.mxu0 %v5684
        %5703 = vmatpush.bf16.xpose.msra.mxu0 %v5681
        %5704 = vmatpush.bf16.xpose.msra.mxu0 %v5678
        %5705 = vmatpush.bf16.xpose.msra.mxu0 %v5675
        %5706 = vmatmul.bf16.gmra.mxu0 %v5651
        %v5707 = vpop.f32.mrf.mxu0
        %v5708 = vadd.f32 0.0, %v5707
        %v5709 = vpop.f32.mrf.mxu0
        %v5710 = vadd.f32 0.0, %v5709
        %5711 = vmatmul.bf16.gmra.mxu0 %v5654
        %v5712 = vpop.f32.mrf.mxu0
        %v5713 = vadd.f32 0.0, %v5712
        %v5714 = vpop.f32.mrf.mxu0
        %v5715 = vadd.f32 0.0, %v5714
        %5716 = vmatmul.bf16.gmra.mxu0 %v5657
        %v5717 = vpop.f32.mrf.mxu0
        %v5718 = vadd.f32 0.0, %v5717
        %v5719 = vpop.f32.mrf.mxu0
        %v5720 = vadd.f32 0.0, %v5719
        %5721 = vmatmul.bf16.gmra.mxu0 %v5660
        %v5722 = vpop.f32.mrf.mxu0
        %v5723 = vadd.f32 0.0, %v5722
        %v5724 = vpop.f32.mrf.mxu0
        %v5725 = vadd.f32 0.0, %v5724
        %5726 = vmatmul.bf16.gmra.mxu0 %v5663
        %v5727 = vpop.f32.mrf.mxu0
        %v5728 = vadd.f32 0.0, %v5727
        %v5729 = vpop.f32.mrf.mxu0
        %v5730 = vadd.f32 0.0, %v5729
        %5731 = vmatmul.bf16.gmra.mxu0 %v5666
        %v5732 = vpop.f32.mrf.mxu0
        %v5733 = vadd.f32 0.0, %v5732
        %v5734 = vpop.f32.mrf.mxu0
        %v5735 = vadd.f32 0.0, %v5734
        %5736 = vmatmul.bf16.gmra.mxu0 %v5669
        %v5737 = vpop.f32.mrf.mxu0
        %v5738 = vadd.f32 0.0, %v5737
        %v5739 = vpop.f32.mrf.mxu0
        %v5740 = vadd.f32 0.0, %v5739
        %5741 = vmatmul.bf16.gmra.mxu0 %v5672
        %v5742 = vpop.f32.mrf.mxu0
        %v5743 = vadd.f32 0.0, %v5742
        %v5744 = vpop.f32.mrf.mxu0
        %v5745 = vadd.f32 0.0, %v5744
        %5746 = vdwg.mxu0
        %v5747 = vsel %vm4283, %v5708, -inf
        %v5748 = vsel %vm4284, %v5710, -inf
        %v5749 = vsel %vm4285, %v5713, -inf
        %v5750 = vsel %vm4286, %v5715, -inf
        %v5751 = vsel %vm4287, %v5718, -inf
        %v5752 = vsel %vm4288, %v5720, -inf
        %v5753 = vsel %vm4289, %v5723, -inf
        %v5754 = vsel %vm4290, %v5725, -inf
        %v5755 = vsel %vm4291, %v5728, -inf
        %v5756 = vsel %vm4292, %v5730, -inf
        %v5757 = vsel %vm4293, %v5733, -inf
        %v5758 = vsel %vm4294, %v5735, -inf
        %v5759 = vsel %vm4295, %v5738, -inf
        %v5760 = vsel %vm4296, %v5740, -inf
        %v5761 = vsel %vm4297, %v5743, -inf
        %v5762 = vsel %vm4298, %v5745, -inf
        %5763 = vmax.xlane.f32.xlu0 %v5747
        %v5764 = vpop.xlane.xlu0 %5763
        %5765 = vmax.xlane.f32.xlu0 %v5748
        %v5766 = vpop.xlane.xlu0 %5765
        %5767 = vmax.xlane.f32.xlu0 %v5749
        %v5768 = vpop.xlane.xlu0 %5767
        %5769 = vmax.xlane.f32.xlu0 %v5750
        %v5770 = vpop.xlane.xlu0 %5769
        %5771 = vmax.xlane.f32.xlu0 %v5751
        %v5772 = vpop.xlane.xlu0 %5771
        %5773 = vmax.xlane.f32.xlu0 %v5752
        %v5774 = vpop.xlane.xlu0 %5773
        %5775 = vmax.xlane.f32.xlu0 %v5753
        %v5776 = vpop.xlane.xlu0 %5775
        %5777 = vmax.xlane.f32.xlu0 %v5754
        %v5778 = vpop.xlane.xlu0 %5777
        %5779 = vmax.xlane.f32.xlu0 %v5755
        %v5780 = vpop.xlane.xlu0 %5779
        %5781 = vmax.xlane.f32.xlu0 %v5756
        %v5782 = vpop.xlane.xlu0 %5781
        %5783 = vmax.xlane.f32.xlu0 %v5757
        %v5784 = vpop.xlane.xlu0 %5783
        %5785 = vmax.xlane.f32.xlu0 %v5758
        %v5786 = vpop.xlane.xlu0 %5785
        %5787 = vmax.xlane.f32.xlu0 %v5759
        %v5788 = vpop.xlane.xlu0 %5787
        %5789 = vmax.xlane.f32.xlu0 %v5760
        %v5790 = vpop.xlane.xlu0 %5789
        %5791 = vmax.xlane.f32.xlu0 %v5761
        %v5792 = vpop.xlane.xlu0 %5791
        %5793 = vmax.xlane.f32.xlu0 %v5762
        %v5794 = vpop.xlane.xlu0 %5793
        %v5795 = vsub.f32 %v5747, %v5764
        %v5796 = vsub.f32 %v5748, %v5766
        %v5797 = vsub.f32 %v5749, %v5768
        %v5798 = vsub.f32 %v5750, %v5770
        %v5799 = vsub.f32 %v5751, %v5772
        %v5800 = vsub.f32 %v5752, %v5774
        %v5801 = vsub.f32 %v5753, %v5776
        %v5802 = vsub.f32 %v5754, %v5778
        %v5803 = vsub.f32 %v5755, %v5780
        %v5804 = vsub.f32 %v5756, %v5782
        %v5805 = vsub.f32 %v5757, %v5784
        %v5806 = vsub.f32 %v5758, %v5786
        %v5807 = vsub.f32 %v5759, %v5788
        %v5808 = vsub.f32 %v5760, %v5790
        %v5809 = vsub.f32 %v5761, %v5792
        %v5810 = vsub.f32 %v5762, %v5794
        %v5811 = vmul.f32 %v5795, 1.442695
        %v5812 = vpow.pop %v5811
        %v5813 = vmul.f32 %v5796, 1.442695
        %v5814 = vpow.pop %v5813
        %v5815 = vmul.f32 %v5797, 1.442695
        %v5816 = vpow.pop %v5815
        %v5817 = vmul.f32 %v5798, 1.442695
        %v5818 = vpow.pop %v5817
        %v5819 = vmul.f32 %v5799, 1.442695
        %v5820 = vpow.pop %v5819
        %v5821 = vmul.f32 %v5800, 1.442695
        %v5822 = vpow.pop %v5821
        %v5823 = vmul.f32 %v5801, 1.442695
        %v5824 = vpow.pop %v5823
        %v5825 = vmul.f32 %v5802, 1.442695
        %v5826 = vpow.pop %v5825
        %v5827 = vmul.f32 %v5803, 1.442695
        %v5828 = vpow.pop %v5827
        %v5829 = vmul.f32 %v5804, 1.442695
        %v5830 = vpow.pop %v5829
        %v5831 = vmul.f32 %v5805, 1.442695
        %v5832 = vpow.pop %v5831
        %v5833 = vmul.f32 %v5806, 1.442695
        %v5834 = vpow.pop %v5833
        %v5835 = vmul.f32 %v5807, 1.442695
        %v5836 = vpow.pop %v5835
        %v5837 = vmul.f32 %v5808, 1.442695
        %v5838 = vpow.pop %v5837
        %v5839 = vmul.f32 %v5809, 1.442695
        %v5840 = vpow.pop %v5839
        %v5841 = vmul.f32 %v5810, 1.442695
        %v5842 = vpow.pop %v5841
        %5843 = vadd.xlane.f32.xlu0 %v5812
        %v5844 = vpop.xlane.xlu0 %5843
        %5845 = vadd.xlane.f32.xlu0 %v5814
        %v5846 = vpop.xlane.xlu0 %5845
        %5847 = vadd.xlane.f32.xlu0 %v5816
        %v5848 = vpop.xlane.xlu0 %5847
        %5849 = vadd.xlane.f32.xlu0 %v5818
        %v5850 = vpop.xlane.xlu0 %5849
        %5851 = vadd.xlane.f32.xlu0 %v5820
        %v5852 = vpop.xlane.xlu0 %5851
        %5853 = vadd.xlane.f32.xlu0 %v5822
        %v5854 = vpop.xlane.xlu0 %5853
        %5855 = vadd.xlane.f32.xlu0 %v5824
        %v5856 = vpop.xlane.xlu0 %5855
        %5857 = vadd.xlane.f32.xlu0 %v5826
        %v5858 = vpop.xlane.xlu0 %5857
        %5859 = vadd.xlane.f32.xlu0 %v5828
        %v5860 = vpop.xlane.xlu0 %5859
        %5861 = vadd.xlane.f32.xlu0 %v5830
        %v5862 = vpop.xlane.xlu0 %5861
        %5863 = vadd.xlane.f32.xlu0 %v5832
        %v5864 = vpop.xlane.xlu0 %5863
        %5865 = vadd.xlane.f32.xlu0 %v5834
        %v5866 = vpop.xlane.xlu0 %5865
        %5867 = vadd.xlane.f32.xlu0 %v5836
        %v5868 = vpop.xlane.xlu0 %5867
        %5869 = vadd.xlane.f32.xlu0 %v5838
        %v5870 = vpop.xlane.xlu0 %5869
        %5871 = vadd.xlane.f32.xlu0 %v5840
        %v5872 = vpop.xlane.xlu0 %5871
        %5873 = vadd.xlane.f32.xlu0 %v5842
        %v5874 = vpop.xlane.xlu0 %5873
        %v5875 = vpack.c.bf16 %v5814, %v5812
        %v5876 = vpack.c.bf16 %v5818, %v5816
        %v5877 = vpack.c.bf16 %v5822, %v5820
        %v5878 = vpack.c.bf16 %v5826, %v5824
        %v5879 = vpack.c.bf16 %v5830, %v5828
        %v5880 = vpack.c.bf16 %v5834, %v5832
        %v5881 = vpack.c.bf16 %v5838, %v5836
        %v5882 = vpack.c.bf16 %v5842, %v5840
        %5883 = vrot.lane.b32.xlu0 %v5521, 64
        %v5884 = vpop.permute.xlu0 %5883
        %5885 = vrot.lane.b32.xlu0 %v5522, 64
        %v5886 = vpop.permute.xlu0 %5885
        %5887 = vrot.lane.b32.xlu0 %v5523, 64
        %v5888 = vpop.permute.xlu0 %5887
        %5889 = vrot.lane.b32.xlu0 %v5524, 64
        %v5890 = vpop.permute.xlu0 %5889
        %5891 = vrot.lane.b32.xlu0 %v5525, 64
        %v5892 = vpop.permute.xlu0 %5891
        %5893 = vrot.lane.b32.xlu0 %v5526, 64
        %v5894 = vpop.permute.xlu0 %5893
        %5895 = vrot.lane.b32.xlu0 %v5527, 64
        %v5896 = vpop.permute.xlu0 %5895
        %5897 = vrot.lane.b32.xlu0 %v5528, 64
        %v5898 = vpop.permute.xlu0 %5897
        %5907 = vmatpush.bf16.msra.mxu0 %v5898
        %5908 = vmatpush.bf16.msra.mxu0 %v5896
        %5909 = vmatpush.bf16.msra.mxu0 %v5894
        %5910 = vmatpush.bf16.msra.mxu0 %v5892
        %5911 = vmatpush.bf16.msra.mxu0 %v5890
        %5912 = vmatpush.bf16.msra.mxu0 %v5888
        %5913 = vmatpush.bf16.msra.mxu0 %v5886
        %5914 = vmatpush.bf16.msra.mxu0 %v5884
        %5915 = vmatmul.bf16.gmra.mxu0 %v5875
        %v5916 = vpop.f32.mrf.mxu0
        %v5917 = vadd.f32 0.0, %v5916
        %v5918 = vpop.f32.mrf.mxu0
        %v5919 = vadd.f32 0.0, %v5918
        %5920 = vmatmul.bf16.gmra.mxu0 %v5876
        %v5921 = vpop.f32.mrf.mxu0
        %v5922 = vadd.f32 0.0, %v5921
        %v5923 = vpop.f32.mrf.mxu0
        %v5924 = vadd.f32 0.0, %v5923
        %5925 = vmatmul.bf16.gmra.mxu0 %v5877
        %v5926 = vpop.f32.mrf.mxu0
        %v5927 = vadd.f32 0.0, %v5926
        %v5928 = vpop.f32.mrf.mxu0
        %v5929 = vadd.f32 0.0, %v5928
        %5930 = vmatmul.bf16.gmra.mxu0 %v5878
        %v5931 = vpop.f32.mrf.mxu0
        %v5932 = vadd.f32 0.0, %v5931
        %v5933 = vpop.f32.mrf.mxu0
        %v5934 = vadd.f32 0.0, %v5933
        %5935 = vmatmul.bf16.gmra.mxu0 %v5879
        %v5936 = vpop.f32.mrf.mxu0
        %v5937 = vadd.f32 0.0, %v5936
        %v5938 = vpop.f32.mrf.mxu0
        %v5939 = vadd.f32 0.0, %v5938
        %5940 = vmatmul.bf16.gmra.mxu0 %v5880
        %v5941 = vpop.f32.mrf.mxu0
        %v5942 = vadd.f32 0.0, %v5941
        %v5943 = vpop.f32.mrf.mxu0
        %v5944 = vadd.f32 0.0, %v5943
        %5945 = vmatmul.bf16.gmra.mxu0 %v5881
        %v5946 = vpop.f32.mrf.mxu0
        %v5947 = vadd.f32 0.0, %v5946
        %v5948 = vpop.f32.mrf.mxu0
        %v5949 = vadd.f32 0.0, %v5948
        %5950 = vmatmul.bf16.gmra.mxu0 %v5882
        %v5951 = vpop.f32.mrf.mxu0
        %v5952 = vadd.f32 0.0, %v5951
        %v5953 = vpop.f32.mrf.mxu0
        %v5954 = vadd.f32 0.0, %v5953
        %5955 = vdwg.mxu0
        %v5956 = vrcp.pop %v5844
        %v5957 = vrcp.pop %v5846
        %v5958 = vrcp.pop %v5848
        %v5959 = vrcp.pop %v5850
        %v5960 = vrcp.pop %v5852
        %v5961 = vrcp.pop %v5854
        %v5962 = vrcp.pop %v5856
        %v5963 = vrcp.pop %v5858
        %v5964 = vrcp.pop %v5860
        %v5965 = vrcp.pop %v5862
        %v5966 = vrcp.pop %v5864
        %v5967 = vrcp.pop %v5866
        %v5968 = vrcp.pop %v5868
        %v5969 = vrcp.pop %v5870
        %v5970 = vrcp.pop %v5872
        %v5971 = vrcp.pop %v5874
        %v5972 = vmul.f32 %v5917, %v5956
        %v5973 = vmul.f32 %v5919, %v5957
        %v5974 = vmul.f32 %v5922, %v5958
        %v5975 = vmul.f32 %v5924, %v5959
        %v5976 = vmul.f32 %v5927, %v5960
        %v5977 = vmul.f32 %v5929, %v5961
        %v5978 = vmul.f32 %v5932, %v5962
        %v5979 = vmul.f32 %v5934, %v5963
        %v5980 = vmul.f32 %v5937, %v5964
        %v5981 = vmul.f32 %v5939, %v5965
        %v5982 = vmul.f32 %v5942, %v5966
        %v5983 = vmul.f32 %v5944, %v5967
        %v5984 = vmul.f32 %v5947, %v5968
        %v5985 = vmul.f32 %v5949, %v5969
        %v5986 = vmul.f32 %v5952, %v5970
        %v5987 = vmul.f32 %v5954, %v5971
        %6004 = vrot.lane.b32.xlu0 %v5972, 64
        %v6005 = vpop.permute.xlu0 %6004
        %6006 = vrot.lane.b32.xlu0 %v5973, 64
        %v6007 = vpop.permute.xlu0 %6006
        %6008 = vrot.lane.b32.xlu0 %v5974, 64
        %v6009 = vpop.permute.xlu0 %6008
        %6010 = vrot.lane.b32.xlu0 %v5975, 64
        %v6011 = vpop.permute.xlu0 %6010
        %6012 = vrot.lane.b32.xlu0 %v5976, 64
        %v6013 = vpop.permute.xlu0 %6012
        %6014 = vrot.lane.b32.xlu0 %v5977, 64
        %v6015 = vpop.permute.xlu0 %6014
        %6016 = vrot.lane.b32.xlu0 %v5978, 64
        %v6017 = vpop.permute.xlu0 %6016
        %6018 = vrot.lane.b32.xlu0 %v5979, 64
        %v6019 = vpop.permute.xlu0 %6018
        %6020 = vrot.lane.b32.xlu0 %v5980, 64
        %v6021 = vpop.permute.xlu0 %6020
        %6022 = vrot.lane.b32.xlu0 %v5981, 64
        %v6023 = vpop.permute.xlu0 %6022
        %6024 = vrot.lane.b32.xlu0 %v5982, 64
        %v6025 = vpop.permute.xlu0 %6024
        %6026 = vrot.lane.b32.xlu0 %v5983, 64
        %v6027 = vpop.permute.xlu0 %6026
        %6028 = vrot.lane.b32.xlu0 %v5984, 64
        %v6029 = vpop.permute.xlu0 %6028
        %6030 = vrot.lane.b32.xlu0 %v5985, 64
        %v6031 = vpop.permute.xlu0 %6030
        %6032 = vrot.lane.b32.xlu0 %v5986, 64
        %v6033 = vpop.permute.xlu0 %6032
        %6034 = vrot.lane.b32.xlu0 %v5987, 64
        %v6035 = vpop.permute.xlu0 %6034
        %v6052 = vsel %vm4379, %v5602, %v6005
        %v6053 = vsel %vm4379, %v5603, %v6007
        %v6054 = vsel %vm4379, %v5604, %v6009
        %v6055 = vsel %vm4379, %v5605, %v6011
        %v6056 = vsel %vm4379, %v5606, %v6013
        %v6057 = vsel %vm4379, %v5607, %v6015
        %v6058 = vsel %vm4379, %v5608, %v6017
        %v6059 = vsel %vm4379, %v5609, %v6019
        %v6060 = vsel %vm4379, %v5610, %v6021
        %v6061 = vsel %vm4379, %v5611, %v6023
        %v6062 = vsel %vm4379, %v5612, %v6025
        %v6063 = vsel %vm4379, %v5613, %v6027
        %v6064 = vsel %vm4379, %v5614, %v6029
        %v6065 = vsel %vm4379, %v5615, %v6031
        %v6066 = vsel %vm4379, %v5616, %v6033
        %v6067 = vsel %vm4379, %v5617, %v6035
        %v6068 = vpack.c.bf16 %v6052, %v6052
        %v6069 = vpack.c.bf16 %v6053, %v6053
        %v6070 = vpack.c.bf16 %v6054, %v6054
        %v6071 = vpack.c.bf16 %v6055, %v6055
        %v6072 = vpack.c.bf16 %v6056, %v6056
        %v6073 = vpack.c.bf16 %v6057, %v6057
        %v6074 = vpack.c.bf16 %v6058, %v6058
        %v6075 = vpack.c.bf16 %v6059, %v6059
        %v6076 = vpack.c.bf16 %v6060, %v6060
        %v6077 = vpack.c.bf16 %v6061, %v6061
        %v6078 = vpack.c.bf16 %v6062, %v6062
        %v6079 = vpack.c.bf16 %v6063, %v6063
        %v6080 = vpack.c.bf16 %v6064, %v6064
        %v6081 = vpack.c.bf16 %v6065, %v6065
        %v6082 = vpack.c.bf16 %v6066, %v6066
        %v6083 = vpack.c.bf16 %v6067, %v6067
        %6084 = vst [vmem:[%s180 + $0x4] sm:$0xf] %v6068
        %6085 = vst [vmem:[%s180 + $0x10] sm:$0xf] %v6069
        %6086 = vst [vmem:[%s180 + $0x1c] sm:$0xf] %v6070
        %6087 = vst [vmem:[%s180 + $0x28] sm:$0xf] %v6071
        %6088 = vst [vmem:[%s180 + $0x34] sm:$0xf] %v6072
        %6089 = vst [vmem:[%s180 + $0x40] sm:$0xf] %v6073
        %6090 = vst [vmem:[%s180 + $0x4c] sm:$0xf] %v6074
        %6091 = vst [vmem:[%s180 + $0x58] sm:$0xf] %v6075
        %6092 = vst [vmem:[%s180 + $0x64] sm:$0xf] %v6076
        %6093 = vst [vmem:[%s180 + $0x70] sm:$0xf] %v6077
        %6094 = vst [vmem:[%s180 + $0x7c] sm:$0xf] %v6078
        %6095 = vst [vmem:[%s180 + $0x88] sm:$0xf] %v6079
        %6096 = vst [vmem:[%s180 + $0x94] sm:$0xf] %v6080
        %6097 = vst [vmem:[%s180 + $0xa0] sm:$0xf] %v6081
        %6098 = vst [vmem:[%s180 + $0xac] sm:$0xf] %v6082
        %6099 = vst [vmem:[%s180 + $0xb8] sm:$0xf] %v6083
        %v6116 = vunpack.c.l.b16 %v4073
        %v6117 = vunpack.c.l.b16 %v4075
        %v6118 = vunpack.c.l.b16 %v4077
        %v6119 = vunpack.c.l.b16 %v4079
        %v6120 = vunpack.c.l.b16 %v4081
        %v6121 = vunpack.c.l.b16 %v4083
        %v6122 = vunpack.c.l.b16 %v4085
        %v6123 = vunpack.c.l.b16 %v4087
        %v6124 = vunpack.c.l.b16 %v4089
        %v6125 = vunpack.c.l.b16 %v4091
        %v6126 = vunpack.c.l.b16 %v4093
        %v6127 = vunpack.c.l.b16 %v4095
        %v6128 = vunpack.c.l.b16 %v4097
        %v6129 = vunpack.c.l.b16 %v4099
        %v6130 = vunpack.c.l.b16 %v4101
        %v6131 = vunpack.c.l.b16 %v4103
        %v6132 = vpack.c.b16 %v6117, %v6116
        %v6133 = vpack.c.b16 %v6119, %v6118
        %v6134 = vpack.c.b16 %v6121, %v6120
        %v6135 = vpack.c.b16 %v6123, %v6122
        %v6136 = vpack.c.b16 %v6125, %v6124
        %v6137 = vpack.c.b16 %v6127, %v6126
        %v6138 = vpack.c.b16 %v6129, %v6128
        %v6139 = vpack.c.b16 %v6131, %v6130
        %v6156 = vunpack.c.l.b16 %v4137
        %v6157 = vunpack.c.l.b16 %v4139
        %v6158 = vunpack.c.l.b16 %v4141
        %v6159 = vunpack.c.l.b16 %v4143
        %v6160 = vunpack.c.l.b16 %v4145
        %v6161 = vunpack.c.l.b16 %v4147
        %v6162 = vunpack.c.l.b16 %v4149
        %v6163 = vunpack.c.l.b16 %v4151
        %v6164 = vunpack.c.l.b16 %v4153
        %v6165 = vunpack.c.l.b16 %v4155
        %v6166 = vunpack.c.l.b16 %v4157
        %v6167 = vunpack.c.l.b16 %v4159
        %v6168 = vunpack.c.l.b16 %v4161
        %v6169 = vunpack.c.l.b16 %v4163
        %v6170 = vunpack.c.l.b16 %v4165
        %v6171 = vunpack.c.l.b16 %v4167
        %v6172 = vpack.c.b16 %v6157, %v6156
        %v6173 = vpack.c.b16 %v6159, %v6158
        %v6174 = vpack.c.b16 %v6161, %v6160
        %v6175 = vpack.c.b16 %v6163, %v6162
        %v6176 = vpack.c.b16 %v6165, %v6164
        %v6177 = vpack.c.b16 %v6167, %v6166
        %v6178 = vpack.c.b16 %v6169, %v6168
        %v6179 = vpack.c.b16 %v6171, %v6170
        %v6181 = vsel %vm4379, %v6132, 0
        %v6184 = vsel %vm4379, %v6133, 0
        %v6187 = vsel %vm4379, %v6134, 0
        %v6190 = vsel %vm4379, %v6135, 0
        %v6193 = vsel %vm4379, %v6136, 0
        %v6196 = vsel %vm4379, %v6137, 0
        %v6199 = vsel %vm4379, %v6138, 0
        %v6202 = vsel %vm4379, %v6139, 0
        %v6205 = vsel %vm4379, %v6172, 0
        %v6208 = vsel %vm4379, %v6173, 0
        %v6211 = vsel %vm4379, %v6174, 0
        %v6214 = vsel %vm4379, %v6175, 0
        %v6217 = vsel %vm4379, %v6176, 0
        %v6220 = vsel %vm4379, %v6177, 0
        %v6223 = vsel %vm4379, %v6178, 0
        %v6226 = vsel %vm4379, %v6179, 0
        %6228 = vmatpush.bf16.xpose.msra.mxu0 %v6226
        %6229 = vmatpush.bf16.xpose.msra.mxu0 %v6223
        %6230 = vmatpush.bf16.xpose.msra.mxu0 %v6220
        %6231 = vmatpush.bf16.xpose.msra.mxu0 %v6217
        %6232 = vmatpush.bf16.xpose.msra.mxu0 %v6214
        %6233 = vmatpush.bf16.xpose.msra.mxu0 %v6211
        %6234 = vmatpush.bf16.xpose.msra.mxu0 %v6208
        %6235 = vmatpush.bf16.xpose.msra.mxu0 %v6205
        %6236 = vmatmul.bf16.gmra.mxu0 %v6181
        %v6237 = vpop.f32.mrf.mxu0
        %v6238 = vadd.f32 0.0, %v6237
        %v6239 = vpop.f32.mrf.mxu0
        %v6240 = vadd.f32 0.0, %v6239
        %6241 = vmatmul.bf16.gmra.mxu0 %v6184
        %v6242 = vpop.f32.mrf.mxu0
        %v6243 = vadd.f32 0.0, %v6242
        %v6244 = vpop.f32.mrf.mxu0
        %v6245 = vadd.f32 0.0, %v6244
        %6246 = vmatmul.bf16.gmra.mxu0 %v6187
        %v6247 = vpop.f32.mrf.mxu0
        %v6248 = vadd.f32 0.0, %v6247
        %v6249 = vpop.f32.mrf.mxu0
        %v6250 = vadd.f32 0.0, %v6249
        %6251 = vmatmul.bf16.gmra.mxu0 %v6190
        %v6252 = vpop.f32.mrf.mxu0
        %v6253 = vadd.f32 0.0, %v6252
        %v6254 = vpop.f32.mrf.mxu0
        %v6255 = vadd.f32 0.0, %v6254
        %6256 = vmatmul.bf16.gmra.mxu0 %v6193
        %v6257 = vpop.f32.mrf.mxu0
        %v6258 = vadd.f32 0.0, %v6257
        %v6259 = vpop.f32.mrf.mxu0
        %v6260 = vadd.f32 0.0, %v6259
        %6261 = vmatmul.bf16.gmra.mxu0 %v6196
        %v6262 = vpop.f32.mrf.mxu0
        %v6263 = vadd.f32 0.0, %v6262
        %v6264 = vpop.f32.mrf.mxu0
        %v6265 = vadd.f32 0.0, %v6264
        %6266 = vmatmul.bf16.gmra.mxu0 %v6199
        %v6267 = vpop.f32.mrf.mxu0
        %v6268 = vadd.f32 0.0, %v6267
        %v6269 = vpop.f32.mrf.mxu0
        %v6270 = vadd.f32 0.0, %v6269
        %6271 = vmatmul.bf16.gmra.mxu0 %v6202
        %v6272 = vpop.f32.mrf.mxu0
        %v6273 = vadd.f32 0.0, %v6272
        %v6274 = vpop.f32.mrf.mxu0
        %v6275 = vadd.f32 0.0, %v6274
        %6276 = vdwg.mxu0
        %v6277 = vsel %vm4283, %v6238, -inf
        %v6278 = vsel %vm4284, %v6240, -inf
        %v6279 = vsel %vm4285, %v6243, -inf
        %v6280 = vsel %vm4286, %v6245, -inf
        %v6281 = vsel %vm4287, %v6248, -inf
        %v6282 = vsel %vm4288, %v6250, -inf
        %v6283 = vsel %vm4289, %v6253, -inf
        %v6284 = vsel %vm4290, %v6255, -inf
        %v6285 = vsel %vm4291, %v6258, -inf
        %v6286 = vsel %vm4292, %v6260, -inf
        %v6287 = vsel %vm4293, %v6263, -inf
        %v6288 = vsel %vm4294, %v6265, -inf
        %v6289 = vsel %vm4295, %v6268, -inf
        %v6290 = vsel %vm4296, %v6270, -inf
        %v6291 = vsel %vm4297, %v6273, -inf
        %v6292 = vsel %vm4298, %v6275, -inf
        %6293 = vmax.xlane.f32.xlu0 %v6277
        %v6294 = vpop.xlane.xlu0 %6293
        %6295 = vmax.xlane.f32.xlu0 %v6278
        %v6296 = vpop.xlane.xlu0 %6295
        %6297 = vmax.xlane.f32.xlu0 %v6279
        %v6298 = vpop.xlane.xlu0 %6297
        %6299 = vmax.xlane.f32.xlu0 %v6280
        %v6300 = vpop.xlane.xlu0 %6299
        %6301 = vmax.xlane.f32.xlu0 %v6281
        %v6302 = vpop.xlane.xlu0 %6301
        %6303 = vmax.xlane.f32.xlu0 %v6282
        %v6304 = vpop.xlane.xlu0 %6303
        %6305 = vmax.xlane.f32.xlu0 %v6283
        %v6306 = vpop.xlane.xlu0 %6305
        %6307 = vmax.xlane.f32.xlu0 %v6284
        %v6308 = vpop.xlane.xlu0 %6307
        %6309 = vmax.xlane.f32.xlu0 %v6285
        %v6310 = vpop.xlane.xlu0 %6309
        %6311 = vmax.xlane.f32.xlu0 %v6286
        %v6312 = vpop.xlane.xlu0 %6311
        %6313 = vmax.xlane.f32.xlu0 %v6287
        %v6314 = vpop.xlane.xlu0 %6313
        %6315 = vmax.xlane.f32.xlu0 %v6288
        %v6316 = vpop.xlane.xlu0 %6315
        %6317 = vmax.xlane.f32.xlu0 %v6289
        %v6318 = vpop.xlane.xlu0 %6317
        %6319 = vmax.xlane.f32.xlu0 %v6290
        %v6320 = vpop.xlane.xlu0 %6319
        %6321 = vmax.xlane.f32.xlu0 %v6291
        %v6322 = vpop.xlane.xlu0 %6321
        %6323 = vmax.xlane.f32.xlu0 %v6292
        %v6324 = vpop.xlane.xlu0 %6323
        %v6325 = vsub.f32 %v6277, %v6294
        %v6326 = vsub.f32 %v6278, %v6296
        %v6327 = vsub.f32 %v6279, %v6298
        %v6328 = vsub.f32 %v6280, %v6300
        %v6329 = vsub.f32 %v6281, %v6302
        %v6330 = vsub.f32 %v6282, %v6304
        %v6331 = vsub.f32 %v6283, %v6306
        %v6332 = vsub.f32 %v6284, %v6308
        %v6333 = vsub.f32 %v6285, %v6310
        %v6334 = vsub.f32 %v6286, %v6312
        %v6335 = vsub.f32 %v6287, %v6314
        %v6336 = vsub.f32 %v6288, %v6316
        %v6337 = vsub.f32 %v6289, %v6318
        %v6338 = vsub.f32 %v6290, %v6320
        %v6339 = vsub.f32 %v6291, %v6322
        %v6340 = vsub.f32 %v6292, %v6324
        %v6341 = vmul.f32 %v6325, 1.442695
        %v6342 = vpow.pop %v6341
        %v6343 = vmul.f32 %v6326, 1.442695
        %v6344 = vpow.pop %v6343
        %v6345 = vmul.f32 %v6327, 1.442695
        %v6346 = vpow.pop %v6345
        %v6347 = vmul.f32 %v6328, 1.442695
        %v6348 = vpow.pop %v6347
        %v6349 = vmul.f32 %v6329, 1.442695
        %v6350 = vpow.pop %v6349
        %v6351 = vmul.f32 %v6330, 1.442695
        %v6352 = vpow.pop %v6351
        %v6353 = vmul.f32 %v6331, 1.442695
        %v6354 = vpow.pop %v6353
        %v6355 = vmul.f32 %v6332, 1.442695
        %v6356 = vpow.pop %v6355
        %v6357 = vmul.f32 %v6333, 1.442695
        %v6358 = vpow.pop %v6357
        %v6359 = vmul.f32 %v6334, 1.442695
        %v6360 = vpow.pop %v6359
        %v6361 = vmul.f32 %v6335, 1.442695
        %v6362 = vpow.pop %v6361
        %v6363 = vmul.f32 %v6336, 1.442695
        %v6364 = vpow.pop %v6363
        %v6365 = vmul.f32 %v6337, 1.442695
        %v6366 = vpow.pop %v6365
        %v6367 = vmul.f32 %v6338, 1.442695
        %v6368 = vpow.pop %v6367
        %v6369 = vmul.f32 %v6339, 1.442695
        %v6370 = vpow.pop %v6369
        %v6371 = vmul.f32 %v6340, 1.442695
        %v6372 = vpow.pop %v6371
        %6373 = vadd.xlane.f32.xlu0 %v6342
        %v6374 = vpop.xlane.xlu0 %6373
        %6375 = vadd.xlane.f32.xlu0 %v6344
        %v6376 = vpop.xlane.xlu0 %6375
        %6377 = vadd.xlane.f32.xlu0 %v6346
        %v6378 = vpop.xlane.xlu0 %6377
        %6379 = vadd.xlane.f32.xlu0 %v6348
        %v6380 = vpop.xlane.xlu0 %6379
        %6381 = vadd.xlane.f32.xlu0 %v6350
        %v6382 = vpop.xlane.xlu0 %6381
        %6383 = vadd.xlane.f32.xlu0 %v6352
        %v6384 = vpop.xlane.xlu0 %6383
        %6385 = vadd.xlane.f32.xlu0 %v6354
        %v6386 = vpop.xlane.xlu0 %6385
        %6387 = vadd.xlane.f32.xlu0 %v6356
        %v6388 = vpop.xlane.xlu0 %6387
        %6389 = vadd.xlane.f32.xlu0 %v6358
        %v6390 = vpop.xlane.xlu0 %6389
        %6391 = vadd.xlane.f32.xlu0 %v6360
        %v6392 = vpop.xlane.xlu0 %6391
        %6393 = vadd.xlane.f32.xlu0 %v6362
        %v6394 = vpop.xlane.xlu0 %6393
        %6395 = vadd.xlane.f32.xlu0 %v6364
        %v6396 = vpop.xlane.xlu0 %6395
        %6397 = vadd.xlane.f32.xlu0 %v6366
        %v6398 = vpop.xlane.xlu0 %6397
        %6399 = vadd.xlane.f32.xlu0 %v6368
        %v6400 = vpop.xlane.xlu0 %6399
        %6401 = vadd.xlane.f32.xlu0 %v6370
        %v6402 = vpop.xlane.xlu0 %6401
        %6403 = vadd.xlane.f32.xlu0 %v6372
        %v6404 = vpop.xlane.xlu0 %6403
        %v6405 = vpack.c.bf16 %v6344, %v6342
        %v6406 = vpack.c.bf16 %v6348, %v6346
        %v6407 = vpack.c.bf16 %v6352, %v6350
        %v6408 = vpack.c.bf16 %v6356, %v6354
        %v6409 = vpack.c.bf16 %v6360, %v6358
        %v6410 = vpack.c.bf16 %v6364, %v6362
        %v6411 = vpack.c.bf16 %v6368, %v6366
        %v6412 = vpack.c.bf16 %v6372, %v6370
        %v6429 = vunpack.c.l.b16 %v4201
        %v6430 = vunpack.c.l.b16 %v4203
        %v6431 = vunpack.c.l.b16 %v4205
        %v6432 = vunpack.c.l.b16 %v4207
        %v6433 = vunpack.c.l.b16 %v4209
        %v6434 = vunpack.c.l.b16 %v4211
        %v6435 = vunpack.c.l.b16 %v4213
        %v6436 = vunpack.c.l.b16 %v4215
        %v6437 = vunpack.c.l.b16 %v4217
        %v6438 = vunpack.c.l.b16 %v4219
        %v6439 = vunpack.c.l.b16 %v4221
        %v6440 = vunpack.c.l.b16 %v4223
        %v6441 = vunpack.c.l.b16 %v4225
        %v6442 = vunpack.c.l.b16 %v4227
        %v6443 = vunpack.c.l.b16 %v4229
        %v6444 = vunpack.c.l.b16 %v4231
        %v6445 = vpack.c.b16 %v6430, %v6429
        %v6446 = vpack.c.b16 %v6432, %v6431
        %v6447 = vpack.c.b16 %v6434, %v6433
        %v6448 = vpack.c.b16 %v6436, %v6435
        %v6449 = vpack.c.b16 %v6438, %v6437
        %v6450 = vpack.c.b16 %v6440, %v6439
        %v6451 = vpack.c.b16 %v6442, %v6441
        %v6452 = vpack.c.b16 %v6444, %v6443
        %6461 = vmatpush.bf16.msra.mxu0 %v6452
        %6462 = vmatpush.bf16.msra.mxu0 %v6451
        %6463 = vmatpush.bf16.msra.mxu0 %v6450
        %6464 = vmatpush.bf16.msra.mxu0 %v6449
        %6465 = vmatpush.bf16.msra.mxu0 %v6448
        %6466 = vmatpush.bf16.msra.mxu0 %v6447
        %6467 = vmatpush.bf16.msra.mxu0 %v6446
        %6468 = vmatpush.bf16.msra.mxu0 %v6445
        %6469 = vmatmul.bf16.gmra.mxu0 %v6405
        %v6470 = vpop.f32.mrf.mxu0
        %v6471 = vadd.f32 0.0, %v6470
        %v6472 = vpop.f32.mrf.mxu0
        %v6473 = vadd.f32 0.0, %v6472
        %6474 = vmatmul.bf16.gmra.mxu0 %v6406
        %v6475 = vpop.f32.mrf.mxu0
        %v6476 = vadd.f32 0.0, %v6475
        %v6477 = vpop.f32.mrf.mxu0
        %v6478 = vadd.f32 0.0, %v6477
        %6479 = vmatmul.bf16.gmra.mxu0 %v6407
        %v6480 = vpop.f32.mrf.mxu0
        %v6481 = vadd.f32 0.0, %v6480
        %v6482 = vpop.f32.mrf.mxu0
        %v6483 = vadd.f32 0.0, %v6482
        %6484 = vmatmul.bf16.gmra.mxu0 %v6408
        %v6485 = vpop.f32.mrf.mxu0
        %v6486 = vadd.f32 0.0, %v6485
        %v6487 = vpop.f32.mrf.mxu0
        %v6488 = vadd.f32 0.0, %v6487
        %6489 = vmatmul.bf16.gmra.mxu0 %v6409
        %v6490 = vpop.f32.mrf.mxu0
        %v6491 = vadd.f32 0.0, %v6490
        %v6492 = vpop.f32.mrf.mxu0
        %v6493 = vadd.f32 0.0, %v6492
        %6494 = vmatmul.bf16.gmra.mxu0 %v6410
        %v6495 = vpop.f32.mrf.mxu0
        %v6496 = vadd.f32 0.0, %v6495
        %v6497 = vpop.f32.mrf.mxu0
        %v6498 = vadd.f32 0.0, %v6497
        %6499 = vmatmul.bf16.gmra.mxu0 %v6411
        %v6500 = vpop.f32.mrf.mxu0
        %v6501 = vadd.f32 0.0, %v6500
        %v6502 = vpop.f32.mrf.mxu0
        %v6503 = vadd.f32 0.0, %v6502
        %6504 = vmatmul.bf16.gmra.mxu0 %v6412
        %v6505 = vpop.f32.mrf.mxu0
        %v6506 = vadd.f32 0.0, %v6505
        %v6507 = vpop.f32.mrf.mxu0
        %v6508 = vadd.f32 0.0, %v6507
        %6509 = vdwg.mxu0
        %v6510 = vrcp.pop %v6374
        %v6511 = vrcp.pop %v6376
        %v6512 = vrcp.pop %v6378
        %v6513 = vrcp.pop %v6380
        %v6514 = vrcp.pop %v6382
        %v6515 = vrcp.pop %v6384
        %v6516 = vrcp.pop %v6386
        %v6517 = vrcp.pop %v6388
        %v6518 = vrcp.pop %v6390
        %v6519 = vrcp.pop %v6392
        %v6520 = vrcp.pop %v6394
        %v6521 = vrcp.pop %v6396
        %v6522 = vrcp.pop %v6398
        %v6523 = vrcp.pop %v6400
        %v6524 = vrcp.pop %v6402
        %v6525 = vrcp.pop %v6404
        %v6526 = vmul.f32 %v6471, %v6510
        %v6527 = vmul.f32 %v6473, %v6511
        %v6528 = vmul.f32 %v6476, %v6512
        %v6529 = vmul.f32 %v6478, %v6513
        %v6530 = vmul.f32 %v6481, %v6514
        %v6531 = vmul.f32 %v6483, %v6515
        %v6532 = vmul.f32 %v6486, %v6516
        %v6533 = vmul.f32 %v6488, %v6517
        %v6534 = vmul.f32 %v6491, %v6518
        %v6535 = vmul.f32 %v6493, %v6519
        %v6536 = vmul.f32 %v6496, %v6520
        %v6537 = vmul.f32 %v6498, %v6521
        %v6538 = vmul.f32 %v6501, %v6522
        %v6539 = vmul.f32 %v6503, %v6523
        %v6540 = vmul.f32 %v6506, %v6524
        %v6541 = vmul.f32 %v6508, %v6525
        %6542 = vrot.lane.b32.xlu0 %v6132, 64
        %v6543 = vpop.permute.xlu0 %6542
        %6544 = vrot.lane.b32.xlu0 %v6133, 64
        %v6545 = vpop.permute.xlu0 %6544
        %6546 = vrot.lane.b32.xlu0 %v6134, 64
        %v6547 = vpop.permute.xlu0 %6546
        %6548 = vrot.lane.b32.xlu0 %v6135, 64
        %v6549 = vpop.permute.xlu0 %6548
        %6550 = vrot.lane.b32.xlu0 %v6136, 64
        %v6551 = vpop.permute.xlu0 %6550
        %6552 = vrot.lane.b32.xlu0 %v6137, 64
        %v6553 = vpop.permute.xlu0 %6552
        %6554 = vrot.lane.b32.xlu0 %v6138, 64
        %v6555 = vpop.permute.xlu0 %6554
        %6556 = vrot.lane.b32.xlu0 %v6139, 64
        %v6557 = vpop.permute.xlu0 %6556
        %6558 = vrot.lane.b32.xlu0 %v6172, 64
        %v6559 = vpop.permute.xlu0 %6558
        %6560 = vrot.lane.b32.xlu0 %v6173, 64
        %v6561 = vpop.permute.xlu0 %6560
        %6562 = vrot.lane.b32.xlu0 %v6174, 64
        %v6563 = vpop.permute.xlu0 %6562
        %6564 = vrot.lane.b32.xlu0 %v6175, 64
        %v6565 = vpop.permute.xlu0 %6564
        %6566 = vrot.lane.b32.xlu0 %v6176, 64
        %v6567 = vpop.permute.xlu0 %6566
        %6568 = vrot.lane.b32.xlu0 %v6177, 64
        %v6569 = vpop.permute.xlu0 %6568
        %6570 = vrot.lane.b32.xlu0 %v6178, 64
        %v6571 = vpop.permute.xlu0 %6570
        %6572 = vrot.lane.b32.xlu0 %v6179, 64
        %v6573 = vpop.permute.xlu0 %6572
        %v6575 = vsel %vm4379, %v6543, 0
        %v6578 = vsel %vm4379, %v6545, 0
        %v6581 = vsel %vm4379, %v6547, 0
        %v6584 = vsel %vm4379, %v6549, 0
        %v6587 = vsel %vm4379, %v6551, 0
        %v6590 = vsel %vm4379, %v6553, 0
        %v6593 = vsel %vm4379, %v6555, 0
        %v6596 = vsel %vm4379, %v6557, 0
        %v6599 = vsel %vm4379, %v6559, 0
        %v6602 = vsel %vm4379, %v6561, 0
        %v6605 = vsel %vm4379, %v6563, 0
        %v6608 = vsel %vm4379, %v6565, 0
        %v6611 = vsel %vm4379, %v6567, 0
        %v6614 = vsel %vm4379, %v6569, 0
        %v6617 = vsel %vm4379, %v6571, 0
        %v6620 = vsel %vm4379, %v6573, 0
        %6622 = vmatpush.bf16.xpose.msra.mxu0 %v6620
        %6623 = vmatpush.bf16.xpose.msra.mxu0 %v6617
        %6624 = vmatpush.bf16.xpose.msra.mxu0 %v6614
        %6625 = vmatpush.bf16.xpose.msra.mxu0 %v6611
        %6626 = vmatpush.bf16.xpose.msra.mxu0 %v6608
        %6627 = vmatpush.bf16.xpose.msra.mxu0 %v6605
        %6628 = vmatpush.bf16.xpose.msra.mxu0 %v6602
        %6629 = vmatpush.bf16.xpose.msra.mxu0 %v6599
        %6630 = vmatmul.bf16.gmra.mxu0 %v6575
        %v6631 = vpop.f32.mrf.mxu0
        %v6632 = vadd.f32 0.0, %v6631
        %v6633 = vpop.f32.mrf.mxu0
        %v6634 = vadd.f32 0.0, %v6633
        %6635 = vmatmul.bf16.gmra.mxu0 %v6578
        %v6636 = vpop.f32.mrf.mxu0
        %v6637 = vadd.f32 0.0, %v6636
        %v6638 = vpop.f32.mrf.mxu0
        %v6639 = vadd.f32 0.0, %v6638
        %6640 = vmatmul.bf16.gmra.mxu0 %v6581
        %v6641 = vpop.f32.mrf.mxu0
        %v6642 = vadd.f32 0.0, %v6641
        %v6643 = vpop.f32.mrf.mxu0
        %v6644 = vadd.f32 0.0, %v6643
        %6645 = vmatmul.bf16.gmra.mxu0 %v6584
        %v6646 = vpop.f32.mrf.mxu0
        %v6647 = vadd.f32 0.0, %v6646
        %v6648 = vpop.f32.mrf.mxu0
        %v6649 = vadd.f32 0.0, %v6648
        %6650 = vmatmul.bf16.gmra.mxu0 %v6587
        %v6651 = vpop.f32.mrf.mxu0
        %v6652 = vadd.f32 0.0, %v6651
        %v6653 = vpop.f32.mrf.mxu0
        %v6654 = vadd.f32 0.0, %v6653
        %6655 = vmatmul.bf16.gmra.mxu0 %v6590
        %v6656 = vpop.f32.mrf.mxu0
        %v6657 = vadd.f32 0.0, %v6656
        %v6658 = vpop.f32.mrf.mxu0
        %v6659 = vadd.f32 0.0, %v6658
        %6660 = vmatmul.bf16.gmra.mxu0 %v6593
        %v6661 = vpop.f32.mrf.mxu0
        %v6662 = vadd.f32 0.0, %v6661
        %v6663 = vpop.f32.mrf.mxu0
        %v6664 = vadd.f32 0.0, %v6663
        %6665 = vmatmul.bf16.gmra.mxu0 %v6596
        %v6666 = vpop.f32.mrf.mxu0
        %v6667 = vadd.f32 0.0, %v6666
        %v6668 = vpop.f32.mrf.mxu0
        %v6669 = vadd.f32 0.0, %v6668
        %6670 = vdwg.mxu0
        %v6671 = vsel %vm4283, %v6632, -inf
        %v6672 = vsel %vm4284, %v6634, -inf
        %v6673 = vsel %vm4285, %v6637, -inf
        %v6674 = vsel %vm4286, %v6639, -inf
        %v6675 = vsel %vm4287, %v6642, -inf
        %v6676 = vsel %vm4288, %v6644, -inf
        %v6677 = vsel %vm4289, %v6647, -inf
        %v6678 = vsel %vm4290, %v6649, -inf
        %v6679 = vsel %vm4291, %v6652, -inf
        %v6680 = vsel %vm4292, %v6654, -inf
        %v6681 = vsel %vm4293, %v6657, -inf
        %v6682 = vsel %vm4294, %v6659, -inf
        %v6683 = vsel %vm4295, %v6662, -inf
        %v6684 = vsel %vm4296, %v6664, -inf
        %v6685 = vsel %vm4297, %v6667, -inf
        %v6686 = vsel %vm4298, %v6669, -inf
        %6687 = vmax.xlane.f32.xlu0 %v6671
        %v6688 = vpop.xlane.xlu0 %6687
        %6689 = vmax.xlane.f32.xlu0 %v6672
        %v6690 = vpop.xlane.xlu0 %6689
        %6691 = vmax.xlane.f32.xlu0 %v6673
        %v6692 = vpop.xlane.xlu0 %6691
        %6693 = vmax.xlane.f32.xlu0 %v6674
        %v6694 = vpop.xlane.xlu0 %6693
        %6695 = vmax.xlane.f32.xlu0 %v6675
        %v6696 = vpop.xlane.xlu0 %6695
        %6697 = vmax.xlane.f32.xlu0 %v6676
        %v6698 = vpop.xlane.xlu0 %6697
        %6699 = vmax.xlane.f32.xlu0 %v6677
        %v6700 = vpop.xlane.xlu0 %6699
        %6701 = vmax.xlane.f32.xlu0 %v6678
        %v6702 = vpop.xlane.xlu0 %6701
        %6703 = vmax.xlane.f32.xlu0 %v6679
        %v6704 = vpop.xlane.xlu0 %6703
        %6705 = vmax.xlane.f32.xlu0 %v6680
        %v6706 = vpop.xlane.xlu0 %6705
        %6707 = vmax.xlane.f32.xlu0 %v6681
        %v6708 = vpop.xlane.xlu0 %6707
        %6709 = vmax.xlane.f32.xlu0 %v6682
        %v6710 = vpop.xlane.xlu0 %6709
        %6711 = vmax.xlane.f32.xlu0 %v6683
        %v6712 = vpop.xlane.xlu0 %6711
        %6713 = vmax.xlane.f32.xlu0 %v6684
        %v6714 = vpop.xlane.xlu0 %6713
        %6715 = vmax.xlane.f32.xlu0 %v6685
        %v6716 = vpop.xlane.xlu0 %6715
        %6717 = vmax.xlane.f32.xlu0 %v6686
        %v6718 = vpop.xlane.xlu0 %6717
        %v6719 = vsub.f32 %v6671, %v6688
        %v6720 = vsub.f32 %v6672, %v6690
        %v6721 = vsub.f32 %v6673, %v6692
        %v6722 = vsub.f32 %v6674, %v6694
        %v6723 = vsub.f32 %v6675, %v6696
        %v6724 = vsub.f32 %v6676, %v6698
        %v6725 = vsub.f32 %v6677, %v6700
        %v6726 = vsub.f32 %v6678, %v6702
        %v6727 = vsub.f32 %v6679, %v6704
        %v6728 = vsub.f32 %v6680, %v6706
        %v6729 = vsub.f32 %v6681, %v6708
        %v6730 = vsub.f32 %v6682, %v6710
        %v6731 = vsub.f32 %v6683, %v6712
        %v6732 = vsub.f32 %v6684, %v6714
        %v6733 = vsub.f32 %v6685, %v6716
        %v6734 = vsub.f32 %v6686, %v6718
        %v6735 = vmul.f32 %v6719, 1.442695
        %v6736 = vpow.pop %v6735
        %v6737 = vmul.f32 %v6720, 1.442695
        %v6738 = vpow.pop %v6737
        %v6739 = vmul.f32 %v6721, 1.442695
        %v6740 = vpow.pop %v6739
        %v6741 = vmul.f32 %v6722, 1.442695
        %v6742 = vpow.pop %v6741
        %v6743 = vmul.f32 %v6723, 1.442695
        %v6744 = vpow.pop %v6743
        %v6745 = vmul.f32 %v6724, 1.442695
        %v6746 = vpow.pop %v6745
        %v6747 = vmul.f32 %v6725, 1.442695
        %v6748 = vpow.pop %v6747
        %v6749 = vmul.f32 %v6726, 1.442695
        %v6750 = vpow.pop %v6749
        %v6751 = vmul.f32 %v6727, 1.442695
        %v6752 = vpow.pop %v6751
        %v6753 = vmul.f32 %v6728, 1.442695
        %v6754 = vpow.pop %v6753
        %v6755 = vmul.f32 %v6729, 1.442695
        %v6756 = vpow.pop %v6755
        %v6757 = vmul.f32 %v6730, 1.442695
        %v6758 = vpow.pop %v6757
        %v6759 = vmul.f32 %v6731, 1.442695
        %v6760 = vpow.pop %v6759
        %v6761 = vmul.f32 %v6732, 1.442695
        %v6762 = vpow.pop %v6761
        %v6763 = vmul.f32 %v6733, 1.442695
        %v6764 = vpow.pop %v6763
        %v6765 = vmul.f32 %v6734, 1.442695
        %v6766 = vpow.pop %v6765
        %6767 = vadd.xlane.f32.xlu0 %v6736
        %v6768 = vpop.xlane.xlu0 %6767
        %6769 = vadd.xlane.f32.xlu0 %v6738
        %v6770 = vpop.xlane.xlu0 %6769
        %6771 = vadd.xlane.f32.xlu0 %v6740
        %v6772 = vpop.xlane.xlu0 %6771
        %6773 = vadd.xlane.f32.xlu0 %v6742
        %v6774 = vpop.xlane.xlu0 %6773
        %6775 = vadd.xlane.f32.xlu0 %v6744
        %v6776 = vpop.xlane.xlu0 %6775
        %6777 = vadd.xlane.f32.xlu0 %v6746
        %v6778 = vpop.xlane.xlu0 %6777
        %6779 = vadd.xlane.f32.xlu0 %v6748
        %v6780 = vpop.xlane.xlu0 %6779
        %6781 = vadd.xlane.f32.xlu0 %v6750
        %v6782 = vpop.xlane.xlu0 %6781
        %6783 = vadd.xlane.f32.xlu0 %v6752
        %v6784 = vpop.xlane.xlu0 %6783
        %6785 = vadd.xlane.f32.xlu0 %v6754
        %v6786 = vpop.xlane.xlu0 %6785
        %6787 = vadd.xlane.f32.xlu0 %v6756
        %v6788 = vpop.xlane.xlu0 %6787
        %6789 = vadd.xlane.f32.xlu0 %v6758
        %v6790 = vpop.xlane.xlu0 %6789
        %6791 = vadd.xlane.f32.xlu0 %v6760
        %v6792 = vpop.xlane.xlu0 %6791
        %6793 = vadd.xlane.f32.xlu0 %v6762
        %v6794 = vpop.xlane.xlu0 %6793
        %6795 = vadd.xlane.f32.xlu0 %v6764
        %v6796 = vpop.xlane.xlu0 %6795
        %6797 = vadd.xlane.f32.xlu0 %v6766
        %v6798 = vpop.xlane.xlu0 %6797
        %v6799 = vpack.c.bf16 %v6738, %v6736
        %v6800 = vpack.c.bf16 %v6742, %v6740
        %v6801 = vpack.c.bf16 %v6746, %v6744
        %v6802 = vpack.c.bf16 %v6750, %v6748
        %v6803 = vpack.c.bf16 %v6754, %v6752
        %v6804 = vpack.c.bf16 %v6758, %v6756
        %v6805 = vpack.c.bf16 %v6762, %v6760
        %v6806 = vpack.c.bf16 %v6766, %v6764
        %6807 = vrot.lane.b32.xlu0 %v6445, 64
        %v6808 = vpop.permute.xlu0 %6807
        %6809 = vrot.lane.b32.xlu0 %v6446, 64
        %v6810 = vpop.permute.xlu0 %6809
        %6811 = vrot.lane.b32.xlu0 %v6447, 64
        %v6812 = vpop.permute.xlu0 %6811
        %6813 = vrot.lane.b32.xlu0 %v6448, 64
        %v6814 = vpop.permute.xlu0 %6813
        %6815 = vrot.lane.b32.xlu0 %v6449, 64
        %v6816 = vpop.permute.xlu0 %6815
        %6817 = vrot.lane.b32.xlu0 %v6450, 64
        %v6818 = vpop.permute.xlu0 %6817
        %6819 = vrot.lane.b32.xlu0 %v6451, 64
        %v6820 = vpop.permute.xlu0 %6819
        %6821 = vrot.lane.b32.xlu0 %v6452, 64
        %v6822 = vpop.permute.xlu0 %6821
        %6831 = vmatpush.bf16.msra.mxu0 %v6822
        %6832 = vmatpush.bf16.msra.mxu0 %v6820
        %6833 = vmatpush.bf16.msra.mxu0 %v6818
        %6834 = vmatpush.bf16.msra.mxu0 %v6816
        %6835 = vmatpush.bf16.msra.mxu0 %v6814
        %6836 = vmatpush.bf16.msra.mxu0 %v6812
        %6837 = vmatpush.bf16.msra.mxu0 %v6810
        %6838 = vmatpush.bf16.msra.mxu0 %v6808
        %6839 = vmatmul.bf16.gmra.mxu0 %v6799
        %v6840 = vpop.f32.mrf.mxu0
        %v6841 = vadd.f32 0.0, %v6840
        %v6842 = vpop.f32.mrf.mxu0
        %v6843 = vadd.f32 0.0, %v6842
        %6844 = vmatmul.bf16.gmra.mxu0 %v6800
        %v6845 = vpop.f32.mrf.mxu0
        %v6846 = vadd.f32 0.0, %v6845
        %v6847 = vpop.f32.mrf.mxu0
        %v6848 = vadd.f32 0.0, %v6847
        %6849 = vmatmul.bf16.gmra.mxu0 %v6801
        %v6850 = vpop.f32.mrf.mxu0
        %v6851 = vadd.f32 0.0, %v6850
        %v6852 = vpop.f32.mrf.mxu0
        %v6853 = vadd.f32 0.0, %v6852
        %6854 = vmatmul.bf16.gmra.mxu0 %v6802
        %v6855 = vpop.f32.mrf.mxu0
        %v6856 = vadd.f32 0.0, %v6855
        %v6857 = vpop.f32.mrf.mxu0
        %v6858 = vadd.f32 0.0, %v6857
        %6859 = vmatmul.bf16.gmra.mxu0 %v6803
        %v6860 = vpop.f32.mrf.mxu0
        %v6861 = vadd.f32 0.0, %v6860
        %v6862 = vpop.f32.mrf.mxu0
        %v6863 = vadd.f32 0.0, %v6862
        %6864 = vmatmul.bf16.gmra.mxu0 %v6804
        %v6865 = vpop.f32.mrf.mxu0
        %v6866 = vadd.f32 0.0, %v6865
        %v6867 = vpop.f32.mrf.mxu0
        %v6868 = vadd.f32 0.0, %v6867
        %6869 = vmatmul.bf16.gmra.mxu0 %v6805
        %v6870 = vpop.f32.mrf.mxu0
        %v6871 = vadd.f32 0.0, %v6870
        %v6872 = vpop.f32.mrf.mxu0
        %v6873 = vadd.f32 0.0, %v6872
        %6874 = vmatmul.bf16.gmra.mxu0 %v6806
        %v6875 = vpop.f32.mrf.mxu0
        %v6876 = vadd.f32 0.0, %v6875
        %v6877 = vpop.f32.mrf.mxu0
        %v6878 = vadd.f32 0.0, %v6877
        %6879 = vdwg.mxu0
        %v6880 = vrcp.pop %v6768
        %v6881 = vrcp.pop %v6770
        %v6882 = vrcp.pop %v6772
        %v6883 = vrcp.pop %v6774
        %v6884 = vrcp.pop %v6776
        %v6885 = vrcp.pop %v6778
        %v6886 = vrcp.pop %v6780
        %v6887 = vrcp.pop %v6782
        %v6888 = vrcp.pop %v6784
        %v6889 = vrcp.pop %v6786
        %v6890 = vrcp.pop %v6788
        %v6891 = vrcp.pop %v6790
        %v6892 = vrcp.pop %v6792
        %v6893 = vrcp.pop %v6794
        %v6894 = vrcp.pop %v6796
        %v6895 = vrcp.pop %v6798
        %v6896 = vmul.f32 %v6841, %v6880
        %v6897 = vmul.f32 %v6843, %v6881
        %v6898 = vmul.f32 %v6846, %v6882
        %v6899 = vmul.f32 %v6848, %v6883
        %v6900 = vmul.f32 %v6851, %v6884
        %v6901 = vmul.f32 %v6853, %v6885
        %v6902 = vmul.f32 %v6856, %v6886
        %v6903 = vmul.f32 %v6858, %v6887
        %v6904 = vmul.f32 %v6861, %v6888
        %v6905 = vmul.f32 %v6863, %v6889
        %v6906 = vmul.f32 %v6866, %v6890
        %v6907 = vmul.f32 %v6868, %v6891
        %v6908 = vmul.f32 %v6871, %v6892
        %v6909 = vmul.f32 %v6873, %v6893
        %v6910 = vmul.f32 %v6876, %v6894
        %v6911 = vmul.f32 %v6878, %v6895
        %6928 = vrot.lane.b32.xlu0 %v6896, 64
        %v6929 = vpop.permute.xlu0 %6928
        %6930 = vrot.lane.b32.xlu0 %v6897, 64
        %v6931 = vpop.permute.xlu0 %6930
        %6932 = vrot.lane.b32.xlu0 %v6898, 64
        %v6933 = vpop.permute.xlu0 %6932
        %6934 = vrot.lane.b32.xlu0 %v6899, 64
        %v6935 = vpop.permute.xlu0 %6934
        %6936 = vrot.lane.b32.xlu0 %v6900, 64
        %v6937 = vpop.permute.xlu0 %6936
        %6938 = vrot.lane.b32.xlu0 %v6901, 64
        %v6939 = vpop.permute.xlu0 %6938
        %6940 = vrot.lane.b32.xlu0 %v6902, 64
        %v6941 = vpop.permute.xlu0 %6940
        %6942 = vrot.lane.b32.xlu0 %v6903, 64
        %v6943 = vpop.permute.xlu0 %6942
        %6944 = vrot.lane.b32.xlu0 %v6904, 64
        %v6945 = vpop.permute.xlu0 %6944
        %6946 = vrot.lane.b32.xlu0 %v6905, 64
        %v6947 = vpop.permute.xlu0 %6946
        %6948 = vrot.lane.b32.xlu0 %v6906, 64
        %v6949 = vpop.permute.xlu0 %6948
        %6950 = vrot.lane.b32.xlu0 %v6907, 64
        %v6951 = vpop.permute.xlu0 %6950
        %6952 = vrot.lane.b32.xlu0 %v6908, 64
        %v6953 = vpop.permute.xlu0 %6952
        %6954 = vrot.lane.b32.xlu0 %v6909, 64
        %v6955 = vpop.permute.xlu0 %6954
        %6956 = vrot.lane.b32.xlu0 %v6910, 64
        %v6957 = vpop.permute.xlu0 %6956
        %6958 = vrot.lane.b32.xlu0 %v6911, 64
        %v6959 = vpop.permute.xlu0 %6958
        %v6976 = vsel %vm4379, %v6526, %v6929
        %v6977 = vsel %vm4379, %v6527, %v6931
        %v6978 = vsel %vm4379, %v6528, %v6933
        %v6979 = vsel %vm4379, %v6529, %v6935
        %v6980 = vsel %vm4379, %v6530, %v6937
        %v6981 = vsel %vm4379, %v6531, %v6939
        %v6982 = vsel %vm4379, %v6532, %v6941
        %v6983 = vsel %vm4379, %v6533, %v6943
        %v6984 = vsel %vm4379, %v6534, %v6945
        %v6985 = vsel %vm4379, %v6535, %v6947
        %v6986 = vsel %vm4379, %v6536, %v6949
        %v6987 = vsel %vm4379, %v6537, %v6951
        %v6988 = vsel %vm4379, %v6538, %v6953
        %v6989 = vsel %vm4379, %v6539, %v6955
        %v6990 = vsel %vm4379, %v6540, %v6957
        %v6991 = vsel %vm4379, %v6541, %v6959
        %v6992 = vpack.c.bf16 %v6976, %v6976
        %v6993 = vpack.c.bf16 %v6977, %v6977
        %v6994 = vpack.c.bf16 %v6978, %v6978
        %v6995 = vpack.c.bf16 %v6979, %v6979
        %v6996 = vpack.c.bf16 %v6980, %v6980
        %v6997 = vpack.c.bf16 %v6981, %v6981
        %v6998 = vpack.c.bf16 %v6982, %v6982
        %v6999 = vpack.c.bf16 %v6983, %v6983
        %v7000 = vpack.c.bf16 %v6984, %v6984
        %v7001 = vpack.c.bf16 %v6985, %v6985
        %v7002 = vpack.c.bf16 %v6986, %v6986
        %v7003 = vpack.c.bf16 %v6987, %v6987
        %v7004 = vpack.c.bf16 %v6988, %v6988
        %v7005 = vpack.c.bf16 %v6989, %v6989
        %v7006 = vpack.c.bf16 %v6990, %v6990
        %v7007 = vpack.c.bf16 %v6991, %v6991
        %7008 = vst [vmem:[%s180 + $0x8] sm:$0xf] %v6992
        %7009 = vst [vmem:[%s180 + $0x14] sm:$0xf] %v6993
        %7010 = vst [vmem:[%s180 + $0x20] sm:$0xf] %v6994
        %7011 = vst [vmem:[%s180 + $0x2c] sm:$0xf] %v6995
        %7012 = vst [vmem:[%s180 + $0x38] sm:$0xf] %v6996
        %7013 = vst [vmem:[%s180 + $0x44] sm:$0xf] %v6997
        %7014 = vst [vmem:[%s180 + $0x50] sm:$0xf] %v6998
        %7015 = vst [vmem:[%s180 + $0x5c] sm:$0xf] %v6999
        %7016 = vst [vmem:[%s180 + $0x68] sm:$0xf] %v7000
        %7017 = vst [vmem:[%s180 + $0x74] sm:$0xf] %v7001
        %7018 = vst [vmem:[%s180 + $0x80] sm:$0xf] %v7002
        %7019 = vst [vmem:[%s180 + $0x8c] sm:$0xf] %v7003
        %7020 = vst [vmem:[%s180 + $0x98] sm:$0xf] %v7004
        %7021 = vst [vmem:[%s180 + $0xa4] sm:$0xf] %v7005
        %7022 = vst [vmem:[%s180 + $0xb0] sm:$0xf] %v7006
        %7023 = vst [vmem:[%s180 + $0xbc] sm:$0xf] %v7007
        %v7024 = vadd.s32 %v4265, 128
        %v7025 = vadd.s32 %v4266, 128
        %v7026 = vadd.s32 %v4267, 128
        %v7027 = vadd.s32 %v4268, 128
        %v7028 = vadd.s32 %v4269, 128
        %v7029 = vadd.s32 %v4270, 128
        %v7030 = vadd.s32 %v4271, 128
        %v7031 = vadd.s32 %v4272, 128
        %v7032 = vadd.s32 %v4273, 128
        %v7033 = vadd.s32 %v4274, 128
        %v7034 = vadd.s32 %v4275, 128
        %v7035 = vadd.s32 %v4276, 128
        %v7036 = vadd.s32 %v4277, 128
        %v7037 = vadd.s32 %v4278, 128
        %v7038 = vadd.s32 %v4279, 128
        %v7039 = vadd.s32 %v4280, 128
        %v7040 = vadd.s32 %v4282, 128
        %vm7041 = vcmp.ge.s32.totalorder %v7024, %v4282
        %vm7042 = vcmp.ge.s32.totalorder %v7024, %v7040
        %vm7043 = vcmp.ge.s32.totalorder %v7025, %v4282
        %vm7044 = vcmp.ge.s32.totalorder %v7025, %v7040
        %vm7045 = vcmp.ge.s32.totalorder %v7026, %v4282
        %vm7046 = vcmp.ge.s32.totalorder %v7026, %v7040
        %vm7047 = vcmp.ge.s32.totalorder %v7027, %v4282
        %vm7048 = vcmp.ge.s32.totalorder %v7027, %v7040
        %vm7049 = vcmp.ge.s32.totalorder %v7028, %v4282
        %vm7050 = vcmp.ge.s32.totalorder %v7028, %v7040
        %vm7051 = vcmp.ge.s32.totalorder %v7029, %v4282
        %vm7052 = vcmp.ge.s32.totalorder %v7029, %v7040
        %vm7053 = vcmp.ge.s32.totalorder %v7030, %v4282
        %vm7054 = vcmp.ge.s32.totalorder %v7030, %v7040
        %vm7055 = vcmp.ge.s32.totalorder %v7031, %v4282
        %vm7056 = vcmp.ge.s32.totalorder %v7031, %v7040
        %vm7057 = vcmp.ge.s32.totalorder %v7032, %v4282
        %vm7058 = vcmp.ge.s32.totalorder %v7032, %v7040
        %vm7059 = vcmp.ge.s32.totalorder %v7033, %v4282
        %vm7060 = vcmp.ge.s32.totalorder %v7033, %v7040
        %vm7061 = vcmp.ge.s32.totalorder %v7034, %v4282
        %vm7062 = vcmp.ge.s32.totalorder %v7034, %v7040
        %vm7063 = vcmp.ge.s32.totalorder %v7035, %v4282
        %vm7064 = vcmp.ge.s32.totalorder %v7035, %v7040
        %vm7065 = vcmp.ge.s32.totalorder %v7036, %v4282
        %vm7066 = vcmp.ge.s32.totalorder %v7036, %v7040
        %vm7067 = vcmp.ge.s32.totalorder %v7037, %v4282
        %vm7068 = vcmp.ge.s32.totalorder %v7037, %v7040
        %vm7069 = vcmp.ge.s32.totalorder %v7038, %v4282
        %vm7070 = vcmp.ge.s32.totalorder %v7038, %v7040
        %vm7071 = vcmp.ge.s32.totalorder %v7039, %v4282
        %vm7072 = vcmp.ge.s32.totalorder %v7039, %v7040
        %v7089 = vunpack.c.l.b16 %v4104
        %v7090 = vunpack.c.l.b16 %v4106
        %v7091 = vunpack.c.l.b16 %v4108
        %v7092 = vunpack.c.l.b16 %v4110
        %v7093 = vunpack.c.l.b16 %v4112
        %v7094 = vunpack.c.l.b16 %v4114
        %v7095 = vunpack.c.l.b16 %v4116
        %v7096 = vunpack.c.l.b16 %v4118
        %v7097 = vunpack.c.l.b16 %v4120
        %v7098 = vunpack.c.l.b16 %v4122
        %v7099 = vunpack.c.l.b16 %v4124
        %v7100 = vunpack.c.l.b16 %v4126
        %v7101 = vunpack.c.l.b16 %v4128
        %v7102 = vunpack.c.l.b16 %v4130
        %v7103 = vunpack.c.l.b16 %v4132
        %v7104 = vunpack.c.l.b16 %v4134
        %v7105 = vpack.c.b16 %v7090, %v7089
        %v7106 = vpack.c.b16 %v7092, %v7091
        %v7107 = vpack.c.b16 %v7094, %v7093
        %v7108 = vpack.c.b16 %v7096, %v7095
        %v7109 = vpack.c.b16 %v7098, %v7097
        %v7110 = vpack.c.b16 %v7100, %v7099
        %v7111 = vpack.c.b16 %v7102, %v7101
        %v7112 = vpack.c.b16 %v7104, %v7103
        %v7129 = vunpack.c.l.b16 %v4168
        %v7130 = vunpack.c.l.b16 %v4170
        %v7131 = vunpack.c.l.b16 %v4172
        %v7132 = vunpack.c.l.b16 %v4174
        %v7133 = vunpack.c.l.b16 %v4176
        %v7134 = vunpack.c.l.b16 %v4178
        %v7135 = vunpack.c.l.b16 %v4180
        %v7136 = vunpack.c.l.b16 %v4182
        %v7137 = vunpack.c.l.b16 %v4184
        %v7138 = vunpack.c.l.b16 %v4186
        %v7139 = vunpack.c.l.b16 %v4188
        %v7140 = vunpack.c.l.b16 %v4190
        %v7141 = vunpack.c.l.b16 %v4192
        %v7142 = vunpack.c.l.b16 %v4194
        %v7143 = vunpack.c.l.b16 %v4196
        %v7144 = vunpack.c.l.b16 %v4198
        %v7145 = vpack.c.b16 %v7130, %v7129
        %v7146 = vpack.c.b16 %v7132, %v7131
        %v7147 = vpack.c.b16 %v7134, %v7133
        %v7148 = vpack.c.b16 %v7136, %v7135
        %v7149 = vpack.c.b16 %v7138, %v7137
        %v7150 = vpack.c.b16 %v7140, %v7139
        %v7151 = vpack.c.b16 %v7142, %v7141
        %v7152 = vpack.c.b16 %v7144, %v7143
        %v7154 = vsel %vm4379, %v7105, 0
        %v7157 = vsel %vm4379, %v7106, 0
        %v7160 = vsel %vm4379, %v7107, 0
        %v7163 = vsel %vm4379, %v7108, 0
        %v7166 = vsel %vm4379, %v7109, 0
        %v7169 = vsel %vm4379, %v7110, 0
        %v7172 = vsel %vm4379, %v7111, 0
        %v7175 = vsel %vm4379, %v7112, 0
        %v7178 = vsel %vm4379, %v7145, 0
        %v7181 = vsel %vm4379, %v7146, 0
        %v7184 = vsel %vm4379, %v7147, 0
        %v7187 = vsel %vm4379, %v7148, 0
        %v7190 = vsel %vm4379, %v7149, 0
        %v7193 = vsel %vm4379, %v7150, 0
        %v7196 = vsel %vm4379, %v7151, 0
        %v7199 = vsel %vm4379, %v7152, 0
        %7201 = vmatpush.bf16.xpose.msra.mxu0 %v4426
        %7202 = vmatpush.bf16.xpose.msra.mxu0 %v4423
        %7203 = vmatpush.bf16.xpose.msra.mxu0 %v4420
        %7204 = vmatpush.bf16.xpose.msra.mxu0 %v4417
        %7205 = vmatpush.bf16.xpose.msra.mxu0 %v4414
        %7206 = vmatpush.bf16.xpose.msra.mxu0 %v4411
        %7207 = vmatpush.bf16.xpose.msra.mxu0 %v4408
        %7208 = vmatpush.bf16.xpose.msra.mxu0 %v4405
        %7209 = vmatmul.bf16.gmra.mxu0 %v7154
        %v7210 = vpop.f32.mrf.mxu0
        %v7211 = vadd.f32 0.0, %v7210
        %v7212 = vpop.f32.mrf.mxu0
        %v7213 = vadd.f32 0.0, %v7212
        %7214 = vmatmul.bf16.gmra.mxu0 %v7157
        %v7215 = vpop.f32.mrf.mxu0
        %v7216 = vadd.f32 0.0, %v7215
        %v7217 = vpop.f32.mrf.mxu0
        %v7218 = vadd.f32 0.0, %v7217
        %7219 = vmatmul.bf16.gmra.mxu0 %v7160
        %v7220 = vpop.f32.mrf.mxu0
        %v7221 = vadd.f32 0.0, %v7220
        %v7222 = vpop.f32.mrf.mxu0
        %v7223 = vadd.f32 0.0, %v7222
        %7224 = vmatmul.bf16.gmra.mxu0 %v7163
        %v7225 = vpop.f32.mrf.mxu0
        %v7226 = vadd.f32 0.0, %v7225
        %v7227 = vpop.f32.mrf.mxu0
        %v7228 = vadd.f32 0.0, %v7227
        %7229 = vmatmul.bf16.gmra.mxu0 %v7166
        %v7230 = vpop.f32.mrf.mxu0
        %v7231 = vadd.f32 0.0, %v7230
        %v7232 = vpop.f32.mrf.mxu0
        %v7233 = vadd.f32 0.0, %v7232
        %7234 = vmatmul.bf16.gmra.mxu0 %v7169
        %v7235 = vpop.f32.mrf.mxu0
        %v7236 = vadd.f32 0.0, %v7235
        %v7237 = vpop.f32.mrf.mxu0
        %v7238 = vadd.f32 0.0, %v7237
        %7239 = vmatmul.bf16.gmra.mxu0 %v7172
        %v7240 = vpop.f32.mrf.mxu0
        %v7241 = vadd.f32 0.0, %v7240
        %v7242 = vpop.f32.mrf.mxu0
        %v7243 = vadd.f32 0.0, %v7242
        %7244 = vmatmul.bf16.gmra.mxu0 %v7175
        %v7245 = vpop.f32.mrf.mxu0
        %v7246 = vadd.f32 0.0, %v7245
        %v7247 = vpop.f32.mrf.mxu0
        %v7248 = vadd.f32 0.0, %v7247
        %7249 = vdwg.mxu0
        %7250 = vmatpush.bf16.xpose.msra.mxu0 %v7199
        %7251 = vmatpush.bf16.xpose.msra.mxu0 %v7196
        %7252 = vmatpush.bf16.xpose.msra.mxu0 %v7193
        %7253 = vmatpush.bf16.xpose.msra.mxu0 %v7190
        %7254 = vmatpush.bf16.xpose.msra.mxu0 %v7187
        %7255 = vmatpush.bf16.xpose.msra.mxu0 %v7184
        %7256 = vmatpush.bf16.xpose.msra.mxu0 %v7181
        %7257 = vmatpush.bf16.xpose.msra.mxu0 %v7178
        %7258 = vmatmul.bf16.gmra.mxu0 %v7154
        %v7259 = vpop.f32.mrf.mxu0
        %v7260 = vadd.f32 0.0, %v7259
        %v7261 = vpop.f32.mrf.mxu0
        %v7262 = vadd.f32 0.0, %v7261
        %7263 = vmatmul.bf16.gmra.mxu0 %v7157
        %v7264 = vpop.f32.mrf.mxu0
        %v7265 = vadd.f32 0.0, %v7264
        %v7266 = vpop.f32.mrf.mxu0
        %v7267 = vadd.f32 0.0, %v7266
        %7268 = vmatmul.bf16.gmra.mxu0 %v7160
        %v7269 = vpop.f32.mrf.mxu0
        %v7270 = vadd.f32 0.0, %v7269
        %v7271 = vpop.f32.mrf.mxu0
        %v7272 = vadd.f32 0.0, %v7271
        %7273 = vmatmul.bf16.gmra.mxu0 %v7163
        %v7274 = vpop.f32.mrf.mxu0
        %v7275 = vadd.f32 0.0, %v7274
        %v7276 = vpop.f32.mrf.mxu0
        %v7277 = vadd.f32 0.0, %v7276
        %7278 = vmatmul.bf16.gmra.mxu0 %v7166
        %v7279 = vpop.f32.mrf.mxu0
        %v7280 = vadd.f32 0.0, %v7279
        %v7281 = vpop.f32.mrf.mxu0
        %v7282 = vadd.f32 0.0, %v7281
        %7283 = vmatmul.bf16.gmra.mxu0 %v7169
        %v7284 = vpop.f32.mrf.mxu0
        %v7285 = vadd.f32 0.0, %v7284
        %v7286 = vpop.f32.mrf.mxu0
        %v7287 = vadd.f32 0.0, %v7286
        %7288 = vmatmul.bf16.gmra.mxu0 %v7172
        %v7289 = vpop.f32.mrf.mxu0
        %v7290 = vadd.f32 0.0, %v7289
        %v7291 = vpop.f32.mrf.mxu0
        %v7292 = vadd.f32 0.0, %v7291
        %7293 = vmatmul.bf16.gmra.mxu0 %v7175
        %v7294 = vpop.f32.mrf.mxu0
        %v7295 = vadd.f32 0.0, %v7294
        %v7296 = vpop.f32.mrf.mxu0
        %v7297 = vadd.f32 0.0, %v7296
        %7298 = vdwg.mxu0
        %v7299 = vsel %vm7041, %v7211, -inf
        %v7300 = vsel %vm7042, %v7260, -inf
        %v7301 = vsel %vm7043, %v7213, -inf
        %v7302 = vsel %vm7044, %v7262, -inf
        %v7303 = vsel %vm7045, %v7216, -inf
        %v7304 = vsel %vm7046, %v7265, -inf
        %v7305 = vsel %vm7047, %v7218, -inf
        %v7306 = vsel %vm7048, %v7267, -inf
        %v7307 = vsel %vm7049, %v7221, -inf
        %v7308 = vsel %vm7050, %v7270, -inf
        %v7309 = vsel %vm7051, %v7223, -inf
        %v7310 = vsel %vm7052, %v7272, -inf
        %v7311 = vsel %vm7053, %v7226, -inf
        %v7312 = vsel %vm7054, %v7275, -inf
        %v7313 = vsel %vm7055, %v7228, -inf
        %v7314 = vsel %vm7056, %v7277, -inf
        %v7315 = vsel %vm7057, %v7231, -inf
        %v7316 = vsel %vm7058, %v7280, -inf
        %v7317 = vsel %vm7059, %v7233, -inf
        %v7318 = vsel %vm7060, %v7282, -inf
        %v7319 = vsel %vm7061, %v7236, -inf
        %v7320 = vsel %vm7062, %v7285, -inf
        %v7321 = vsel %vm7063, %v7238, -inf
        %v7322 = vsel %vm7064, %v7287, -inf
        %v7323 = vsel %vm7065, %v7241, -inf
        %v7324 = vsel %vm7066, %v7290, -inf
        %v7325 = vsel %vm7067, %v7243, -inf
        %v7326 = vsel %vm7068, %v7292, -inf
        %v7327 = vsel %vm7069, %v7246, -inf
        %v7328 = vsel %vm7070, %v7295, -inf
        %v7329 = vsel %vm7071, %v7248, -inf
        %v7330 = vsel %vm7072, %v7297, -inf
        %v7331 = vmax.f32 %v7299, %v7300
        %7332 = vmax.xlane.f32.xlu0 %v7331
        %v7333 = vpop.xlane.xlu0 %7332
        %v7334 = vmax.f32 %v7301, %v7302
        %7335 = vmax.xlane.f32.xlu0 %v7334
        %v7336 = vpop.xlane.xlu0 %7335
        %v7337 = vmax.f32 %v7303, %v7304
        %7338 = vmax.xlane.f32.xlu0 %v7337
        %v7339 = vpop.xlane.xlu0 %7338
        %v7340 = vmax.f32 %v7305, %v7306
        %7341 = vmax.xlane.f32.xlu0 %v7340
        %v7342 = vpop.xlane.xlu0 %7341
        %v7343 = vmax.f32 %v7307, %v7308
        %7344 = vmax.xlane.f32.xlu0 %v7343
        %v7345 = vpop.xlane.xlu0 %7344
        %v7346 = vmax.f32 %v7309, %v7310
        %7347 = vmax.xlane.f32.xlu0 %v7346
        %v7348 = vpop.xlane.xlu0 %7347
        %v7349 = vmax.f32 %v7311, %v7312
        %7350 = vmax.xlane.f32.xlu0 %v7349
        %v7351 = vpop.xlane.xlu0 %7350
        %v7352 = vmax.f32 %v7313, %v7314
        %7353 = vmax.xlane.f32.xlu0 %v7352
        %v7354 = vpop.xlane.xlu0 %7353
        %v7355 = vmax.f32 %v7315, %v7316
        %7356 = vmax.xlane.f32.xlu0 %v7355
        %v7357 = vpop.xlane.xlu0 %7356
        %v7358 = vmax.f32 %v7317, %v7318
        %7359 = vmax.xlane.f32.xlu0 %v7358
        %v7360 = vpop.xlane.xlu0 %7359
        %v7361 = vmax.f32 %v7319, %v7320
        %7362 = vmax.xlane.f32.xlu0 %v7361
        %v7363 = vpop.xlane.xlu0 %7362
        %v7364 = vmax.f32 %v7321, %v7322
        %7365 = vmax.xlane.f32.xlu0 %v7364
        %v7366 = vpop.xlane.xlu0 %7365
        %v7367 = vmax.f32 %v7323, %v7324
        %7368 = vmax.xlane.f32.xlu0 %v7367
        %v7369 = vpop.xlane.xlu0 %7368
        %v7370 = vmax.f32 %v7325, %v7326
        %7371 = vmax.xlane.f32.xlu0 %v7370
        %v7372 = vpop.xlane.xlu0 %7371
        %v7373 = vmax.f32 %v7327, %v7328
        %7374 = vmax.xlane.f32.xlu0 %v7373
        %v7375 = vpop.xlane.xlu0 %7374
        %v7376 = vmax.f32 %v7329, %v7330
        %7377 = vmax.xlane.f32.xlu0 %v7376
        %v7378 = vpop.xlane.xlu0 %7377
        %v7379 = vsub.f32 %v7299, %v7333
        %v7380 = vsub.f32 %v7300, %v7333
        %v7381 = vsub.f32 %v7301, %v7336
        %v7382 = vsub.f32 %v7302, %v7336
        %v7383 = vsub.f32 %v7303, %v7339
        %v7384 = vsub.f32 %v7304, %v7339
        %v7385 = vsub.f32 %v7305, %v7342
        %v7386 = vsub.f32 %v7306, %v7342
        %v7387 = vsub.f32 %v7307, %v7345
        %v7388 = vsub.f32 %v7308, %v7345
        %v7389 = vsub.f32 %v7309, %v7348
        %v7390 = vsub.f32 %v7310, %v7348
        %v7391 = vsub.f32 %v7311, %v7351
        %v7392 = vsub.f32 %v7312, %v7351
        %v7393 = vsub.f32 %v7313, %v7354
        %v7394 = vsub.f32 %v7314, %v7354
        %v7395 = vsub.f32 %v7315, %v7357
        %v7396 = vsub.f32 %v7316, %v7357
        %v7397 = vsub.f32 %v7317, %v7360
        %v7398 = vsub.f32 %v7318, %v7360
        %v7399 = vsub.f32 %v7319, %v7363
        %v7400 = vsub.f32 %v7320, %v7363
        %v7401 = vsub.f32 %v7321, %v7366
        %v7402 = vsub.f32 %v7322, %v7366
        %v7403 = vsub.f32 %v7323, %v7369
        %v7404 = vsub.f32 %v7324, %v7369
        %v7405 = vsub.f32 %v7325, %v7372
        %v7406 = vsub.f32 %v7326, %v7372
        %v7407 = vsub.f32 %v7327, %v7375
        %v7408 = vsub.f32 %v7328, %v7375
        %v7409 = vsub.f32 %v7329, %v7378
        %v7410 = vsub.f32 %v7330, %v7378
        %v7411 = vmul.f32 %v7379, 1.442695
        %v7412 = vpow.pop %v7411
        %v7413 = vmul.f32 %v7380, 1.442695
        %v7414 = vpow.pop %v7413
        %v7415 = vmul.f32 %v7381, 1.442695
        %v7416 = vpow.pop %v7415
        %v7417 = vmul.f32 %v7382, 1.442695
        %v7418 = vpow.pop %v7417
        %v7419 = vmul.f32 %v7383, 1.442695
        %v7420 = vpow.pop %v7419
        %v7421 = vmul.f32 %v7384, 1.442695
        %v7422 = vpow.pop %v7421
        %v7423 = vmul.f32 %v7385, 1.442695
        %v7424 = vpow.pop %v7423
        %v7425 = vmul.f32 %v7386, 1.442695
        %v7426 = vpow.pop %v7425
        %v7427 = vmul.f32 %v7387, 1.442695
        %v7428 = vpow.pop %v7427
        %v7429 = vmul.f32 %v7388, 1.442695
        %v7430 = vpow.pop %v7429
        %v7431 = vmul.f32 %v7389, 1.442695
        %v7432 = vpow.pop %v7431
        %v7433 = vmul.f32 %v7390, 1.442695
        %v7434 = vpow.pop %v7433
        %v7435 = vmul.f32 %v7391, 1.442695
        %v7436 = vpow.pop %v7435
        %v7437 = vmul.f32 %v7392, 1.442695
        %v7438 = vpow.pop %v7437
        %v7439 = vmul.f32 %v7393, 1.442695
        %v7440 = vpow.pop %v7439
        %v7441 = vmul.f32 %v7394, 1.442695
        %v7442 = vpow.pop %v7441
        %v7443 = vmul.f32 %v7395, 1.442695
        %v7444 = vpow.pop %v7443
        %v7445 = vmul.f32 %v7396, 1.442695
        %v7446 = vpow.pop %v7445
        %v7447 = vmul.f32 %v7397, 1.442695
        %v7448 = vpow.pop %v7447
        %v7449 = vmul.f32 %v7398, 1.442695
        %v7450 = vpow.pop %v7449
        %v7451 = vmul.f32 %v7399, 1.442695
        %v7452 = vpow.pop %v7451
        %v7453 = vmul.f32 %v7400, 1.442695
        %v7454 = vpow.pop %v7453
        %v7455 = vmul.f32 %v7401, 1.442695
        %v7456 = vpow.pop %v7455
        %v7457 = vmul.f32 %v7402, 1.442695
        %v7458 = vpow.pop %v7457
        %v7459 = vmul.f32 %v7403, 1.442695
        %v7460 = vpow.pop %v7459
        %v7461 = vmul.f32 %v7404, 1.442695
        %v7462 = vpow.pop %v7461
        %v7463 = vmul.f32 %v7405, 1.442695
        %v7464 = vpow.pop %v7463
        %v7465 = vmul.f32 %v7406, 1.442695
        %v7466 = vpow.pop %v7465
        %v7467 = vmul.f32 %v7407, 1.442695
        %v7468 = vpow.pop %v7467
        %v7469 = vmul.f32 %v7408, 1.442695
        %v7470 = vpow.pop %v7469
        %v7471 = vmul.f32 %v7409, 1.442695
        %v7472 = vpow.pop %v7471
        %v7473 = vmul.f32 %v7410, 1.442695
        %v7474 = vpow.pop %v7473
        %v7475 = vadd.f32 %v7412, %v7414
        %7476 = vadd.xlane.f32.xlu0 %v7475
        %v7477 = vpop.xlane.xlu0 %7476
        %v7478 = vadd.f32 %v7416, %v7418
        %7479 = vadd.xlane.f32.xlu0 %v7478
        %v7480 = vpop.xlane.xlu0 %7479
        %v7481 = vadd.f32 %v7420, %v7422
        %7482 = vadd.xlane.f32.xlu0 %v7481
        %v7483 = vpop.xlane.xlu0 %7482
        %v7484 = vadd.f32 %v7424, %v7426
        %7485 = vadd.xlane.f32.xlu0 %v7484
        %v7486 = vpop.xlane.xlu0 %7485
        %v7487 = vadd.f32 %v7428, %v7430
        %7488 = vadd.xlane.f32.xlu0 %v7487
        %v7489 = vpop.xlane.xlu0 %7488
        %v7490 = vadd.f32 %v7432, %v7434
        %7491 = vadd.xlane.f32.xlu0 %v7490
        %v7492 = vpop.xlane.xlu0 %7491
        %v7493 = vadd.f32 %v7436, %v7438
        %7494 = vadd.xlane.f32.xlu0 %v7493
        %v7495 = vpop.xlane.xlu0 %7494
        %v7496 = vadd.f32 %v7440, %v7442
        %7497 = vadd.xlane.f32.xlu0 %v7496
        %v7498 = vpop.xlane.xlu0 %7497
        %v7499 = vadd.f32 %v7444, %v7446
        %7500 = vadd.xlane.f32.xlu0 %v7499
        %v7501 = vpop.xlane.xlu0 %7500
        %v7502 = vadd.f32 %v7448, %v7450
        %7503 = vadd.xlane.f32.xlu0 %v7502
        %v7504 = vpop.xlane.xlu0 %7503
        %v7505 = vadd.f32 %v7452, %v7454
        %7506 = vadd.xlane.f32.xlu0 %v7505
        %v7507 = vpop.xlane.xlu0 %7506
        %v7508 = vadd.f32 %v7456, %v7458
        %7509 = vadd.xlane.f32.xlu0 %v7508
        %v7510 = vpop.xlane.xlu0 %7509
        %v7511 = vadd.f32 %v7460, %v7462
        %7512 = vadd.xlane.f32.xlu0 %v7511
        %v7513 = vpop.xlane.xlu0 %7512
        %v7514 = vadd.f32 %v7464, %v7466
        %7515 = vadd.xlane.f32.xlu0 %v7514
        %v7516 = vpop.xlane.xlu0 %7515
        %v7517 = vadd.f32 %v7468, %v7470
        %7518 = vadd.xlane.f32.xlu0 %v7517
        %v7519 = vpop.xlane.xlu0 %7518
        %v7520 = vadd.f32 %v7472, %v7474
        %7521 = vadd.xlane.f32.xlu0 %v7520
        %v7522 = vpop.xlane.xlu0 %7521
        %v7523 = vpack.c.bf16 %v7416, %v7412
        %v7524 = vpack.c.bf16 %v7418, %v7414
        %v7525 = vpack.c.bf16 %v7424, %v7420
        %v7526 = vpack.c.bf16 %v7426, %v7422
        %v7527 = vpack.c.bf16 %v7432, %v7428
        %v7528 = vpack.c.bf16 %v7434, %v7430
        %v7529 = vpack.c.bf16 %v7440, %v7436
        %v7530 = vpack.c.bf16 %v7442, %v7438
        %v7531 = vpack.c.bf16 %v7448, %v7444
        %v7532 = vpack.c.bf16 %v7450, %v7446
        %v7533 = vpack.c.bf16 %v7456, %v7452
        %v7534 = vpack.c.bf16 %v7458, %v7454
        %v7535 = vpack.c.bf16 %v7464, %v7460
        %v7536 = vpack.c.bf16 %v7466, %v7462
        %v7537 = vpack.c.bf16 %v7472, %v7468
        %v7538 = vpack.c.bf16 %v7474, %v7470
        %v7555 = vunpack.c.l.b16 %v4232
        %v7556 = vunpack.c.l.b16 %v4234
        %v7557 = vunpack.c.l.b16 %v4236
        %v7558 = vunpack.c.l.b16 %v4238
        %v7559 = vunpack.c.l.b16 %v4240
        %v7560 = vunpack.c.l.b16 %v4242
        %v7561 = vunpack.c.l.b16 %v4244
        %v7562 = vunpack.c.l.b16 %v4246
        %v7563 = vunpack.c.l.b16 %v4248
        %v7564 = vunpack.c.l.b16 %v4250
        %v7565 = vunpack.c.l.b16 %v4252
        %v7566 = vunpack.c.l.b16 %v4254
        %v7567 = vunpack.c.l.b16 %v4256
        %v7568 = vunpack.c.l.b16 %v4258
        %v7569 = vunpack.c.l.b16 %v4260
        %v7570 = vunpack.c.l.b16 %v4262
        %v7571 = vpack.c.b16 %v7556, %v7555
        %v7572 = vpack.c.b16 %v7558, %v7557
        %v7573 = vpack.c.b16 %v7560, %v7559
        %v7574 = vpack.c.b16 %v7562, %v7561
        %v7575 = vpack.c.b16 %v7564, %v7563
        %v7576 = vpack.c.b16 %v7566, %v7565
        %v7577 = vpack.c.b16 %v7568, %v7567
        %v7578 = vpack.c.b16 %v7570, %v7569
        %7587 = vmatpush.bf16.msra.mxu0 %v4652
        %7588 = vmatpush.bf16.msra.mxu0 %v4651
        %7589 = vmatpush.bf16.msra.mxu0 %v4650
        %7590 = vmatpush.bf16.msra.mxu0 %v4649
        %7591 = vmatpush.bf16.msra.mxu0 %v4648
        %7592 = vmatpush.bf16.msra.mxu0 %v4647
        %7593 = vmatpush.bf16.msra.mxu0 %v4646
        %7594 = vmatpush.bf16.msra.mxu0 %v4645
        %7595 = vmatmul.bf16.gmra.mxu0 %v7523
        %v7596 = vpop.f32.mrf.mxu0
        %v7597 = vadd.f32 0.0, %v7596
        %v7598 = vpop.f32.mrf.mxu0
        %v7599 = vadd.f32 0.0, %v7598
        %7600 = vmatmul.bf16.gmra.mxu0 %v7525
        %v7601 = vpop.f32.mrf.mxu0
        %v7602 = vadd.f32 0.0, %v7601
        %v7603 = vpop.f32.mrf.mxu0
        %v7604 = vadd.f32 0.0, %v7603
        %7605 = vmatmul.bf16.gmra.mxu0 %v7527
        %v7606 = vpop.f32.mrf.mxu0
        %v7607 = vadd.f32 0.0, %v7606
        %v7608 = vpop.f32.mrf.mxu0
        %v7609 = vadd.f32 0.0, %v7608
        %7610 = vmatmul.bf16.gmra.mxu0 %v7529
        %v7611 = vpop.f32.mrf.mxu0
        %v7612 = vadd.f32 0.0, %v7611
        %v7613 = vpop.f32.mrf.mxu0
        %v7614 = vadd.f32 0.0, %v7613
        %7615 = vmatmul.bf16.gmra.mxu0 %v7531
        %v7616 = vpop.f32.mrf.mxu0
        %v7617 = vadd.f32 0.0, %v7616
        %v7618 = vpop.f32.mrf.mxu0
        %v7619 = vadd.f32 0.0, %v7618
        %7620 = vmatmul.bf16.gmra.mxu0 %v7533
        %v7621 = vpop.f32.mrf.mxu0
        %v7622 = vadd.f32 0.0, %v7621
        %v7623 = vpop.f32.mrf.mxu0
        %v7624 = vadd.f32 0.0, %v7623
        %7625 = vmatmul.bf16.gmra.mxu0 %v7535
        %v7626 = vpop.f32.mrf.mxu0
        %v7627 = vadd.f32 0.0, %v7626
        %v7628 = vpop.f32.mrf.mxu0
        %v7629 = vadd.f32 0.0, %v7628
        %7630 = vmatmul.bf16.gmra.mxu0 %v7537
        %v7631 = vpop.f32.mrf.mxu0
        %v7632 = vadd.f32 0.0, %v7631
        %v7633 = vpop.f32.mrf.mxu0
        %v7634 = vadd.f32 0.0, %v7633
        %7635 = vdwg.mxu0
        %7636 = vmatpush.bf16.msra.mxu0 %v7578
        %7637 = vmatpush.bf16.msra.mxu0 %v7577
        %7638 = vmatpush.bf16.msra.mxu0 %v7576
        %7639 = vmatpush.bf16.msra.mxu0 %v7575
        %7640 = vmatpush.bf16.msra.mxu0 %v7574
        %7641 = vmatpush.bf16.msra.mxu0 %v7573
        %7642 = vmatpush.bf16.msra.mxu0 %v7572
        %7643 = vmatpush.bf16.msra.mxu0 %v7571
        %7644 = vmatmul.bf16.gmra.mxu0 %v7524
        %v7645 = vpop.f32.mrf.mxu0
        %v7646 = vadd.f32 %v7597, %v7645
        %v7647 = vpop.f32.mrf.mxu0
        %v7648 = vadd.f32 %v7599, %v7647
        %7649 = vmatmul.bf16.gmra.mxu0 %v7526
        %v7650 = vpop.f32.mrf.mxu0
        %v7651 = vadd.f32 %v7602, %v7650
        %v7652 = vpop.f32.mrf.mxu0
        %v7653 = vadd.f32 %v7604, %v7652
        %7654 = vmatmul.bf16.gmra.mxu0 %v7528
        %v7655 = vpop.f32.mrf.mxu0
        %v7656 = vadd.f32 %v7607, %v7655
        %v7657 = vpop.f32.mrf.mxu0
        %v7658 = vadd.f32 %v7609, %v7657
        %7659 = vmatmul.bf16.gmra.mxu0 %v7530
        %v7660 = vpop.f32.mrf.mxu0
        %v7661 = vadd.f32 %v7612, %v7660
        %v7662 = vpop.f32.mrf.mxu0
        %v7663 = vadd.f32 %v7614, %v7662
        %7664 = vmatmul.bf16.gmra.mxu0 %v7532
        %v7665 = vpop.f32.mrf.mxu0
        %v7666 = vadd.f32 %v7617, %v7665
        %v7667 = vpop.f32.mrf.mxu0
        %v7668 = vadd.f32 %v7619, %v7667
        %7669 = vmatmul.bf16.gmra.mxu0 %v7534
        %v7670 = vpop.f32.mrf.mxu0
        %v7671 = vadd.f32 %v7622, %v7670
        %v7672 = vpop.f32.mrf.mxu0
        %v7673 = vadd.f32 %v7624, %v7672
        %7674 = vmatmul.bf16.gmra.mxu0 %v7536
        %v7675 = vpop.f32.mrf.mxu0
        %v7676 = vadd.f32 %v7627, %v7675
        %v7677 = vpop.f32.mrf.mxu0
        %v7678 = vadd.f32 %v7629, %v7677
        %7679 = vmatmul.bf16.gmra.mxu0 %v7538
        %v7680 = vpop.f32.mrf.mxu0
        %v7681 = vadd.f32 %v7632, %v7680
        %v7682 = vpop.f32.mrf.mxu0
        %v7683 = vadd.f32 %v7634, %v7682
        %7684 = vdwg.mxu0
        %v7685 = vrcp.pop %v7477
        %v7686 = vrcp.pop %v7480
        %v7687 = vrcp.pop %v7483
        %v7688 = vrcp.pop %v7486
        %v7689 = vrcp.pop %v7489
        %v7690 = vrcp.pop %v7492
        %v7691 = vrcp.pop %v7495
        %v7692 = vrcp.pop %v7498
        %v7693 = vrcp.pop %v7501
        %v7694 = vrcp.pop %v7504
        %v7695 = vrcp.pop %v7507
        %v7696 = vrcp.pop %v7510
        %v7697 = vrcp.pop %v7513
        %v7698 = vrcp.pop %v7516
        %v7699 = vrcp.pop %v7519
        %v7700 = vrcp.pop %v7522
        %v7701 = vmul.f32 %v7646, %v7685
        %v7702 = vmul.f32 %v7648, %v7686
        %v7703 = vmul.f32 %v7651, %v7687
        %v7704 = vmul.f32 %v7653, %v7688
        %v7705 = vmul.f32 %v7656, %v7689
        %v7706 = vmul.f32 %v7658, %v7690
        %v7707 = vmul.f32 %v7661, %v7691
        %v7708 = vmul.f32 %v7663, %v7692
        %v7709 = vmul.f32 %v7666, %v7693
        %v7710 = vmul.f32 %v7668, %v7694
        %v7711 = vmul.f32 %v7671, %v7695
        %v7712 = vmul.f32 %v7673, %v7696
        %v7713 = vmul.f32 %v7676, %v7697
        %v7714 = vmul.f32 %v7678, %v7698
        %v7715 = vmul.f32 %v7681, %v7699
        %v7716 = vmul.f32 %v7683, %v7700
        %7717 = vrot.lane.b32.xlu0 %v7105, 64
        %v7718 = vpop.permute.xlu0 %7717
        %7719 = vrot.lane.b32.xlu0 %v7106, 64
        %v7720 = vpop.permute.xlu0 %7719
        %7721 = vrot.lane.b32.xlu0 %v7107, 64
        %v7722 = vpop.permute.xlu0 %7721
        %7723 = vrot.lane.b32.xlu0 %v7108, 64
        %v7724 = vpop.permute.xlu0 %7723
        %7725 = vrot.lane.b32.xlu0 %v7109, 64
        %v7726 = vpop.permute.xlu0 %7725
        %7727 = vrot.lane.b32.xlu0 %v7110, 64
        %v7728 = vpop.permute.xlu0 %7727
        %7729 = vrot.lane.b32.xlu0 %v7111, 64
        %v7730 = vpop.permute.xlu0 %7729
        %7731 = vrot.lane.b32.xlu0 %v7112, 64
        %v7732 = vpop.permute.xlu0 %7731
        %7733 = vrot.lane.b32.xlu0 %v7145, 64
        %v7734 = vpop.permute.xlu0 %7733
        %7735 = vrot.lane.b32.xlu0 %v7146, 64
        %v7736 = vpop.permute.xlu0 %7735
        %7737 = vrot.lane.b32.xlu0 %v7147, 64
        %v7738 = vpop.permute.xlu0 %7737
        %7739 = vrot.lane.b32.xlu0 %v7148, 64
        %v7740 = vpop.permute.xlu0 %7739
        %7741 = vrot.lane.b32.xlu0 %v7149, 64
        %v7742 = vpop.permute.xlu0 %7741
        %7743 = vrot.lane.b32.xlu0 %v7150, 64
        %v7744 = vpop.permute.xlu0 %7743
        %7745 = vrot.lane.b32.xlu0 %v7151, 64
        %v7746 = vpop.permute.xlu0 %7745
        %7747 = vrot.lane.b32.xlu0 %v7152, 64
        %v7748 = vpop.permute.xlu0 %7747
        %v7750 = vsel %vm4379, %v7718, 0
        %v7753 = vsel %vm4379, %v7720, 0
        %v7756 = vsel %vm4379, %v7722, 0
        %v7759 = vsel %vm4379, %v7724, 0
        %v7762 = vsel %vm4379, %v7726, 0
        %v7765 = vsel %vm4379, %v7728, 0
        %v7768 = vsel %vm4379, %v7730, 0
        %v7771 = vsel %vm4379, %v7732, 0
        %v7774 = vsel %vm4379, %v7734, 0
        %v7777 = vsel %vm4379, %v7736, 0
        %v7780 = vsel %vm4379, %v7738, 0
        %v7783 = vsel %vm4379, %v7740, 0
        %v7786 = vsel %vm4379, %v7742, 0
        %v7789 = vsel %vm4379, %v7744, 0
        %v7792 = vsel %vm4379, %v7746, 0
        %v7795 = vsel %vm4379, %v7748, 0
        %7797 = vmatpush.bf16.xpose.msra.mxu0 %v4820
        %7798 = vmatpush.bf16.xpose.msra.mxu0 %v4817
        %7799 = vmatpush.bf16.xpose.msra.mxu0 %v4814
        %7800 = vmatpush.bf16.xpose.msra.mxu0 %v4811
        %7801 = vmatpush.bf16.xpose.msra.mxu0 %v4808
        %7802 = vmatpush.bf16.xpose.msra.mxu0 %v4805
        %7803 = vmatpush.bf16.xpose.msra.mxu0 %v4802
        %7804 = vmatpush.bf16.xpose.msra.mxu0 %v4799
        %7805 = vmatmul.bf16.gmra.mxu0 %v7750
        %v7806 = vpop.f32.mrf.mxu0
        %v7807 = vadd.f32 0.0, %v7806
        %v7808 = vpop.f32.mrf.mxu0
        %v7809 = vadd.f32 0.0, %v7808
        %7810 = vmatmul.bf16.gmra.mxu0 %v7753
        %v7811 = vpop.f32.mrf.mxu0
        %v7812 = vadd.f32 0.0, %v7811
        %v7813 = vpop.f32.mrf.mxu0
        %v7814 = vadd.f32 0.0, %v7813
        %7815 = vmatmul.bf16.gmra.mxu0 %v7756
        %v7816 = vpop.f32.mrf.mxu0
        %v7817 = vadd.f32 0.0, %v7816
        %v7818 = vpop.f32.mrf.mxu0
        %v7819 = vadd.f32 0.0, %v7818
        %7820 = vmatmul.bf16.gmra.mxu0 %v7759
        %v7821 = vpop.f32.mrf.mxu0
        %v7822 = vadd.f32 0.0, %v7821
        %v7823 = vpop.f32.mrf.mxu0
        %v7824 = vadd.f32 0.0, %v7823
        %7825 = vmatmul.bf16.gmra.mxu0 %v7762
        %v7826 = vpop.f32.mrf.mxu0
        %v7827 = vadd.f32 0.0, %v7826
        %v7828 = vpop.f32.mrf.mxu0
        %v7829 = vadd.f32 0.0, %v7828
        %7830 = vmatmul.bf16.gmra.mxu0 %v7765
        %v7831 = vpop.f32.mrf.mxu0
        %v7832 = vadd.f32 0.0, %v7831
        %v7833 = vpop.f32.mrf.mxu0
        %v7834 = vadd.f32 0.0, %v7833
        %7835 = vmatmul.bf16.gmra.mxu0 %v7768
        %v7836 = vpop.f32.mrf.mxu0
        %v7837 = vadd.f32 0.0, %v7836
        %v7838 = vpop.f32.mrf.mxu0
        %v7839 = vadd.f32 0.0, %v7838
        %7840 = vmatmul.bf16.gmra.mxu0 %v7771
        %v7841 = vpop.f32.mrf.mxu0
        %v7842 = vadd.f32 0.0, %v7841
        %v7843 = vpop.f32.mrf.mxu0
        %v7844 = vadd.f32 0.0, %v7843
        %7845 = vdwg.mxu0
        %7846 = vmatpush.bf16.xpose.msra.mxu0 %v7795
        %7847 = vmatpush.bf16.xpose.msra.mxu0 %v7792
        %7848 = vmatpush.bf16.xpose.msra.mxu0 %v7789
        %7849 = vmatpush.bf16.xpose.msra.mxu0 %v7786
        %7850 = vmatpush.bf16.xpose.msra.mxu0 %v7783
        %7851 = vmatpush.bf16.xpose.msra.mxu0 %v7780
        %7852 = vmatpush.bf16.xpose.msra.mxu0 %v7777
        %7853 = vmatpush.bf16.xpose.msra.mxu0 %v7774
        %7854 = vmatmul.bf16.gmra.mxu0 %v7750
        %v7855 = vpop.f32.mrf.mxu0
        %v7856 = vadd.f32 0.0, %v7855
        %v7857 = vpop.f32.mrf.mxu0
        %v7858 = vadd.f32 0.0, %v7857
        %7859 = vmatmul.bf16.gmra.mxu0 %v7753
        %v7860 = vpop.f32.mrf.mxu0
        %v7861 = vadd.f32 0.0, %v7860
        %v7862 = vpop.f32.mrf.mxu0
        %v7863 = vadd.f32 0.0, %v7862
        %7864 = vmatmul.bf16.gmra.mxu0 %v7756
        %v7865 = vpop.f32.mrf.mxu0
        %v7866 = vadd.f32 0.0, %v7865
        %v7867 = vpop.f32.mrf.mxu0
        %v7868 = vadd.f32 0.0, %v7867
        %7869 = vmatmul.bf16.gmra.mxu0 %v7759
        %v7870 = vpop.f32.mrf.mxu0
        %v7871 = vadd.f32 0.0, %v7870
        %v7872 = vpop.f32.mrf.mxu0
        %v7873 = vadd.f32 0.0, %v7872
        %7874 = vmatmul.bf16.gmra.mxu0 %v7762
        %v7875 = vpop.f32.mrf.mxu0
        %v7876 = vadd.f32 0.0, %v7875
        %v7877 = vpop.f32.mrf.mxu0
        %v7878 = vadd.f32 0.0, %v7877
        %7879 = vmatmul.bf16.gmra.mxu0 %v7765
        %v7880 = vpop.f32.mrf.mxu0
        %v7881 = vadd.f32 0.0, %v7880
        %v7882 = vpop.f32.mrf.mxu0
        %v7883 = vadd.f32 0.0, %v7882
        %7884 = vmatmul.bf16.gmra.mxu0 %v7768
        %v7885 = vpop.f32.mrf.mxu0
        %v7886 = vadd.f32 0.0, %v7885
        %v7887 = vpop.f32.mrf.mxu0
        %v7888 = vadd.f32 0.0, %v7887
        %7889 = vmatmul.bf16.gmra.mxu0 %v7771
        %v7890 = vpop.f32.mrf.mxu0
        %v7891 = vadd.f32 0.0, %v7890
        %v7892 = vpop.f32.mrf.mxu0
        %v7893 = vadd.f32 0.0, %v7892
        %7894 = vdwg.mxu0
        %v7895 = vsel %vm7041, %v7807, -inf
        %v7896 = vsel %vm7042, %v7856, -inf
        %v7897 = vsel %vm7043, %v7809, -inf
        %v7898 = vsel %vm7044, %v7858, -inf
        %v7899 = vsel %vm7045, %v7812, -inf
        %v7900 = vsel %vm7046, %v7861, -inf
        %v7901 = vsel %vm7047, %v7814, -inf
        %v7902 = vsel %vm7048, %v7863, -inf
        %v7903 = vsel %vm7049, %v7817, -inf
        %v7904 = vsel %vm7050, %v7866, -inf
        %v7905 = vsel %vm7051, %v7819, -inf
        %v7906 = vsel %vm7052, %v7868, -inf
        %v7907 = vsel %vm7053, %v7822, -inf
        %v7908 = vsel %vm7054, %v7871, -inf
        %v7909 = vsel %vm7055, %v7824, -inf
        %v7910 = vsel %vm7056, %v7873, -inf
        %v7911 = vsel %vm7057, %v7827, -inf
        %v7912 = vsel %vm7058, %v7876, -inf
        %v7913 = vsel %vm7059, %v7829, -inf
        %v7914 = vsel %vm7060, %v7878, -inf
        %v7915 = vsel %vm7061, %v7832, -inf
        %v7916 = vsel %vm7062, %v7881, -inf
        %v7917 = vsel %vm7063, %v7834, -inf
        %v7918 = vsel %vm7064, %v7883, -inf
        %v7919 = vsel %vm7065, %v7837, -inf
        %v7920 = vsel %vm7066, %v7886, -inf
        %v7921 = vsel %vm7067, %v7839, -inf
        %v7922 = vsel %vm7068, %v7888, -inf
        %v7923 = vsel %vm7069, %v7842, -inf
        %v7924 = vsel %vm7070, %v7891, -inf
        %v7925 = vsel %vm7071, %v7844, -inf
        %v7926 = vsel %vm7072, %v7893, -inf
        %v7927 = vmax.f32 %v7895, %v7896
        %7928 = vmax.xlane.f32.xlu0 %v7927
        %v7929 = vpop.xlane.xlu0 %7928
        %v7930 = vmax.f32 %v7897, %v7898
        %7931 = vmax.xlane.f32.xlu0 %v7930
        %v7932 = vpop.xlane.xlu0 %7931
        %v7933 = vmax.f32 %v7899, %v7900
        %7934 = vmax.xlane.f32.xlu0 %v7933
        %v7935 = vpop.xlane.xlu0 %7934
        %v7936 = vmax.f32 %v7901, %v7902
        %7937 = vmax.xlane.f32.xlu0 %v7936
        %v7938 = vpop.xlane.xlu0 %7937
        %v7939 = vmax.f32 %v7903, %v7904
        %7940 = vmax.xlane.f32.xlu0 %v7939
        %v7941 = vpop.xlane.xlu0 %7940
        %v7942 = vmax.f32 %v7905, %v7906
        %7943 = vmax.xlane.f32.xlu0 %v7942
        %v7944 = vpop.xlane.xlu0 %7943
        %v7945 = vmax.f32 %v7907, %v7908
        %7946 = vmax.xlane.f32.xlu0 %v7945
        %v7947 = vpop.xlane.xlu0 %7946
        %v7948 = vmax.f32 %v7909, %v7910
        %7949 = vmax.xlane.f32.xlu0 %v7948
        %v7950 = vpop.xlane.xlu0 %7949
        %v7951 = vmax.f32 %v7911, %v7912
        %7952 = vmax.xlane.f32.xlu0 %v7951
        %v7953 = vpop.xlane.xlu0 %7952
        %v7954 = vmax.f32 %v7913, %v7914
        %7955 = vmax.xlane.f32.xlu0 %v7954
        %v7956 = vpop.xlane.xlu0 %7955
        %v7957 = vmax.f32 %v7915, %v7916
        %7958 = vmax.xlane.f32.xlu0 %v7957
        %v7959 = vpop.xlane.xlu0 %7958
        %v7960 = vmax.f32 %v7917, %v7918
        %7961 = vmax.xlane.f32.xlu0 %v7960
        %v7962 = vpop.xlane.xlu0 %7961
        %v7963 = vmax.f32 %v7919, %v7920
        %7964 = vmax.xlane.f32.xlu0 %v7963
        %v7965 = vpop.xlane.xlu0 %7964
        %v7966 = vmax.f32 %v7921, %v7922
        %7967 = vmax.xlane.f32.xlu0 %v7966
        %v7968 = vpop.xlane.xlu0 %7967
        %v7969 = vmax.f32 %v7923, %v7924
        %7970 = vmax.xlane.f32.xlu0 %v7969
        %v7971 = vpop.xlane.xlu0 %7970
        %v7972 = vmax.f32 %v7925, %v7926
        %7973 = vmax.xlane.f32.xlu0 %v7972
        %v7974 = vpop.xlane.xlu0 %7973
        %v7975 = vsub.f32 %v7895, %v7929
        %v7976 = vsub.f32 %v7896, %v7929
        %v7977 = vsub.f32 %v7897, %v7932
        %v7978 = vsub.f32 %v7898, %v7932
        %v7979 = vsub.f32 %v7899, %v7935
        %v7980 = vsub.f32 %v7900, %v7935
        %v7981 = vsub.f32 %v7901, %v7938
        %v7982 = vsub.f32 %v7902, %v7938
        %v7983 = vsub.f32 %v7903, %v7941
        %v7984 = vsub.f32 %v7904, %v7941
        %v7985 = vsub.f32 %v7905, %v7944
        %v7986 = vsub.f32 %v7906, %v7944
        %v7987 = vsub.f32 %v7907, %v7947
        %v7988 = vsub.f32 %v7908, %v7947
        %v7989 = vsub.f32 %v7909, %v7950
        %v7990 = vsub.f32 %v7910, %v7950
        %v7991 = vsub.f32 %v7911, %v7953
        %v7992 = vsub.f32 %v7912, %v7953
        %v7993 = vsub.f32 %v7913, %v7956
        %v7994 = vsub.f32 %v7914, %v7956
        %v7995 = vsub.f32 %v7915, %v7959
        %v7996 = vsub.f32 %v7916, %v7959
        %v7997 = vsub.f32 %v7917, %v7962
        %v7998 = vsub.f32 %v7918, %v7962
        %v7999 = vsub.f32 %v7919, %v7965
        %v8000 = vsub.f32 %v7920, %v7965
        %v8001 = vsub.f32 %v7921, %v7968
        %v8002 = vsub.f32 %v7922, %v7968
        %v8003 = vsub.f32 %v7923, %v7971
        %v8004 = vsub.f32 %v7924, %v7971
        %v8005 = vsub.f32 %v7925, %v7974
        %v8006 = vsub.f32 %v7926, %v7974
        %v8007 = vmul.f32 %v7975, 1.442695
        %v8008 = vpow.pop %v8007
        %v8009 = vmul.f32 %v7976, 1.442695
        %v8010 = vpow.pop %v8009
        %v8011 = vmul.f32 %v7977, 1.442695
        %v8012 = vpow.pop %v8011
        %v8013 = vmul.f32 %v7978, 1.442695
        %v8014 = vpow.pop %v8013
        %v8015 = vmul.f32 %v7979, 1.442695
        %v8016 = vpow.pop %v8015
        %v8017 = vmul.f32 %v7980, 1.442695
        %v8018 = vpow.pop %v8017
        %v8019 = vmul.f32 %v7981, 1.442695
        %v8020 = vpow.pop %v8019
        %v8021 = vmul.f32 %v7982, 1.442695
        %v8022 = vpow.pop %v8021
        %v8023 = vmul.f32 %v7983, 1.442695
        %v8024 = vpow.pop %v8023
        %v8025 = vmul.f32 %v7984, 1.442695
        %v8026 = vpow.pop %v8025
        %v8027 = vmul.f32 %v7985, 1.442695
        %v8028 = vpow.pop %v8027
        %v8029 = vmul.f32 %v7986, 1.442695
        %v8030 = vpow.pop %v8029
        %v8031 = vmul.f32 %v7987, 1.442695
        %v8032 = vpow.pop %v8031
        %v8033 = vmul.f32 %v7988, 1.442695
        %v8034 = vpow.pop %v8033
        %v8035 = vmul.f32 %v7989, 1.442695
        %v8036 = vpow.pop %v8035
        %v8037 = vmul.f32 %v7990, 1.442695
        %v8038 = vpow.pop %v8037
        %v8039 = vmul.f32 %v7991, 1.442695
        %v8040 = vpow.pop %v8039
        %v8041 = vmul.f32 %v7992, 1.442695
        %v8042 = vpow.pop %v8041
        %v8043 = vmul.f32 %v7993, 1.442695
        %v8044 = vpow.pop %v8043
        %v8045 = vmul.f32 %v7994, 1.442695
        %v8046 = vpow.pop %v8045
        %v8047 = vmul.f32 %v7995, 1.442695
        %v8048 = vpow.pop %v8047
        %v8049 = vmul.f32 %v7996, 1.442695
        %v8050 = vpow.pop %v8049
        %v8051 = vmul.f32 %v7997, 1.442695
        %v8052 = vpow.pop %v8051
        %v8053 = vmul.f32 %v7998, 1.442695
        %v8054 = vpow.pop %v8053
        %v8055 = vmul.f32 %v7999, 1.442695
        %v8056 = vpow.pop %v8055
        %v8057 = vmul.f32 %v8000, 1.442695
        %v8058 = vpow.pop %v8057
        %v8059 = vmul.f32 %v8001, 1.442695
        %v8060 = vpow.pop %v8059
        %v8061 = vmul.f32 %v8002, 1.442695
        %v8062 = vpow.pop %v8061
        %v8063 = vmul.f32 %v8003, 1.442695
        %v8064 = vpow.pop %v8063
        %v8065 = vmul.f32 %v8004, 1.442695
        %v8066 = vpow.pop %v8065
        %v8067 = vmul.f32 %v8005, 1.442695
        %v8068 = vpow.pop %v8067
        %v8069 = vmul.f32 %v8006, 1.442695
        %v8070 = vpow.pop %v8069
        %v8071 = vadd.f32 %v8008, %v8010
        %8072 = vadd.xlane.f32.xlu0 %v8071
        %v8073 = vpop.xlane.xlu0 %8072
        %v8074 = vadd.f32 %v8012, %v8014
        %8075 = vadd.xlane.f32.xlu0 %v8074
        %v8076 = vpop.xlane.xlu0 %8075
        %v8077 = vadd.f32 %v8016, %v8018
        %8078 = vadd.xlane.f32.xlu0 %v8077
        %v8079 = vpop.xlane.xlu0 %8078
        %v8080 = vadd.f32 %v8020, %v8022
        %8081 = vadd.xlane.f32.xlu0 %v8080
        %v8082 = vpop.xlane.xlu0 %8081
        %v8083 = vadd.f32 %v8024, %v8026
        %8084 = vadd.xlane.f32.xlu0 %v8083
        %v8085 = vpop.xlane.xlu0 %8084
        %v8086 = vadd.f32 %v8028, %v8030
        %8087 = vadd.xlane.f32.xlu0 %v8086
        %v8088 = vpop.xlane.xlu0 %8087
        %v8089 = vadd.f32 %v8032, %v8034
        %8090 = vadd.xlane.f32.xlu0 %v8089
        %v8091 = vpop.xlane.xlu0 %8090
        %v8092 = vadd.f32 %v8036, %v8038
        %8093 = vadd.xlane.f32.xlu0 %v8092
        %v8094 = vpop.xlane.xlu0 %8093
        %v8095 = vadd.f32 %v8040, %v8042
        %8096 = vadd.xlane.f32.xlu0 %v8095
        %v8097 = vpop.xlane.xlu0 %8096
        %v8098 = vadd.f32 %v8044, %v8046
        %8099 = vadd.xlane.f32.xlu0 %v8098
        %v8100 = vpop.xlane.xlu0 %8099
        %v8101 = vadd.f32 %v8048, %v8050
        %8102 = vadd.xlane.f32.xlu0 %v8101
        %v8103 = vpop.xlane.xlu0 %8102
        %v8104 = vadd.f32 %v8052, %v8054
        %8105 = vadd.xlane.f32.xlu0 %v8104
        %v8106 = vpop.xlane.xlu0 %8105
        %v8107 = vadd.f32 %v8056, %v8058
        %8108 = vadd.xlane.f32.xlu0 %v8107
        %v8109 = vpop.xlane.xlu0 %8108
        %v8110 = vadd.f32 %v8060, %v8062
        %8111 = vadd.xlane.f32.xlu0 %v8110
        %v8112 = vpop.xlane.xlu0 %8111
        %v8113 = vadd.f32 %v8064, %v8066
        %8114 = vadd.xlane.f32.xlu0 %v8113
        %v8115 = vpop.xlane.xlu0 %8114
        %v8116 = vadd.f32 %v8068, %v8070
        %8117 = vadd.xlane.f32.xlu0 %v8116
        %v8118 = vpop.xlane.xlu0 %8117
        %v8119 = vpack.c.bf16 %v8012, %v8008
        %v8120 = vpack.c.bf16 %v8014, %v8010
        %v8121 = vpack.c.bf16 %v8020, %v8016
        %v8122 = vpack.c.bf16 %v8022, %v8018
        %v8123 = vpack.c.bf16 %v8028, %v8024
        %v8124 = vpack.c.bf16 %v8030, %v8026
        %v8125 = vpack.c.bf16 %v8036, %v8032
        %v8126 = vpack.c.bf16 %v8038, %v8034
        %v8127 = vpack.c.bf16 %v8044, %v8040
        %v8128 = vpack.c.bf16 %v8046, %v8042
        %v8129 = vpack.c.bf16 %v8052, %v8048
        %v8130 = vpack.c.bf16 %v8054, %v8050
        %v8131 = vpack.c.bf16 %v8060, %v8056
        %v8132 = vpack.c.bf16 %v8062, %v8058
        %v8133 = vpack.c.bf16 %v8068, %v8064
        %v8134 = vpack.c.bf16 %v8070, %v8066
        %8135 = vrot.lane.b32.xlu0 %v7571, 64
        %v8136 = vpop.permute.xlu0 %8135
        %8137 = vrot.lane.b32.xlu0 %v7572, 64
        %v8138 = vpop.permute.xlu0 %8137
        %8139 = vrot.lane.b32.xlu0 %v7573, 64
        %v8140 = vpop.permute.xlu0 %8139
        %8141 = vrot.lane.b32.xlu0 %v7574, 64
        %v8142 = vpop.permute.xlu0 %8141
        %8143 = vrot.lane.b32.xlu0 %v7575, 64
        %v8144 = vpop.permute.xlu0 %8143
        %8145 = vrot.lane.b32.xlu0 %v7576, 64
        %v8146 = vpop.permute.xlu0 %8145
        %8147 = vrot.lane.b32.xlu0 %v7577, 64
        %v8148 = vpop.permute.xlu0 %8147
        %8149 = vrot.lane.b32.xlu0 %v7578, 64
        %v8150 = vpop.permute.xlu0 %8149
        %8159 = vmatpush.bf16.msra.mxu0 %v5022
        %8160 = vmatpush.bf16.msra.mxu0 %v5020
        %8161 = vmatpush.bf16.msra.mxu0 %v5018
        %8162 = vmatpush.bf16.msra.mxu0 %v5016
        %8163 = vmatpush.bf16.msra.mxu0 %v5014
        %8164 = vmatpush.bf16.msra.mxu0 %v5012
        %8165 = vmatpush.bf16.msra.mxu0 %v5010
        %8166 = vmatpush.bf16.msra.mxu0 %v5008
        %8167 = vmatmul.bf16.gmra.mxu0 %v8119
        %v8168 = vpop.f32.mrf.mxu0
        %v8169 = vadd.f32 0.0, %v8168
        %v8170 = vpop.f32.mrf.mxu0
        %v8171 = vadd.f32 0.0, %v8170
        %8172 = vmatmul.bf16.gmra.mxu0 %v8121
        %v8173 = vpop.f32.mrf.mxu0
        %v8174 = vadd.f32 0.0, %v8173
        %v8175 = vpop.f32.mrf.mxu0
        %v8176 = vadd.f32 0.0, %v8175
        %8177 = vmatmul.bf16.gmra.mxu0 %v8123
        %v8178 = vpop.f32.mrf.mxu0
        %v8179 = vadd.f32 0.0, %v8178
        %v8180 = vpop.f32.mrf.mxu0
        %v8181 = vadd.f32 0.0, %v8180
        %8182 = vmatmul.bf16.gmra.mxu0 %v8125
        %v8183 = vpop.f32.mrf.mxu0
        %v8184 = vadd.f32 0.0, %v8183
        %v8185 = vpop.f32.mrf.mxu0
        %v8186 = vadd.f32 0.0, %v8185
        %8187 = vmatmul.bf16.gmra.mxu0 %v8127
        %v8188 = vpop.f32.mrf.mxu0
        %v8189 = vadd.f32 0.0, %v8188
        %v8190 = vpop.f32.mrf.mxu0
        %v8191 = vadd.f32 0.0, %v8190
        %8192 = vmatmul.bf16.gmra.mxu0 %v8129
        %v8193 = vpop.f32.mrf.mxu0
        %v8194 = vadd.f32 0.0, %v8193
        %v8195 = vpop.f32.mrf.mxu0
        %v8196 = vadd.f32 0.0, %v8195
        %8197 = vmatmul.bf16.gmra.mxu0 %v8131
        %v8198 = vpop.f32.mrf.mxu0
        %v8199 = vadd.f32 0.0, %v8198
        %v8200 = vpop.f32.mrf.mxu0
        %v8201 = vadd.f32 0.0, %v8200
        %8202 = vmatmul.bf16.gmra.mxu0 %v8133
        %v8203 = vpop.f32.mrf.mxu0
        %v8204 = vadd.f32 0.0, %v8203
        %v8205 = vpop.f32.mrf.mxu0
        %v8206 = vadd.f32 0.0, %v8205
        %8207 = vdwg.mxu0
        %8208 = vmatpush.bf16.msra.mxu0 %v8150
        %8209 = vmatpush.bf16.msra.mxu0 %v8148
        %8210 = vmatpush.bf16.msra.mxu0 %v8146
        %8211 = vmatpush.bf16.msra.mxu0 %v8144
        %8212 = vmatpush.bf16.msra.mxu0 %v8142
        %8213 = vmatpush.bf16.msra.mxu0 %v8140
        %8214 = vmatpush.bf16.msra.mxu0 %v8138
        %8215 = vmatpush.bf16.msra.mxu0 %v8136
        %8216 = vmatmul.bf16.gmra.mxu0 %v8120
        %v8217 = vpop.f32.mrf.mxu0
        %v8218 = vadd.f32 %v8169, %v8217
        %v8219 = vpop.f32.mrf.mxu0
        %v8220 = vadd.f32 %v8171, %v8219
        %8221 = vmatmul.bf16.gmra.mxu0 %v8122
        %v8222 = vpop.f32.mrf.mxu0
        %v8223 = vadd.f32 %v8174, %v8222
        %v8224 = vpop.f32.mrf.mxu0
        %v8225 = vadd.f32 %v8176, %v8224
        %8226 = vmatmul.bf16.gmra.mxu0 %v8124
        %v8227 = vpop.f32.mrf.mxu0
        %v8228 = vadd.f32 %v8179, %v8227
        %v8229 = vpop.f32.mrf.mxu0
        %v8230 = vadd.f32 %v8181, %v8229
        %8231 = vmatmul.bf16.gmra.mxu0 %v8126
        %v8232 = vpop.f32.mrf.mxu0
        %v8233 = vadd.f32 %v8184, %v8232
        %v8234 = vpop.f32.mrf.mxu0
        %v8235 = vadd.f32 %v8186, %v8234
        %8236 = vmatmul.bf16.gmra.mxu0 %v8128
        %v8237 = vpop.f32.mrf.mxu0
        %v8238 = vadd.f32 %v8189, %v8237
        %v8239 = vpop.f32.mrf.mxu0
        %v8240 = vadd.f32 %v8191, %v8239
        %8241 = vmatmul.bf16.gmra.mxu0 %v8130
        %v8242 = vpop.f32.mrf.mxu0
        %v8243 = vadd.f32 %v8194, %v8242
        %v8244 = vpop.f32.mrf.mxu0
        %v8245 = vadd.f32 %v8196, %v8244
        %8246 = vmatmul.bf16.gmra.mxu0 %v8132
        %v8247 = vpop.f32.mrf.mxu0
        %v8248 = vadd.f32 %v8199, %v8247
        %v8249 = vpop.f32.mrf.mxu0
        %v8250 = vadd.f32 %v8201, %v8249
        %8251 = vmatmul.bf16.gmra.mxu0 %v8134
        %v8252 = vpop.f32.mrf.mxu0
        %v8253 = vadd.f32 %v8204, %v8252
        %v8254 = vpop.f32.mrf.mxu0
        %v8255 = vadd.f32 %v8206, %v8254
        %8256 = vdwg.mxu0
        %v8257 = vrcp.pop %v8073
        %v8258 = vrcp.pop %v8076
        %v8259 = vrcp.pop %v8079
        %v8260 = vrcp.pop %v8082
        %v8261 = vrcp.pop %v8085
        %v8262 = vrcp.pop %v8088
        %v8263 = vrcp.pop %v8091
        %v8264 = vrcp.pop %v8094
        %v8265 = vrcp.pop %v8097
        %v8266 = vrcp.pop %v8100
        %v8267 = vrcp.pop %v8103
        %v8268 = vrcp.pop %v8106
        %v8269 = vrcp.pop %v8109
        %v8270 = vrcp.pop %v8112
        %v8271 = vrcp.pop %v8115
        %v8272 = vrcp.pop %v8118
        %v8273 = vmul.f32 %v8218, %v8257
        %v8274 = vmul.f32 %v8220, %v8258
        %v8275 = vmul.f32 %v8223, %v8259
        %v8276 = vmul.f32 %v8225, %v8260
        %v8277 = vmul.f32 %v8228, %v8261
        %v8278 = vmul.f32 %v8230, %v8262
        %v8279 = vmul.f32 %v8233, %v8263
        %v8280 = vmul.f32 %v8235, %v8264
        %v8281 = vmul.f32 %v8238, %v8265
        %v8282 = vmul.f32 %v8240, %v8266
        %v8283 = vmul.f32 %v8243, %v8267
        %v8284 = vmul.f32 %v8245, %v8268
        %v8285 = vmul.f32 %v8248, %v8269
        %v8286 = vmul.f32 %v8250, %v8270
        %v8287 = vmul.f32 %v8253, %v8271
        %v8288 = vmul.f32 %v8255, %v8272
        %8305 = vrot.lane.b32.xlu0 %v8273, 64
        %v8306 = vpop.permute.xlu0 %8305
        %8307 = vrot.lane.b32.xlu0 %v8274, 64
        %v8308 = vpop.permute.xlu0 %8307
        %8309 = vrot.lane.b32.xlu0 %v8275, 64
        %v8310 = vpop.permute.xlu0 %8309
        %8311 = vrot.lane.b32.xlu0 %v8276, 64
        %v8312 = vpop.permute.xlu0 %8311
        %8313 = vrot.lane.b32.xlu0 %v8277, 64
        %v8314 = vpop.permute.xlu0 %8313
        %8315 = vrot.lane.b32.xlu0 %v8278, 64
        %v8316 = vpop.permute.xlu0 %8315
        %8317 = vrot.lane.b32.xlu0 %v8279, 64
        %v8318 = vpop.permute.xlu0 %8317
        %8319 = vrot.lane.b32.xlu0 %v8280, 64
        %v8320 = vpop.permute.xlu0 %8319
        %8321 = vrot.lane.b32.xlu0 %v8281, 64
        %v8322 = vpop.permute.xlu0 %8321
        %8323 = vrot.lane.b32.xlu0 %v8282, 64
        %v8324 = vpop.permute.xlu0 %8323
        %8325 = vrot.lane.b32.xlu0 %v8283, 64
        %v8326 = vpop.permute.xlu0 %8325
        %8327 = vrot.lane.b32.xlu0 %v8284, 64
        %v8328 = vpop.permute.xlu0 %8327
        %8329 = vrot.lane.b32.xlu0 %v8285, 64
        %v8330 = vpop.permute.xlu0 %8329
        %8331 = vrot.lane.b32.xlu0 %v8286, 64
        %v8332 = vpop.permute.xlu0 %8331
        %8333 = vrot.lane.b32.xlu0 %v8287, 64
        %v8334 = vpop.permute.xlu0 %8333
        %8335 = vrot.lane.b32.xlu0 %v8288, 64
        %v8336 = vpop.permute.xlu0 %8335
        %v8353 = vsel %vm4379, %v7701, %v8306
        %v8354 = vsel %vm4379, %v7702, %v8308
        %v8355 = vsel %vm4379, %v7703, %v8310
        %v8356 = vsel %vm4379, %v7704, %v8312
        %v8357 = vsel %vm4379, %v7705, %v8314
        %v8358 = vsel %vm4379, %v7706, %v8316
        %v8359 = vsel %vm4379, %v7707, %v8318
        %v8360 = vsel %vm4379, %v7708, %v8320
        %v8361 = vsel %vm4379, %v7709, %v8322
        %v8362 = vsel %vm4379, %v7710, %v8324
        %v8363 = vsel %vm4379, %v7711, %v8326
        %v8364 = vsel %vm4379, %v7712, %v8328
        %v8365 = vsel %vm4379, %v7713, %v8330
        %v8366 = vsel %vm4379, %v7714, %v8332
        %v8367 = vsel %vm4379, %v7715, %v8334
        %v8368 = vsel %vm4379, %v7716, %v8336
        %v8369 = vpack.c.bf16 %v8353, %v8353
        %v8370 = vpack.c.bf16 %v8354, %v8354
        %v8371 = vpack.c.bf16 %v8355, %v8355
        %v8372 = vpack.c.bf16 %v8356, %v8356
        %v8373 = vpack.c.bf16 %v8357, %v8357
        %v8374 = vpack.c.bf16 %v8358, %v8358
        %v8375 = vpack.c.bf16 %v8359, %v8359
        %v8376 = vpack.c.bf16 %v8360, %v8360
        %v8377 = vpack.c.bf16 %v8361, %v8361
        %v8378 = vpack.c.bf16 %v8362, %v8362
        %v8379 = vpack.c.bf16 %v8363, %v8363
        %v8380 = vpack.c.bf16 %v8364, %v8364
        %v8381 = vpack.c.bf16 %v8365, %v8365
        %v8382 = vpack.c.bf16 %v8366, %v8366
        %v8383 = vpack.c.bf16 %v8367, %v8367
        %v8384 = vpack.c.bf16 %v8368, %v8368
        %8385 = vst [vmem:[%s180 + $0xc0] sm:$0xf] %v8369
        %8386 = vst [vmem:[%s180 + $0xcc] sm:$0xf] %v8370
        %8387 = vst [vmem:[%s180 + $0xd8] sm:$0xf] %v8371
        %8388 = vst [vmem:[%s180 + $0xe4] sm:$0xf] %v8372
        %8389 = vst [vmem:[%s180 + $0xf0] sm:$0xf] %v8373
        %8390 = vst [vmem:[%s180 + $0xfc] sm:$0xf] %v8374
        %8391 = vst [vmem:[%s180 + $0x108] sm:$0xf] %v8375
        %8392 = vst [vmem:[%s180 + $0x114] sm:$0xf] %v8376
        %8393 = vst [vmem:[%s180 + $0x120] sm:$0xf] %v8377
        %8394 = vst [vmem:[%s180 + $0x12c] sm:$0xf] %v8378
        %8395 = vst [vmem:[%s180 + $0x138] sm:$0xf] %v8379
        %8396 = vst [vmem:[%s180 + $0x144] sm:$0xf] %v8380
        %8397 = vst [vmem:[%s180 + $0x150] sm:$0xf] %v8381
        %8398 = vst [vmem:[%s180 + $0x15c] sm:$0xf] %v8382
        %8399 = vst [vmem:[%s180 + $0x168] sm:$0xf] %v8383
        %8400 = vst [vmem:[%s180 + $0x174] sm:$0xf] %v8384
        %v8401 = vunpack.c.h.b16 %v4104
        %v8402 = vunpack.c.h.b16 %v4106
        %v8403 = vunpack.c.h.b16 %v4108
        %v8404 = vunpack.c.h.b16 %v4110
        %v8405 = vunpack.c.h.b16 %v4112
        %v8406 = vunpack.c.h.b16 %v4114
        %v8407 = vunpack.c.h.b16 %v4116
        %v8408 = vunpack.c.h.b16 %v4118
        %v8409 = vunpack.c.h.b16 %v4120
        %v8410 = vunpack.c.h.b16 %v4122
        %v8411 = vunpack.c.h.b16 %v4124
        %v8412 = vunpack.c.h.b16 %v4126
        %v8413 = vunpack.c.h.b16 %v4128
        %v8414 = vunpack.c.h.b16 %v4130
        %v8415 = vunpack.c.h.b16 %v4132
        %v8416 = vunpack.c.h.b16 %v4134
        %v8417 = vpack.c.b16 %v8402, %v8401
        %v8418 = vpack.c.b16 %v8404, %v8403
        %v8419 = vpack.c.b16 %v8406, %v8405
        %v8420 = vpack.c.b16 %v8408, %v8407
        %v8421 = vpack.c.b16 %v8410, %v8409
        %v8422 = vpack.c.b16 %v8412, %v8411
        %v8423 = vpack.c.b16 %v8414, %v8413
        %v8424 = vpack.c.b16 %v8416, %v8415
        %v8425 = vunpack.c.h.b16 %v4168
        %v8426 = vunpack.c.h.b16 %v4170
        %v8427 = vunpack.c.h.b16 %v4172
        %v8428 = vunpack.c.h.b16 %v4174
        %v8429 = vunpack.c.h.b16 %v4176
        %v8430 = vunpack.c.h.b16 %v4178
        %v8431 = vunpack.c.h.b16 %v4180
        %v8432 = vunpack.c.h.b16 %v4182
        %v8433 = vunpack.c.h.b16 %v4184
        %v8434 = vunpack.c.h.b16 %v4186
        %v8435 = vunpack.c.h.b16 %v4188
        %v8436 = vunpack.c.h.b16 %v4190
        %v8437 = vunpack.c.h.b16 %v4192
        %v8438 = vunpack.c.h.b16 %v4194
        %v8439 = vunpack.c.h.b16 %v4196
        %v8440 = vunpack.c.h.b16 %v4198
        %v8441 = vpack.c.b16 %v8426, %v8425
        %v8442 = vpack.c.b16 %v8428, %v8427
        %v8443 = vpack.c.b16 %v8430, %v8429
        %v8444 = vpack.c.b16 %v8432, %v8431
        %v8445 = vpack.c.b16 %v8434, %v8433
        %v8446 = vpack.c.b16 %v8436, %v8435
        %v8447 = vpack.c.b16 %v8438, %v8437
        %v8448 = vpack.c.b16 %v8440, %v8439
        %v8450 = vsel %vm4379, %v8417, 0
        %v8453 = vsel %vm4379, %v8418, 0
        %v8456 = vsel %vm4379, %v8419, 0
        %v8459 = vsel %vm4379, %v8420, 0
        %v8462 = vsel %vm4379, %v8421, 0
        %v8465 = vsel %vm4379, %v8422, 0
        %v8468 = vsel %vm4379, %v8423, 0
        %v8471 = vsel %vm4379, %v8424, 0
        %v8474 = vsel %vm4379, %v8441, 0
        %v8477 = vsel %vm4379, %v8442, 0
        %v8480 = vsel %vm4379, %v8443, 0
        %v8483 = vsel %vm4379, %v8444, 0
        %v8486 = vsel %vm4379, %v8445, 0
        %v8489 = vsel %vm4379, %v8446, 0
        %v8492 = vsel %vm4379, %v8447, 0
        %v8495 = vsel %vm4379, %v8448, 0
        %8497 = vmatpush.bf16.xpose.msra.mxu0 %v5318
        %8498 = vmatpush.bf16.xpose.msra.mxu0 %v5315
        %8499 = vmatpush.bf16.xpose.msra.mxu0 %v5312
        %8500 = vmatpush.bf16.xpose.msra.mxu0 %v5309
        %8501 = vmatpush.bf16.xpose.msra.mxu0 %v5306
        %8502 = vmatpush.bf16.xpose.msra.mxu0 %v5303
        %8503 = vmatpush.bf16.xpose.msra.mxu0 %v5300
        %8504 = vmatpush.bf16.xpose.msra.mxu0 %v5297
        %8505 = vmatmul.bf16.gmra.mxu0 %v8450
        %v8506 = vpop.f32.mrf.mxu0
        %v8507 = vadd.f32 0.0, %v8506
        %v8508 = vpop.f32.mrf.mxu0
        %v8509 = vadd.f32 0.0, %v8508
        %8510 = vmatmul.bf16.gmra.mxu0 %v8453
        %v8511 = vpop.f32.mrf.mxu0
        %v8512 = vadd.f32 0.0, %v8511
        %v8513 = vpop.f32.mrf.mxu0
        %v8514 = vadd.f32 0.0, %v8513
        %8515 = vmatmul.bf16.gmra.mxu0 %v8456
        %v8516 = vpop.f32.mrf.mxu0
        %v8517 = vadd.f32 0.0, %v8516
        %v8518 = vpop.f32.mrf.mxu0
        %v8519 = vadd.f32 0.0, %v8518
        %8520 = vmatmul.bf16.gmra.mxu0 %v8459
        %v8521 = vpop.f32.mrf.mxu0
        %v8522 = vadd.f32 0.0, %v8521
        %v8523 = vpop.f32.mrf.mxu0
        %v8524 = vadd.f32 0.0, %v8523
        %8525 = vmatmul.bf16.gmra.mxu0 %v8462
        %v8526 = vpop.f32.mrf.mxu0
        %v8527 = vadd.f32 0.0, %v8526
        %v8528 = vpop.f32.mrf.mxu0
        %v8529 = vadd.f32 0.0, %v8528
        %8530 = vmatmul.bf16.gmra.mxu0 %v8465
        %v8531 = vpop.f32.mrf.mxu0
        %v8532 = vadd.f32 0.0, %v8531
        %v8533 = vpop.f32.mrf.mxu0
        %v8534 = vadd.f32 0.0, %v8533
        %8535 = vmatmul.bf16.gmra.mxu0 %v8468
        %v8536 = vpop.f32.mrf.mxu0
        %v8537 = vadd.f32 0.0, %v8536
        %v8538 = vpop.f32.mrf.mxu0
        %v8539 = vadd.f32 0.0, %v8538
        %8540 = vmatmul.bf16.gmra.mxu0 %v8471
        %v8541 = vpop.f32.mrf.mxu0
        %v8542 = vadd.f32 0.0, %v8541
        %v8543 = vpop.f32.mrf.mxu0
        %v8544 = vadd.f32 0.0, %v8543
        %8545 = vdwg.mxu0
        %8546 = vmatpush.bf16.xpose.msra.mxu0 %v8495
        %8547 = vmatpush.bf16.xpose.msra.mxu0 %v8492
        %8548 = vmatpush.bf16.xpose.msra.mxu0 %v8489
        %8549 = vmatpush.bf16.xpose.msra.mxu0 %v8486
        %8550 = vmatpush.bf16.xpose.msra.mxu0 %v8483
        %8551 = vmatpush.bf16.xpose.msra.mxu0 %v8480
        %8552 = vmatpush.bf16.xpose.msra.mxu0 %v8477
        %8553 = vmatpush.bf16.xpose.msra.mxu0 %v8474
        %8554 = vmatmul.bf16.gmra.mxu0 %v8450
        %v8555 = vpop.f32.mrf.mxu0
        %v8556 = vadd.f32 0.0, %v8555
        %v8557 = vpop.f32.mrf.mxu0
        %v8558 = vadd.f32 0.0, %v8557
        %8559 = vmatmul.bf16.gmra.mxu0 %v8453
        %v8560 = vpop.f32.mrf.mxu0
        %v8561 = vadd.f32 0.0, %v8560
        %v8562 = vpop.f32.mrf.mxu0
        %v8563 = vadd.f32 0.0, %v8562
        %8564 = vmatmul.bf16.gmra.mxu0 %v8456
        %v8565 = vpop.f32.mrf.mxu0
        %v8566 = vadd.f32 0.0, %v8565
        %v8567 = vpop.f32.mrf.mxu0
        %v8568 = vadd.f32 0.0, %v8567
        %8569 = vmatmul.bf16.gmra.mxu0 %v8459
        %v8570 = vpop.f32.mrf.mxu0
        %v8571 = vadd.f32 0.0, %v8570
        %v8572 = vpop.f32.mrf.mxu0
        %v8573 = vadd.f32 0.0, %v8572
        %8574 = vmatmul.bf16.gmra.mxu0 %v8462
        %v8575 = vpop.f32.mrf.mxu0
        %v8576 = vadd.f32 0.0, %v8575
        %v8577 = vpop.f32.mrf.mxu0
        %v8578 = vadd.f32 0.0, %v8577
        %8579 = vmatmul.bf16.gmra.mxu0 %v8465
        %v8580 = vpop.f32.mrf.mxu0
        %v8581 = vadd.f32 0.0, %v8580
        %v8582 = vpop.f32.mrf.mxu0
        %v8583 = vadd.f32 0.0, %v8582
        %8584 = vmatmul.bf16.gmra.mxu0 %v8468
        %v8585 = vpop.f32.mrf.mxu0
        %v8586 = vadd.f32 0.0, %v8585
        %v8587 = vpop.f32.mrf.mxu0
        %v8588 = vadd.f32 0.0, %v8587
        %8589 = vmatmul.bf16.gmra.mxu0 %v8471
        %v8590 = vpop.f32.mrf.mxu0
        %v8591 = vadd.f32 0.0, %v8590
        %v8592 = vpop.f32.mrf.mxu0
        %v8593 = vadd.f32 0.0, %v8592
        %8594 = vdwg.mxu0
        %v8595 = vsel %vm7041, %v8507, -inf
        %v8596 = vsel %vm7042, %v8556, -inf
        %v8597 = vsel %vm7043, %v8509, -inf
        %v8598 = vsel %vm7044, %v8558, -inf
        %v8599 = vsel %vm7045, %v8512, -inf
        %v8600 = vsel %vm7046, %v8561, -inf
        %v8601 = vsel %vm7047, %v8514, -inf
        %v8602 = vsel %vm7048, %v8563, -inf
        %v8603 = vsel %vm7049, %v8517, -inf
        %v8604 = vsel %vm7050, %v8566, -inf
        %v8605 = vsel %vm7051, %v8519, -inf
        %v8606 = vsel %vm7052, %v8568, -inf
        %v8607 = vsel %vm7053, %v8522, -inf
        %v8608 = vsel %vm7054, %v8571, -inf
        %v8609 = vsel %vm7055, %v8524, -inf
        %v8610 = vsel %vm7056, %v8573, -inf
        %v8611 = vsel %vm7057, %v8527, -inf
        %v8612 = vsel %vm7058, %v8576, -inf
        %v8613 = vsel %vm7059, %v8529, -inf
        %v8614 = vsel %vm7060, %v8578, -inf
        %v8615 = vsel %vm7061, %v8532, -inf
        %v8616 = vsel %vm7062, %v8581, -inf
        %v8617 = vsel %vm7063, %v8534, -inf
        %v8618 = vsel %vm7064, %v8583, -inf
        %v8619 = vsel %vm7065, %v8537, -inf
        %v8620 = vsel %vm7066, %v8586, -inf
        %v8621 = vsel %vm7067, %v8539, -inf
        %v8622 = vsel %vm7068, %v8588, -inf
        %v8623 = vsel %vm7069, %v8542, -inf
        %v8624 = vsel %vm7070, %v8591, -inf
        %v8625 = vsel %vm7071, %v8544, -inf
        %v8626 = vsel %vm7072, %v8593, -inf
        %v8627 = vmax.f32 %v8595, %v8596
        %8628 = vmax.xlane.f32.xlu0 %v8627
        %v8629 = vpop.xlane.xlu0 %8628
        %v8630 = vmax.f32 %v8597, %v8598
        %8631 = vmax.xlane.f32.xlu0 %v8630
        %v8632 = vpop.xlane.xlu0 %8631
        %v8633 = vmax.f32 %v8599, %v8600
        %8634 = vmax.xlane.f32.xlu0 %v8633
        %v8635 = vpop.xlane.xlu0 %8634
        %v8636 = vmax.f32 %v8601, %v8602
        %8637 = vmax.xlane.f32.xlu0 %v8636
        %v8638 = vpop.xlane.xlu0 %8637
        %v8639 = vmax.f32 %v8603, %v8604
        %8640 = vmax.xlane.f32.xlu0 %v8639
        %v8641 = vpop.xlane.xlu0 %8640
        %v8642 = vmax.f32 %v8605, %v8606
        %8643 = vmax.xlane.f32.xlu0 %v8642
        %v8644 = vpop.xlane.xlu0 %8643
        %v8645 = vmax.f32 %v8607, %v8608
        %8646 = vmax.xlane.f32.xlu0 %v8645
        %v8647 = vpop.xlane.xlu0 %8646
        %v8648 = vmax.f32 %v8609, %v8610
        %8649 = vmax.xlane.f32.xlu0 %v8648
        %v8650 = vpop.xlane.xlu0 %8649
        %v8651 = vmax.f32 %v8611, %v8612
        %8652 = vmax.xlane.f32.xlu0 %v8651
        %v8653 = vpop.xlane.xlu0 %8652
        %v8654 = vmax.f32 %v8613, %v8614
        %8655 = vmax.xlane.f32.xlu0 %v8654
        %v8656 = vpop.xlane.xlu0 %8655
        %v8657 = vmax.f32 %v8615, %v8616
        %8658 = vmax.xlane.f32.xlu0 %v8657
        %v8659 = vpop.xlane.xlu0 %8658
        %v8660 = vmax.f32 %v8617, %v8618
        %8661 = vmax.xlane.f32.xlu0 %v8660
        %v8662 = vpop.xlane.xlu0 %8661
        %v8663 = vmax.f32 %v8619, %v8620
        %8664 = vmax.xlane.f32.xlu0 %v8663
        %v8665 = vpop.xlane.xlu0 %8664
        %v8666 = vmax.f32 %v8621, %v8622
        %8667 = vmax.xlane.f32.xlu0 %v8666
        %v8668 = vpop.xlane.xlu0 %8667
        %v8669 = vmax.f32 %v8623, %v8624
        %8670 = vmax.xlane.f32.xlu0 %v8669
        %v8671 = vpop.xlane.xlu0 %8670
        %v8672 = vmax.f32 %v8625, %v8626
        %8673 = vmax.xlane.f32.xlu0 %v8672
        %v8674 = vpop.xlane.xlu0 %8673
        %v8675 = vsub.f32 %v8595, %v8629
        %v8676 = vsub.f32 %v8596, %v8629
        %v8677 = vsub.f32 %v8597, %v8632
        %v8678 = vsub.f32 %v8598, %v8632
        %v8679 = vsub.f32 %v8599, %v8635
        %v8680 = vsub.f32 %v8600, %v8635
        %v8681 = vsub.f32 %v8601, %v8638
        %v8682 = vsub.f32 %v8602, %v8638
        %v8683 = vsub.f32 %v8603, %v8641
        %v8684 = vsub.f32 %v8604, %v8641
        %v8685 = vsub.f32 %v8605, %v8644
        %v8686 = vsub.f32 %v8606, %v8644
        %v8687 = vsub.f32 %v8607, %v8647
        %v8688 = vsub.f32 %v8608, %v8647
        %v8689 = vsub.f32 %v8609, %v8650
        %v8690 = vsub.f32 %v8610, %v8650
        %v8691 = vsub.f32 %v8611, %v8653
        %v8692 = vsub.f32 %v8612, %v8653
        %v8693 = vsub.f32 %v8613, %v8656
        %v8694 = vsub.f32 %v8614, %v8656
        %v8695 = vsub.f32 %v8615, %v8659
        %v8696 = vsub.f32 %v8616, %v8659
        %v8697 = vsub.f32 %v8617, %v8662
        %v8698 = vsub.f32 %v8618, %v8662
        %v8699 = vsub.f32 %v8619, %v8665
        %v8700 = vsub.f32 %v8620, %v8665
        %v8701 = vsub.f32 %v8621, %v8668
        %v8702 = vsub.f32 %v8622, %v8668
        %v8703 = vsub.f32 %v8623, %v8671
        %v8704 = vsub.f32 %v8624, %v8671
        %v8705 = vsub.f32 %v8625, %v8674
        %v8706 = vsub.f32 %v8626, %v8674
        %v8707 = vmul.f32 %v8675, 1.442695
        %v8708 = vpow.pop %v8707
        %v8709 = vmul.f32 %v8676, 1.442695
        %v8710 = vpow.pop %v8709
        %v8711 = vmul.f32 %v8677, 1.442695
        %v8712 = vpow.pop %v8711
        %v8713 = vmul.f32 %v8678, 1.442695
        %v8714 = vpow.pop %v8713
        %v8715 = vmul.f32 %v8679, 1.442695
        %v8716 = vpow.pop %v8715
        %v8717 = vmul.f32 %v8680, 1.442695
        %v8718 = vpow.pop %v8717
        %v8719 = vmul.f32 %v8681, 1.442695
        %v8720 = vpow.pop %v8719
        %v8721 = vmul.f32 %v8682, 1.442695
        %v8722 = vpow.pop %v8721
        %v8723 = vmul.f32 %v8683, 1.442695
        %v8724 = vpow.pop %v8723
        %v8725 = vmul.f32 %v8684, 1.442695
        %v8726 = vpow.pop %v8725
        %v8727 = vmul.f32 %v8685, 1.442695
        %v8728 = vpow.pop %v8727
        %v8729 = vmul.f32 %v8686, 1.442695
        %v8730 = vpow.pop %v8729
        %v8731 = vmul.f32 %v8687, 1.442695
        %v8732 = vpow.pop %v8731
        %v8733 = vmul.f32 %v8688, 1.442695
        %v8734 = vpow.pop %v8733
        %v8735 = vmul.f32 %v8689, 1.442695
        %v8736 = vpow.pop %v8735
        %v8737 = vmul.f32 %v8690, 1.442695
        %v8738 = vpow.pop %v8737
        %v8739 = vmul.f32 %v8691, 1.442695
        %v8740 = vpow.pop %v8739
        %v8741 = vmul.f32 %v8692, 1.442695
        %v8742 = vpow.pop %v8741
        %v8743 = vmul.f32 %v8693, 1.442695
        %v8744 = vpow.pop %v8743
        %v8745 = vmul.f32 %v8694, 1.442695
        %v8746 = vpow.pop %v8745
        %v8747 = vmul.f32 %v8695, 1.442695
        %v8748 = vpow.pop %v8747
        %v8749 = vmul.f32 %v8696, 1.442695
        %v8750 = vpow.pop %v8749
        %v8751 = vmul.f32 %v8697, 1.442695
        %v8752 = vpow.pop %v8751
        %v8753 = vmul.f32 %v8698, 1.442695
        %v8754 = vpow.pop %v8753
        %v8755 = vmul.f32 %v8699, 1.442695
        %v8756 = vpow.pop %v8755
        %v8757 = vmul.f32 %v8700, 1.442695
        %v8758 = vpow.pop %v8757
        %v8759 = vmul.f32 %v8701, 1.442695
        %v8760 = vpow.pop %v8759
        %v8761 = vmul.f32 %v8702, 1.442695
        %v8762 = vpow.pop %v8761
        %v8763 = vmul.f32 %v8703, 1.442695
        %v8764 = vpow.pop %v8763
        %v8765 = vmul.f32 %v8704, 1.442695
        %v8766 = vpow.pop %v8765
        %v8767 = vmul.f32 %v8705, 1.442695
        %v8768 = vpow.pop %v8767
        %v8769 = vmul.f32 %v8706, 1.442695
        %v8770 = vpow.pop %v8769
        %v8771 = vadd.f32 %v8708, %v8710
        %8772 = vadd.xlane.f32.xlu0 %v8771
        %v8773 = vpop.xlane.xlu0 %8772
        %v8774 = vadd.f32 %v8712, %v8714
        %8775 = vadd.xlane.f32.xlu0 %v8774
        %v8776 = vpop.xlane.xlu0 %8775
        %v8777 = vadd.f32 %v8716, %v8718
        %8778 = vadd.xlane.f32.xlu0 %v8777
        %v8779 = vpop.xlane.xlu0 %8778
        %v8780 = vadd.f32 %v8720, %v8722
        %8781 = vadd.xlane.f32.xlu0 %v8780
        %v8782 = vpop.xlane.xlu0 %8781
        %v8783 = vadd.f32 %v8724, %v8726
        %8784 = vadd.xlane.f32.xlu0 %v8783
        %v8785 = vpop.xlane.xlu0 %8784
        %v8786 = vadd.f32 %v8728, %v8730
        %8787 = vadd.xlane.f32.xlu0 %v8786
        %v8788 = vpop.xlane.xlu0 %8787
        %v8789 = vadd.f32 %v8732, %v8734
        %8790 = vadd.xlane.f32.xlu0 %v8789
        %v8791 = vpop.xlane.xlu0 %8790
        %v8792 = vadd.f32 %v8736, %v8738
        %8793 = vadd.xlane.f32.xlu0 %v8792
        %v8794 = vpop.xlane.xlu0 %8793
        %v8795 = vadd.f32 %v8740, %v8742
        %8796 = vadd.xlane.f32.xlu0 %v8795
        %v8797 = vpop.xlane.xlu0 %8796
        %v8798 = vadd.f32 %v8744, %v8746
        %8799 = vadd.xlane.f32.xlu0 %v8798
        %v8800 = vpop.xlane.xlu0 %8799
        %v8801 = vadd.f32 %v8748, %v8750
        %8802 = vadd.xlane.f32.xlu0 %v8801
        %v8803 = vpop.xlane.xlu0 %8802
        %v8804 = vadd.f32 %v8752, %v8754
        %8805 = vadd.xlane.f32.xlu0 %v8804
        %v8806 = vpop.xlane.xlu0 %8805
        %v8807 = vadd.f32 %v8756, %v8758
        %8808 = vadd.xlane.f32.xlu0 %v8807
        %v8809 = vpop.xlane.xlu0 %8808
        %v8810 = vadd.f32 %v8760, %v8762
        %8811 = vadd.xlane.f32.xlu0 %v8810
        %v8812 = vpop.xlane.xlu0 %8811
        %v8813 = vadd.f32 %v8764, %v8766
        %8814 = vadd.xlane.f32.xlu0 %v8813
        %v8815 = vpop.xlane.xlu0 %8814
        %v8816 = vadd.f32 %v8768, %v8770
        %8817 = vadd.xlane.f32.xlu0 %v8816
        %v8818 = vpop.xlane.xlu0 %8817
        %v8819 = vpack.c.bf16 %v8712, %v8708
        %v8820 = vpack.c.bf16 %v8714, %v8710
        %v8821 = vpack.c.bf16 %v8720, %v8716
        %v8822 = vpack.c.bf16 %v8722, %v8718
        %v8823 = vpack.c.bf16 %v8728, %v8724
        %v8824 = vpack.c.bf16 %v8730, %v8726
        %v8825 = vpack.c.bf16 %v8736, %v8732
        %v8826 = vpack.c.bf16 %v8738, %v8734
        %v8827 = vpack.c.bf16 %v8744, %v8740
        %v8828 = vpack.c.bf16 %v8746, %v8742
        %v8829 = vpack.c.bf16 %v8752, %v8748
        %v8830 = vpack.c.bf16 %v8754, %v8750
        %v8831 = vpack.c.bf16 %v8760, %v8756
        %v8832 = vpack.c.bf16 %v8762, %v8758
        %v8833 = vpack.c.bf16 %v8768, %v8764
        %v8834 = vpack.c.bf16 %v8770, %v8766
        %v8835 = vunpack.c.h.b16 %v4232
        %v8836 = vunpack.c.h.b16 %v4234
        %v8837 = vunpack.c.h.b16 %v4236
        %v8838 = vunpack.c.h.b16 %v4238
        %v8839 = vunpack.c.h.b16 %v4240
        %v8840 = vunpack.c.h.b16 %v4242
        %v8841 = vunpack.c.h.b16 %v4244
        %v8842 = vunpack.c.h.b16 %v4246
        %v8843 = vunpack.c.h.b16 %v4248
        %v8844 = vunpack.c.h.b16 %v4250
        %v8845 = vunpack.c.h.b16 %v4252
        %v8846 = vunpack.c.h.b16 %v4254
        %v8847 = vunpack.c.h.b16 %v4256
        %v8848 = vunpack.c.h.b16 %v4258
        %v8849 = vunpack.c.h.b16 %v4260
        %v8850 = vunpack.c.h.b16 %v4262
        %v8851 = vpack.c.b16 %v8836, %v8835
        %v8852 = vpack.c.b16 %v8838, %v8837
        %v8853 = vpack.c.b16 %v8840, %v8839
        %v8854 = vpack.c.b16 %v8842, %v8841
        %v8855 = vpack.c.b16 %v8844, %v8843
        %v8856 = vpack.c.b16 %v8846, %v8845
        %v8857 = vpack.c.b16 %v8848, %v8847
        %v8858 = vpack.c.b16 %v8850, %v8849
        %8867 = vmatpush.bf16.msra.mxu0 %v5528
        %8868 = vmatpush.bf16.msra.mxu0 %v5527
        %8869 = vmatpush.bf16.msra.mxu0 %v5526
        %8870 = vmatpush.bf16.msra.mxu0 %v5525
        %8871 = vmatpush.bf16.msra.mxu0 %v5524
        %8872 = vmatpush.bf16.msra.mxu0 %v5523
        %8873 = vmatpush.bf16.msra.mxu0 %v5522
        %8874 = vmatpush.bf16.msra.mxu0 %v5521
        %8875 = vmatmul.bf16.gmra.mxu0 %v8819
        %v8876 = vpop.f32.mrf.mxu0
        %v8877 = vadd.f32 0.0, %v8876
        %v8878 = vpop.f32.mrf.mxu0
        %v8879 = vadd.f32 0.0, %v8878
        %8880 = vmatmul.bf16.gmra.mxu0 %v8821
        %v8881 = vpop.f32.mrf.mxu0
        %v8882 = vadd.f32 0.0, %v8881
        %v8883 = vpop.f32.mrf.mxu0
        %v8884 = vadd.f32 0.0, %v8883
        %8885 = vmatmul.bf16.gmra.mxu0 %v8823
        %v8886 = vpop.f32.mrf.mxu0
        %v8887 = vadd.f32 0.0, %v8886
        %v8888 = vpop.f32.mrf.mxu0
        %v8889 = vadd.f32 0.0, %v8888
        %8890 = vmatmul.bf16.gmra.mxu0 %v8825
        %v8891 = vpop.f32.mrf.mxu0
        %v8892 = vadd.f32 0.0, %v8891
        %v8893 = vpop.f32.mrf.mxu0
        %v8894 = vadd.f32 0.0, %v8893
        %8895 = vmatmul.bf16.gmra.mxu0 %v8827
        %v8896 = vpop.f32.mrf.mxu0
        %v8897 = vadd.f32 0.0, %v8896
        %v8898 = vpop.f32.mrf.mxu0
        %v8899 = vadd.f32 0.0, %v8898
        %8900 = vmatmul.bf16.gmra.mxu0 %v8829
        %v8901 = vpop.f32.mrf.mxu0
        %v8902 = vadd.f32 0.0, %v8901
        %v8903 = vpop.f32.mrf.mxu0
        %v8904 = vadd.f32 0.0, %v8903
        %8905 = vmatmul.bf16.gmra.mxu0 %v8831
        %v8906 = vpop.f32.mrf.mxu0
        %v8907 = vadd.f32 0.0, %v8906
        %v8908 = vpop.f32.mrf.mxu0
        %v8909 = vadd.f32 0.0, %v8908
        %8910 = vmatmul.bf16.gmra.mxu0 %v8833
        %v8911 = vpop.f32.mrf.mxu0
        %v8912 = vadd.f32 0.0, %v8911
        %v8913 = vpop.f32.mrf.mxu0
        %v8914 = vadd.f32 0.0, %v8913
        %8915 = vdwg.mxu0
        %8916 = vmatpush.bf16.msra.mxu0 %v8858
        %8917 = vmatpush.bf16.msra.mxu0 %v8857
        %8918 = vmatpush.bf16.msra.mxu0 %v8856
        %8919 = vmatpush.bf16.msra.mxu0 %v8855
        %8920 = vmatpush.bf16.msra.mxu0 %v8854
        %8921 = vmatpush.bf16.msra.mxu0 %v8853
        %8922 = vmatpush.bf16.msra.mxu0 %v8852
        %8923 = vmatpush.bf16.msra.mxu0 %v8851
        %8924 = vmatmul.bf16.gmra.mxu0 %v8820
        %v8925 = vpop.f32.mrf.mxu0
        %v8926 = vadd.f32 %v8877, %v8925
        %v8927 = vpop.f32.mrf.mxu0
        %v8928 = vadd.f32 %v8879, %v8927
        %8929 = vmatmul.bf16.gmra.mxu0 %v8822
        %v8930 = vpop.f32.mrf.mxu0
        %v8931 = vadd.f32 %v8882, %v8930
        %v8932 = vpop.f32.mrf.mxu0
        %v8933 = vadd.f32 %v8884, %v8932
        %8934 = vmatmul.bf16.gmra.mxu0 %v8824
        %v8935 = vpop.f32.mrf.mxu0
        %v8936 = vadd.f32 %v8887, %v8935
        %v8937 = vpop.f32.mrf.mxu0
        %v8938 = vadd.f32 %v8889, %v8937
        %8939 = vmatmul.bf16.gmra.mxu0 %v8826
        %v8940 = vpop.f32.mrf.mxu0
        %v8941 = vadd.f32 %v8892, %v8940
        %v8942 = vpop.f32.mrf.mxu0
        %v8943 = vadd.f32 %v8894, %v8942
        %8944 = vmatmul.bf16.gmra.mxu0 %v8828
        %v8945 = vpop.f32.mrf.mxu0
        %v8946 = vadd.f32 %v8897, %v8945
        %v8947 = vpop.f32.mrf.mxu0
        %v8948 = vadd.f32 %v8899, %v8947
        %8949 = vmatmul.bf16.gmra.mxu0 %v8830
        %v8950 = vpop.f32.mrf.mxu0
        %v8951 = vadd.f32 %v8902, %v8950
        %v8952 = vpop.f32.mrf.mxu0
        %v8953 = vadd.f32 %v8904, %v8952
        %8954 = vmatmul.bf16.gmra.mxu0 %v8832
        %v8955 = vpop.f32.mrf.mxu0
        %v8956 = vadd.f32 %v8907, %v8955
        %v8957 = vpop.f32.mrf.mxu0
        %v8958 = vadd.f32 %v8909, %v8957
        %8959 = vmatmul.bf16.gmra.mxu0 %v8834
        %v8960 = vpop.f32.mrf.mxu0
        %v8961 = vadd.f32 %v8912, %v8960
        %v8962 = vpop.f32.mrf.mxu0
        %v8963 = vadd.f32 %v8914, %v8962
        %8964 = vdwg.mxu0
        %v8965 = vrcp.pop %v8773
        %v8966 = vrcp.pop %v8776
        %v8967 = vrcp.pop %v8779
        %v8968 = vrcp.pop %v8782
        %v8969 = vrcp.pop %v8785
        %v8970 = vrcp.pop %v8788
        %v8971 = vrcp.pop %v8791
        %v8972 = vrcp.pop %v8794
        %v8973 = vrcp.pop %v8797
        %v8974 = vrcp.pop %v8800
        %v8975 = vrcp.pop %v8803
        %v8976 = vrcp.pop %v8806
        %v8977 = vrcp.pop %v8809
        %v8978 = vrcp.pop %v8812
        %v8979 = vrcp.pop %v8815
        %v8980 = vrcp.pop %v8818
        %v8981 = vmul.f32 %v8926, %v8965
        %v8982 = vmul.f32 %v8928, %v8966
        %v8983 = vmul.f32 %v8931, %v8967
        %v8984 = vmul.f32 %v8933, %v8968
        %v8985 = vmul.f32 %v8936, %v8969
        %v8986 = vmul.f32 %v8938, %v8970
        %v8987 = vmul.f32 %v8941, %v8971
        %v8988 = vmul.f32 %v8943, %v8972
        %v8989 = vmul.f32 %v8946, %v8973
        %v8990 = vmul.f32 %v8948, %v8974
        %v8991 = vmul.f32 %v8951, %v8975
        %v8992 = vmul.f32 %v8953, %v8976
        %v8993 = vmul.f32 %v8956, %v8977
        %v8994 = vmul.f32 %v8958, %v8978
        %v8995 = vmul.f32 %v8961, %v8979
        %v8996 = vmul.f32 %v8963, %v8980
        %8997 = vrot.lane.b32.xlu0 %v8417, 64
        %v8998 = vpop.permute.xlu0 %8997
        %8999 = vrot.lane.b32.xlu0 %v8418, 64
        %v9000 = vpop.permute.xlu0 %8999
        %9001 = vrot.lane.b32.xlu0 %v8419, 64
        %v9002 = vpop.permute.xlu0 %9001
        %9003 = vrot.lane.b32.xlu0 %v8420, 64
        %v9004 = vpop.permute.xlu0 %9003
        %9005 = vrot.lane.b32.xlu0 %v8421, 64
        %v9006 = vpop.permute.xlu0 %9005
        %9007 = vrot.lane.b32.xlu0 %v8422, 64
        %v9008 = vpop.permute.xlu0 %9007
        %9009 = vrot.lane.b32.xlu0 %v8423, 64
        %v9010 = vpop.permute.xlu0 %9009
        %9011 = vrot.lane.b32.xlu0 %v8424, 64
        %v9012 = vpop.permute.xlu0 %9011
        %9013 = vrot.lane.b32.xlu0 %v8441, 64
        %v9014 = vpop.permute.xlu0 %9013
        %9015 = vrot.lane.b32.xlu0 %v8442, 64
        %v9016 = vpop.permute.xlu0 %9015
        %9017 = vrot.lane.b32.xlu0 %v8443, 64
        %v9018 = vpop.permute.xlu0 %9017
        %9019 = vrot.lane.b32.xlu0 %v8444, 64
        %v9020 = vpop.permute.xlu0 %9019
        %9021 = vrot.lane.b32.xlu0 %v8445, 64
        %v9022 = vpop.permute.xlu0 %9021
        %9023 = vrot.lane.b32.xlu0 %v8446, 64
        %v9024 = vpop.permute.xlu0 %9023
        %9025 = vrot.lane.b32.xlu0 %v8447, 64
        %v9026 = vpop.permute.xlu0 %9025
        %9027 = vrot.lane.b32.xlu0 %v8448, 64
        %v9028 = vpop.permute.xlu0 %9027
        %v9030 = vsel %vm4379, %v8998, 0
        %v9033 = vsel %vm4379, %v9000, 0
        %v9036 = vsel %vm4379, %v9002, 0
        %v9039 = vsel %vm4379, %v9004, 0
        %v9042 = vsel %vm4379, %v9006, 0
        %v9045 = vsel %vm4379, %v9008, 0
        %v9048 = vsel %vm4379, %v9010, 0
        %v9051 = vsel %vm4379, %v9012, 0
        %v9054 = vsel %vm4379, %v9014, 0
        %v9057 = vsel %vm4379, %v9016, 0
        %v9060 = vsel %vm4379, %v9018, 0
        %v9063 = vsel %vm4379, %v9020, 0
        %v9066 = vsel %vm4379, %v9022, 0
        %v9069 = vsel %vm4379, %v9024, 0
        %v9072 = vsel %vm4379, %v9026, 0
        %v9075 = vsel %vm4379, %v9028, 0
        %9077 = vmatpush.bf16.xpose.msra.mxu0 %v5696
        %9078 = vmatpush.bf16.xpose.msra.mxu0 %v5693
        %9079 = vmatpush.bf16.xpose.msra.mxu0 %v5690
        %9080 = vmatpush.bf16.xpose.msra.mxu0 %v5687
        %9081 = vmatpush.bf16.xpose.msra.mxu0 %v5684
        %9082 = vmatpush.bf16.xpose.msra.mxu0 %v5681
        %9083 = vmatpush.bf16.xpose.msra.mxu0 %v5678
        %9084 = vmatpush.bf16.xpose.msra.mxu0 %v5675
        %9085 = vmatmul.bf16.gmra.mxu0 %v9030
        %v9086 = vpop.f32.mrf.mxu0
        %v9087 = vadd.f32 0.0, %v9086
        %v9088 = vpop.f32.mrf.mxu0
        %v9089 = vadd.f32 0.0, %v9088
        %9090 = vmatmul.bf16.gmra.mxu0 %v9033
        %v9091 = vpop.f32.mrf.mxu0
        %v9092 = vadd.f32 0.0, %v9091
        %v9093 = vpop.f32.mrf.mxu0
        %v9094 = vadd.f32 0.0, %v9093
        %9095 = vmatmul.bf16.gmra.mxu0 %v9036
        %v9096 = vpop.f32.mrf.mxu0
        %v9097 = vadd.f32 0.0, %v9096
        %v9098 = vpop.f32.mrf.mxu0
        %v9099 = vadd.f32 0.0, %v9098
        %9100 = vmatmul.bf16.gmra.mxu0 %v9039
        %v9101 = vpop.f32.mrf.mxu0
        %v9102 = vadd.f32 0.0, %v9101
        %v9103 = vpop.f32.mrf.mxu0
        %v9104 = vadd.f32 0.0, %v9103
        %9105 = vmatmul.bf16.gmra.mxu0 %v9042
        %v9106 = vpop.f32.mrf.mxu0
        %v9107 = vadd.f32 0.0, %v9106
        %v9108 = vpop.f32.mrf.mxu0
        %v9109 = vadd.f32 0.0, %v9108
        %9110 = vmatmul.bf16.gmra.mxu0 %v9045
        %v9111 = vpop.f32.mrf.mxu0
        %v9112 = vadd.f32 0.0, %v9111
        %v9113 = vpop.f32.mrf.mxu0
        %v9114 = vadd.f32 0.0, %v9113
        %9115 = vmatmul.bf16.gmra.mxu0 %v9048
        %v9116 = vpop.f32.mrf.mxu0
        %v9117 = vadd.f32 0.0, %v9116
        %v9118 = vpop.f32.mrf.mxu0
        %v9119 = vadd.f32 0.0, %v9118
        %9120 = vmatmul.bf16.gmra.mxu0 %v9051
        %v9121 = vpop.f32.mrf.mxu0
        %v9122 = vadd.f32 0.0, %v9121
        %v9123 = vpop.f32.mrf.mxu0
        %v9124 = vadd.f32 0.0, %v9123
        %9125 = vdwg.mxu0
        %9126 = vmatpush.bf16.xpose.msra.mxu0 %v9075
        %9127 = vmatpush.bf16.xpose.msra.mxu0 %v9072
        %9128 = vmatpush.bf16.xpose.msra.mxu0 %v9069
        %9129 = vmatpush.bf16.xpose.msra.mxu0 %v9066
        %9130 = vmatpush.bf16.xpose.msra.mxu0 %v9063
        %9131 = vmatpush.bf16.xpose.msra.mxu0 %v9060
        %9132 = vmatpush.bf16.xpose.msra.mxu0 %v9057
        %9133 = vmatpush.bf16.xpose.msra.mxu0 %v9054
        %9134 = vmatmul.bf16.gmra.mxu0 %v9030
        %v9135 = vpop.f32.mrf.mxu0
        %v9136 = vadd.f32 0.0, %v9135
        %v9137 = vpop.f32.mrf.mxu0
        %v9138 = vadd.f32 0.0, %v9137
        %9139 = vmatmul.bf16.gmra.mxu0 %v9033
        %v9140 = vpop.f32.mrf.mxu0
        %v9141 = vadd.f32 0.0, %v9140
        %v9142 = vpop.f32.mrf.mxu0
        %v9143 = vadd.f32 0.0, %v9142
        %9144 = vmatmul.bf16.gmra.mxu0 %v9036
        %v9145 = vpop.f32.mrf.mxu0
        %v9146 = vadd.f32 0.0, %v9145
        %v9147 = vpop.f32.mrf.mxu0
        %v9148 = vadd.f32 0.0, %v9147
        %9149 = vmatmul.bf16.gmra.mxu0 %v9039
        %v9150 = vpop.f32.mrf.mxu0
        %v9151 = vadd.f32 0.0, %v9150
        %v9152 = vpop.f32.mrf.mxu0
        %v9153 = vadd.f32 0.0, %v9152
        %9154 = vmatmul.bf16.gmra.mxu0 %v9042
        %v9155 = vpop.f32.mrf.mxu0
        %v9156 = vadd.f32 0.0, %v9155
        %v9157 = vpop.f32.mrf.mxu0
        %v9158 = vadd.f32 0.0, %v9157
        %9159 = vmatmul.bf16.gmra.mxu0 %v9045
        %v9160 = vpop.f32.mrf.mxu0
        %v9161 = vadd.f32 0.0, %v9160
        %v9162 = vpop.f32.mrf.mxu0
        %v9163 = vadd.f32 0.0, %v9162
        %9164 = vmatmul.bf16.gmra.mxu0 %v9048
        %v9165 = vpop.f32.mrf.mxu0
        %v9166 = vadd.f32 0.0, %v9165
        %v9167 = vpop.f32.mrf.mxu0
        %v9168 = vadd.f32 0.0, %v9167
        %9169 = vmatmul.bf16.gmra.mxu0 %v9051
        %v9170 = vpop.f32.mrf.mxu0
        %v9171 = vadd.f32 0.0, %v9170
        %v9172 = vpop.f32.mrf.mxu0
        %v9173 = vadd.f32 0.0, %v9172
        %9174 = vdwg.mxu0
        %v9175 = vsel %vm7041, %v9087, -inf
        %v9176 = vsel %vm7042, %v9136, -inf
        %v9177 = vsel %vm7043, %v9089, -inf
        %v9178 = vsel %vm7044, %v9138, -inf
        %v9179 = vsel %vm7045, %v9092, -inf
        %v9180 = vsel %vm7046, %v9141, -inf
        %v9181 = vsel %vm7047, %v9094, -inf
        %v9182 = vsel %vm7048, %v9143, -inf
        %v9183 = vsel %vm7049, %v9097, -inf
        %v9184 = vsel %vm7050, %v9146, -inf
        %v9185 = vsel %vm7051, %v9099, -inf
        %v9186 = vsel %vm7052, %v9148, -inf
        %v9187 = vsel %vm7053, %v9102, -inf
        %v9188 = vsel %vm7054, %v9151, -inf
        %v9189 = vsel %vm7055, %v9104, -inf
        %v9190 = vsel %vm7056, %v9153, -inf
        %v9191 = vsel %vm7057, %v9107, -inf
        %v9192 = vsel %vm7058, %v9156, -inf
        %v9193 = vsel %vm7059, %v9109, -inf
        %v9194 = vsel %vm7060, %v9158, -inf
        %v9195 = vsel %vm7061, %v9112, -inf
        %v9196 = vsel %vm7062, %v9161, -inf
        %v9197 = vsel %vm7063, %v9114, -inf
        %v9198 = vsel %vm7064, %v9163, -inf
        %v9199 = vsel %vm7065, %v9117, -inf
        %v9200 = vsel %vm7066, %v9166, -inf
        %v9201 = vsel %vm7067, %v9119, -inf
        %v9202 = vsel %vm7068, %v9168, -inf
        %v9203 = vsel %vm7069, %v9122, -inf
        %v9204 = vsel %vm7070, %v9171, -inf
        %v9205 = vsel %vm7071, %v9124, -inf
        %v9206 = vsel %vm7072, %v9173, -inf
        %v9207 = vmax.f32 %v9175, %v9176
        %9208 = vmax.xlane.f32.xlu0 %v9207
        %v9209 = vpop.xlane.xlu0 %9208
        %v9210 = vmax.f32 %v9177, %v9178
        %9211 = vmax.xlane.f32.xlu0 %v9210
        %v9212 = vpop.xlane.xlu0 %9211
        %v9213 = vmax.f32 %v9179, %v9180
        %9214 = vmax.xlane.f32.xlu0 %v9213
        %v9215 = vpop.xlane.xlu0 %9214
        %v9216 = vmax.f32 %v9181, %v9182
        %9217 = vmax.xlane.f32.xlu0 %v9216
        %v9218 = vpop.xlane.xlu0 %9217
        %v9219 = vmax.f32 %v9183, %v9184
        %9220 = vmax.xlane.f32.xlu0 %v9219
        %v9221 = vpop.xlane.xlu0 %9220
        %v9222 = vmax.f32 %v9185, %v9186
        %9223 = vmax.xlane.f32.xlu0 %v9222
        %v9224 = vpop.xlane.xlu0 %9223
        %v9225 = vmax.f32 %v9187, %v9188
        %9226 = vmax.xlane.f32.xlu0 %v9225
        %v9227 = vpop.xlane.xlu0 %9226
        %v9228 = vmax.f32 %v9189, %v9190
        %9229 = vmax.xlane.f32.xlu0 %v9228
        %v9230 = vpop.xlane.xlu0 %9229
        %v9231 = vmax.f32 %v9191, %v9192
        %9232 = vmax.xlane.f32.xlu0 %v9231
        %v9233 = vpop.xlane.xlu0 %9232
        %v9234 = vmax.f32 %v9193, %v9194
        %9235 = vmax.xlane.f32.xlu0 %v9234
        %v9236 = vpop.xlane.xlu0 %9235
        %v9237 = vmax.f32 %v9195, %v9196
        %9238 = vmax.xlane.f32.xlu0 %v9237
        %v9239 = vpop.xlane.xlu0 %9238
        %v9240 = vmax.f32 %v9197, %v9198
        %9241 = vmax.xlane.f32.xlu0 %v9240
        %v9242 = vpop.xlane.xlu0 %9241
        %v9243 = vmax.f32 %v9199, %v9200
        %9244 = vmax.xlane.f32.xlu0 %v9243
        %v9245 = vpop.xlane.xlu0 %9244
        %v9246 = vmax.f32 %v9201, %v9202
        %9247 = vmax.xlane.f32.xlu0 %v9246
        %v9248 = vpop.xlane.xlu0 %9247
        %v9249 = vmax.f32 %v9203, %v9204
        %9250 = vmax.xlane.f32.xlu0 %v9249
        %v9251 = vpop.xlane.xlu0 %9250
        %v9252 = vmax.f32 %v9205, %v9206
        %9253 = vmax.xlane.f32.xlu0 %v9252
        %v9254 = vpop.xlane.xlu0 %9253
        %v9255 = vsub.f32 %v9175, %v9209
        %v9256 = vsub.f32 %v9176, %v9209
        %v9257 = vsub.f32 %v9177, %v9212
        %v9258 = vsub.f32 %v9178, %v9212
        %v9259 = vsub.f32 %v9179, %v9215
        %v9260 = vsub.f32 %v9180, %v9215
        %v9261 = vsub.f32 %v9181, %v9218
        %v9262 = vsub.f32 %v9182, %v9218
        %v9263 = vsub.f32 %v9183, %v9221
        %v9264 = vsub.f32 %v9184, %v9221
        %v9265 = vsub.f32 %v9185, %v9224
        %v9266 = vsub.f32 %v9186, %v9224
        %v9267 = vsub.f32 %v9187, %v9227
        %v9268 = vsub.f32 %v9188, %v9227
        %v9269 = vsub.f32 %v9189, %v9230
        %v9270 = vsub.f32 %v9190, %v9230
        %v9271 = vsub.f32 %v9191, %v9233
        %v9272 = vsub.f32 %v9192, %v9233
        %v9273 = vsub.f32 %v9193, %v9236
        %v9274 = vsub.f32 %v9194, %v9236
        %v9275 = vsub.f32 %v9195, %v9239
        %v9276 = vsub.f32 %v9196, %v9239
        %v9277 = vsub.f32 %v9197, %v9242
        %v9278 = vsub.f32 %v9198, %v9242
        %v9279 = vsub.f32 %v9199, %v9245
        %v9280 = vsub.f32 %v9200, %v9245
        %v9281 = vsub.f32 %v9201, %v9248
        %v9282 = vsub.f32 %v9202, %v9248
        %v9283 = vsub.f32 %v9203, %v9251
        %v9284 = vsub.f32 %v9204, %v9251
        %v9285 = vsub.f32 %v9205, %v9254
        %v9286 = vsub.f32 %v9206, %v9254
        %v9287 = vmul.f32 %v9255, 1.442695
        %v9288 = vpow.pop %v9287
        %v9289 = vmul.f32 %v9256, 1.442695
        %v9290 = vpow.pop %v9289
        %v9291 = vmul.f32 %v9257, 1.442695
        %v9292 = vpow.pop %v9291
        %v9293 = vmul.f32 %v9258, 1.442695
        %v9294 = vpow.pop %v9293
        %v9295 = vmul.f32 %v9259, 1.442695
        %v9296 = vpow.pop %v9295
        %v9297 = vmul.f32 %v9260, 1.442695
        %v9298 = vpow.pop %v9297
        %v9299 = vmul.f32 %v9261, 1.442695
        %v9300 = vpow.pop %v9299
        %v9301 = vmul.f32 %v9262, 1.442695
        %v9302 = vpow.pop %v9301
        %v9303 = vmul.f32 %v9263, 1.442695
        %v9304 = vpow.pop %v9303
        %v9305 = vmul.f32 %v9264, 1.442695
        %v9306 = vpow.pop %v9305
        %v9307 = vmul.f32 %v9265, 1.442695
        %v9308 = vpow.pop %v9307
        %v9309 = vmul.f32 %v9266, 1.442695
        %v9310 = vpow.pop %v9309
        %v9311 = vmul.f32 %v9267, 1.442695
        %v9312 = vpow.pop %v9311
        %v9313 = vmul.f32 %v9268, 1.442695
        %v9314 = vpow.pop %v9313
        %v9315 = vmul.f32 %v9269, 1.442695
        %v9316 = vpow.pop %v9315
        %v9317 = vmul.f32 %v9270, 1.442695
        %v9318 = vpow.pop %v9317
        %v9319 = vmul.f32 %v9271, 1.442695
        %v9320 = vpow.pop %v9319
        %v9321 = vmul.f32 %v9272, 1.442695
        %v9322 = vpow.pop %v9321
        %v9323 = vmul.f32 %v9273, 1.442695
        %v9324 = vpow.pop %v9323
        %v9325 = vmul.f32 %v9274, 1.442695
        %v9326 = vpow.pop %v9325
        %v9327 = vmul.f32 %v9275, 1.442695
        %v9328 = vpow.pop %v9327
        %v9329 = vmul.f32 %v9276, 1.442695
        %v9330 = vpow.pop %v9329
        %v9331 = vmul.f32 %v9277, 1.442695
        %v9332 = vpow.pop %v9331
        %v9333 = vmul.f32 %v9278, 1.442695
        %v9334 = vpow.pop %v9333
        %v9335 = vmul.f32 %v9279, 1.442695
        %v9336 = vpow.pop %v9335
        %v9337 = vmul.f32 %v9280, 1.442695
        %v9338 = vpow.pop %v9337
        %v9339 = vmul.f32 %v9281, 1.442695
        %v9340 = vpow.pop %v9339
        %v9341 = vmul.f32 %v9282, 1.442695
        %v9342 = vpow.pop %v9341
        %v9343 = vmul.f32 %v9283, 1.442695
        %v9344 = vpow.pop %v9343
        %v9345 = vmul.f32 %v9284, 1.442695
        %v9346 = vpow.pop %v9345
        %v9347 = vmul.f32 %v9285, 1.442695
        %v9348 = vpow.pop %v9347
        %v9349 = vmul.f32 %v9286, 1.442695
        %v9350 = vpow.pop %v9349
        %v9351 = vadd.f32 %v9288, %v9290
        %9352 = vadd.xlane.f32.xlu0 %v9351
        %v9353 = vpop.xlane.xlu0 %9352
        %v9354 = vadd.f32 %v9292, %v9294
        %9355 = vadd.xlane.f32.xlu0 %v9354
        %v9356 = vpop.xlane.xlu0 %9355
        %v9357 = vadd.f32 %v9296, %v9298
        %9358 = vadd.xlane.f32.xlu0 %v9357
        %v9359 = vpop.xlane.xlu0 %9358
        %v9360 = vadd.f32 %v9300, %v9302
        %9361 = vadd.xlane.f32.xlu0 %v9360
        %v9362 = vpop.xlane.xlu0 %9361
        %v9363 = vadd.f32 %v9304, %v9306
        %9364 = vadd.xlane.f32.xlu0 %v9363
        %v9365 = vpop.xlane.xlu0 %9364
        %v9366 = vadd.f32 %v9308, %v9310
        %9367 = vadd.xlane.f32.xlu0 %v9366
        %v9368 = vpop.xlane.xlu0 %9367
        %v9369 = vadd.f32 %v9312, %v9314
        %9370 = vadd.xlane.f32.xlu0 %v9369
        %v9371 = vpop.xlane.xlu0 %9370
        %v9372 = vadd.f32 %v9316, %v9318
        %9373 = vadd.xlane.f32.xlu0 %v9372
        %v9374 = vpop.xlane.xlu0 %9373
        %v9375 = vadd.f32 %v9320, %v9322
        %9376 = vadd.xlane.f32.xlu0 %v9375
        %v9377 = vpop.xlane.xlu0 %9376
        %v9378 = vadd.f32 %v9324, %v9326
        %9379 = vadd.xlane.f32.xlu0 %v9378
        %v9380 = vpop.xlane.xlu0 %9379
        %v9381 = vadd.f32 %v9328, %v9330
        %9382 = vadd.xlane.f32.xlu0 %v9381
        %v9383 = vpop.xlane.xlu0 %9382
        %v9384 = vadd.f32 %v9332, %v9334
        %9385 = vadd.xlane.f32.xlu0 %v9384
        %v9386 = vpop.xlane.xlu0 %9385
        %v9387 = vadd.f32 %v9336, %v9338
        %9388 = vadd.xlane.f32.xlu0 %v9387
        %v9389 = vpop.xlane.xlu0 %9388
        %v9390 = vadd.f32 %v9340, %v9342
        %9391 = vadd.xlane.f32.xlu0 %v9390
        %v9392 = vpop.xlane.xlu0 %9391
        %v9393 = vadd.f32 %v9344, %v9346
        %9394 = vadd.xlane.f32.xlu0 %v9393
        %v9395 = vpop.xlane.xlu0 %9394
        %v9396 = vadd.f32 %v9348, %v9350
        %9397 = vadd.xlane.f32.xlu0 %v9396
        %v9398 = vpop.xlane.xlu0 %9397
        %v9399 = vpack.c.bf16 %v9292, %v9288
        %v9400 = vpack.c.bf16 %v9294, %v9290
        %v9401 = vpack.c.bf16 %v9300, %v9296
        %v9402 = vpack.c.bf16 %v9302, %v9298
        %v9403 = vpack.c.bf16 %v9308, %v9304
        %v9404 = vpack.c.bf16 %v9310, %v9306
        %v9405 = vpack.c.bf16 %v9316, %v9312
        %v9406 = vpack.c.bf16 %v9318, %v9314
        %v9407 = vpack.c.bf16 %v9324, %v9320
        %v9408 = vpack.c.bf16 %v9326, %v9322
        %v9409 = vpack.c.bf16 %v9332, %v9328
        %v9410 = vpack.c.bf16 %v9334, %v9330
        %v9411 = vpack.c.bf16 %v9340, %v9336
        %v9412 = vpack.c.bf16 %v9342, %v9338
        %v9413 = vpack.c.bf16 %v9348, %v9344
        %v9414 = vpack.c.bf16 %v9350, %v9346
        %9415 = vrot.lane.b32.xlu0 %v8851, 64
        %v9416 = vpop.permute.xlu0 %9415
        %9417 = vrot.lane.b32.xlu0 %v8852, 64
        %v9418 = vpop.permute.xlu0 %9417
        %9419 = vrot.lane.b32.xlu0 %v8853, 64
        %v9420 = vpop.permute.xlu0 %9419
        %9421 = vrot.lane.b32.xlu0 %v8854, 64
        %v9422 = vpop.permute.xlu0 %9421
        %9423 = vrot.lane.b32.xlu0 %v8855, 64
        %v9424 = vpop.permute.xlu0 %9423
        %9425 = vrot.lane.b32.xlu0 %v8856, 64
        %v9426 = vpop.permute.xlu0 %9425
        %9427 = vrot.lane.b32.xlu0 %v8857, 64
        %v9428 = vpop.permute.xlu0 %9427
        %9429 = vrot.lane.b32.xlu0 %v8858, 64
        %v9430 = vpop.permute.xlu0 %9429
        %9439 = vmatpush.bf16.msra.mxu0 %v5898
        %9440 = vmatpush.bf16.msra.mxu0 %v5896
        %9441 = vmatpush.bf16.msra.mxu0 %v5894
        %9442 = vmatpush.bf16.msra.mxu0 %v5892
        %9443 = vmatpush.bf16.msra.mxu0 %v5890
        %9444 = vmatpush.bf16.msra.mxu0 %v5888
        %9445 = vmatpush.bf16.msra.mxu0 %v5886
        %9446 = vmatpush.bf16.msra.mxu0 %v5884
        %9447 = vmatmul.bf16.gmra.mxu0 %v9399
        %v9448 = vpop.f32.mrf.mxu0
        %v9449 = vadd.f32 0.0, %v9448
        %v9450 = vpop.f32.mrf.mxu0
        %v9451 = vadd.f32 0.0, %v9450
        %9452 = vmatmul.bf16.gmra.mxu0 %v9401
        %v9453 = vpop.f32.mrf.mxu0
        %v9454 = vadd.f32 0.0, %v9453
        %v9455 = vpop.f32.mrf.mxu0
        %v9456 = vadd.f32 0.0, %v9455
        %9457 = vmatmul.bf16.gmra.mxu0 %v9403
        %v9458 = vpop.f32.mrf.mxu0
        %v9459 = vadd.f32 0.0, %v9458
        %v9460 = vpop.f32.mrf.mxu0
        %v9461 = vadd.f32 0.0, %v9460
        %9462 = vmatmul.bf16.gmra.mxu0 %v9405
        %v9463 = vpop.f32.mrf.mxu0
        %v9464 = vadd.f32 0.0, %v9463
        %v9465 = vpop.f32.mrf.mxu0
        %v9466 = vadd.f32 0.0, %v9465
        %9467 = vmatmul.bf16.gmra.mxu0 %v9407
        %v9468 = vpop.f32.mrf.mxu0
        %v9469 = vadd.f32 0.0, %v9468
        %v9470 = vpop.f32.mrf.mxu0
        %v9471 = vadd.f32 0.0, %v9470
        %9472 = vmatmul.bf16.gmra.mxu0 %v9409
        %v9473 = vpop.f32.mrf.mxu0
        %v9474 = vadd.f32 0.0, %v9473
        %v9475 = vpop.f32.mrf.mxu0
        %v9476 = vadd.f32 0.0, %v9475
        %9477 = vmatmul.bf16.gmra.mxu0 %v9411
        %v9478 = vpop.f32.mrf.mxu0
        %v9479 = vadd.f32 0.0, %v9478
        %v9480 = vpop.f32.mrf.mxu0
        %v9481 = vadd.f32 0.0, %v9480
        %9482 = vmatmul.bf16.gmra.mxu0 %v9413
        %v9483 = vpop.f32.mrf.mxu0
        %v9484 = vadd.f32 0.0, %v9483
        %v9485 = vpop.f32.mrf.mxu0
        %v9486 = vadd.f32 0.0, %v9485
        %9487 = vdwg.mxu0
        %9488 = vmatpush.bf16.msra.mxu0 %v9430
        %9489 = vmatpush.bf16.msra.mxu0 %v9428
        %9490 = vmatpush.bf16.msra.mxu0 %v9426
        %9491 = vmatpush.bf16.msra.mxu0 %v9424
        %9492 = vmatpush.bf16.msra.mxu0 %v9422
        %9493 = vmatpush.bf16.msra.mxu0 %v9420
        %9494 = vmatpush.bf16.msra.mxu0 %v9418
        %9495 = vmatpush.bf16.msra.mxu0 %v9416
        %9496 = vmatmul.bf16.gmra.mxu0 %v9400
        %v9497 = vpop.f32.mrf.mxu0
        %v9498 = vadd.f32 %v9449, %v9497
        %v9499 = vpop.f32.mrf.mxu0
        %v9500 = vadd.f32 %v9451, %v9499
        %9501 = vmatmul.bf16.gmra.mxu0 %v9402
        %v9502 = vpop.f32.mrf.mxu0
        %v9503 = vadd.f32 %v9454, %v9502
        %v9504 = vpop.f32.mrf.mxu0
        %v9505 = vadd.f32 %v9456, %v9504
        %9506 = vmatmul.bf16.gmra.mxu0 %v9404
        %v9507 = vpop.f32.mrf.mxu0
        %v9508 = vadd.f32 %v9459, %v9507
        %v9509 = vpop.f32.mrf.mxu0
        %v9510 = vadd.f32 %v9461, %v9509
        %9511 = vmatmul.bf16.gmra.mxu0 %v9406
        %v9512 = vpop.f32.mrf.mxu0
        %v9513 = vadd.f32 %v9464, %v9512
        %v9514 = vpop.f32.mrf.mxu0
        %v9515 = vadd.f32 %v9466, %v9514
        %9516 = vmatmul.bf16.gmra.mxu0 %v9408
        %v9517 = vpop.f32.mrf.mxu0
        %v9518 = vadd.f32 %v9469, %v9517
        %v9519 = vpop.f32.mrf.mxu0
        %v9520 = vadd.f32 %v9471, %v9519
        %9521 = vmatmul.bf16.gmra.mxu0 %v9410
        %v9522 = vpop.f32.mrf.mxu0
        %v9523 = vadd.f32 %v9474, %v9522
        %v9524 = vpop.f32.mrf.mxu0
        %v9525 = vadd.f32 %v9476, %v9524
        %9526 = vmatmul.bf16.gmra.mxu0 %v9412
        %v9527 = vpop.f32.mrf.mxu0
        %v9528 = vadd.f32 %v9479, %v9527
        %v9529 = vpop.f32.mrf.mxu0
        %v9530 = vadd.f32 %v9481, %v9529
        %9531 = vmatmul.bf16.gmra.mxu0 %v9414
        %v9532 = vpop.f32.mrf.mxu0
        %v9533 = vadd.f32 %v9484, %v9532
        %v9534 = vpop.f32.mrf.mxu0
        %v9535 = vadd.f32 %v9486, %v9534
        %9536 = vdwg.mxu0
        %v9537 = vrcp.pop %v9353
        %v9538 = vrcp.pop %v9356
        %v9539 = vrcp.pop %v9359
        %v9540 = vrcp.pop %v9362
        %v9541 = vrcp.pop %v9365
        %v9542 = vrcp.pop %v9368
        %v9543 = vrcp.pop %v9371
        %v9544 = vrcp.pop %v9374
        %v9545 = vrcp.pop %v9377
        %v9546 = vrcp.pop %v9380
        %v9547 = vrcp.pop %v9383
        %v9548 = vrcp.pop %v9386
        %v9549 = vrcp.pop %v9389
        %v9550 = vrcp.pop %v9392
        %v9551 = vrcp.pop %v9395
        %v9552 = vrcp.pop %v9398
        %v9553 = vmul.f32 %v9498, %v9537
        %v9554 = vmul.f32 %v9500, %v9538
        %v9555 = vmul.f32 %v9503, %v9539
        %v9556 = vmul.f32 %v9505, %v9540
        %v9557 = vmul.f32 %v9508, %v9541
        %v9558 = vmul.f32 %v9510, %v9542
        %v9559 = vmul.f32 %v9513, %v9543
        %v9560 = vmul.f32 %v9515, %v9544
        %v9561 = vmul.f32 %v9518, %v9545
        %v9562 = vmul.f32 %v9520, %v9546
        %v9563 = vmul.f32 %v9523, %v9547
        %v9564 = vmul.f32 %v9525, %v9548
        %v9565 = vmul.f32 %v9528, %v9549
        %v9566 = vmul.f32 %v9530, %v9550
        %v9567 = vmul.f32 %v9533, %v9551
        %v9568 = vmul.f32 %v9535, %v9552
        %9585 = vrot.lane.b32.xlu0 %v9553, 64
        %v9586 = vpop.permute.xlu0 %9585
        %9587 = vrot.lane.b32.xlu0 %v9554, 64
        %v9588 = vpop.permute.xlu0 %9587
        %9589 = vrot.lane.b32.xlu0 %v9555, 64
        %v9590 = vpop.permute.xlu0 %9589
        %9591 = vrot.lane.b32.xlu0 %v9556, 64
        %v9592 = vpop.permute.xlu0 %9591
        %9593 = vrot.lane.b32.xlu0 %v9557, 64
        %v9594 = vpop.permute.xlu0 %9593
        %9595 = vrot.lane.b32.xlu0 %v9558, 64
        %v9596 = vpop.permute.xlu0 %9595
        %9597 = vrot.lane.b32.xlu0 %v9559, 64
        %v9598 = vpop.permute.xlu0 %9597
        %9599 = vrot.lane.b32.xlu0 %v9560, 64
        %v9600 = vpop.permute.xlu0 %9599
        %9601 = vrot.lane.b32.xlu0 %v9561, 64
        %v9602 = vpop.permute.xlu0 %9601
        %9603 = vrot.lane.b32.xlu0 %v9562, 64
        %v9604 = vpop.permute.xlu0 %9603
        %9605 = vrot.lane.b32.xlu0 %v9563, 64
        %v9606 = vpop.permute.xlu0 %9605
        %9607 = vrot.lane.b32.xlu0 %v9564, 64
        %v9608 = vpop.permute.xlu0 %9607
        %9609 = vrot.lane.b32.xlu0 %v9565, 64
        %v9610 = vpop.permute.xlu0 %9609
        %9611 = vrot.lane.b32.xlu0 %v9566, 64
        %v9612 = vpop.permute.xlu0 %9611
        %9613 = vrot.lane.b32.xlu0 %v9567, 64
        %v9614 = vpop.permute.xlu0 %9613
        %9615 = vrot.lane.b32.xlu0 %v9568, 64
        %v9616 = vpop.permute.xlu0 %9615
        %v9633 = vsel %vm4379, %v8981, %v9586
        %v9634 = vsel %vm4379, %v8982, %v9588
        %v9635 = vsel %vm4379, %v8983, %v9590
        %v9636 = vsel %vm4379, %v8984, %v9592
        %v9637 = vsel %vm4379, %v8985, %v9594
        %v9638 = vsel %vm4379, %v8986, %v9596
        %v9639 = vsel %vm4379, %v8987, %v9598
        %v9640 = vsel %vm4379, %v8988, %v9600
        %v9641 = vsel %vm4379, %v8989, %v9602
        %v9642 = vsel %vm4379, %v8990, %v9604
        %v9643 = vsel %vm4379, %v8991, %v9606
        %v9644 = vsel %vm4379, %v8992, %v9608
        %v9645 = vsel %vm4379, %v8993, %v9610
        %v9646 = vsel %vm4379, %v8994, %v9612
        %v9647 = vsel %vm4379, %v8995, %v9614
        %v9648 = vsel %vm4379, %v8996, %v9616
        %v9649 = vpack.c.bf16 %v9633, %v9633
        %v9650 = vpack.c.bf16 %v9634, %v9634
        %v9651 = vpack.c.bf16 %v9635, %v9635
        %v9652 = vpack.c.bf16 %v9636, %v9636
        %v9653 = vpack.c.bf16 %v9637, %v9637
        %v9654 = vpack.c.bf16 %v9638, %v9638
        %v9655 = vpack.c.bf16 %v9639, %v9639
        %v9656 = vpack.c.bf16 %v9640, %v9640
        %v9657 = vpack.c.bf16 %v9641, %v9641
        %v9658 = vpack.c.bf16 %v9642, %v9642
        %v9659 = vpack.c.bf16 %v9643, %v9643
        %v9660 = vpack.c.bf16 %v9644, %v9644
        %v9661 = vpack.c.bf16 %v9645, %v9645
        %v9662 = vpack.c.bf16 %v9646, %v9646
        %v9663 = vpack.c.bf16 %v9647, %v9647
        %v9664 = vpack.c.bf16 %v9648, %v9648
        %9665 = vst [vmem:[%s180 + $0xc4] sm:$0xf] %v9649
        %9666 = vst [vmem:[%s180 + $0xd0] sm:$0xf] %v9650
        %9667 = vst [vmem:[%s180 + $0xdc] sm:$0xf] %v9651
        %9668 = vst [vmem:[%s180 + $0xe8] sm:$0xf] %v9652
        %9669 = vst [vmem:[%s180 + $0xf4] sm:$0xf] %v9653
        %9670 = vst [vmem:[%s180 + $0x100] sm:$0xf] %v9654
        %9671 = vst [vmem:[%s180 + $0x10c] sm:$0xf] %v9655
        %9672 = vst [vmem:[%s180 + $0x118] sm:$0xf] %v9656
        %9673 = vst [vmem:[%s180 + $0x124] sm:$0xf] %v9657
        %9674 = vst [vmem:[%s180 + $0x130] sm:$0xf] %v9658
        %9675 = vst [vmem:[%s180 + $0x13c] sm:$0xf] %v9659
        %9676 = vst [vmem:[%s180 + $0x148] sm:$0xf] %v9660
        %9677 = vst [vmem:[%s180 + $0x154] sm:$0xf] %v9661
        %9678 = vst [vmem:[%s180 + $0x160] sm:$0xf] %v9662
        %9679 = vst [vmem:[%s180 + $0x16c] sm:$0xf] %v9663
        %9680 = vst [vmem:[%s180 + $0x178] sm:$0xf] %v9664
        %v9697 = vunpack.c.l.b16 %v4105
        %v9698 = vunpack.c.l.b16 %v4107
        %v9699 = vunpack.c.l.b16 %v4109
        %v9700 = vunpack.c.l.b16 %v4111
        %v9701 = vunpack.c.l.b16 %v4113
        %v9702 = vunpack.c.l.b16 %v4115
        %v9703 = vunpack.c.l.b16 %v4117
        %v9704 = vunpack.c.l.b16 %v4119
        %v9705 = vunpack.c.l.b16 %v4121
        %v9706 = vunpack.c.l.b16 %v4123
        %v9707 = vunpack.c.l.b16 %v4125
        %v9708 = vunpack.c.l.b16 %v4127
        %v9709 = vunpack.c.l.b16 %v4129
        %v9710 = vunpack.c.l.b16 %v4131
        %v9711 = vunpack.c.l.b16 %v4133
        %v9712 = vunpack.c.l.b16 %v4135
        %v9713 = vpack.c.b16 %v9698, %v9697
        %v9714 = vpack.c.b16 %v9700, %v9699
        %v9715 = vpack.c.b16 %v9702, %v9701
        %v9716 = vpack.c.b16 %v9704, %v9703
        %v9717 = vpack.c.b16 %v9706, %v9705
        %v9718 = vpack.c.b16 %v9708, %v9707
        %v9719 = vpack.c.b16 %v9710, %v9709
        %v9720 = vpack.c.b16 %v9712, %v9711
        %v9737 = vunpack.c.l.b16 %v4169
        %v9738 = vunpack.c.l.b16 %v4171
        %v9739 = vunpack.c.l.b16 %v4173
        %v9740 = vunpack.c.l.b16 %v4175
        %v9741 = vunpack.c.l.b16 %v4177
        %v9742 = vunpack.c.l.b16 %v4179
        %v9743 = vunpack.c.l.b16 %v4181
        %v9744 = vunpack.c.l.b16 %v4183
        %v9745 = vunpack.c.l.b16 %v4185
        %v9746 = vunpack.c.l.b16 %v4187
        %v9747 = vunpack.c.l.b16 %v4189
        %v9748 = vunpack.c.l.b16 %v4191
        %v9749 = vunpack.c.l.b16 %v4193
        %v9750 = vunpack.c.l.b16 %v4195
        %v9751 = vunpack.c.l.b16 %v4197
        %v9752 = vunpack.c.l.b16 %v4199
        %v9753 = vpack.c.b16 %v9738, %v9737
        %v9754 = vpack.c.b16 %v9740, %v9739
        %v9755 = vpack.c.b16 %v9742, %v9741
        %v9756 = vpack.c.b16 %v9744, %v9743
        %v9757 = vpack.c.b16 %v9746, %v9745
        %v9758 = vpack.c.b16 %v9748, %v9747
        %v9759 = vpack.c.b16 %v9750, %v9749
        %v9760 = vpack.c.b16 %v9752, %v9751
        %v9762 = vsel %vm4379, %v9713, 0
        %v9765 = vsel %vm4379, %v9714, 0
        %v9768 = vsel %vm4379, %v9715, 0
        %v9771 = vsel %vm4379, %v9716, 0
        %v9774 = vsel %vm4379, %v9717, 0
        %v9777 = vsel %vm4379, %v9718, 0
        %v9780 = vsel %vm4379, %v9719, 0
        %v9783 = vsel %vm4379, %v9720, 0
        %v9786 = vsel %vm4379, %v9753, 0
        %v9789 = vsel %vm4379, %v9754, 0
        %v9792 = vsel %vm4379, %v9755, 0
        %v9795 = vsel %vm4379, %v9756, 0
        %v9798 = vsel %vm4379, %v9757, 0
        %v9801 = vsel %vm4379, %v9758, 0
        %v9804 = vsel %vm4379, %v9759, 0
        %v9807 = vsel %vm4379, %v9760, 0
        %9809 = vmatpush.bf16.xpose.msra.mxu0 %v6226
        %9810 = vmatpush.bf16.xpose.msra.mxu0 %v6223
        %9811 = vmatpush.bf16.xpose.msra.mxu0 %v6220
        %9812 = vmatpush.bf16.xpose.msra.mxu0 %v6217
        %9813 = vmatpush.bf16.xpose.msra.mxu0 %v6214
        %9814 = vmatpush.bf16.xpose.msra.mxu0 %v6211
        %9815 = vmatpush.bf16.xpose.msra.mxu0 %v6208
        %9816 = vmatpush.bf16.xpose.msra.mxu0 %v6205
        %9817 = vmatmul.bf16.gmra.mxu0 %v9762
        %v9818 = vpop.f32.mrf.mxu0
        %v9819 = vadd.f32 0.0, %v9818
        %v9820 = vpop.f32.mrf.mxu0
        %v9821 = vadd.f32 0.0, %v9820
        %9822 = vmatmul.bf16.gmra.mxu0 %v9765
        %v9823 = vpop.f32.mrf.mxu0
        %v9824 = vadd.f32 0.0, %v9823
        %v9825 = vpop.f32.mrf.mxu0
        %v9826 = vadd.f32 0.0, %v9825
        %9827 = vmatmul.bf16.gmra.mxu0 %v9768
        %v9828 = vpop.f32.mrf.mxu0
        %v9829 = vadd.f32 0.0, %v9828
        %v9830 = vpop.f32.mrf.mxu0
        %v9831 = vadd.f32 0.0, %v9830
        %9832 = vmatmul.bf16.gmra.mxu0 %v9771
        %v9833 = vpop.f32.mrf.mxu0
        %v9834 = vadd.f32 0.0, %v9833
        %v9835 = vpop.f32.mrf.mxu0
        %v9836 = vadd.f32 0.0, %v9835
        %9837 = vmatmul.bf16.gmra.mxu0 %v9774
        %v9838 = vpop.f32.mrf.mxu0
        %v9839 = vadd.f32 0.0, %v9838
        %v9840 = vpop.f32.mrf.mxu0
        %v9841 = vadd.f32 0.0, %v9840
        %9842 = vmatmul.bf16.gmra.mxu0 %v9777
        %v9843 = vpop.f32.mrf.mxu0
        %v9844 = vadd.f32 0.0, %v9843
        %v9845 = vpop.f32.mrf.mxu0
        %v9846 = vadd.f32 0.0, %v9845
        %9847 = vmatmul.bf16.gmra.mxu0 %v9780
        %v9848 = vpop.f32.mrf.mxu0
        %v9849 = vadd.f32 0.0, %v9848
        %v9850 = vpop.f32.mrf.mxu0
        %v9851 = vadd.f32 0.0, %v9850
        %9852 = vmatmul.bf16.gmra.mxu0 %v9783
        %v9853 = vpop.f32.mrf.mxu0
        %v9854 = vadd.f32 0.0, %v9853
        %v9855 = vpop.f32.mrf.mxu0
        %v9856 = vadd.f32 0.0, %v9855
        %9857 = vdwg.mxu0
        %9858 = vmatpush.bf16.xpose.msra.mxu0 %v9807
        %9859 = vmatpush.bf16.xpose.msra.mxu0 %v9804
        %9860 = vmatpush.bf16.xpose.msra.mxu0 %v9801
        %9861 = vmatpush.bf16.xpose.msra.mxu0 %v9798
        %9862 = vmatpush.bf16.xpose.msra.mxu0 %v9795
        %9863 = vmatpush.bf16.xpose.msra.mxu0 %v9792
        %9864 = vmatpush.bf16.xpose.msra.mxu0 %v9789
        %9865 = vmatpush.bf16.xpose.msra.mxu0 %v9786
        %9866 = vmatmul.bf16.gmra.mxu0 %v9762
        %v9867 = vpop.f32.mrf.mxu0
        %v9868 = vadd.f32 0.0, %v9867
        %v9869 = vpop.f32.mrf.mxu0
        %v9870 = vadd.f32 0.0, %v9869
        %9871 = vmatmul.bf16.gmra.mxu0 %v9765
        %v9872 = vpop.f32.mrf.mxu0
        %v9873 = vadd.f32 0.0, %v9872
        %v9874 = vpop.f32.mrf.mxu0
        %v9875 = vadd.f32 0.0, %v9874
        %9876 = vmatmul.bf16.gmra.mxu0 %v9768
        %v9877 = vpop.f32.mrf.mxu0
        %v9878 = vadd.f32 0.0, %v9877
        %v9879 = vpop.f32.mrf.mxu0
        %v9880 = vadd.f32 0.0, %v9879
        %9881 = vmatmul.bf16.gmra.mxu0 %v9771
        %v9882 = vpop.f32.mrf.mxu0
        %v9883 = vadd.f32 0.0, %v9882
        %v9884 = vpop.f32.mrf.mxu0
        %v9885 = vadd.f32 0.0, %v9884
        %9886 = vmatmul.bf16.gmra.mxu0 %v9774
        %v9887 = vpop.f32.mrf.mxu0
        %v9888 = vadd.f32 0.0, %v9887
        %v9889 = vpop.f32.mrf.mxu0
        %v9890 = vadd.f32 0.0, %v9889
        %9891 = vmatmul.bf16.gmra.mxu0 %v9777
        %v9892 = vpop.f32.mrf.mxu0
        %v9893 = vadd.f32 0.0, %v9892
        %v9894 = vpop.f32.mrf.mxu0
        %v9895 = vadd.f32 0.0, %v9894
        %9896 = vmatmul.bf16.gmra.mxu0 %v9780
        %v9897 = vpop.f32.mrf.mxu0
        %v9898 = vadd.f32 0.0, %v9897
        %v9899 = vpop.f32.mrf.mxu0
        %v9900 = vadd.f32 0.0, %v9899
        %9901 = vmatmul.bf16.gmra.mxu0 %v9783
        %v9902 = vpop.f32.mrf.mxu0
        %v9903 = vadd.f32 0.0, %v9902
        %v9904 = vpop.f32.mrf.mxu0
        %v9905 = vadd.f32 0.0, %v9904
        %9906 = vdwg.mxu0
        %v9907 = vsel %vm7041, %v9819, -inf
        %v9908 = vsel %vm7042, %v9868, -inf
        %v9909 = vsel %vm7043, %v9821, -inf
        %v9910 = vsel %vm7044, %v9870, -inf
        %v9911 = vsel %vm7045, %v9824, -inf
        %v9912 = vsel %vm7046, %v9873, -inf
        %v9913 = vsel %vm7047, %v9826, -inf
        %v9914 = vsel %vm7048, %v9875, -inf
        %v9915 = vsel %vm7049, %v9829, -inf
        %v9916 = vsel %vm7050, %v9878, -inf
        %v9917 = vsel %vm7051, %v9831, -inf
        %v9918 = vsel %vm7052, %v9880, -inf
        %v9919 = vsel %vm7053, %v9834, -inf
        %v9920 = vsel %vm7054, %v9883, -inf
        %v9921 = vsel %vm7055, %v9836, -inf
        %v9922 = vsel %vm7056, %v9885, -inf
        %v9923 = vsel %vm7057, %v9839, -inf
        %v9924 = vsel %vm7058, %v9888, -inf
        %v9925 = vsel %vm7059, %v9841, -inf
        %v9926 = vsel %vm7060, %v9890, -inf
        %v9927 = vsel %vm7061, %v9844, -inf
        %v9928 = vsel %vm7062, %v9893, -inf
        %v9929 = vsel %vm7063, %v9846, -inf
        %v9930 = vsel %vm7064, %v9895, -inf
        %v9931 = vsel %vm7065, %v9849, -inf
        %v9932 = vsel %vm7066, %v9898, -inf
        %v9933 = vsel %vm7067, %v9851, -inf
        %v9934 = vsel %vm7068, %v9900, -inf
        %v9935 = vsel %vm7069, %v9854, -inf
        %v9936 = vsel %vm7070, %v9903, -inf
        %v9937 = vsel %vm7071, %v9856, -inf
        %v9938 = vsel %vm7072, %v9905, -inf
        %v9939 = vmax.f32 %v9907, %v9908
        %9940 = vmax.xlane.f32.xlu0 %v9939
        %v9941 = vpop.xlane.xlu0 %9940
        %v9942 = vmax.f32 %v9909, %v9910
        %9943 = vmax.xlane.f32.xlu0 %v9942
        %v9944 = vpop.xlane.xlu0 %9943
        %v9945 = vmax.f32 %v9911, %v9912
        %9946 = vmax.xlane.f32.xlu0 %v9945
        %v9947 = vpop.xlane.xlu0 %9946
        %v9948 = vmax.f32 %v9913, %v9914
        %9949 = vmax.xlane.f32.xlu0 %v9948
        %v9950 = vpop.xlane.xlu0 %9949
        %v9951 = vmax.f32 %v9915, %v9916
        %9952 = vmax.xlane.f32.xlu0 %v9951
        %v9953 = vpop.xlane.xlu0 %9952
        %v9954 = vmax.f32 %v9917, %v9918
        %9955 = vmax.xlane.f32.xlu0 %v9954
        %v9956 = vpop.xlane.xlu0 %9955
        %v9957 = vmax.f32 %v9919, %v9920
        %9958 = vmax.xlane.f32.xlu0 %v9957
        %v9959 = vpop.xlane.xlu0 %9958
        %v9960 = vmax.f32 %v9921, %v9922
        %9961 = vmax.xlane.f32.xlu0 %v9960
        %v9962 = vpop.xlane.xlu0 %9961
        %v9963 = vmax.f32 %v9923, %v9924
        %9964 = vmax.xlane.f32.xlu0 %v9963
        %v9965 = vpop.xlane.xlu0 %9964
        %v9966 = vmax.f32 %v9925, %v9926
        %9967 = vmax.xlane.f32.xlu0 %v9966
        %v9968 = vpop.xlane.xlu0 %9967
        %v9969 = vmax.f32 %v9927, %v9928
        %9970 = vmax.xlane.f32.xlu0 %v9969
        %v9971 = vpop.xlane.xlu0 %9970
        %v9972 = vmax.f32 %v9929, %v9930
        %9973 = vmax.xlane.f32.xlu0 %v9972
        %v9974 = vpop.xlane.xlu0 %9973
        %v9975 = vmax.f32 %v9931, %v9932
        %9976 = vmax.xlane.f32.xlu0 %v9975
        %v9977 = vpop.xlane.xlu0 %9976
        %v9978 = vmax.f32 %v9933, %v9934
        %9979 = vmax.xlane.f32.xlu0 %v9978
        %v9980 = vpop.xlane.xlu0 %9979
        %v9981 = vmax.f32 %v9935, %v9936
        %9982 = vmax.xlane.f32.xlu0 %v9981
        %v9983 = vpop.xlane.xlu0 %9982
        %v9984 = vmax.f32 %v9937, %v9938
        %9985 = vmax.xlane.f32.xlu0 %v9984
        %v9986 = vpop.xlane.xlu0 %9985
        %v9987 = vsub.f32 %v9907, %v9941
        %v9988 = vsub.f32 %v9908, %v9941
        %v9989 = vsub.f32 %v9909, %v9944
        %v9990 = vsub.f32 %v9910, %v9944
        %v9991 = vsub.f32 %v9911, %v9947
        %v9992 = vsub.f32 %v9912, %v9947
        %v9993 = vsub.f32 %v9913, %v9950
        %v9994 = vsub.f32 %v9914, %v9950
        %v9995 = vsub.f32 %v9915, %v9953
        %v9996 = vsub.f32 %v9916, %v9953
        %v9997 = vsub.f32 %v9917, %v9956
        %v9998 = vsub.f32 %v9918, %v9956
        %v9999 = vsub.f32 %v9919, %v9959
        %v10000 = vsub.f32 %v9920, %v9959
        %v10001 = vsub.f32 %v9921, %v9962
        %v10002 = vsub.f32 %v9922, %v9962
        %v10003 = vsub.f32 %v9923, %v9965
        %v10004 = vsub.f32 %v9924, %v9965
        %v10005 = vsub.f32 %v9925, %v9968
        %v10006 = vsub.f32 %v9926, %v9968
        %v10007 = vsub.f32 %v9927, %v9971
        %v10008 = vsub.f32 %v9928, %v9971
        %v10009 = vsub.f32 %v9929, %v9974
        %v10010 = vsub.f32 %v9930, %v9974
        %v10011 = vsub.f32 %v9931, %v9977
        %v10012 = vsub.f32 %v9932, %v9977
        %v10013 = vsub.f32 %v9933, %v9980
        %v10014 = vsub.f32 %v9934, %v9980
        %v10015 = vsub.f32 %v9935, %v9983
        %v10016 = vsub.f32 %v9936, %v9983
        %v10017 = vsub.f32 %v9937, %v9986
        %v10018 = vsub.f32 %v9938, %v9986
        %v10019 = vmul.f32 %v9987, 1.442695
        %v10020 = vpow.pop %v10019
        %v10021 = vmul.f32 %v9988, 1.442695
        %v10022 = vpow.pop %v10021
        %v10023 = vmul.f32 %v9989, 1.442695
        %v10024 = vpow.pop %v10023
        %v10025 = vmul.f32 %v9990, 1.442695
        %v10026 = vpow.pop %v10025
        %v10027 = vmul.f32 %v9991, 1.442695
        %v10028 = vpow.pop %v10027
        %v10029 = vmul.f32 %v9992, 1.442695
        %v10030 = vpow.pop %v10029
        %v10031 = vmul.f32 %v9993, 1.442695
        %v10032 = vpow.pop %v10031
        %v10033 = vmul.f32 %v9994, 1.442695
        %v10034 = vpow.pop %v10033
        %v10035 = vmul.f32 %v9995, 1.442695
        %v10036 = vpow.pop %v10035
        %v10037 = vmul.f32 %v9996, 1.442695
        %v10038 = vpow.pop %v10037
        %v10039 = vmul.f32 %v9997, 1.442695
        %v10040 = vpow.pop %v10039
        %v10041 = vmul.f32 %v9998, 1.442695
        %v10042 = vpow.pop %v10041
        %v10043 = vmul.f32 %v9999, 1.442695
        %v10044 = vpow.pop %v10043
        %v10045 = vmul.f32 %v10000, 1.442695
        %v10046 = vpow.pop %v10045
        %v10047 = vmul.f32 %v10001, 1.442695
        %v10048 = vpow.pop %v10047
        %v10049 = vmul.f32 %v10002, 1.442695
        %v10050 = vpow.pop %v10049
        %v10051 = vmul.f32 %v10003, 1.442695
        %v10052 = vpow.pop %v10051
        %v10053 = vmul.f32 %v10004, 1.442695
        %v10054 = vpow.pop %v10053
        %v10055 = vmul.f32 %v10005, 1.442695
        %v10056 = vpow.pop %v10055
        %v10057 = vmul.f32 %v10006, 1.442695
        %v10058 = vpow.pop %v10057
        %v10059 = vmul.f32 %v10007, 1.442695
        %v10060 = vpow.pop %v10059
        %v10061 = vmul.f32 %v10008, 1.442695
        %v10062 = vpow.pop %v10061
        %v10063 = vmul.f32 %v10009, 1.442695
        %v10064 = vpow.pop %v10063
        %v10065 = vmul.f32 %v10010, 1.442695
        %v10066 = vpow.pop %v10065
        %v10067 = vmul.f32 %v10011, 1.442695
        %v10068 = vpow.pop %v10067
        %v10069 = vmul.f32 %v10012, 1.442695
        %v10070 = vpow.pop %v10069
        %v10071 = vmul.f32 %v10013, 1.442695
        %v10072 = vpow.pop %v10071
        %v10073 = vmul.f32 %v10014, 1.442695
        %v10074 = vpow.pop %v10073
        %v10075 = vmul.f32 %v10015, 1.442695
        %v10076 = vpow.pop %v10075
        %v10077 = vmul.f32 %v10016, 1.442695
        %v10078 = vpow.pop %v10077
        %v10079 = vmul.f32 %v10017, 1.442695
        %v10080 = vpow.pop %v10079
        %v10081 = vmul.f32 %v10018, 1.442695
        %v10082 = vpow.pop %v10081
        %v10083 = vadd.f32 %v10020, %v10022
        %10084 = vadd.xlane.f32.xlu0 %v10083
        %v10085 = vpop.xlane.xlu0 %10084
        %v10086 = vadd.f32 %v10024, %v10026
        %10087 = vadd.xlane.f32.xlu0 %v10086
        %v10088 = vpop.xlane.xlu0 %10087
        %v10089 = vadd.f32 %v10028, %v10030
        %10090 = vadd.xlane.f32.xlu0 %v10089
        %v10091 = vpop.xlane.xlu0 %10090
        %v10092 = vadd.f32 %v10032, %v10034
        %10093 = vadd.xlane.f32.xlu0 %v10092
        %v10094 = vpop.xlane.xlu0 %10093
        %v10095 = vadd.f32 %v10036, %v10038
        %10096 = vadd.xlane.f32.xlu0 %v10095
        %v10097 = vpop.xlane.xlu0 %10096
        %v10098 = vadd.f32 %v10040, %v10042
        %10099 = vadd.xlane.f32.xlu0 %v10098
        %v10100 = vpop.xlane.xlu0 %10099
        %v10101 = vadd.f32 %v10044, %v10046
        %10102 = vadd.xlane.f32.xlu0 %v10101
        %v10103 = vpop.xlane.xlu0 %10102
        %v10104 = vadd.f32 %v10048, %v10050
        %10105 = vadd.xlane.f32.xlu0 %v10104
        %v10106 = vpop.xlane.xlu0 %10105
        %v10107 = vadd.f32 %v10052, %v10054
        %10108 = vadd.xlane.f32.xlu0 %v10107
        %v10109 = vpop.xlane.xlu0 %10108
        %v10110 = vadd.f32 %v10056, %v10058
        %10111 = vadd.xlane.f32.xlu0 %v10110
        %v10112 = vpop.xlane.xlu0 %10111
        %v10113 = vadd.f32 %v10060, %v10062
        %10114 = vadd.xlane.f32.xlu0 %v10113
        %v10115 = vpop.xlane.xlu0 %10114
        %v10116 = vadd.f32 %v10064, %v10066
        %10117 = vadd.xlane.f32.xlu0 %v10116
        %v10118 = vpop.xlane.xlu0 %10117
        %v10119 = vadd.f32 %v10068, %v10070
        %10120 = vadd.xlane.f32.xlu0 %v10119
        %v10121 = vpop.xlane.xlu0 %10120
        %v10122 = vadd.f32 %v10072, %v10074
        %10123 = vadd.xlane.f32.xlu0 %v10122
        %v10124 = vpop.xlane.xlu0 %10123
        %v10125 = vadd.f32 %v10076, %v10078
        %10126 = vadd.xlane.f32.xlu0 %v10125
        %v10127 = vpop.xlane.xlu0 %10126
        %v10128 = vadd.f32 %v10080, %v10082
        %10129 = vadd.xlane.f32.xlu0 %v10128
        %v10130 = vpop.xlane.xlu0 %10129
        %v10131 = vpack.c.bf16 %v10024, %v10020
        %v10132 = vpack.c.bf16 %v10026, %v10022
        %v10133 = vpack.c.bf16 %v10032, %v10028
        %v10134 = vpack.c.bf16 %v10034, %v10030
        %v10135 = vpack.c.bf16 %v10040, %v10036
        %v10136 = vpack.c.bf16 %v10042, %v10038
        %v10137 = vpack.c.bf16 %v10048, %v10044
        %v10138 = vpack.c.bf16 %v10050, %v10046
        %v10139 = vpack.c.bf16 %v10056, %v10052
        %v10140 = vpack.c.bf16 %v10058, %v10054
        %v10141 = vpack.c.bf16 %v10064, %v10060
        %v10142 = vpack.c.bf16 %v10066, %v10062
        %v10143 = vpack.c.bf16 %v10072, %v10068
        %v10144 = vpack.c.bf16 %v10074, %v10070
        %v10145 = vpack.c.bf16 %v10080, %v10076
        %v10146 = vpack.c.bf16 %v10082, %v10078
        %v10163 = vunpack.c.l.b16 %v4233
        %v10164 = vunpack.c.l.b16 %v4235
        %v10165 = vunpack.c.l.b16 %v4237
        %v10166 = vunpack.c.l.b16 %v4239
        %v10167 = vunpack.c.l.b16 %v4241
        %v10168 = vunpack.c.l.b16 %v4243
        %v10169 = vunpack.c.l.b16 %v4245
        %v10170 = vunpack.c.l.b16 %v4247
        %v10171 = vunpack.c.l.b16 %v4249
        %v10172 = vunpack.c.l.b16 %v4251
        %v10173 = vunpack.c.l.b16 %v4253
        %v10174 = vunpack.c.l.b16 %v4255
        %v10175 = vunpack.c.l.b16 %v4257
        %v10176 = vunpack.c.l.b16 %v4259
        %v10177 = vunpack.c.l.b16 %v4261
        %v10178 = vunpack.c.l.b16 %v4263
        %v10179 = vpack.c.b16 %v10164, %v10163
        %v10180 = vpack.c.b16 %v10166, %v10165
        %v10181 = vpack.c.b16 %v10168, %v10167
        %v10182 = vpack.c.b16 %v10170, %v10169
        %v10183 = vpack.c.b16 %v10172, %v10171
        %v10184 = vpack.c.b16 %v10174, %v10173
        %v10185 = vpack.c.b16 %v10176, %v10175
        %v10186 = vpack.c.b16 %v10178, %v10177
        %10195 = vmatpush.bf16.msra.mxu0 %v6452
        %10196 = vmatpush.bf16.msra.mxu0 %v6451
        %10197 = vmatpush.bf16.msra.mxu0 %v6450
        %10198 = vmatpush.bf16.msra.mxu0 %v6449
        %10199 = vmatpush.bf16.msra.mxu0 %v6448
        %10200 = vmatpush.bf16.msra.mxu0 %v6447
        %10201 = vmatpush.bf16.msra.mxu0 %v6446
        %10202 = vmatpush.bf16.msra.mxu0 %v6445
        %10203 = vmatmul.bf16.gmra.mxu0 %v10131
        %v10204 = vpop.f32.mrf.mxu0
        %v10205 = vadd.f32 0.0, %v10204
        %v10206 = vpop.f32.mrf.mxu0
        %v10207 = vadd.f32 0.0, %v10206
        %10208 = vmatmul.bf16.gmra.mxu0 %v10133
        %v10209 = vpop.f32.mrf.mxu0
        %v10210 = vadd.f32 0.0, %v10209
        %v10211 = vpop.f32.mrf.mxu0
        %v10212 = vadd.f32 0.0, %v10211
        %10213 = vmatmul.bf16.gmra.mxu0 %v10135
        %v10214 = vpop.f32.mrf.mxu0
        %v10215 = vadd.f32 0.0, %v10214
        %v10216 = vpop.f32.mrf.mxu0
        %v10217 = vadd.f32 0.0, %v10216
        %10218 = vmatmul.bf16.gmra.mxu0 %v10137
        %v10219 = vpop.f32.mrf.mxu0
        %v10220 = vadd.f32 0.0, %v10219
        %v10221 = vpop.f32.mrf.mxu0
        %v10222 = vadd.f32 0.0, %v10221
        %10223 = vmatmul.bf16.gmra.mxu0 %v10139
        %v10224 = vpop.f32.mrf.mxu0
        %v10225 = vadd.f32 0.0, %v10224
        %v10226 = vpop.f32.mrf.mxu0
        %v10227 = vadd.f32 0.0, %v10226
        %10228 = vmatmul.bf16.gmra.mxu0 %v10141
        %v10229 = vpop.f32.mrf.mxu0
        %v10230 = vadd.f32 0.0, %v10229
        %v10231 = vpop.f32.mrf.mxu0
        %v10232 = vadd.f32 0.0, %v10231
        %10233 = vmatmul.bf16.gmra.mxu0 %v10143
        %v10234 = vpop.f32.mrf.mxu0
        %v10235 = vadd.f32 0.0, %v10234
        %v10236 = vpop.f32.mrf.mxu0
        %v10237 = vadd.f32 0.0, %v10236
        %10238 = vmatmul.bf16.gmra.mxu0 %v10145
        %v10239 = vpop.f32.mrf.mxu0
        %v10240 = vadd.f32 0.0, %v10239
        %v10241 = vpop.f32.mrf.mxu0
        %v10242 = vadd.f32 0.0, %v10241
        %10243 = vdwg.mxu0
        %10244 = vmatpush.bf16.msra.mxu0 %v10186
        %10245 = vmatpush.bf16.msra.mxu0 %v10185
        %10246 = vmatpush.bf16.msra.mxu0 %v10184
        %10247 = vmatpush.bf16.msra.mxu0 %v10183
        %10248 = vmatpush.bf16.msra.mxu0 %v10182
        %10249 = vmatpush.bf16.msra.mxu0 %v10181
        %10250 = vmatpush.bf16.msra.mxu0 %v10180
        %10251 = vmatpush.bf16.msra.mxu0 %v10179
        %10252 = vmatmul.bf16.gmra.mxu0 %v10132
        %v10253 = vpop.f32.mrf.mxu0
        %v10254 = vadd.f32 %v10205, %v10253
        %v10255 = vpop.f32.mrf.mxu0
        %v10256 = vadd.f32 %v10207, %v10255
        %10257 = vmatmul.bf16.gmra.mxu0 %v10134
        %v10258 = vpop.f32.mrf.mxu0
        %v10259 = vadd.f32 %v10210, %v10258
        %v10260 = vpop.f32.mrf.mxu0
        %v10261 = vadd.f32 %v10212, %v10260
        %10262 = vmatmul.bf16.gmra.mxu0 %v10136
        %v10263 = vpop.f32.mrf.mxu0
        %v10264 = vadd.f32 %v10215, %v10263
        %v10265 = vpop.f32.mrf.mxu0
        %v10266 = vadd.f32 %v10217, %v10265
        %10267 = vmatmul.bf16.gmra.mxu0 %v10138
        %v10268 = vpop.f32.mrf.mxu0
        %v10269 = vadd.f32 %v10220, %v10268
        %v10270 = vpop.f32.mrf.mxu0
        %v10271 = vadd.f32 %v10222, %v10270
        %10272 = vmatmul.bf16.gmra.mxu0 %v10140
        %v10273 = vpop.f32.mrf.mxu0
        %v10274 = vadd.f32 %v10225, %v10273
        %v10275 = vpop.f32.mrf.mxu0
        %v10276 = vadd.f32 %v10227, %v10275
        %10277 = vmatmul.bf16.gmra.mxu0 %v10142
        %v10278 = vpop.f32.mrf.mxu0
        %v10279 = vadd.f32 %v10230, %v10278
        %v10280 = vpop.f32.mrf.mxu0
        %v10281 = vadd.f32 %v10232, %v10280
        %10282 = vmatmul.bf16.gmra.mxu0 %v10144
        %v10283 = vpop.f32.mrf.mxu0
        %v10284 = vadd.f32 %v10235, %v10283
        %v10285 = vpop.f32.mrf.mxu0
        %v10286 = vadd.f32 %v10237, %v10285
        %10287 = vmatmul.bf16.gmra.mxu0 %v10146
        %v10288 = vpop.f32.mrf.mxu0
        %v10289 = vadd.f32 %v10240, %v10288
        %v10290 = vpop.f32.mrf.mxu0
        %v10291 = vadd.f32 %v10242, %v10290
        %10292 = vdwg.mxu0
        %v10293 = vrcp.pop %v10085
        %v10294 = vrcp.pop %v10088
        %v10295 = vrcp.pop %v10091
        %v10296 = vrcp.pop %v10094
        %v10297 = vrcp.pop %v10097
        %v10298 = vrcp.pop %v10100
        %v10299 = vrcp.pop %v10103
        %v10300 = vrcp.pop %v10106
        %v10301 = vrcp.pop %v10109
        %v10302 = vrcp.pop %v10112
        %v10303 = vrcp.pop %v10115
        %v10304 = vrcp.pop %v10118
        %v10305 = vrcp.pop %v10121
        %v10306 = vrcp.pop %v10124
        %v10307 = vrcp.pop %v10127
        %v10308 = vrcp.pop %v10130
        %v10309 = vmul.f32 %v10254, %v10293
        %v10310 = vmul.f32 %v10256, %v10294
        %v10311 = vmul.f32 %v10259, %v10295
        %v10312 = vmul.f32 %v10261, %v10296
        %v10313 = vmul.f32 %v10264, %v10297
        %v10314 = vmul.f32 %v10266, %v10298
        %v10315 = vmul.f32 %v10269, %v10299
        %v10316 = vmul.f32 %v10271, %v10300
        %v10317 = vmul.f32 %v10274, %v10301
        %v10318 = vmul.f32 %v10276, %v10302
        %v10319 = vmul.f32 %v10279, %v10303
        %v10320 = vmul.f32 %v10281, %v10304
        %v10321 = vmul.f32 %v10284, %v10305
        %v10322 = vmul.f32 %v10286, %v10306
        %v10323 = vmul.f32 %v10289, %v10307
        %v10324 = vmul.f32 %v10291, %v10308
        %10325 = vrot.lane.b32.xlu0 %v9713, 64
        %v10326 = vpop.permute.xlu0 %10325
        %10327 = vrot.lane.b32.xlu0 %v9714, 64
        %v10328 = vpop.permute.xlu0 %10327
        %10329 = vrot.lane.b32.xlu0 %v9715, 64
        %v10330 = vpop.permute.xlu0 %10329
        %10331 = vrot.lane.b32.xlu0 %v9716, 64
        %v10332 = vpop.permute.xlu0 %10331
        %10333 = vrot.lane.b32.xlu0 %v9717, 64
        %v10334 = vpop.permute.xlu0 %10333
        %10335 = vrot.lane.b32.xlu0 %v9718, 64
        %v10336 = vpop.permute.xlu0 %10335
        %10337 = vrot.lane.b32.xlu0 %v9719, 64
        %v10338 = vpop.permute.xlu0 %10337
        %10339 = vrot.lane.b32.xlu0 %v9720, 64
        %v10340 = vpop.permute.xlu0 %10339
        %10341 = vrot.lane.b32.xlu0 %v9753, 64
        %v10342 = vpop.permute.xlu0 %10341
        %10343 = vrot.lane.b32.xlu0 %v9754, 64
        %v10344 = vpop.permute.xlu0 %10343
        %10345 = vrot.lane.b32.xlu0 %v9755, 64
        %v10346 = vpop.permute.xlu0 %10345
        %10347 = vrot.lane.b32.xlu0 %v9756, 64
        %v10348 = vpop.permute.xlu0 %10347
        %10349 = vrot.lane.b32.xlu0 %v9757, 64
        %v10350 = vpop.permute.xlu0 %10349
        %10351 = vrot.lane.b32.xlu0 %v9758, 64
        %v10352 = vpop.permute.xlu0 %10351
        %10353 = vrot.lane.b32.xlu0 %v9759, 64
        %v10354 = vpop.permute.xlu0 %10353
        %10355 = vrot.lane.b32.xlu0 %v9760, 64
        %v10356 = vpop.permute.xlu0 %10355
        %v10358 = vsel %vm4379, %v10326, 0
        %v10361 = vsel %vm4379, %v10328, 0
        %v10364 = vsel %vm4379, %v10330, 0
        %v10367 = vsel %vm4379, %v10332, 0
        %v10370 = vsel %vm4379, %v10334, 0
        %v10373 = vsel %vm4379, %v10336, 0
        %v10376 = vsel %vm4379, %v10338, 0
        %v10379 = vsel %vm4379, %v10340, 0
        %v10382 = vsel %vm4379, %v10342, 0
        %v10385 = vsel %vm4379, %v10344, 0
        %v10388 = vsel %vm4379, %v10346, 0
        %v10391 = vsel %vm4379, %v10348, 0
        %v10394 = vsel %vm4379, %v10350, 0
        %v10397 = vsel %vm4379, %v10352, 0
        %v10400 = vsel %vm4379, %v10354, 0
        %v10403 = vsel %vm4379, %v10356, 0
        %10405 = vmatpush.bf16.xpose.msra.mxu0 %v6620
        %10406 = vmatpush.bf16.xpose.msra.mxu0 %v6617
        %10407 = vmatpush.bf16.xpose.msra.mxu0 %v6614
        %10408 = vmatpush.bf16.xpose.msra.mxu0 %v6611
        %10409 = vmatpush.bf16.xpose.msra.mxu0 %v6608
        %10410 = vmatpush.bf16.xpose.msra.mxu0 %v6605
        %10411 = vmatpush.bf16.xpose.msra.mxu0 %v6602
        %10412 = vmatpush.bf16.xpose.msra.mxu0 %v6599
        %10413 = vmatmul.bf16.gmra.mxu0 %v10358
        %v10414 = vpop.f32.mrf.mxu0
        %v10415 = vadd.f32 0.0, %v10414
        %v10416 = vpop.f32.mrf.mxu0
        %v10417 = vadd.f32 0.0, %v10416
        %10418 = vmatmul.bf16.gmra.mxu0 %v10361
        %v10419 = vpop.f32.mrf.mxu0
        %v10420 = vadd.f32 0.0, %v10419
        %v10421 = vpop.f32.mrf.mxu0
        %v10422 = vadd.f32 0.0, %v10421
        %10423 = vmatmul.bf16.gmra.mxu0 %v10364
        %v10424 = vpop.f32.mrf.mxu0
        %v10425 = vadd.f32 0.0, %v10424
        %v10426 = vpop.f32.mrf.mxu0
        %v10427 = vadd.f32 0.0, %v10426
        %10428 = vmatmul.bf16.gmra.mxu0 %v10367
        %v10429 = vpop.f32.mrf.mxu0
        %v10430 = vadd.f32 0.0, %v10429
        %v10431 = vpop.f32.mrf.mxu0
        %v10432 = vadd.f32 0.0, %v10431
        %10433 = vmatmul.bf16.gmra.mxu0 %v10370
        %v10434 = vpop.f32.mrf.mxu0
        %v10435 = vadd.f32 0.0, %v10434
        %v10436 = vpop.f32.mrf.mxu0
        %v10437 = vadd.f32 0.0, %v10436
        %10438 = vmatmul.bf16.gmra.mxu0 %v10373
        %v10439 = vpop.f32.mrf.mxu0
        %v10440 = vadd.f32 0.0, %v10439
        %v10441 = vpop.f32.mrf.mxu0
        %v10442 = vadd.f32 0.0, %v10441
        %10443 = vmatmul.bf16.gmra.mxu0 %v10376
        %v10444 = vpop.f32.mrf.mxu0
        %v10445 = vadd.f32 0.0, %v10444
        %v10446 = vpop.f32.mrf.mxu0
        %v10447 = vadd.f32 0.0, %v10446
        %10448 = vmatmul.bf16.gmra.mxu0 %v10379
        %v10449 = vpop.f32.mrf.mxu0
        %v10450 = vadd.f32 0.0, %v10449
        %v10451 = vpop.f32.mrf.mxu0
        %v10452 = vadd.f32 0.0, %v10451
        %10453 = vdwg.mxu0
        %10454 = vmatpush.bf16.xpose.msra.mxu0 %v10403
        %10455 = vmatpush.bf16.xpose.msra.mxu0 %v10400
        %10456 = vmatpush.bf16.xpose.msra.mxu0 %v10397
        %10457 = vmatpush.bf16.xpose.msra.mxu0 %v10394
        %10458 = vmatpush.bf16.xpose.msra.mxu0 %v10391
        %10459 = vmatpush.bf16.xpose.msra.mxu0 %v10388
        %10460 = vmatpush.bf16.xpose.msra.mxu0 %v10385
        %10461 = vmatpush.bf16.xpose.msra.mxu0 %v10382
        %10462 = vmatmul.bf16.gmra.mxu0 %v10358
        %v10463 = vpop.f32.mrf.mxu0
        %v10464 = vadd.f32 0.0, %v10463
        %v10465 = vpop.f32.mrf.mxu0
        %v10466 = vadd.f32 0.0, %v10465
        %10467 = vmatmul.bf16.gmra.mxu0 %v10361
        %v10468 = vpop.f32.mrf.mxu0
        %v10469 = vadd.f32 0.0, %v10468
        %v10470 = vpop.f32.mrf.mxu0
        %v10471 = vadd.f32 0.0, %v10470
        %10472 = vmatmul.bf16.gmra.mxu0 %v10364
        %v10473 = vpop.f32.mrf.mxu0
        %v10474 = vadd.f32 0.0, %v10473
        %v10475 = vpop.f32.mrf.mxu0
        %v10476 = vadd.f32 0.0, %v10475
        %10477 = vmatmul.bf16.gmra.mxu0 %v10367
        %v10478 = vpop.f32.mrf.mxu0
        %v10479 = vadd.f32 0.0, %v10478
        %v10480 = vpop.f32.mrf.mxu0
        %v10481 = vadd.f32 0.0, %v10480
        %10482 = vmatmul.bf16.gmra.mxu0 %v10370
        %v10483 = vpop.f32.mrf.mxu0
        %v10484 = vadd.f32 0.0, %v10483
        %v10485 = vpop.f32.mrf.mxu0
        %v10486 = vadd.f32 0.0, %v10485
        %10487 = vmatmul.bf16.gmra.mxu0 %v10373
        %v10488 = vpop.f32.mrf.mxu0
        %v10489 = vadd.f32 0.0, %v10488
        %v10490 = vpop.f32.mrf.mxu0
        %v10491 = vadd.f32 0.0, %v10490
        %10492 = vmatmul.bf16.gmra.mxu0 %v10376
        %v10493 = vpop.f32.mrf.mxu0
        %v10494 = vadd.f32 0.0, %v10493
        %v10495 = vpop.f32.mrf.mxu0
        %v10496 = vadd.f32 0.0, %v10495
        %10497 = vmatmul.bf16.gmra.mxu0 %v10379
        %v10498 = vpop.f32.mrf.mxu0
        %v10499 = vadd.f32 0.0, %v10498
        %v10500 = vpop.f32.mrf.mxu0
        %v10501 = vadd.f32 0.0, %v10500
        %10502 = vdwg.mxu0
        %v10503 = vsel %vm7041, %v10415, -inf
        %v10504 = vsel %vm7042, %v10464, -inf
        %v10505 = vsel %vm7043, %v10417, -inf
        %v10506 = vsel %vm7044, %v10466, -inf
        %v10507 = vsel %vm7045, %v10420, -inf
        %v10508 = vsel %vm7046, %v10469, -inf
        %v10509 = vsel %vm7047, %v10422, -inf
        %v10510 = vsel %vm7048, %v10471, -inf
        %v10511 = vsel %vm7049, %v10425, -inf
        %v10512 = vsel %vm7050, %v10474, -inf
        %v10513 = vsel %vm7051, %v10427, -inf
        %v10514 = vsel %vm7052, %v10476, -inf
        %v10515 = vsel %vm7053, %v10430, -inf
        %v10516 = vsel %vm7054, %v10479, -inf
        %v10517 = vsel %vm7055, %v10432, -inf
        %v10518 = vsel %vm7056, %v10481, -inf
        %v10519 = vsel %vm7057, %v10435, -inf
        %v10520 = vsel %vm7058, %v10484, -inf
        %v10521 = vsel %vm7059, %v10437, -inf
        %v10522 = vsel %vm7060, %v10486, -inf
        %v10523 = vsel %vm7061, %v10440, -inf
        %v10524 = vsel %vm7062, %v10489, -inf
        %v10525 = vsel %vm7063, %v10442, -inf
        %v10526 = vsel %vm7064, %v10491, -inf
        %v10527 = vsel %vm7065, %v10445, -inf
        %v10528 = vsel %vm7066, %v10494, -inf
        %v10529 = vsel %vm7067, %v10447, -inf
        %v10530 = vsel %vm7068, %v10496, -inf
        %v10531 = vsel %vm7069, %v10450, -inf
        %v10532 = vsel %vm7070, %v10499, -inf
        %v10533 = vsel %vm7071, %v10452, -inf
        %v10534 = vsel %vm7072, %v10501, -inf
        %v10535 = vmax.f32 %v10503, %v10504
        %10536 = vmax.xlane.f32.xlu0 %v10535
        %v10537 = vpop.xlane.xlu0 %10536
        %v10538 = vmax.f32 %v10505, %v10506
        %10539 = vmax.xlane.f32.xlu0 %v10538
        %v10540 = vpop.xlane.xlu0 %10539
        %v10541 = vmax.f32 %v10507, %v10508
        %10542 = vmax.xlane.f32.xlu0 %v10541
        %v10543 = vpop.xlane.xlu0 %10542
        %v10544 = vmax.f32 %v10509, %v10510
        %10545 = vmax.xlane.f32.xlu0 %v10544
        %v10546 = vpop.xlane.xlu0 %10545
        %v10547 = vmax.f32 %v10511, %v10512
        %10548 = vmax.xlane.f32.xlu0 %v10547
        %v10549 = vpop.xlane.xlu0 %10548
        %v10550 = vmax.f32 %v10513, %v10514
        %10551 = vmax.xlane.f32.xlu0 %v10550
        %v10552 = vpop.xlane.xlu0 %10551
        %v10553 = vmax.f32 %v10515, %v10516
        %10554 = vmax.xlane.f32.xlu0 %v10553
        %v10555 = vpop.xlane.xlu0 %10554
        %v10556 = vmax.f32 %v10517, %v10518
        %10557 = vmax.xlane.f32.xlu0 %v10556
        %v10558 = vpop.xlane.xlu0 %10557
        %v10559 = vmax.f32 %v10519, %v10520
        %10560 = vmax.xlane.f32.xlu0 %v10559
        %v10561 = vpop.xlane.xlu0 %10560
        %v10562 = vmax.f32 %v10521, %v10522
        %10563 = vmax.xlane.f32.xlu0 %v10562
        %v10564 = vpop.xlane.xlu0 %10563
        %v10565 = vmax.f32 %v10523, %v10524
        %10566 = vmax.xlane.f32.xlu0 %v10565
        %v10567 = vpop.xlane.xlu0 %10566
        %v10568 = vmax.f32 %v10525, %v10526
        %10569 = vmax.xlane.f32.xlu0 %v10568
        %v10570 = vpop.xlane.xlu0 %10569
        %v10571 = vmax.f32 %v10527, %v10528
        %10572 = vmax.xlane.f32.xlu0 %v10571
        %v10573 = vpop.xlane.xlu0 %10572
        %v10574 = vmax.f32 %v10529, %v10530
        %10575 = vmax.xlane.f32.xlu0 %v10574
        %v10576 = vpop.xlane.xlu0 %10575
        %v10577 = vmax.f32 %v10531, %v10532
        %10578 = vmax.xlane.f32.xlu0 %v10577
        %v10579 = vpop.xlane.xlu0 %10578
        %v10580 = vmax.f32 %v10533, %v10534
        %10581 = vmax.xlane.f32.xlu0 %v10580
        %v10582 = vpop.xlane.xlu0 %10581
        %v10583 = vsub.f32 %v10503, %v10537
        %v10584 = vsub.f32 %v10504, %v10537
        %v10585 = vsub.f32 %v10505, %v10540
        %v10586 = vsub.f32 %v10506, %v10540
        %v10587 = vsub.f32 %v10507, %v10543
        %v10588 = vsub.f32 %v10508, %v10543
        %v10589 = vsub.f32 %v10509, %v10546
        %v10590 = vsub.f32 %v10510, %v10546
        %v10591 = vsub.f32 %v10511, %v10549
        %v10592 = vsub.f32 %v10512, %v10549
        %v10593 = vsub.f32 %v10513, %v10552
        %v10594 = vsub.f32 %v10514, %v10552
        %v10595 = vsub.f32 %v10515, %v10555
        %v10596 = vsub.f32 %v10516, %v10555
        %v10597 = vsub.f32 %v10517, %v10558
        %v10598 = vsub.f32 %v10518, %v10558
        %v10599 = vsub.f32 %v10519, %v10561
        %v10600 = vsub.f32 %v10520, %v10561
        %v10601 = vsub.f32 %v10521, %v10564
        %v10602 = vsub.f32 %v10522, %v10564
        %v10603 = vsub.f32 %v10523, %v10567
        %v10604 = vsub.f32 %v10524, %v10567
        %v10605 = vsub.f32 %v10525, %v10570
        %v10606 = vsub.f32 %v10526, %v10570
        %v10607 = vsub.f32 %v10527, %v10573
        %v10608 = vsub.f32 %v10528, %v10573
        %v10609 = vsub.f32 %v10529, %v10576
        %v10610 = vsub.f32 %v10530, %v10576
        %v10611 = vsub.f32 %v10531, %v10579
        %v10612 = vsub.f32 %v10532, %v10579
        %v10613 = vsub.f32 %v10533, %v10582
        %v10614 = vsub.f32 %v10534, %v10582
        %v10615 = vmul.f32 %v10583, 1.442695
        %v10616 = vpow.pop %v10615
        %v10617 = vmul.f32 %v10584, 1.442695
        %v10618 = vpow.pop %v10617
        %v10619 = vmul.f32 %v10585, 1.442695
        %v10620 = vpow.pop %v10619
        %v10621 = vmul.f32 %v10586, 1.442695
        %v10622 = vpow.pop %v10621
        %v10623 = vmul.f32 %v10587, 1.442695
        %v10624 = vpow.pop %v10623
        %v10625 = vmul.f32 %v10588, 1.442695
        %v10626 = vpow.pop %v10625
        %v10627 = vmul.f32 %v10589, 1.442695
        %v10628 = vpow.pop %v10627
        %v10629 = vmul.f32 %v10590, 1.442695
        %v10630 = vpow.pop %v10629
        %v10631 = vmul.f32 %v10591, 1.442695
        %v10632 = vpow.pop %v10631
        %v10633 = vmul.f32 %v10592, 1.442695
        %v10634 = vpow.pop %v10633
        %v10635 = vmul.f32 %v10593, 1.442695
        %v10636 = vpow.pop %v10635
        %v10637 = vmul.f32 %v10594, 1.442695
        %v10638 = vpow.pop %v10637
        %v10639 = vmul.f32 %v10595, 1.442695
        %v10640 = vpow.pop %v10639
        %v10641 = vmul.f32 %v10596, 1.442695
        %v10642 = vpow.pop %v10641
        %v10643 = vmul.f32 %v10597, 1.442695
        %v10644 = vpow.pop %v10643
        %v10645 = vmul.f32 %v10598, 1.442695
        %v10646 = vpow.pop %v10645
        %v10647 = vmul.f32 %v10599, 1.442695
        %v10648 = vpow.pop %v10647
        %v10649 = vmul.f32 %v10600, 1.442695
        %v10650 = vpow.pop %v10649
        %v10651 = vmul.f32 %v10601, 1.442695
        %v10652 = vpow.pop %v10651
        %v10653 = vmul.f32 %v10602, 1.442695
        %v10654 = vpow.pop %v10653
        %v10655 = vmul.f32 %v10603, 1.442695
        %v10656 = vpow.pop %v10655
        %v10657 = vmul.f32 %v10604, 1.442695
        %v10658 = vpow.pop %v10657
        %v10659 = vmul.f32 %v10605, 1.442695
        %v10660 = vpow.pop %v10659
        %v10661 = vmul.f32 %v10606, 1.442695
        %v10662 = vpow.pop %v10661
        %v10663 = vmul.f32 %v10607, 1.442695
        %v10664 = vpow.pop %v10663
        %v10665 = vmul.f32 %v10608, 1.442695
        %v10666 = vpow.pop %v10665
        %v10667 = vmul.f32 %v10609, 1.442695
        %v10668 = vpow.pop %v10667
        %v10669 = vmul.f32 %v10610, 1.442695
        %v10670 = vpow.pop %v10669
        %v10671 = vmul.f32 %v10611, 1.442695
        %v10672 = vpow.pop %v10671
        %v10673 = vmul.f32 %v10612, 1.442695
        %v10674 = vpow.pop %v10673
        %v10675 = vmul.f32 %v10613, 1.442695
        %v10676 = vpow.pop %v10675
        %v10677 = vmul.f32 %v10614, 1.442695
        %v10678 = vpow.pop %v10677
        %v10679 = vadd.f32 %v10616, %v10618
        %10680 = vadd.xlane.f32.xlu0 %v10679
        %v10681 = vpop.xlane.xlu0 %10680
        %v10682 = vadd.f32 %v10620, %v10622
        %10683 = vadd.xlane.f32.xlu0 %v10682
        %v10684 = vpop.xlane.xlu0 %10683
        %v10685 = vadd.f32 %v10624, %v10626
        %10686 = vadd.xlane.f32.xlu0 %v10685
        %v10687 = vpop.xlane.xlu0 %10686
        %v10688 = vadd.f32 %v10628, %v10630
        %10689 = vadd.xlane.f32.xlu0 %v10688
        %v10690 = vpop.xlane.xlu0 %10689
        %v10691 = vadd.f32 %v10632, %v10634
        %10692 = vadd.xlane.f32.xlu0 %v10691
        %v10693 = vpop.xlane.xlu0 %10692
        %v10694 = vadd.f32 %v10636, %v10638
        %10695 = vadd.xlane.f32.xlu0 %v10694
        %v10696 = vpop.xlane.xlu0 %10695
        %v10697 = vadd.f32 %v10640, %v10642
        %10698 = vadd.xlane.f32.xlu0 %v10697
        %v10699 = vpop.xlane.xlu0 %10698
        %v10700 = vadd.f32 %v10644, %v10646
        %10701 = vadd.xlane.f32.xlu0 %v10700
        %v10702 = vpop.xlane.xlu0 %10701
        %v10703 = vadd.f32 %v10648, %v10650
        %10704 = vadd.xlane.f32.xlu0 %v10703
        %v10705 = vpop.xlane.xlu0 %10704
        %v10706 = vadd.f32 %v10652, %v10654
        %10707 = vadd.xlane.f32.xlu0 %v10706
        %v10708 = vpop.xlane.xlu0 %10707
        %v10709 = vadd.f32 %v10656, %v10658
        %10710 = vadd.xlane.f32.xlu0 %v10709
        %v10711 = vpop.xlane.xlu0 %10710
        %v10712 = vadd.f32 %v10660, %v10662
        %10713 = vadd.xlane.f32.xlu0 %v10712
        %v10714 = vpop.xlane.xlu0 %10713
        %v10715 = vadd.f32 %v10664, %v10666
        %10716 = vadd.xlane.f32.xlu0 %v10715
        %v10717 = vpop.xlane.xlu0 %10716
        %v10718 = vadd.f32 %v10668, %v10670
        %10719 = vadd.xlane.f32.xlu0 %v10718
        %v10720 = vpop.xlane.xlu0 %10719
        %v10721 = vadd.f32 %v10672, %v10674
        %10722 = vadd.xlane.f32.xlu0 %v10721
        %v10723 = vpop.xlane.xlu0 %10722
        %v10724 = vadd.f32 %v10676, %v10678
        %10725 = vadd.xlane.f32.xlu0 %v10724
        %v10726 = vpop.xlane.xlu0 %10725
        %v10727 = vpack.c.bf16 %v10620, %v10616
        %v10728 = vpack.c.bf16 %v10622, %v10618
        %v10729 = vpack.c.bf16 %v10628, %v10624
        %v10730 = vpack.c.bf16 %v10630, %v10626
        %v10731 = vpack.c.bf16 %v10636, %v10632
        %v10732 = vpack.c.bf16 %v10638, %v10634
        %v10733 = vpack.c.bf16 %v10644, %v10640
        %v10734 = vpack.c.bf16 %v10646, %v10642
        %v10735 = vpack.c.bf16 %v10652, %v10648
        %v10736 = vpack.c.bf16 %v10654, %v10650
        %v10737 = vpack.c.bf16 %v10660, %v10656
        %v10738 = vpack.c.bf16 %v10662, %v10658
        %v10739 = vpack.c.bf16 %v10668, %v10664
        %v10740 = vpack.c.bf16 %v10670, %v10666
        %v10741 = vpack.c.bf16 %v10676, %v10672
        %v10742 = vpack.c.bf16 %v10678, %v10674
        %10743 = vrot.lane.b32.xlu0 %v10179, 64
        %v10744 = vpop.permute.xlu0 %10743
        %10745 = vrot.lane.b32.xlu0 %v10180, 64
        %v10746 = vpop.permute.xlu0 %10745
        %10747 = vrot.lane.b32.xlu0 %v10181, 64
        %v10748 = vpop.permute.xlu0 %10747
        %10749 = vrot.lane.b32.xlu0 %v10182, 64
        %v10750 = vpop.permute.xlu0 %10749
        %10751 = vrot.lane.b32.xlu0 %v10183, 64
        %v10752 = vpop.permute.xlu0 %10751
        %10753 = vrot.lane.b32.xlu0 %v10184, 64
        %v10754 = vpop.permute.xlu0 %10753
        %10755 = vrot.lane.b32.xlu0 %v10185, 64
        %v10756 = vpop.permute.xlu0 %10755
        %10757 = vrot.lane.b32.xlu0 %v10186, 64
        %v10758 = vpop.permute.xlu0 %10757
        %10767 = vmatpush.bf16.msra.mxu0 %v6822
        %10768 = vmatpush.bf16.msra.mxu0 %v6820
        %10769 = vmatpush.bf16.msra.mxu0 %v6818
        %10770 = vmatpush.bf16.msra.mxu0 %v6816
        %10771 = vmatpush.bf16.msra.mxu0 %v6814
        %10772 = vmatpush.bf16.msra.mxu0 %v6812
        %10773 = vmatpush.bf16.msra.mxu0 %v6810
        %10774 = vmatpush.bf16.msra.mxu0 %v6808
        %10775 = vmatmul.bf16.gmra.mxu0 %v10727
        %v10776 = vpop.f32.mrf.mxu0
        %v10777 = vadd.f32 0.0, %v10776
        %v10778 = vpop.f32.mrf.mxu0
        %v10779 = vadd.f32 0.0, %v10778
        %10780 = vmatmul.bf16.gmra.mxu0 %v10729
        %v10781 = vpop.f32.mrf.mxu0
        %v10782 = vadd.f32 0.0, %v10781
        %v10783 = vpop.f32.mrf.mxu0
        %v10784 = vadd.f32 0.0, %v10783
        %10785 = vmatmul.bf16.gmra.mxu0 %v10731
        %v10786 = vpop.f32.mrf.mxu0
        %v10787 = vadd.f32 0.0, %v10786
        %v10788 = vpop.f32.mrf.mxu0
        %v10789 = vadd.f32 0.0, %v10788
        %10790 = vmatmul.bf16.gmra.mxu0 %v10733
        %v10791 = vpop.f32.mrf.mxu0
        %v10792 = vadd.f32 0.0, %v10791
        %v10793 = vpop.f32.mrf.mxu0
        %v10794 = vadd.f32 0.0, %v10793
        %10795 = vmatmul.bf16.gmra.mxu0 %v10735
        %v10796 = vpop.f32.mrf.mxu0
        %v10797 = vadd.f32 0.0, %v10796
        %v10798 = vpop.f32.mrf.mxu0
        %v10799 = vadd.f32 0.0, %v10798
        %10800 = vmatmul.bf16.gmra.mxu0 %v10737
        %v10801 = vpop.f32.mrf.mxu0
        %v10802 = vadd.f32 0.0, %v10801
        %v10803 = vpop.f32.mrf.mxu0
        %v10804 = vadd.f32 0.0, %v10803
        %10805 = vmatmul.bf16.gmra.mxu0 %v10739
        %v10806 = vpop.f32.mrf.mxu0
        %v10807 = vadd.f32 0.0, %v10806
        %v10808 = vpop.f32.mrf.mxu0
        %v10809 = vadd.f32 0.0, %v10808
        %10810 = vmatmul.bf16.gmra.mxu0 %v10741
        %v10811 = vpop.f32.mrf.mxu0
        %v10812 = vadd.f32 0.0, %v10811
        %v10813 = vpop.f32.mrf.mxu0
        %v10814 = vadd.f32 0.0, %v10813
        %10815 = vdwg.mxu0
        %10816 = vmatpush.bf16.msra.mxu0 %v10758
        %10817 = vmatpush.bf16.msra.mxu0 %v10756
        %10818 = vmatpush.bf16.msra.mxu0 %v10754
        %10819 = vmatpush.bf16.msra.mxu0 %v10752
        %10820 = vmatpush.bf16.msra.mxu0 %v10750
        %10821 = vmatpush.bf16.msra.mxu0 %v10748
        %10822 = vmatpush.bf16.msra.mxu0 %v10746
        %10823 = vmatpush.bf16.msra.mxu0 %v10744
        %10824 = vmatmul.bf16.gmra.mxu0 %v10728
        %v10825 = vpop.f32.mrf.mxu0
        %v10826 = vadd.f32 %v10777, %v10825
        %v10827 = vpop.f32.mrf.mxu0
        %v10828 = vadd.f32 %v10779, %v10827
        %10829 = vmatmul.bf16.gmra.mxu0 %v10730
        %v10830 = vpop.f32.mrf.mxu0
        %v10831 = vadd.f32 %v10782, %v10830
        %v10832 = vpop.f32.mrf.mxu0
        %v10833 = vadd.f32 %v10784, %v10832
        %10834 = vmatmul.bf16.gmra.mxu0 %v10732
        %v10835 = vpop.f32.mrf.mxu0
        %v10836 = vadd.f32 %v10787, %v10835
        %v10837 = vpop.f32.mrf.mxu0
        %v10838 = vadd.f32 %v10789, %v10837
        %10839 = vmatmul.bf16.gmra.mxu0 %v10734
        %v10840 = vpop.f32.mrf.mxu0
        %v10841 = vadd.f32 %v10792, %v10840
        %v10842 = vpop.f32.mrf.mxu0
        %v10843 = vadd.f32 %v10794, %v10842
        %10844 = vmatmul.bf16.gmra.mxu0 %v10736
        %v10845 = vpop.f32.mrf.mxu0
        %v10846 = vadd.f32 %v10797, %v10845
        %v10847 = vpop.f32.mrf.mxu0
        %v10848 = vadd.f32 %v10799, %v10847
        %10849 = vmatmul.bf16.gmra.mxu0 %v10738
        %v10850 = vpop.f32.mrf.mxu0
        %v10851 = vadd.f32 %v10802, %v10850
        %v10852 = vpop.f32.mrf.mxu0
        %v10853 = vadd.f32 %v10804, %v10852
        %10854 = vmatmul.bf16.gmra.mxu0 %v10740
        %v10855 = vpop.f32.mrf.mxu0
        %v10856 = vadd.f32 %v10807, %v10855
        %v10857 = vpop.f32.mrf.mxu0
        %v10858 = vadd.f32 %v10809, %v10857
        %10859 = vmatmul.bf16.gmra.mxu0 %v10742
        %v10860 = vpop.f32.mrf.mxu0
        %v10861 = vadd.f32 %v10812, %v10860
        %v10862 = vpop.f32.mrf.mxu0
        %v10863 = vadd.f32 %v10814, %v10862
        %10864 = vdwg.mxu0
        %v10865 = vrcp.pop %v10681
        %v10866 = vrcp.pop %v10684
        %v10867 = vrcp.pop %v10687
        %v10868 = vrcp.pop %v10690
        %v10869 = vrcp.pop %v10693
        %v10870 = vrcp.pop %v10696
        %v10871 = vrcp.pop %v10699
        %v10872 = vrcp.pop %v10702
        %v10873 = vrcp.pop %v10705
        %v10874 = vrcp.pop %v10708
        %v10875 = vrcp.pop %v10711
        %v10876 = vrcp.pop %v10714
        %v10877 = vrcp.pop %v10717
        %v10878 = vrcp.pop %v10720
        %v10879 = vrcp.pop %v10723
        %v10880 = vrcp.pop %v10726
        %v10881 = vmul.f32 %v10826, %v10865
        %v10882 = vmul.f32 %v10828, %v10866
        %v10883 = vmul.f32 %v10831, %v10867
        %v10884 = vmul.f32 %v10833, %v10868
        %v10885 = vmul.f32 %v10836, %v10869
        %v10886 = vmul.f32 %v10838, %v10870
        %v10887 = vmul.f32 %v10841, %v10871
        %v10888 = vmul.f32 %v10843, %v10872
        %v10889 = vmul.f32 %v10846, %v10873
        %v10890 = vmul.f32 %v10848, %v10874
        %v10891 = vmul.f32 %v10851, %v10875
        %v10892 = vmul.f32 %v10853, %v10876
        %v10893 = vmul.f32 %v10856, %v10877
        %v10894 = vmul.f32 %v10858, %v10878
        %v10895 = vmul.f32 %v10861, %v10879
        %v10896 = vmul.f32 %v10863, %v10880
        %10913 = vrot.lane.b32.xlu0 %v10881, 64
        %v10914 = vpop.permute.xlu0 %10913
        %10915 = vrot.lane.b32.xlu0 %v10882, 64
        %v10916 = vpop.permute.xlu0 %10915
        %10917 = vrot.lane.b32.xlu0 %v10883, 64
        %v10918 = vpop.permute.xlu0 %10917
        %10919 = vrot.lane.b32.xlu0 %v10884, 64
        %v10920 = vpop.permute.xlu0 %10919
        %10921 = vrot.lane.b32.xlu0 %v10885, 64
        %v10922 = vpop.permute.xlu0 %10921
        %10923 = vrot.lane.b32.xlu0 %v10886, 64
        %v10924 = vpop.permute.xlu0 %10923
        %10925 = vrot.lane.b32.xlu0 %v10887, 64
        %v10926 = vpop.permute.xlu0 %10925
        %10927 = vrot.lane.b32.xlu0 %v10888, 64
        %v10928 = vpop.permute.xlu0 %10927
        %10929 = vrot.lane.b32.xlu0 %v10889, 64
        %v10930 = vpop.permute.xlu0 %10929
        %10931 = vrot.lane.b32.xlu0 %v10890, 64
        %v10932 = vpop.permute.xlu0 %10931
        %10933 = vrot.lane.b32.xlu0 %v10891, 64
        %v10934 = vpop.permute.xlu0 %10933
        %10935 = vrot.lane.b32.xlu0 %v10892, 64
        %v10936 = vpop.permute.xlu0 %10935
        %10937 = vrot.lane.b32.xlu0 %v10893, 64
        %v10938 = vpop.permute.xlu0 %10937
        %10939 = vrot.lane.b32.xlu0 %v10894, 64
        %v10940 = vpop.permute.xlu0 %10939
        %10941 = vrot.lane.b32.xlu0 %v10895, 64
        %v10942 = vpop.permute.xlu0 %10941
        %10943 = vrot.lane.b32.xlu0 %v10896, 64
        %v10944 = vpop.permute.xlu0 %10943
        %v10961 = vsel %vm4379, %v10309, %v10914
        %v10962 = vsel %vm4379, %v10310, %v10916
        %v10963 = vsel %vm4379, %v10311, %v10918
        %v10964 = vsel %vm4379, %v10312, %v10920
        %v10965 = vsel %vm4379, %v10313, %v10922
        %v10966 = vsel %vm4379, %v10314, %v10924
        %v10967 = vsel %vm4379, %v10315, %v10926
        %v10968 = vsel %vm4379, %v10316, %v10928
        %v10969 = vsel %vm4379, %v10317, %v10930
        %v10970 = vsel %vm4379, %v10318, %v10932
        %v10971 = vsel %vm4379, %v10319, %v10934
        %v10972 = vsel %vm4379, %v10320, %v10936
        %v10973 = vsel %vm4379, %v10321, %v10938
        %v10974 = vsel %vm4379, %v10322, %v10940
        %v10975 = vsel %vm4379, %v10323, %v10942
        %v10976 = vsel %vm4379, %v10324, %v10944
        %v10977 = vpack.c.bf16 %v10961, %v10961
        %v10978 = vpack.c.bf16 %v10962, %v10962
        %v10979 = vpack.c.bf16 %v10963, %v10963
        %v10980 = vpack.c.bf16 %v10964, %v10964
        %v10981 = vpack.c.bf16 %v10965, %v10965
        %v10982 = vpack.c.bf16 %v10966, %v10966
        %v10983 = vpack.c.bf16 %v10967, %v10967
        %v10984 = vpack.c.bf16 %v10968, %v10968
        %v10985 = vpack.c.bf16 %v10969, %v10969
        %v10986 = vpack.c.bf16 %v10970, %v10970
        %v10987 = vpack.c.bf16 %v10971, %v10971
        %v10988 = vpack.c.bf16 %v10972, %v10972
        %v10989 = vpack.c.bf16 %v10973, %v10973
        %v10990 = vpack.c.bf16 %v10974, %v10974
        %v10991 = vpack.c.bf16 %v10975, %v10975
        %v10992 = vpack.c.bf16 %v10976, %v10976
        %10993 = vst [vmem:[%s180 + $0xc8] sm:$0xf] %v10977
        %10994 = vst [vmem:[%s180 + $0xd4] sm:$0xf] %v10978
        %10995 = vst [vmem:[%s180 + $0xe0] sm:$0xf] %v10979
        %10996 = vst [vmem:[%s180 + $0xec] sm:$0xf] %v10980
        %10997 = vst [vmem:[%s180 + $0xf8] sm:$0xf] %v10981
        %10998 = vst [vmem:[%s180 + $0x104] sm:$0xf] %v10982
        %10999 = vst [vmem:[%s180 + $0x110] sm:$0xf] %v10983
        %11000 = vst [vmem:[%s180 + $0x11c] sm:$0xf] %v10984
        %11001 = vst [vmem:[%s180 + $0x128] sm:$0xf] %v10985
        %11002 = vst [vmem:[%s180 + $0x134] sm:$0xf] %v10986
        %11003 = vst [vmem:[%s180 + $0x140] sm:$0xf] %v10987
        %11004 = vst [vmem:[%s180 + $0x14c] sm:$0xf] %v10988
        %11005 = vst [vmem:[%s180 + $0x158] sm:$0xf] %v10989
        %11006 = vst [vmem:[%s180 + $0x164] sm:$0xf] %v10990
        %11007 = vst [vmem:[%s180 + $0x170] sm:$0xf] %v10991
        %11008 = vst [vmem:[%s180 + $0x17c] sm:$0xf] %v10992
        %s11009 = sand.u32 %s75, 1
        %s11010 = scalar_lea.sflag [#allocation4], %s11009
        %s11011 = sand.u32 %s75, 1
        %s11012 = smul.addr %s11011, 384
        %s11013 = scalar_lea.vmem [#allocation7], %s11012
        // Predicated region
        $region37: #{tpu_custom_call.1} parent=27 // pred_check
          %p11014 = pneg %p85
        $region38: #{tpu_custom_call.1} parent=27 // pred_check_branch
          %11016 = sbr.rel (%p11014) target = $region40
        $region39: #{tpu_custom_call.1} parent=27 // pred_region
          %11018 = vsyncadd %s11010, 0
          %s11019 = smul.addr %s20, 96
          %s11020 = smul.addr %s11019, 4
          %s11021 = scalar_lea.hbm %s2, %s11020
          %s11022 = sshll.u32 %s11013, 4
          %s11023 = int_to_ptr.vmem [resolvable:$true] %s11022
          %s11024 = sshll.u32 %s11021, 4
          %s11025 = int_to_ptr.hbm [resolvable:$true] %s11024
          %11030 = dma.vmem_to_hbm [thread:$0]  %s11023, 6144, %s11025, %s11010, 192, 192, 12
        $region40: #{tpu_custom_call.1} parent=27 // pred_fallthru
          _
      $region28: #{tpu_custom_call.1} parent=5 // pred_fallthru
        _
      %p11031 = scmp.le.s32.totalorder 2, %s15
      // Predicated region
      $region41: #{tpu_custom_call.1} parent=5 // pred_check
        %p11032 = pneg %p11031
      $region42: #{tpu_custom_call.1} parent=5 // pred_check_branch
        %11034 = sbr.rel (%p11032) target = $region44
      $region43: #{tpu_custom_call.1} parent=5 // pred_region
        %s11035 = ssub.s32 %s15, 2
        // Predicated region
        $region45: #{tpu_custom_call.1} parent=43 // pred_check
          %p11036 = pneg %p91
        $region46: #{tpu_custom_call.1} parent=43 // pred_check_branch
          %11038 = sbr.rel (%p11036) target = $region48
        $region47: #{tpu_custom_call.1} parent=43 // pred_region
          %s11039 = sand.u32 %s76, 1
          %s11040 = scalar_lea.sflag [#allocation4], %s11039
          %s11041 = sand.u32 %s76, 1
          %s11042 = smul.addr %s11041, 384
          %s11043 = scalar_lea.vmem [#allocation7], %s11042
          %11045 = dma.done %s11040, 6144
        $region48: #{tpu_custom_call.1} parent=43 // pred_fallthru
          _
      $region44: #{tpu_custom_call.1} parent=5 // pred_fallthru
        _
    $region6: #{tpu_custom_call.1} parent=1 // loop_footer
      %s19 = sadd.s32 1, %s15
    $region7: #{tpu_custom_call.1} parent=1 // loop_footer_branch
      %14 = sbr.rel target = $region3
    $region8: #{tpu_custom_call.1} parent=1 // loop_exit
      _
    %11046 = vsyncpa [#allocation3], 1
    %s11047 = scalar_lea.sflag [#allocation3], 1
    %11048 = vsyncpa %s11047, 1
    %11049 = vsyncpa [#allocation6], 1
    %11050 = vsyncpa [#allocation4], 1
    %s11051 = scalar_lea.sflag [#allocation4], 1
    %11052 = vsyncpa %s11051, 1

</llo_original>
